<compile_context>
chip_gen: v7x
topology: tpu7x:2x2x1
jax: 0.10.0
libtpu: 0.0.40
codegen_flags: <defaults>
</compile_context>

<pallas_src>
import functools

import jax
import jax.numpy as jnp
from jax.experimental import pallas as pl
from jax.experimental.pallas import tpu as pltpu


def _attention_kernel(x_ref, xkp_ref, wq_ref, wk_ref, wv_ref, wo_ref,
                      bo_ref, g_ref, b_ref, o_ref, *, heads, d, r, eps):
    """One grid step = one batch element.

    x_ref   : (1, n, c)        tokens (row-major over the he*wi spatial grid)
    xkp_ref : (1, r, d, c)     xkp[0, p] = x rows p, p+r, p+2r, ...  (for the k-view)
    wq_ref  : (heads, c, d)    per-head Q projection
    wk_ref  : (heads, c, d)    per-head K projection
    wv_ref  : (heads, c, d)    per-head V projection
    wo_ref  : (heads, d, c)    per-head slice of the output projection
    bo_ref  : (1, c)           output-projection bias
    g_ref   : (1, c)           LayerNorm weight
    b_ref   : (1, c)           LayerNorm bias
    o_ref   : (1, n, c)        output tokens (LayerNorm(to_out(attn)) + x)
    """
    x = x_ref[0]                                  # (n, c)
    n = x.shape[0]
    c = x.shape[1]

    acc_out = jnp.zeros((n, c), dtype=jnp.float32)

    for head in range(heads):
        qh = jnp.dot(x, wq_ref[head], preferred_element_type=jnp.float32)   # (n, d)
        vh = jnp.dot(x, wv_ref[head], preferred_element_type=jnp.float32)   # (n, d)

        # Online softmax over the r column chunks of dots = q @ k.view(d, n).
        m_i = jnp.full((n, 1), -jnp.inf, dtype=jnp.float32)
        l_i = jnp.zeros((n, 1), dtype=jnp.float32)
        acc = jnp.zeros((n, d), dtype=jnp.float32)

        for p in range(r):
            xk = xkp_ref[0, p]                                               # (d, c)
            # k.view(b*h, d, n)[:, p*d:(p+1)*d] == (x[p::r, :] @ Wk_head)
            kblk = jnp.dot(xk, wk_ref[head],
                           preferred_element_type=jnp.float32)              # (d, d)
            s = jnp.dot(qh, kblk, preferred_element_type=jnp.float32)        # (n, d)
            vblk = vh[p * d:(p + 1) * d, :]                                  # (d, d)

            m_new = jnp.maximum(m_i, s.max(axis=-1, keepdims=True))
            alpha = jnp.exp(m_i - m_new)
            pexp = jnp.exp(s - m_new)
            l_i = alpha * l_i + pexp.sum(axis=-1, keepdims=True)
            acc = alpha * acc + jnp.dot(pexp, vblk,
                                        preferred_element_type=jnp.float32)
            m_i = m_new

        out_h = acc / l_i                                                    # (n, d)
        # to_out linear, accumulated per head: out_concat @ W_out^T
        acc_out = acc_out + jnp.dot(out_h, wo_ref[head],
                                    preferred_element_type=jnp.float32)      # (n, c)

    y = acc_out + bo_ref[...]                                                # + bias
    # LayerNorm(dim)  (PyTorch: biased variance, eps=1e-5, affine)
    mu = jnp.mean(y, axis=-1, keepdims=True)
    var = jnp.mean(jnp.square(y - mu), axis=-1, keepdims=True)
    y = (y - mu) * jax.lax.rsqrt(var + eps)
    y = y * g_ref[...] + b_ref[...]
    # Residual (x here is exactly x_ori in the token layout).
    o_ref[0] = (y + x).astype(o_ref.dtype)


def attention_forward(x, w_qkv, w_out, b_out, gamma, beta, *,
                      heads, dim_head, eps=1e-5):
    """x: (bt, c, he, wi); w_qkv: (3*heads*dim_head, c); w_out: (c, heads*dim_head)."""
    bt, c, he, wi = x.shape
    n = he * wi
    inner = heads * dim_head
    assert w_qkv.shape == (3 * inner, c)
    assert w_out.shape == (c, inner)
    # TODO(synk): the chunked k-view decomposition requires (he*wi) % dim_head == 0;
    # a remainder chunk would need a masked tail.
    assert n % dim_head == 0
    r = n // dim_head

    # NCHW -> token layout (== x.permute(0, 2, 3, 1).view(bt, he*wi, c)).
    x_seq = jnp.transpose(x, (0, 2, 3, 1)).reshape(bt, n, c)
    # Pre-gathered rows for the k flat-view: x_kperm[b, p, i, :] = x_seq[b, i*r + p, :].
    x_kperm = x_seq.reshape(bt, dim_head, r, c).transpose(0, 2, 1, 3)        # (bt, r, d, c)

    # Per-head weight slabs (tiny, computed once; lets the kernel use only
    # leading-dim ref indexing).
    wq_h = w_qkv[:inner].reshape(heads, dim_head, c).transpose(0, 2, 1)       # (h, c, d)
    wk_h = w_qkv[inner:2 * inner].reshape(heads, dim_head, c).transpose(0, 2, 1)
    wv_h = w_qkv[2 * inner:].reshape(heads, dim_head, c).transpose(0, 2, 1)
    wo_h = jnp.transpose(w_out).reshape(heads, dim_head, c)                   # (h, d, c)

    kernel = functools.partial(_attention_kernel,
                               heads=heads, d=dim_head, r=r, eps=eps)

    out_seq = pl.pallas_call(
        kernel,
        out_shape=jax.ShapeDtypeStruct((bt, n, c), jnp.float32),
        grid=(bt,),
        in_specs=[
            pl.BlockSpec((1, n, c), lambda i: (i, 0, 0)),
            pl.BlockSpec((1, r, dim_head, c), lambda i: (i, 0, 0, 0)),
            pl.BlockSpec((heads, c, dim_head), lambda i: (0, 0, 0)),
            pl.BlockSpec((heads, c, dim_head), lambda i: (0, 0, 0)),
            pl.BlockSpec((heads, c, dim_head), lambda i: (0, 0, 0)),
            pl.BlockSpec((heads, dim_head, c), lambda i: (0, 0, 0)),
            pl.BlockSpec((1, c), lambda i: (0, 0)),
            pl.BlockSpec((1, c), lambda i: (0, 0)),
            pl.BlockSpec((1, c), lambda i: (0, 0)),
        ],
        out_specs=pl.BlockSpec((1, n, c), lambda i: (i, 0, 0)),
        compiler_params=pltpu.CompilerParams(
            dimension_semantics=("parallel",)),
    )(x_seq, x_kperm, wq_h, wk_h, wv_h, wo_h,
      b_out.reshape(1, c), gamma.reshape(1, c), beta.reshape(1, c))

    # Token layout -> NCHW (residual already added in-kernel).
    return jnp.transpose(out_seq.reshape(bt, he, wi, c), (0, 3, 1, 2))


def _reference_forward(x, w_qkv, w_out, b_out, gamma, beta, *,
                       heads, dim_head, eps=1e-5):
    """Plain-JAX replica of the PyTorch Attention.forward (quirks included)."""
    hp = jax.lax.Precision.HIGHEST
    bt, c, he, wi = x.shape
    n = he * wi
    inner = heads * dim_head
    xs = jnp.transpose(x, (0, 2, 3, 1)).reshape(bt, n, c)
    qkv = jnp.einsum("bnc,fc->bnf", xs, w_qkv, precision=hp)
    q, k, v = jnp.split(qkv, 3, axis=-1)

    def split_heads(t):
        return t.reshape(bt, n, heads, dim_head).transpose(0, 2, 1, 3)

    q = split_heads(q).reshape(bt * heads, n, dim_head)
    k = split_heads(k).reshape(bt * heads, dim_head, n)   # flat view, NOT a transpose
    v = split_heads(v).reshape(bt * heads, n, dim_head)
    dots = jnp.einsum("bnd,bdm->bnm", q, k, precision=hp)  # module never applies scale
    attn = jax.nn.softmax(dots, axis=-1)
    out = jnp.einsum("bnm,bmd->bnd", attn, v, precision=hp)
    out = out.reshape(bt, heads, n, dim_head).transpose(0, 2, 1, 3).reshape(bt, n, inner)
    out = jnp.einsum("bni,ci->bnc", out, w_out, precision=hp) + b_out
    mu = out.mean(-1, keepdims=True)
    var = jnp.mean((out - mu) ** 2, axis=-1, keepdims=True)
    out = (out - mu) / jnp.sqrt(var + eps) * gamma + beta
    return jnp.transpose(out.reshape(bt, he, wi, c), (0, 3, 1, 2)) + x


if __name__ == "__main__":
    key = jax.random.PRNGKey(0)
    ks = jax.random.split(key, 6)

    # Small shapes consistent with the module: x is (bt, dim, he, wi).
    bt, dim, he, wi = 2, 128, 8, 8
    heads, dim_head = 4, 16
    inner = heads * dim_head

    x = jax.random.normal(ks[0], (bt, dim, he, wi), dtype=jnp.float32)
    w_qkv = 0.1 * jax.random.normal(ks[1], (3 * inner, dim), dtype=jnp.float32)
    w_out = 0.1 * jax.random.normal(ks[2], (dim, inner), dtype=jnp.float32)
    b_out = 0.1 * jax.random.normal(ks[3], (dim,), dtype=jnp.float32)
    gamma = 1.0 + 0.1 * jax.random.normal(ks[4], (dim,), dtype=jnp.float32)
    beta = 0.1 * jax.random.normal(ks[5], (dim,), dtype=jnp.float32)

    out = attention_forward(x, w_qkv, w_out, b_out, gamma, beta,
                            heads=heads, dim_head=dim_head)
    out = jax.block_until_ready(out)
    assert out.shape == (bt, dim, he, wi), out.shape

    ref = jax.block_until_ready(
        _reference_forward(x, w_qkv, w_out, b_out, gamma, beta,
                           heads=heads, dim_head=dim_head))
    max_err = float(jnp.max(jnp.abs(out - ref)))
    assert jnp.allclose(out, ref, atol=1e-3, rtol=1e-3), max_err

    print("KERNEL_OK")
</pallas_src>

<mosaic_0001>
module attributes {stable_mosaic.version = 11 : i64} {
  func.func @_attention_kernel(%arg0: i32, %arg1: memref<1x64x128xf32, #tpu.memory_space<vmem>>, %arg2: memref<1x4x16x128xf32, #tpu.memory_space<vmem>>, %arg3: memref<4x128x16xf32, #tpu.memory_space<vmem>>, %arg4: memref<4x128x16xf32, #tpu.memory_space<vmem>>, %arg5: memref<4x128x16xf32, #tpu.memory_space<vmem>>, %arg6: memref<4x16x128xf32, #tpu.memory_space<vmem>>, %arg7: memref<1x128xf32, #tpu.memory_space<vmem>>, %arg8: memref<1x128xf32, #tpu.memory_space<vmem>>, %arg9: memref<1x128xf32, #tpu.memory_space<vmem>>, %arg10: memref<1x64x128xf32, #tpu.memory_space<vmem>>) attributes {dimension_semantics = [#tpu.dimension_semantics<parallel>], iteration_bounds = array<i64: 2>, scalar_prefetch = 0 : i64, scratch_operands = 0 : i64, tpu.core_type = #tpu.core_type<tc>, window_params = [{transform_indices = @transform_0, window_bounds = array<i64: 1, 64, 128>}, {transform_indices = @transform_1, window_bounds = array<i64: 1, 4, 16, 128>}, {pipeline_mode = #tpu.pipeline_mode<synchronous>, transform_indices = @transform_2, window_bounds = array<i64: 4, 128, 16>}, {pipeline_mode = #tpu.pipeline_mode<synchronous>, transform_indices = @transform_3, window_bounds = array<i64: 4, 128, 16>}, {pipeline_mode = #tpu.pipeline_mode<synchronous>, transform_indices = @transform_4, window_bounds = array<i64: 4, 128, 16>}, {pipeline_mode = #tpu.pipeline_mode<synchronous>, transform_indices = @transform_5, window_bounds = array<i64: 4, 16, 128>}, {pipeline_mode = #tpu.pipeline_mode<synchronous>, transform_indices = @transform_6, window_bounds = array<i64: 1, 128>}, {pipeline_mode = #tpu.pipeline_mode<synchronous>, transform_indices = @transform_7, window_bounds = array<i64: 1, 128>}, {pipeline_mode = #tpu.pipeline_mode<synchronous>, transform_indices = @transform_8, window_bounds = array<i64: 1, 128>}, {transform_indices = @transform_9, window_bounds = array<i64: 1, 64, 128>}]} {
    %c0 = arith.constant 0 : index
    %c0_0 = arith.constant 0 : index
    %c0_1 = arith.constant 0 : index
    %0 = vector.load %arg1[%c0, %c0_0, %c0_1] : memref<1x64x128xf32, #tpu.memory_space<vmem>>, vector<1x64x128xf32>
    %1 = vector.shape_cast %0 : vector<1x64x128xf32> to vector<64x128xf32>
    %cst = arith.constant 0.000000e+00 : f32
    %2 = vector.broadcast %cst : f32 to vector<64x128xf32>
    %c0_2 = arith.constant 0 : index
    %c0_3 = arith.constant 0 : index
    %c0_4 = arith.constant 0 : index
    %3 = vector.load %arg3[%c0_2, %c0_3, %c0_4] : memref<4x128x16xf32, #tpu.memory_space<vmem>>, vector<1x128x16xf32>
    %4 = vector.shape_cast %3 : vector<1x128x16xf32> to vector<128x16xf32>
    %cst_5 = arith.constant dense<0.000000e+00> : vector<64x16xf32>
    %5 = tpu.matmul %1, %4, %cst_5 {dimension_numbers = #tpu.dot_dimension_numbers<[1], [0], [0], [1], [0, 0, 1, 1], [], []>} : vector<64x128xf32>, vector<128x16xf32>, vector<64x16xf32> -> vector<64x16xf32>
    %c0_6 = arith.constant 0 : index
    %c0_7 = arith.constant 0 : index
    %c0_8 = arith.constant 0 : index
    %6 = vector.load %arg5[%c0_6, %c0_7, %c0_8] : memref<4x128x16xf32, #tpu.memory_space<vmem>>, vector<1x128x16xf32>
    %7 = vector.shape_cast %6 : vector<1x128x16xf32> to vector<128x16xf32>
    %cst_9 = arith.constant dense<0.000000e+00> : vector<64x16xf32>
    %8 = tpu.matmul %1, %7, %cst_9 {dimension_numbers = #tpu.dot_dimension_numbers<[1], [0], [0], [1], [0, 0, 1, 1], [], []>} : vector<64x128xf32>, vector<128x16xf32>, vector<64x16xf32> -> vector<64x16xf32>
    %cst_10 = arith.constant 0xFF800000 : f32
    %9 = vector.broadcast %cst_10 : f32 to vector<64x1xf32>
    %cst_11 = arith.constant 0.000000e+00 : f32
    %10 = vector.broadcast %cst_11 : f32 to vector<64x1xf32>
    %cst_12 = arith.constant 0.000000e+00 : f32
    %11 = vector.broadcast %cst_12 : f32 to vector<64x16xf32>
    %c0_13 = arith.constant 0 : index
    %c0_14 = arith.constant 0 : index
    %c0_15 = arith.constant 0 : index
    %c0_16 = arith.constant 0 : index
    %12 = vector.load %arg2[%c0_13, %c0_14, %c0_15, %c0_16] : memref<1x4x16x128xf32, #tpu.memory_space<vmem>>, vector<1x1x16x128xf32>
    %13 = vector.shape_cast %12 : vector<1x1x16x128xf32> to vector<16x128xf32>
    %c0_17 = arith.constant 0 : index
    %c0_18 = arith.constant 0 : index
    %c0_19 = arith.constant 0 : index
    %14 = vector.load %arg4[%c0_17, %c0_18, %c0_19] : memref<4x128x16xf32, #tpu.memory_space<vmem>>, vector<1x128x16xf32>
    %15 = vector.shape_cast %14 : vector<1x128x16xf32> to vector<128x16xf32>
    %cst_20 = arith.constant dense<0.000000e+00> : vector<16x16xf32>
    %16 = tpu.matmul %13, %15, %cst_20 {dimension_numbers = #tpu.dot_dimension_numbers<[1], [0], [0], [1], [0, 0, 1, 1], [], []>} : vector<16x128xf32>, vector<128x16xf32>, vector<16x16xf32> -> vector<16x16xf32>
    %cst_21 = arith.constant dense<0.000000e+00> : vector<64x16xf32>
    %17 = tpu.matmul %5, %16, %cst_21 {dimension_numbers = #tpu.dot_dimension_numbers<[1], [0], [0], [1], [0, 0, 1, 1], [], []>} : vector<64x16xf32>, vector<16x16xf32>, vector<64x16xf32> -> vector<64x16xf32>
    %18 = vector.extract_strided_slice %8 {offsets = [0, 0], sizes = [16, 16], strides = [1, 1]} : vector<64x16xf32> to vector<16x16xf32>
    %cst_22 = arith.constant dense<0xFF800000> : vector<64xf32>
    %19 = vector.multi_reduction <maximumf>, %17, %cst_22 [1] : vector<64x16xf32> to vector<64xf32>
    %20 = vector.shape_cast %19 : vector<64xf32> to vector<64x1xf32>
    %21 = arith.maximumf %9, %20 : vector<64x1xf32>
    %22 = arith.subf %9, %21 : vector<64x1xf32>
    %23 = math.exp %22 : vector<64x1xf32>
    %24 = vector.broadcast %21 : vector<64x1xf32> to vector<64x16xf32>
    %25 = arith.subf %17, %24 : vector<64x16xf32>
    %26 = math.exp %25 : vector<64x16xf32>
    %27 = arith.mulf %23, %10 : vector<64x1xf32>
    %cst_23 = arith.constant dense<0.000000e+00> : vector<64xf32>
    %28 = vector.multi_reduction <add>, %26, %cst_23 [1] : vector<64x16xf32> to vector<64xf32>
    %29 = vector.shape_cast %28 : vector<64xf32> to vector<64x1xf32>
    %30 = arith.addf %27, %29 : vector<64x1xf32>
    %31 = vector.broadcast %23 : vector<64x1xf32> to vector<64x16xf32>
    %32 = arith.mulf %31, %11 : vector<64x16xf32>
    %cst_24 = arith.constant dense<0.000000e+00> : vector<64x16xf32>
    %33 = tpu.matmul %26, %18, %cst_24 {dimension_numbers = #tpu.dot_dimension_numbers<[1], [0], [0], [1], [0, 0, 1, 1], [], []>} : vector<64x16xf32>, vector<16x16xf32>, vector<64x16xf32> -> vector<64x16xf32>
    %34 = arith.addf %32, %33 : vector<64x16xf32>
    %c0_25 = arith.constant 0 : index
    %c1 = arith.constant 1 : index
    %c0_26 = arith.constant 0 : index
    %c0_27 = arith.constant 0 : index
    %35 = vector.load %arg2[%c0_25, %c1, %c0_26, %c0_27] : memref<1x4x16x128xf32, #tpu.memory_space<vmem>>, vector<1x1x16x128xf32>
    %36 = vector.shape_cast %35 : vector<1x1x16x128xf32> to vector<16x128xf32>
    %c0_28 = arith.constant 0 : index
    %c0_29 = arith.constant 0 : index
    %c0_30 = arith.constant 0 : index
    %37 = vector.load %arg4[%c0_28, %c0_29, %c0_30] : memref<4x128x16xf32, #tpu.memory_space<vmem>>, vector<1x128x16xf32>
    %38 = vector.shape_cast %37 : vector<1x128x16xf32> to vector<128x16xf32>
    %cst_31 = arith.constant dense<0.000000e+00> : vector<16x16xf32>
    %39 = tpu.matmul %36, %38, %cst_31 {dimension_numbers = #tpu.dot_dimension_numbers<[1], [0], [0], [1], [0, 0, 1, 1], [], []>} : vector<16x128xf32>, vector<128x16xf32>, vector<16x16xf32> -> vector<16x16xf32>
    %cst_32 = arith.constant dense<0.000000e+00> : vector<64x16xf32>
    %40 = tpu.matmul %5, %39, %cst_32 {dimension_numbers = #tpu.dot_dimension_numbers<[1], [0], [0], [1], [0, 0, 1, 1], [], []>} : vector<64x16xf32>, vector<16x16xf32>, vector<64x16xf32> -> vector<64x16xf32>
    %41 = vector.extract_strided_slice %8 {offsets = [16, 0], sizes = [16, 16], strides = [1, 1]} : vector<64x16xf32> to vector<16x16xf32>
    %cst_33 = arith.constant dense<0xFF800000> : vector<64xf32>
    %42 = vector.multi_reduction <maximumf>, %40, %cst_33 [1] : vector<64x16xf32> to vector<64xf32>
    %43 = vector.shape_cast %42 : vector<64xf32> to vector<64x1xf32>
    %44 = arith.maximumf %21, %43 : vector<64x1xf32>
    %45 = arith.subf %21, %44 : vector<64x1xf32>
    %46 = math.exp %45 : vector<64x1xf32>
    %47 = vector.broadcast %44 : vector<64x1xf32> to vector<64x16xf32>
    %48 = arith.subf %40, %47 : vector<64x16xf32>
    %49 = math.exp %48 : vector<64x16xf32>
    %50 = arith.mulf %46, %30 : vector<64x1xf32>
    %cst_34 = arith.constant dense<0.000000e+00> : vector<64xf32>
    %51 = vector.multi_reduction <add>, %49, %cst_34 [1] : vector<64x16xf32> to vector<64xf32>
    %52 = vector.shape_cast %51 : vector<64xf32> to vector<64x1xf32>
    %53 = arith.addf %50, %52 : vector<64x1xf32>
    %54 = vector.broadcast %46 : vector<64x1xf32> to vector<64x16xf32>
    %55 = arith.mulf %54, %34 : vector<64x16xf32>
    %cst_35 = arith.constant dense<0.000000e+00> : vector<64x16xf32>
    %56 = tpu.matmul %49, %41, %cst_35 {dimension_numbers = #tpu.dot_dimension_numbers<[1], [0], [0], [1], [0, 0, 1, 1], [], []>} : vector<64x16xf32>, vector<16x16xf32>, vector<64x16xf32> -> vector<64x16xf32>
    %57 = arith.addf %55, %56 : vector<64x16xf32>
    %c0_36 = arith.constant 0 : index
    %c2 = arith.constant 2 : index
    %c0_37 = arith.constant 0 : index
    %c0_38 = arith.constant 0 : index
    %58 = vector.load %arg2[%c0_36, %c2, %c0_37, %c0_38] : memref<1x4x16x128xf32, #tpu.memory_space<vmem>>, vector<1x1x16x128xf32>
    %59 = vector.shape_cast %58 : vector<1x1x16x128xf32> to vector<16x128xf32>
    %c0_39 = arith.constant 0 : index
    %c0_40 = arith.constant 0 : index
    %c0_41 = arith.constant 0 : index
    %60 = vector.load %arg4[%c0_39, %c0_40, %c0_41] : memref<4x128x16xf32, #tpu.memory_space<vmem>>, vector<1x128x16xf32>
    %61 = vector.shape_cast %60 : vector<1x128x16xf32> to vector<128x16xf32>
    %cst_42 = arith.constant dense<0.000000e+00> : vector<16x16xf32>
    %62 = tpu.matmul %59, %61, %cst_42 {dimension_numbers = #tpu.dot_dimension_numbers<[1], [0], [0], [1], [0, 0, 1, 1], [], []>} : vector<16x128xf32>, vector<128x16xf32>, vector<16x16xf32> -> vector<16x16xf32>
    %cst_43 = arith.constant dense<0.000000e+00> : vector<64x16xf32>
    %63 = tpu.matmul %5, %62, %cst_43 {dimension_numbers = #tpu.dot_dimension_numbers<[1], [0], [0], [1], [0, 0, 1, 1], [], []>} : vector<64x16xf32>, vector<16x16xf32>, vector<64x16xf32> -> vector<64x16xf32>
    %64 = vector.extract_strided_slice %8 {offsets = [32, 0], sizes = [16, 16], strides = [1, 1]} : vector<64x16xf32> to vector<16x16xf32>
    %cst_44 = arith.constant dense<0xFF800000> : vector<64xf32>
    %65 = vector.multi_reduction <maximumf>, %63, %cst_44 [1] : vector<64x16xf32> to vector<64xf32>
    %66 = vector.shape_cast %65 : vector<64xf32> to vector<64x1xf32>
    %67 = arith.maximumf %44, %66 : vector<64x1xf32>
    %68 = arith.subf %44, %67 : vector<64x1xf32>
    %69 = math.exp %68 : vector<64x1xf32>
    %70 = vector.broadcast %67 : vector<64x1xf32> to vector<64x16xf32>
    %71 = arith.subf %63, %70 : vector<64x16xf32>
    %72 = math.exp %71 : vector<64x16xf32>
    %73 = arith.mulf %69, %53 : vector<64x1xf32>
    %cst_45 = arith.constant dense<0.000000e+00> : vector<64xf32>
    %74 = vector.multi_reduction <add>, %72, %cst_45 [1] : vector<64x16xf32> to vector<64xf32>
    %75 = vector.shape_cast %74 : vector<64xf32> to vector<64x1xf32>
    %76 = arith.addf %73, %75 : vector<64x1xf32>
    %77 = vector.broadcast %69 : vector<64x1xf32> to vector<64x16xf32>
    %78 = arith.mulf %77, %57 : vector<64x16xf32>
    %cst_46 = arith.constant dense<0.000000e+00> : vector<64x16xf32>
    %79 = tpu.matmul %72, %64, %cst_46 {dimension_numbers = #tpu.dot_dimension_numbers<[1], [0], [0], [1], [0, 0, 1, 1], [], []>} : vector<64x16xf32>, vector<16x16xf32>, vector<64x16xf32> -> vector<64x16xf32>
    %80 = arith.addf %78, %79 : vector<64x16xf32>
    %c0_47 = arith.constant 0 : index
    %c3 = arith.constant 3 : index
    %c0_48 = arith.constant 0 : index
    %c0_49 = arith.constant 0 : index
    %81 = vector.load %arg2[%c0_47, %c3, %c0_48, %c0_49] : memref<1x4x16x128xf32, #tpu.memory_space<vmem>>, vector<1x1x16x128xf32>
    %82 = vector.shape_cast %81 : vector<1x1x16x128xf32> to vector<16x128xf32>
    %c0_50 = arith.constant 0 : index
    %c0_51 = arith.constant 0 : index
    %c0_52 = arith.constant 0 : index
    %83 = vector.load %arg4[%c0_50, %c0_51, %c0_52] : memref<4x128x16xf32, #tpu.memory_space<vmem>>, vector<1x128x16xf32>
    %84 = vector.shape_cast %83 : vector<1x128x16xf32> to vector<128x16xf32>
    %cst_53 = arith.constant dense<0.000000e+00> : vector<16x16xf32>
    %85 = tpu.matmul %82, %84, %cst_53 {dimension_numbers = #tpu.dot_dimension_numbers<[1], [0], [0], [1], [0, 0, 1, 1], [], []>} : vector<16x128xf32>, vector<128x16xf32>, vector<16x16xf32> -> vector<16x16xf32>
    %cst_54 = arith.constant dense<0.000000e+00> : vector<64x16xf32>
    %86 = tpu.matmul %5, %85, %cst_54 {dimension_numbers = #tpu.dot_dimension_numbers<[1], [0], [0], [1], [0, 0, 1, 1], [], []>} : vector<64x16xf32>, vector<16x16xf32>, vector<64x16xf32> -> vector<64x16xf32>
    %87 = vector.extract_strided_slice %8 {offsets = [48, 0], sizes = [16, 16], strides = [1, 1]} : vector<64x16xf32> to vector<16x16xf32>
    %cst_55 = arith.constant dense<0xFF800000> : vector<64xf32>
    %88 = vector.multi_reduction <maximumf>, %86, %cst_55 [1] : vector<64x16xf32> to vector<64xf32>
    %89 = vector.shape_cast %88 : vector<64xf32> to vector<64x1xf32>
    %90 = arith.maximumf %67, %89 : vector<64x1xf32>
    %91 = arith.subf %67, %90 : vector<64x1xf32>
    %92 = math.exp %91 : vector<64x1xf32>
    %93 = vector.broadcast %90 : vector<64x1xf32> to vector<64x16xf32>
    %94 = arith.subf %86, %93 : vector<64x16xf32>
    %95 = math.exp %94 : vector<64x16xf32>
    %96 = arith.mulf %92, %76 : vector<64x1xf32>
    %cst_56 = arith.constant dense<0.000000e+00> : vector<64xf32>
    %97 = vector.multi_reduction <add>, %95, %cst_56 [1] : vector<64x16xf32> to vector<64xf32>
    %98 = vector.shape_cast %97 : vector<64xf32> to vector<64x1xf32>
    %99 = arith.addf %96, %98 : vector<64x1xf32>
    %100 = vector.broadcast %92 : vector<64x1xf32> to vector<64x16xf32>
    %101 = arith.mulf %100, %80 : vector<64x16xf32>
    %cst_57 = arith.constant dense<0.000000e+00> : vector<64x16xf32>
    %102 = tpu.matmul %95, %87, %cst_57 {dimension_numbers = #tpu.dot_dimension_numbers<[1], [0], [0], [1], [0, 0, 1, 1], [], []>} : vector<64x16xf32>, vector<16x16xf32>, vector<64x16xf32> -> vector<64x16xf32>
    %103 = arith.addf %101, %102 : vector<64x16xf32>
    %104 = vector.broadcast %99 : vector<64x1xf32> to vector<64x16xf32>
    %105 = arith.divf %103, %104 : vector<64x16xf32>
    %c0_58 = arith.constant 0 : index
    %c0_59 = arith.constant 0 : index
    %c0_60 = arith.constant 0 : index
    %106 = vector.load %arg6[%c0_58, %c0_59, %c0_60] : memref<4x16x128xf32, #tpu.memory_space<vmem>>, vector<1x16x128xf32>
    %107 = vector.shape_cast %106 : vector<1x16x128xf32> to vector<16x128xf32>
    %cst_61 = arith.constant dense<0.000000e+00> : vector<64x128xf32>
    %108 = tpu.matmul %105, %107, %cst_61 {dimension_numbers = #tpu.dot_dimension_numbers<[1], [0], [0], [1], [0, 0, 1, 1], [], []>} : vector<64x16xf32>, vector<16x128xf32>, vector<64x128xf32> -> vector<64x128xf32>
    %109 = arith.addf %2, %108 : vector<64x128xf32>
    %c1_62 = arith.constant 1 : index
    %c0_63 = arith.constant 0 : index
    %c0_64 = arith.constant 0 : index
    %110 = vector.load %arg3[%c1_62, %c0_63, %c0_64] : memref<4x128x16xf32, #tpu.memory_space<vmem>>, vector<1x128x16xf32>
    %111 = vector.shape_cast %110 : vector<1x128x16xf32> to vector<128x16xf32>
    %cst_65 = arith.constant dense<0.000000e+00> : vector<64x16xf32>
    %112 = tpu.matmul %1, %111, %cst_65 {dimension_numbers = #tpu.dot_dimension_numbers<[1], [0], [0], [1], [0, 0, 1, 1], [], []>} : vector<64x128xf32>, vector<128x16xf32>, vector<64x16xf32> -> vector<64x16xf32>
    %c1_66 = arith.constant 1 : index
    %c0_67 = arith.constant 0 : index
    %c0_68 = arith.constant 0 : index
    %113 = vector.load %arg5[%c1_66, %c0_67, %c0_68] : memref<4x128x16xf32, #tpu.memory_space<vmem>>, vector<1x128x16xf32>
    %114 = vector.shape_cast %113 : vector<1x128x16xf32> to vector<128x16xf32>
    %cst_69 = arith.constant dense<0.000000e+00> : vector<64x16xf32>
    %115 = tpu.matmul %1, %114, %cst_69 {dimension_numbers = #tpu.dot_dimension_numbers<[1], [0], [0], [1], [0, 0, 1, 1], [], []>} : vector<64x128xf32>, vector<128x16xf32>, vector<64x16xf32> -> vector<64x16xf32>
    %cst_70 = arith.constant 0xFF800000 : f32
    %116 = vector.broadcast %cst_70 : f32 to vector<64x1xf32>
    %cst_71 = arith.constant 0.000000e+00 : f32
    %117 = vector.broadcast %cst_71 : f32 to vector<64x1xf32>
    %cst_72 = arith.constant 0.000000e+00 : f32
    %118 = vector.broadcast %cst_72 : f32 to vector<64x16xf32>
    %c0_73 = arith.constant 0 : index
    %c0_74 = arith.constant 0 : index
    %c0_75 = arith.constant 0 : index
    %c0_76 = arith.constant 0 : index
    %119 = vector.load %arg2[%c0_73, %c0_74, %c0_75, %c0_76] : memref<1x4x16x128xf32, #tpu.memory_space<vmem>>, vector<1x1x16x128xf32>
    %120 = vector.shape_cast %119 : vector<1x1x16x128xf32> to vector<16x128xf32>
    %c1_77 = arith.constant 1 : index
    %c0_78 = arith.constant 0 : index
    %c0_79 = arith.constant 0 : index
    %121 = vector.load %arg4[%c1_77, %c0_78, %c0_79] : memref<4x128x16xf32, #tpu.memory_space<vmem>>, vector<1x128x16xf32>
    %122 = vector.shape_cast %121 : vector<1x128x16xf32> to vector<128x16xf32>
    %cst_80 = arith.constant dense<0.000000e+00> : vector<16x16xf32>
    %123 = tpu.matmul %120, %122, %cst_80 {dimension_numbers = #tpu.dot_dimension_numbers<[1], [0], [0], [1], [0, 0, 1, 1], [], []>} : vector<16x128xf32>, vector<128x16xf32>, vector<16x16xf32> -> vector<16x16xf32>
    %cst_81 = arith.constant dense<0.000000e+00> : vector<64x16xf32>
    %124 = tpu.matmul %112, %123, %cst_81 {dimension_numbers = #tpu.dot_dimension_numbers<[1], [0], [0], [1], [0, 0, 1, 1], [], []>} : vector<64x16xf32>, vector<16x16xf32>, vector<64x16xf32> -> vector<64x16xf32>
    %125 = vector.extract_strided_slice %115 {offsets = [0, 0], sizes = [16, 16], strides = [1, 1]} : vector<64x16xf32> to vector<16x16xf32>
    %cst_82 = arith.constant dense<0xFF800000> : vector<64xf32>
    %126 = vector.multi_reduction <maximumf>, %124, %cst_82 [1] : vector<64x16xf32> to vector<64xf32>
    %127 = vector.shape_cast %126 : vector<64xf32> to vector<64x1xf32>
    %128 = arith.maximumf %116, %127 : vector<64x1xf32>
    %129 = arith.subf %116, %128 : vector<64x1xf32>
    %130 = math.exp %129 : vector<64x1xf32>
    %131 = vector.broadcast %128 : vector<64x1xf32> to vector<64x16xf32>
    %132 = arith.subf %124, %131 : vector<64x16xf32>
    %133 = math.exp %132 : vector<64x16xf32>
    %134 = arith.mulf %130, %117 : vector<64x1xf32>
    %cst_83 = arith.constant dense<0.000000e+00> : vector<64xf32>
    %135 = vector.multi_reduction <add>, %133, %cst_83 [1] : vector<64x16xf32> to vector<64xf32>
    %136 = vector.shape_cast %135 : vector<64xf32> to vector<64x1xf32>
    %137 = arith.addf %134, %136 : vector<64x1xf32>
    %138 = vector.broadcast %130 : vector<64x1xf32> to vector<64x16xf32>
    %139 = arith.mulf %138, %118 : vector<64x16xf32>
    %cst_84 = arith.constant dense<0.000000e+00> : vector<64x16xf32>
    %140 = tpu.matmul %133, %125, %cst_84 {dimension_numbers = #tpu.dot_dimension_numbers<[1], [0], [0], [1], [0, 0, 1, 1], [], []>} : vector<64x16xf32>, vector<16x16xf32>, vector<64x16xf32> -> vector<64x16xf32>
    %141 = arith.addf %139, %140 : vector<64x16xf32>
    %c0_85 = arith.constant 0 : index
    %c1_86 = arith.constant 1 : index
    %c0_87 = arith.constant 0 : index
    %c0_88 = arith.constant 0 : index
    %142 = vector.load %arg2[%c0_85, %c1_86, %c0_87, %c0_88] : memref<1x4x16x128xf32, #tpu.memory_space<vmem>>, vector<1x1x16x128xf32>
    %143 = vector.shape_cast %142 : vector<1x1x16x128xf32> to vector<16x128xf32>
    %c1_89 = arith.constant 1 : index
    %c0_90 = arith.constant 0 : index
    %c0_91 = arith.constant 0 : index
    %144 = vector.load %arg4[%c1_89, %c0_90, %c0_91] : memref<4x128x16xf32, #tpu.memory_space<vmem>>, vector<1x128x16xf32>
    %145 = vector.shape_cast %144 : vector<1x128x16xf32> to vector<128x16xf32>
    %cst_92 = arith.constant dense<0.000000e+00> : vector<16x16xf32>
    %146 = tpu.matmul %143, %145, %cst_92 {dimension_numbers = #tpu.dot_dimension_numbers<[1], [0], [0], [1], [0, 0, 1, 1], [], []>} : vector<16x128xf32>, vector<128x16xf32>, vector<16x16xf32> -> vector<16x16xf32>
    %cst_93 = arith.constant dense<0.000000e+00> : vector<64x16xf32>
    %147 = tpu.matmul %112, %146, %cst_93 {dimension_numbers = #tpu.dot_dimension_numbers<[1], [0], [0], [1], [0, 0, 1, 1], [], []>} : vector<64x16xf32>, vector<16x16xf32>, vector<64x16xf32> -> vector<64x16xf32>
    %148 = vector.extract_strided_slice %115 {offsets = [16, 0], sizes = [16, 16], strides = [1, 1]} : vector<64x16xf32> to vector<16x16xf32>
    %cst_94 = arith.constant dense<0xFF800000> : vector<64xf32>
    %149 = vector.multi_reduction <maximumf>, %147, %cst_94 [1] : vector<64x16xf32> to vector<64xf32>
    %150 = vector.shape_cast %149 : vector<64xf32> to vector<64x1xf32>
    %151 = arith.maximumf %128, %150 : vector<64x1xf32>
    %152 = arith.subf %128, %151 : vector<64x1xf32>
    %153 = math.exp %152 : vector<64x1xf32>
    %154 = vector.broadcast %151 : vector<64x1xf32> to vector<64x16xf32>
    %155 = arith.subf %147, %154 : vector<64x16xf32>
    %156 = math.exp %155 : vector<64x16xf32>
    %157 = arith.mulf %153, %137 : vector<64x1xf32>
    %cst_95 = arith.constant dense<0.000000e+00> : vector<64xf32>
    %158 = vector.multi_reduction <add>, %156, %cst_95 [1] : vector<64x16xf32> to vector<64xf32>
    %159 = vector.shape_cast %158 : vector<64xf32> to vector<64x1xf32>
    %160 = arith.addf %157, %159 : vector<64x1xf32>
    %161 = vector.broadcast %153 : vector<64x1xf32> to vector<64x16xf32>
    %162 = arith.mulf %161, %141 : vector<64x16xf32>
    %cst_96 = arith.constant dense<0.000000e+00> : vector<64x16xf32>
    %163 = tpu.matmul %156, %148, %cst_96 {dimension_numbers = #tpu.dot_dimension_numbers<[1], [0], [0], [1], [0, 0, 1, 1], [], []>} : vector<64x16xf32>, vector<16x16xf32>, vector<64x16xf32> -> vector<64x16xf32>
    %164 = arith.addf %162, %163 : vector<64x16xf32>
    %c0_97 = arith.constant 0 : index
    %c2_98 = arith.constant 2 : index
    %c0_99 = arith.constant 0 : index
    %c0_100 = arith.constant 0 : index
    %165 = vector.load %arg2[%c0_97, %c2_98, %c0_99, %c0_100] : memref<1x4x16x128xf32, #tpu.memory_space<vmem>>, vector<1x1x16x128xf32>
    %166 = vector.shape_cast %165 : vector<1x1x16x128xf32> to vector<16x128xf32>
    %c1_101 = arith.constant 1 : index
    %c0_102 = arith.constant 0 : index
    %c0_103 = arith.constant 0 : index
    %167 = vector.load %arg4[%c1_101, %c0_102, %c0_103] : memref<4x128x16xf32, #tpu.memory_space<vmem>>, vector<1x128x16xf32>
    %168 = vector.shape_cast %167 : vector<1x128x16xf32> to vector<128x16xf32>
    %cst_104 = arith.constant dense<0.000000e+00> : vector<16x16xf32>
    %169 = tpu.matmul %166, %168, %cst_104 {dimension_numbers = #tpu.dot_dimension_numbers<[1], [0], [0], [1], [0, 0, 1, 1], [], []>} : vector<16x128xf32>, vector<128x16xf32>, vector<16x16xf32> -> vector<16x16xf32>
    %cst_105 = arith.constant dense<0.000000e+00> : vector<64x16xf32>
    %170 = tpu.matmul %112, %169, %cst_105 {dimension_numbers = #tpu.dot_dimension_numbers<[1], [0], [0], [1], [0, 0, 1, 1], [], []>} : vector<64x16xf32>, vector<16x16xf32>, vector<64x16xf32> -> vector<64x16xf32>
    %171 = vector.extract_strided_slice %115 {offsets = [32, 0], sizes = [16, 16], strides = [1, 1]} : vector<64x16xf32> to vector<16x16xf32>
    %cst_106 = arith.constant dense<0xFF800000> : vector<64xf32>
    %172 = vector.multi_reduction <maximumf>, %170, %cst_106 [1] : vector<64x16xf32> to vector<64xf32>
    %173 = vector.shape_cast %172 : vector<64xf32> to vector<64x1xf32>
    %174 = arith.maximumf %151, %173 : vector<64x1xf32>
    %175 = arith.subf %151, %174 : vector<64x1xf32>
    %176 = math.exp %175 : vector<64x1xf32>
    %177 = vector.broadcast %174 : vector<64x1xf32> to vector<64x16xf32>
    %178 = arith.subf %170, %177 : vector<64x16xf32>
    %179 = math.exp %178 : vector<64x16xf32>
    %180 = arith.mulf %176, %160 : vector<64x1xf32>
    %cst_107 = arith.constant dense<0.000000e+00> : vector<64xf32>
    %181 = vector.multi_reduction <add>, %179, %cst_107 [1] : vector<64x16xf32> to vector<64xf32>
    %182 = vector.shape_cast %181 : vector<64xf32> to vector<64x1xf32>
    %183 = arith.addf %180, %182 : vector<64x1xf32>
    %184 = vector.broadcast %176 : vector<64x1xf32> to vector<64x16xf32>
    %185 = arith.mulf %184, %164 : vector<64x16xf32>
    %cst_108 = arith.constant dense<0.000000e+00> : vector<64x16xf32>
    %186 = tpu.matmul %179, %171, %cst_108 {dimension_numbers = #tpu.dot_dimension_numbers<[1], [0], [0], [1], [0, 0, 1, 1], [], []>} : vector<64x16xf32>, vector<16x16xf32>, vector<64x16xf32> -> vector<64x16xf32>
    %187 = arith.addf %185, %186 : vector<64x16xf32>
    %c0_109 = arith.constant 0 : index
    %c3_110 = arith.constant 3 : index
    %c0_111 = arith.constant 0 : index
    %c0_112 = arith.constant 0 : index
    %188 = vector.load %arg2[%c0_109, %c3_110, %c0_111, %c0_112] : memref<1x4x16x128xf32, #tpu.memory_space<vmem>>, vector<1x1x16x128xf32>
    %189 = vector.shape_cast %188 : vector<1x1x16x128xf32> to vector<16x128xf32>
    %c1_113 = arith.constant 1 : index
    %c0_114 = arith.constant 0 : index
    %c0_115 = arith.constant 0 : index
    %190 = vector.load %arg4[%c1_113, %c0_114, %c0_115] : memref<4x128x16xf32, #tpu.memory_space<vmem>>, vector<1x128x16xf32>
    %191 = vector.shape_cast %190 : vector<1x128x16xf32> to vector<128x16xf32>
    %cst_116 = arith.constant dense<0.000000e+00> : vector<16x16xf32>
    %192 = tpu.matmul %189, %191, %cst_116 {dimension_numbers = #tpu.dot_dimension_numbers<[1], [0], [0], [1], [0, 0, 1, 1], [], []>} : vector<16x128xf32>, vector<128x16xf32>, vector<16x16xf32> -> vector<16x16xf32>
    %cst_117 = arith.constant dense<0.000000e+00> : vector<64x16xf32>
    %193 = tpu.matmul %112, %192, %cst_117 {dimension_numbers = #tpu.dot_dimension_numbers<[1], [0], [0], [1], [0, 0, 1, 1], [], []>} : vector<64x16xf32>, vector<16x16xf32>, vector<64x16xf32> -> vector<64x16xf32>
    %194 = vector.extract_strided_slice %115 {offsets = [48, 0], sizes = [16, 16], strides = [1, 1]} : vector<64x16xf32> to vector<16x16xf32>
    %cst_118 = arith.constant dense<0xFF800000> : vector<64xf32>
    %195 = vector.multi_reduction <maximumf>, %193, %cst_118 [1] : vector<64x16xf32> to vector<64xf32>
    %196 = vector.shape_cast %195 : vector<64xf32> to vector<64x1xf32>
    %197 = arith.maximumf %174, %196 : vector<64x1xf32>
    %198 = arith.subf %174, %197 : vector<64x1xf32>
    %199 = math.exp %198 : vector<64x1xf32>
    %200 = vector.broadcast %197 : vector<64x1xf32> to vector<64x16xf32>
    %201 = arith.subf %193, %200 : vector<64x16xf32>
    %202 = math.exp %201 : vector<64x16xf32>
    %203 = arith.mulf %199, %183 : vector<64x1xf32>
    %cst_119 = arith.constant dense<0.000000e+00> : vector<64xf32>
    %204 = vector.multi_reduction <add>, %202, %cst_119 [1] : vector<64x16xf32> to vector<64xf32>
    %205 = vector.shape_cast %204 : vector<64xf32> to vector<64x1xf32>
    %206 = arith.addf %203, %205 : vector<64x1xf32>
    %207 = vector.broadcast %199 : vector<64x1xf32> to vector<64x16xf32>
    %208 = arith.mulf %207, %187 : vector<64x16xf32>
    %cst_120 = arith.constant dense<0.000000e+00> : vector<64x16xf32>
    %209 = tpu.matmul %202, %194, %cst_120 {dimension_numbers = #tpu.dot_dimension_numbers<[1], [0], [0], [1], [0, 0, 1, 1], [], []>} : vector<64x16xf32>, vector<16x16xf32>, vector<64x16xf32> -> vector<64x16xf32>
    %210 = arith.addf %208, %209 : vector<64x16xf32>
    %211 = vector.broadcast %206 : vector<64x1xf32> to vector<64x16xf32>
    %212 = arith.divf %210, %211 : vector<64x16xf32>
    %c1_121 = arith.constant 1 : index
    %c0_122 = arith.constant 0 : index
    %c0_123 = arith.constant 0 : index
    %213 = vector.load %arg6[%c1_121, %c0_122, %c0_123] : memref<4x16x128xf32, #tpu.memory_space<vmem>>, vector<1x16x128xf32>
    %214 = vector.shape_cast %213 : vector<1x16x128xf32> to vector<16x128xf32>
    %cst_124 = arith.constant dense<0.000000e+00> : vector<64x128xf32>
    %215 = tpu.matmul %212, %214, %cst_124 {dimension_numbers = #tpu.dot_dimension_numbers<[1], [0], [0], [1], [0, 0, 1, 1], [], []>} : vector<64x16xf32>, vector<16x128xf32>, vector<64x128xf32> -> vector<64x128xf32>
    %216 = arith.addf %109, %215 : vector<64x128xf32>
    %c2_125 = arith.constant 2 : index
    %c0_126 = arith.constant 0 : index
    %c0_127 = arith.constant 0 : index
    %217 = vector.load %arg3[%c2_125, %c0_126, %c0_127] : memref<4x128x16xf32, #tpu.memory_space<vmem>>, vector<1x128x16xf32>
    %218 = vector.shape_cast %217 : vector<1x128x16xf32> to vector<128x16xf32>
    %cst_128 = arith.constant dense<0.000000e+00> : vector<64x16xf32>
    %219 = tpu.matmul %1, %218, %cst_128 {dimension_numbers = #tpu.dot_dimension_numbers<[1], [0], [0], [1], [0, 0, 1, 1], [], []>} : vector<64x128xf32>, vector<128x16xf32>, vector<64x16xf32> -> vector<64x16xf32>
    %c2_129 = arith.constant 2 : index
    %c0_130 = arith.constant 0 : index
    %c0_131 = arith.constant 0 : index
    %220 = vector.load %arg5[%c2_129, %c0_130, %c0_131] : memref<4x128x16xf32, #tpu.memory_space<vmem>>, vector<1x128x16xf32>
    %221 = vector.shape_cast %220 : vector<1x128x16xf32> to vector<128x16xf32>
    %cst_132 = arith.constant dense<0.000000e+00> : vector<64x16xf32>
    %222 = tpu.matmul %1, %221, %cst_132 {dimension_numbers = #tpu.dot_dimension_numbers<[1], [0], [0], [1], [0, 0, 1, 1], [], []>} : vector<64x128xf32>, vector<128x16xf32>, vector<64x16xf32> -> vector<64x16xf32>
    %cst_133 = arith.constant 0xFF800000 : f32
    %223 = vector.broadcast %cst_133 : f32 to vector<64x1xf32>
    %cst_134 = arith.constant 0.000000e+00 : f32
    %224 = vector.broadcast %cst_134 : f32 to vector<64x1xf32>
    %cst_135 = arith.constant 0.000000e+00 : f32
    %225 = vector.broadcast %cst_135 : f32 to vector<64x16xf32>
    %c0_136 = arith.constant 0 : index
    %c0_137 = arith.constant 0 : index
    %c0_138 = arith.constant 0 : index
    %c0_139 = arith.constant 0 : index
    %226 = vector.load %arg2[%c0_136, %c0_137, %c0_138, %c0_139] : memref<1x4x16x128xf32, #tpu.memory_space<vmem>>, vector<1x1x16x128xf32>
    %227 = vector.shape_cast %226 : vector<1x1x16x128xf32> to vector<16x128xf32>
    %c2_140 = arith.constant 2 : index
    %c0_141 = arith.constant 0 : index
    %c0_142 = arith.constant 0 : index
    %228 = vector.load %arg4[%c2_140, %c0_141, %c0_142] : memref<4x128x16xf32, #tpu.memory_space<vmem>>, vector<1x128x16xf32>
    %229 = vector.shape_cast %228 : vector<1x128x16xf32> to vector<128x16xf32>
    %cst_143 = arith.constant dense<0.000000e+00> : vector<16x16xf32>
    %230 = tpu.matmul %227, %229, %cst_143 {dimension_numbers = #tpu.dot_dimension_numbers<[1], [0], [0], [1], [0, 0, 1, 1], [], []>} : vector<16x128xf32>, vector<128x16xf32>, vector<16x16xf32> -> vector<16x16xf32>
    %cst_144 = arith.constant dense<0.000000e+00> : vector<64x16xf32>
    %231 = tpu.matmul %219, %230, %cst_144 {dimension_numbers = #tpu.dot_dimension_numbers<[1], [0], [0], [1], [0, 0, 1, 1], [], []>} : vector<64x16xf32>, vector<16x16xf32>, vector<64x16xf32> -> vector<64x16xf32>
    %232 = vector.extract_strided_slice %222 {offsets = [0, 0], sizes = [16, 16], strides = [1, 1]} : vector<64x16xf32> to vector<16x16xf32>
    %cst_145 = arith.constant dense<0xFF800000> : vector<64xf32>
    %233 = vector.multi_reduction <maximumf>, %231, %cst_145 [1] : vector<64x16xf32> to vector<64xf32>
    %234 = vector.shape_cast %233 : vector<64xf32> to vector<64x1xf32>
    %235 = arith.maximumf %223, %234 : vector<64x1xf32>
    %236 = arith.subf %223, %235 : vector<64x1xf32>
    %237 = math.exp %236 : vector<64x1xf32>
    %238 = vector.broadcast %235 : vector<64x1xf32> to vector<64x16xf32>
    %239 = arith.subf %231, %238 : vector<64x16xf32>
    %240 = math.exp %239 : vector<64x16xf32>
    %241 = arith.mulf %237, %224 : vector<64x1xf32>
    %cst_146 = arith.constant dense<0.000000e+00> : vector<64xf32>
    %242 = vector.multi_reduction <add>, %240, %cst_146 [1] : vector<64x16xf32> to vector<64xf32>
    %243 = vector.shape_cast %242 : vector<64xf32> to vector<64x1xf32>
    %244 = arith.addf %241, %243 : vector<64x1xf32>
    %245 = vector.broadcast %237 : vector<64x1xf32> to vector<64x16xf32>
    %246 = arith.mulf %245, %225 : vector<64x16xf32>
    %cst_147 = arith.constant dense<0.000000e+00> : vector<64x16xf32>
    %247 = tpu.matmul %240, %232, %cst_147 {dimension_numbers = #tpu.dot_dimension_numbers<[1], [0], [0], [1], [0, 0, 1, 1], [], []>} : vector<64x16xf32>, vector<16x16xf32>, vector<64x16xf32> -> vector<64x16xf32>
    %248 = arith.addf %246, %247 : vector<64x16xf32>
    %c0_148 = arith.constant 0 : index
    %c1_149 = arith.constant 1 : index
    %c0_150 = arith.constant 0 : index
    %c0_151 = arith.constant 0 : index
    %249 = vector.load %arg2[%c0_148, %c1_149, %c0_150, %c0_151] : memref<1x4x16x128xf32, #tpu.memory_space<vmem>>, vector<1x1x16x128xf32>
    %250 = vector.shape_cast %249 : vector<1x1x16x128xf32> to vector<16x128xf32>
    %c2_152 = arith.constant 2 : index
    %c0_153 = arith.constant 0 : index
    %c0_154 = arith.constant 0 : index
    %251 = vector.load %arg4[%c2_152, %c0_153, %c0_154] : memref<4x128x16xf32, #tpu.memory_space<vmem>>, vector<1x128x16xf32>
    %252 = vector.shape_cast %251 : vector<1x128x16xf32> to vector<128x16xf32>
    %cst_155 = arith.constant dense<0.000000e+00> : vector<16x16xf32>
    %253 = tpu.matmul %250, %252, %cst_155 {dimension_numbers = #tpu.dot_dimension_numbers<[1], [0], [0], [1], [0, 0, 1, 1], [], []>} : vector<16x128xf32>, vector<128x16xf32>, vector<16x16xf32> -> vector<16x16xf32>
    %cst_156 = arith.constant dense<0.000000e+00> : vector<64x16xf32>
    %254 = tpu.matmul %219, %253, %cst_156 {dimension_numbers = #tpu.dot_dimension_numbers<[1], [0], [0], [1], [0, 0, 1, 1], [], []>} : vector<64x16xf32>, vector<16x16xf32>, vector<64x16xf32> -> vector<64x16xf32>
    %255 = vector.extract_strided_slice %222 {offsets = [16, 0], sizes = [16, 16], strides = [1, 1]} : vector<64x16xf32> to vector<16x16xf32>
    %cst_157 = arith.constant dense<0xFF800000> : vector<64xf32>
    %256 = vector.multi_reduction <maximumf>, %254, %cst_157 [1] : vector<64x16xf32> to vector<64xf32>
    %257 = vector.shape_cast %256 : vector<64xf32> to vector<64x1xf32>
    %258 = arith.maximumf %235, %257 : vector<64x1xf32>
    %259 = arith.subf %235, %258 : vector<64x1xf32>
    %260 = math.exp %259 : vector<64x1xf32>
    %261 = vector.broadcast %258 : vector<64x1xf32> to vector<64x16xf32>
    %262 = arith.subf %254, %261 : vector<64x16xf32>
    %263 = math.exp %262 : vector<64x16xf32>
    %264 = arith.mulf %260, %244 : vector<64x1xf32>
    %cst_158 = arith.constant dense<0.000000e+00> : vector<64xf32>
    %265 = vector.multi_reduction <add>, %263, %cst_158 [1] : vector<64x16xf32> to vector<64xf32>
    %266 = vector.shape_cast %265 : vector<64xf32> to vector<64x1xf32>
    %267 = arith.addf %264, %266 : vector<64x1xf32>
    %268 = vector.broadcast %260 : vector<64x1xf32> to vector<64x16xf32>
    %269 = arith.mulf %268, %248 : vector<64x16xf32>
    %cst_159 = arith.constant dense<0.000000e+00> : vector<64x16xf32>
    %270 = tpu.matmul %263, %255, %cst_159 {dimension_numbers = #tpu.dot_dimension_numbers<[1], [0], [0], [1], [0, 0, 1, 1], [], []>} : vector<64x16xf32>, vector<16x16xf32>, vector<64x16xf32> -> vector<64x16xf32>
    %271 = arith.addf %269, %270 : vector<64x16xf32>
    %c0_160 = arith.constant 0 : index
    %c2_161 = arith.constant 2 : index
    %c0_162 = arith.constant 0 : index
    %c0_163 = arith.constant 0 : index
    %272 = vector.load %arg2[%c0_160, %c2_161, %c0_162, %c0_163] : memref<1x4x16x128xf32, #tpu.memory_space<vmem>>, vector<1x1x16x128xf32>
    %273 = vector.shape_cast %272 : vector<1x1x16x128xf32> to vector<16x128xf32>
    %c2_164 = arith.constant 2 : index
    %c0_165 = arith.constant 0 : index
    %c0_166 = arith.constant 0 : index
    %274 = vector.load %arg4[%c2_164, %c0_165, %c0_166] : memref<4x128x16xf32, #tpu.memory_space<vmem>>, vector<1x128x16xf32>
    %275 = vector.shape_cast %274 : vector<1x128x16xf32> to vector<128x16xf32>
    %cst_167 = arith.constant dense<0.000000e+00> : vector<16x16xf32>
    %276 = tpu.matmul %273, %275, %cst_167 {dimension_numbers = #tpu.dot_dimension_numbers<[1], [0], [0], [1], [0, 0, 1, 1], [], []>} : vector<16x128xf32>, vector<128x16xf32>, vector<16x16xf32> -> vector<16x16xf32>
    %cst_168 = arith.constant dense<0.000000e+00> : vector<64x16xf32>
    %277 = tpu.matmul %219, %276, %cst_168 {dimension_numbers = #tpu.dot_dimension_numbers<[1], [0], [0], [1], [0, 0, 1, 1], [], []>} : vector<64x16xf32>, vector<16x16xf32>, vector<64x16xf32> -> vector<64x16xf32>
    %278 = vector.extract_strided_slice %222 {offsets = [32, 0], sizes = [16, 16], strides = [1, 1]} : vector<64x16xf32> to vector<16x16xf32>
    %cst_169 = arith.constant dense<0xFF800000> : vector<64xf32>
    %279 = vector.multi_reduction <maximumf>, %277, %cst_169 [1] : vector<64x16xf32> to vector<64xf32>
    %280 = vector.shape_cast %279 : vector<64xf32> to vector<64x1xf32>
    %281 = arith.maximumf %258, %280 : vector<64x1xf32>
    %282 = arith.subf %258, %281 : vector<64x1xf32>
    %283 = math.exp %282 : vector<64x1xf32>
    %284 = vector.broadcast %281 : vector<64x1xf32> to vector<64x16xf32>
    %285 = arith.subf %277, %284 : vector<64x16xf32>
    %286 = math.exp %285 : vector<64x16xf32>
    %287 = arith.mulf %283, %267 : vector<64x1xf32>
    %cst_170 = arith.constant dense<0.000000e+00> : vector<64xf32>
    %288 = vector.multi_reduction <add>, %286, %cst_170 [1] : vector<64x16xf32> to vector<64xf32>
    %289 = vector.shape_cast %288 : vector<64xf32> to vector<64x1xf32>
    %290 = arith.addf %287, %289 : vector<64x1xf32>
    %291 = vector.broadcast %283 : vector<64x1xf32> to vector<64x16xf32>
    %292 = arith.mulf %291, %271 : vector<64x16xf32>
    %cst_171 = arith.constant dense<0.000000e+00> : vector<64x16xf32>
    %293 = tpu.matmul %286, %278, %cst_171 {dimension_numbers = #tpu.dot_dimension_numbers<[1], [0], [0], [1], [0, 0, 1, 1], [], []>} : vector<64x16xf32>, vector<16x16xf32>, vector<64x16xf32> -> vector<64x16xf32>
    %294 = arith.addf %292, %293 : vector<64x16xf32>
    %c0_172 = arith.constant 0 : index
    %c3_173 = arith.constant 3 : index
    %c0_174 = arith.constant 0 : index
    %c0_175 = arith.constant 0 : index
    %295 = vector.load %arg2[%c0_172, %c3_173, %c0_174, %c0_175] : memref<1x4x16x128xf32, #tpu.memory_space<vmem>>, vector<1x1x16x128xf32>
    %296 = vector.shape_cast %295 : vector<1x1x16x128xf32> to vector<16x128xf32>
    %c2_176 = arith.constant 2 : index
    %c0_177 = arith.constant 0 : index
    %c0_178 = arith.constant 0 : index
    %297 = vector.load %arg4[%c2_176, %c0_177, %c0_178] : memref<4x128x16xf32, #tpu.memory_space<vmem>>, vector<1x128x16xf32>
    %298 = vector.shape_cast %297 : vector<1x128x16xf32> to vector<128x16xf32>
    %cst_179 = arith.constant dense<0.000000e+00> : vector<16x16xf32>
    %299 = tpu.matmul %296, %298, %cst_179 {dimension_numbers = #tpu.dot_dimension_numbers<[1], [0], [0], [1], [0, 0, 1, 1], [], []>} : vector<16x128xf32>, vector<128x16xf32>, vector<16x16xf32> -> vector<16x16xf32>
    %cst_180 = arith.constant dense<0.000000e+00> : vector<64x16xf32>
    %300 = tpu.matmul %219, %299, %cst_180 {dimension_numbers = #tpu.dot_dimension_numbers<[1], [0], [0], [1], [0, 0, 1, 1], [], []>} : vector<64x16xf32>, vector<16x16xf32>, vector<64x16xf32> -> vector<64x16xf32>
    %301 = vector.extract_strided_slice %222 {offsets = [48, 0], sizes = [16, 16], strides = [1, 1]} : vector<64x16xf32> to vector<16x16xf32>
    %cst_181 = arith.constant dense<0xFF800000> : vector<64xf32>
    %302 = vector.multi_reduction <maximumf>, %300, %cst_181 [1] : vector<64x16xf32> to vector<64xf32>
    %303 = vector.shape_cast %302 : vector<64xf32> to vector<64x1xf32>
    %304 = arith.maximumf %281, %303 : vector<64x1xf32>
    %305 = arith.subf %281, %304 : vector<64x1xf32>
    %306 = math.exp %305 : vector<64x1xf32>
    %307 = vector.broadcast %304 : vector<64x1xf32> to vector<64x16xf32>
    %308 = arith.subf %300, %307 : vector<64x16xf32>
    %309 = math.exp %308 : vector<64x16xf32>
    %310 = arith.mulf %306, %290 : vector<64x1xf32>
    %cst_182 = arith.constant dense<0.000000e+00> : vector<64xf32>
    %311 = vector.multi_reduction <add>, %309, %cst_182 [1] : vector<64x16xf32> to vector<64xf32>
    %312 = vector.shape_cast %311 : vector<64xf32> to vector<64x1xf32>
    %313 = arith.addf %310, %312 : vector<64x1xf32>
    %314 = vector.broadcast %306 : vector<64x1xf32> to vector<64x16xf32>
    %315 = arith.mulf %314, %294 : vector<64x16xf32>
    %cst_183 = arith.constant dense<0.000000e+00> : vector<64x16xf32>
    %316 = tpu.matmul %309, %301, %cst_183 {dimension_numbers = #tpu.dot_dimension_numbers<[1], [0], [0], [1], [0, 0, 1, 1], [], []>} : vector<64x16xf32>, vector<16x16xf32>, vector<64x16xf32> -> vector<64x16xf32>
    %317 = arith.addf %315, %316 : vector<64x16xf32>
    %318 = vector.broadcast %313 : vector<64x1xf32> to vector<64x16xf32>
    %319 = arith.divf %317, %318 : vector<64x16xf32>
    %c2_184 = arith.constant 2 : index
    %c0_185 = arith.constant 0 : index
    %c0_186 = arith.constant 0 : index
    %320 = vector.load %arg6[%c2_184, %c0_185, %c0_186] : memref<4x16x128xf32, #tpu.memory_space<vmem>>, vector<1x16x128xf32>
    %321 = vector.shape_cast %320 : vector<1x16x128xf32> to vector<16x128xf32>
    %cst_187 = arith.constant dense<0.000000e+00> : vector<64x128xf32>
    %322 = tpu.matmul %319, %321, %cst_187 {dimension_numbers = #tpu.dot_dimension_numbers<[1], [0], [0], [1], [0, 0, 1, 1], [], []>} : vector<64x16xf32>, vector<16x128xf32>, vector<64x128xf32> -> vector<64x128xf32>
    %323 = arith.addf %216, %322 : vector<64x128xf32>
    %c3_188 = arith.constant 3 : index
    %c0_189 = arith.constant 0 : index
    %c0_190 = arith.constant 0 : index
    %324 = vector.load %arg3[%c3_188, %c0_189, %c0_190] : memref<4x128x16xf32, #tpu.memory_space<vmem>>, vector<1x128x16xf32>
    %325 = vector.shape_cast %324 : vector<1x128x16xf32> to vector<128x16xf32>
    %cst_191 = arith.constant dense<0.000000e+00> : vector<64x16xf32>
    %326 = tpu.matmul %1, %325, %cst_191 {dimension_numbers = #tpu.dot_dimension_numbers<[1], [0], [0], [1], [0, 0, 1, 1], [], []>} : vector<64x128xf32>, vector<128x16xf32>, vector<64x16xf32> -> vector<64x16xf32>
    %c3_192 = arith.constant 3 : index
    %c0_193 = arith.constant 0 : index
    %c0_194 = arith.constant 0 : index
    %327 = vector.load %arg5[%c3_192, %c0_193, %c0_194] : memref<4x128x16xf32, #tpu.memory_space<vmem>>, vector<1x128x16xf32>
    %328 = vector.shape_cast %327 : vector<1x128x16xf32> to vector<128x16xf32>
    %cst_195 = arith.constant dense<0.000000e+00> : vector<64x16xf32>
    %329 = tpu.matmul %1, %328, %cst_195 {dimension_numbers = #tpu.dot_dimension_numbers<[1], [0], [0], [1], [0, 0, 1, 1], [], []>} : vector<64x128xf32>, vector<128x16xf32>, vector<64x16xf32> -> vector<64x16xf32>
    %cst_196 = arith.constant 0xFF800000 : f32
    %330 = vector.broadcast %cst_196 : f32 to vector<64x1xf32>
    %cst_197 = arith.constant 0.000000e+00 : f32
    %331 = vector.broadcast %cst_197 : f32 to vector<64x1xf32>
    %cst_198 = arith.constant 0.000000e+00 : f32
    %332 = vector.broadcast %cst_198 : f32 to vector<64x16xf32>
    %c0_199 = arith.constant 0 : index
    %c0_200 = arith.constant 0 : index
    %c0_201 = arith.constant 0 : index
    %c0_202 = arith.constant 0 : index
    %333 = vector.load %arg2[%c0_199, %c0_200, %c0_201, %c0_202] : memref<1x4x16x128xf32, #tpu.memory_space<vmem>>, vector<1x1x16x128xf32>
    %334 = vector.shape_cast %333 : vector<1x1x16x128xf32> to vector<16x128xf32>
    %c3_203 = arith.constant 3 : index
    %c0_204 = arith.constant 0 : index
    %c0_205 = arith.constant 0 : index
    %335 = vector.load %arg4[%c3_203, %c0_204, %c0_205] : memref<4x128x16xf32, #tpu.memory_space<vmem>>, vector<1x128x16xf32>
    %336 = vector.shape_cast %335 : vector<1x128x16xf32> to vector<128x16xf32>
    %cst_206 = arith.constant dense<0.000000e+00> : vector<16x16xf32>
    %337 = tpu.matmul %334, %336, %cst_206 {dimension_numbers = #tpu.dot_dimension_numbers<[1], [0], [0], [1], [0, 0, 1, 1], [], []>} : vector<16x128xf32>, vector<128x16xf32>, vector<16x16xf32> -> vector<16x16xf32>
    %cst_207 = arith.constant dense<0.000000e+00> : vector<64x16xf32>
    %338 = tpu.matmul %326, %337, %cst_207 {dimension_numbers = #tpu.dot_dimension_numbers<[1], [0], [0], [1], [0, 0, 1, 1], [], []>} : vector<64x16xf32>, vector<16x16xf32>, vector<64x16xf32> -> vector<64x16xf32>
    %339 = vector.extract_strided_slice %329 {offsets = [0, 0], sizes = [16, 16], strides = [1, 1]} : vector<64x16xf32> to vector<16x16xf32>
    %cst_208 = arith.constant dense<0xFF800000> : vector<64xf32>
    %340 = vector.multi_reduction <maximumf>, %338, %cst_208 [1] : vector<64x16xf32> to vector<64xf32>
    %341 = vector.shape_cast %340 : vector<64xf32> to vector<64x1xf32>
    %342 = arith.maximumf %330, %341 : vector<64x1xf32>
    %343 = arith.subf %330, %342 : vector<64x1xf32>
    %344 = math.exp %343 : vector<64x1xf32>
    %345 = vector.broadcast %342 : vector<64x1xf32> to vector<64x16xf32>
    %346 = arith.subf %338, %345 : vector<64x16xf32>
    %347 = math.exp %346 : vector<64x16xf32>
    %348 = arith.mulf %344, %331 : vector<64x1xf32>
    %cst_209 = arith.constant dense<0.000000e+00> : vector<64xf32>
    %349 = vector.multi_reduction <add>, %347, %cst_209 [1] : vector<64x16xf32> to vector<64xf32>
    %350 = vector.shape_cast %349 : vector<64xf32> to vector<64x1xf32>
    %351 = arith.addf %348, %350 : vector<64x1xf32>
    %352 = vector.broadcast %344 : vector<64x1xf32> to vector<64x16xf32>
    %353 = arith.mulf %352, %332 : vector<64x16xf32>
    %cst_210 = arith.constant dense<0.000000e+00> : vector<64x16xf32>
    %354 = tpu.matmul %347, %339, %cst_210 {dimension_numbers = #tpu.dot_dimension_numbers<[1], [0], [0], [1], [0, 0, 1, 1], [], []>} : vector<64x16xf32>, vector<16x16xf32>, vector<64x16xf32> -> vector<64x16xf32>
    %355 = arith.addf %353, %354 : vector<64x16xf32>
    %c0_211 = arith.constant 0 : index
    %c1_212 = arith.constant 1 : index
    %c0_213 = arith.constant 0 : index
    %c0_214 = arith.constant 0 : index
    %356 = vector.load %arg2[%c0_211, %c1_212, %c0_213, %c0_214] : memref<1x4x16x128xf32, #tpu.memory_space<vmem>>, vector<1x1x16x128xf32>
    %357 = vector.shape_cast %356 : vector<1x1x16x128xf32> to vector<16x128xf32>
    %c3_215 = arith.constant 3 : index
    %c0_216 = arith.constant 0 : index
    %c0_217 = arith.constant 0 : index
    %358 = vector.load %arg4[%c3_215, %c0_216, %c0_217] : memref<4x128x16xf32, #tpu.memory_space<vmem>>, vector<1x128x16xf32>
    %359 = vector.shape_cast %358 : vector<1x128x16xf32> to vector<128x16xf32>
    %cst_218 = arith.constant dense<0.000000e+00> : vector<16x16xf32>
    %360 = tpu.matmul %357, %359, %cst_218 {dimension_numbers = #tpu.dot_dimension_numbers<[1], [0], [0], [1], [0, 0, 1, 1], [], []>} : vector<16x128xf32>, vector<128x16xf32>, vector<16x16xf32> -> vector<16x16xf32>
    %cst_219 = arith.constant dense<0.000000e+00> : vector<64x16xf32>
    %361 = tpu.matmul %326, %360, %cst_219 {dimension_numbers = #tpu.dot_dimension_numbers<[1], [0], [0], [1], [0, 0, 1, 1], [], []>} : vector<64x16xf32>, vector<16x16xf32>, vector<64x16xf32> -> vector<64x16xf32>
    %362 = vector.extract_strided_slice %329 {offsets = [16, 0], sizes = [16, 16], strides = [1, 1]} : vector<64x16xf32> to vector<16x16xf32>
    %cst_220 = arith.constant dense<0xFF800000> : vector<64xf32>
    %363 = vector.multi_reduction <maximumf>, %361, %cst_220 [1] : vector<64x16xf32> to vector<64xf32>
    %364 = vector.shape_cast %363 : vector<64xf32> to vector<64x1xf32>
    %365 = arith.maximumf %342, %364 : vector<64x1xf32>
    %366 = arith.subf %342, %365 : vector<64x1xf32>
    %367 = math.exp %366 : vector<64x1xf32>
    %368 = vector.broadcast %365 : vector<64x1xf32> to vector<64x16xf32>
    %369 = arith.subf %361, %368 : vector<64x16xf32>
    %370 = math.exp %369 : vector<64x16xf32>
    %371 = arith.mulf %367, %351 : vector<64x1xf32>
    %cst_221 = arith.constant dense<0.000000e+00> : vector<64xf32>
    %372 = vector.multi_reduction <add>, %370, %cst_221 [1] : vector<64x16xf32> to vector<64xf32>
    %373 = vector.shape_cast %372 : vector<64xf32> to vector<64x1xf32>
    %374 = arith.addf %371, %373 : vector<64x1xf32>
    %375 = vector.broadcast %367 : vector<64x1xf32> to vector<64x16xf32>
    %376 = arith.mulf %375, %355 : vector<64x16xf32>
    %cst_222 = arith.constant dense<0.000000e+00> : vector<64x16xf32>
    %377 = tpu.matmul %370, %362, %cst_222 {dimension_numbers = #tpu.dot_dimension_numbers<[1], [0], [0], [1], [0, 0, 1, 1], [], []>} : vector<64x16xf32>, vector<16x16xf32>, vector<64x16xf32> -> vector<64x16xf32>
    %378 = arith.addf %376, %377 : vector<64x16xf32>
    %c0_223 = arith.constant 0 : index
    %c2_224 = arith.constant 2 : index
    %c0_225 = arith.constant 0 : index
    %c0_226 = arith.constant 0 : index
    %379 = vector.load %arg2[%c0_223, %c2_224, %c0_225, %c0_226] : memref<1x4x16x128xf32, #tpu.memory_space<vmem>>, vector<1x1x16x128xf32>
    %380 = vector.shape_cast %379 : vector<1x1x16x128xf32> to vector<16x128xf32>
    %c3_227 = arith.constant 3 : index
    %c0_228 = arith.constant 0 : index
    %c0_229 = arith.constant 0 : index
    %381 = vector.load %arg4[%c3_227, %c0_228, %c0_229] : memref<4x128x16xf32, #tpu.memory_space<vmem>>, vector<1x128x16xf32>
    %382 = vector.shape_cast %381 : vector<1x128x16xf32> to vector<128x16xf32>
    %cst_230 = arith.constant dense<0.000000e+00> : vector<16x16xf32>
    %383 = tpu.matmul %380, %382, %cst_230 {dimension_numbers = #tpu.dot_dimension_numbers<[1], [0], [0], [1], [0, 0, 1, 1], [], []>} : vector<16x128xf32>, vector<128x16xf32>, vector<16x16xf32> -> vector<16x16xf32>
    %cst_231 = arith.constant dense<0.000000e+00> : vector<64x16xf32>
    %384 = tpu.matmul %326, %383, %cst_231 {dimension_numbers = #tpu.dot_dimension_numbers<[1], [0], [0], [1], [0, 0, 1, 1], [], []>} : vector<64x16xf32>, vector<16x16xf32>, vector<64x16xf32> -> vector<64x16xf32>
    %385 = vector.extract_strided_slice %329 {offsets = [32, 0], sizes = [16, 16], strides = [1, 1]} : vector<64x16xf32> to vector<16x16xf32>
    %cst_232 = arith.constant dense<0xFF800000> : vector<64xf32>
    %386 = vector.multi_reduction <maximumf>, %384, %cst_232 [1] : vector<64x16xf32> to vector<64xf32>
    %387 = vector.shape_cast %386 : vector<64xf32> to vector<64x1xf32>
    %388 = arith.maximumf %365, %387 : vector<64x1xf32>
    %389 = arith.subf %365, %388 : vector<64x1xf32>
    %390 = math.exp %389 : vector<64x1xf32>
    %391 = vector.broadcast %388 : vector<64x1xf32> to vector<64x16xf32>
    %392 = arith.subf %384, %391 : vector<64x16xf32>
    %393 = math.exp %392 : vector<64x16xf32>
    %394 = arith.mulf %390, %374 : vector<64x1xf32>
    %cst_233 = arith.constant dense<0.000000e+00> : vector<64xf32>
    %395 = vector.multi_reduction <add>, %393, %cst_233 [1] : vector<64x16xf32> to vector<64xf32>
    %396 = vector.shape_cast %395 : vector<64xf32> to vector<64x1xf32>
    %397 = arith.addf %394, %396 : vector<64x1xf32>
    %398 = vector.broadcast %390 : vector<64x1xf32> to vector<64x16xf32>
    %399 = arith.mulf %398, %378 : vector<64x16xf32>
    %cst_234 = arith.constant dense<0.000000e+00> : vector<64x16xf32>
    %400 = tpu.matmul %393, %385, %cst_234 {dimension_numbers = #tpu.dot_dimension_numbers<[1], [0], [0], [1], [0, 0, 1, 1], [], []>} : vector<64x16xf32>, vector<16x16xf32>, vector<64x16xf32> -> vector<64x16xf32>
    %401 = arith.addf %399, %400 : vector<64x16xf32>
    %c0_235 = arith.constant 0 : index
    %c3_236 = arith.constant 3 : index
    %c0_237 = arith.constant 0 : index
    %c0_238 = arith.constant 0 : index
    %402 = vector.load %arg2[%c0_235, %c3_236, %c0_237, %c0_238] : memref<1x4x16x128xf32, #tpu.memory_space<vmem>>, vector<1x1x16x128xf32>
    %403 = vector.shape_cast %402 : vector<1x1x16x128xf32> to vector<16x128xf32>
    %c3_239 = arith.constant 3 : index
    %c0_240 = arith.constant 0 : index
    %c0_241 = arith.constant 0 : index
    %404 = vector.load %arg4[%c3_239, %c0_240, %c0_241] : memref<4x128x16xf32, #tpu.memory_space<vmem>>, vector<1x128x16xf32>
    %405 = vector.shape_cast %404 : vector<1x128x16xf32> to vector<128x16xf32>
    %cst_242 = arith.constant dense<0.000000e+00> : vector<16x16xf32>
    %406 = tpu.matmul %403, %405, %cst_242 {dimension_numbers = #tpu.dot_dimension_numbers<[1], [0], [0], [1], [0, 0, 1, 1], [], []>} : vector<16x128xf32>, vector<128x16xf32>, vector<16x16xf32> -> vector<16x16xf32>
    %cst_243 = arith.constant dense<0.000000e+00> : vector<64x16xf32>
    %407 = tpu.matmul %326, %406, %cst_243 {dimension_numbers = #tpu.dot_dimension_numbers<[1], [0], [0], [1], [0, 0, 1, 1], [], []>} : vector<64x16xf32>, vector<16x16xf32>, vector<64x16xf32> -> vector<64x16xf32>
    %408 = vector.extract_strided_slice %329 {offsets = [48, 0], sizes = [16, 16], strides = [1, 1]} : vector<64x16xf32> to vector<16x16xf32>
    %cst_244 = arith.constant dense<0xFF800000> : vector<64xf32>
    %409 = vector.multi_reduction <maximumf>, %407, %cst_244 [1] : vector<64x16xf32> to vector<64xf32>
    %410 = vector.shape_cast %409 : vector<64xf32> to vector<64x1xf32>
    %411 = arith.maximumf %388, %410 : vector<64x1xf32>
    %412 = arith.subf %388, %411 : vector<64x1xf32>
    %413 = math.exp %412 : vector<64x1xf32>
    %414 = vector.broadcast %411 : vector<64x1xf32> to vector<64x16xf32>
    %415 = arith.subf %407, %414 : vector<64x16xf32>
    %416 = math.exp %415 : vector<64x16xf32>
    %417 = arith.mulf %413, %397 : vector<64x1xf32>
    %cst_245 = arith.constant dense<0.000000e+00> : vector<64xf32>
    %418 = vector.multi_reduction <add>, %416, %cst_245 [1] : vector<64x16xf32> to vector<64xf32>
    %419 = vector.shape_cast %418 : vector<64xf32> to vector<64x1xf32>
    %420 = arith.addf %417, %419 : vector<64x1xf32>
    %421 = vector.broadcast %413 : vector<64x1xf32> to vector<64x16xf32>
    %422 = arith.mulf %421, %401 : vector<64x16xf32>
    %cst_246 = arith.constant dense<0.000000e+00> : vector<64x16xf32>
    %423 = tpu.matmul %416, %408, %cst_246 {dimension_numbers = #tpu.dot_dimension_numbers<[1], [0], [0], [1], [0, 0, 1, 1], [], []>} : vector<64x16xf32>, vector<16x16xf32>, vector<64x16xf32> -> vector<64x16xf32>
    %424 = arith.addf %422, %423 : vector<64x16xf32>
    %425 = vector.broadcast %420 : vector<64x1xf32> to vector<64x16xf32>
    %426 = arith.divf %424, %425 : vector<64x16xf32>
    %c3_247 = arith.constant 3 : index
    %c0_248 = arith.constant 0 : index
    %c0_249 = arith.constant 0 : index
    %427 = vector.load %arg6[%c3_247, %c0_248, %c0_249] : memref<4x16x128xf32, #tpu.memory_space<vmem>>, vector<1x16x128xf32>
    %428 = vector.shape_cast %427 : vector<1x16x128xf32> to vector<16x128xf32>
    %cst_250 = arith.constant dense<0.000000e+00> : vector<64x128xf32>
    %429 = tpu.matmul %426, %428, %cst_250 {dimension_numbers = #tpu.dot_dimension_numbers<[1], [0], [0], [1], [0, 0, 1, 1], [], []>} : vector<64x16xf32>, vector<16x128xf32>, vector<64x128xf32> -> vector<64x128xf32>
    %430 = arith.addf %323, %429 : vector<64x128xf32>
    %c0_251 = arith.constant 0 : index
    %c0_252 = arith.constant 0 : index
    %431 = vector.load %arg7[%c0_251, %c0_252] : memref<1x128xf32, #tpu.memory_space<vmem>>, vector<1x128xf32>
    %432 = vector.broadcast %431 : vector<1x128xf32> to vector<64x128xf32>
    %433 = arith.addf %430, %432 : vector<64x128xf32>
    %cst_253 = arith.constant dense<0.000000e+00> : vector<64xf32>
    %434 = vector.multi_reduction <add>, %433, %cst_253 [1] : vector<64x128xf32> to vector<64xf32>
    %435 = vector.shape_cast %434 : vector<64xf32> to vector<64x1xf32>
    %cst_254 = arith.constant 1.280000e+02 : f32
    %436 = vector.broadcast %cst_254 : f32 to vector<64x1xf32>
    %437 = arith.divf %435, %436 : vector<64x1xf32>
    %438 = vector.broadcast %437 : vector<64x1xf32> to vector<64x128xf32>
    %439 = arith.subf %433, %438 : vector<64x128xf32>
    %440 = arith.mulf %439, %439 : vector<64x128xf32>
    %cst_255 = arith.constant dense<0.000000e+00> : vector<64xf32>
    %441 = vector.multi_reduction <add>, %440, %cst_255 [1] : vector<64x128xf32> to vector<64xf32>
    %442 = vector.shape_cast %441 : vector<64xf32> to vector<64x1xf32>
    %cst_256 = arith.constant 1.280000e+02 : f32
    %443 = vector.broadcast %cst_256 : f32 to vector<64x1xf32>
    %444 = arith.divf %442, %443 : vector<64x1xf32>
    %445 = vector.broadcast %437 : vector<64x1xf32> to vector<64x128xf32>
    %446 = arith.subf %433, %445 : vector<64x128xf32>
    %cst_257 = arith.constant 9.99999974E-6 : f32
    %447 = vector.broadcast %cst_257 : f32 to vector<64x1xf32>
    %448 = arith.addf %444, %447 : vector<64x1xf32>
    %449 = math.rsqrt %448 : vector<64x1xf32>
    %450 = vector.broadcast %449 : vector<64x1xf32> to vector<64x128xf32>
    %451 = arith.mulf %446, %450 : vector<64x128xf32>
    %c0_258 = arith.constant 0 : index
    %c0_259 = arith.constant 0 : index
    %452 = vector.load %arg8[%c0_258, %c0_259] : memref<1x128xf32, #tpu.memory_space<vmem>>, vector<1x128xf32>
    %453 = vector.broadcast %452 : vector<1x128xf32> to vector<64x128xf32>
    %454 = arith.mulf %451, %453 : vector<64x128xf32>
    %c0_260 = arith.constant 0 : index
    %c0_261 = arith.constant 0 : index
    %455 = vector.load %arg9[%c0_260, %c0_261] : memref<1x128xf32, #tpu.memory_space<vmem>>, vector<1x128xf32>
    %456 = vector.broadcast %455 : vector<1x128xf32> to vector<64x128xf32>
    %457 = arith.addf %454, %456 : vector<64x128xf32>
    %458 = arith.addf %457, %1 : vector<64x128xf32>
    %c0_262 = arith.constant 0 : index
    %c0_263 = arith.constant 0 : index
    %c0_264 = arith.constant 0 : index
    %459 = vector.load %arg10[%c0_262, %c0_263, %c0_264] : memref<1x64x128xf32, #tpu.memory_space<vmem>>, vector<1x64x128xf32>
    %460 = vector.shape_cast %459 : vector<1x64x128xf32> to vector<64x128xf32>
    %461 = vector.shape_cast %458 : vector<64x128xf32> to vector<1x64x128xf32>
    tpu.vector_store %arg10[%c0_262, %c0_263, %c0_264], %461 {strides = array<i32>} : memref<1x64x128xf32, #tpu.memory_space<vmem>>, vector<1x64x128xf32>,
    return
  }
  func.func @transform_0(%arg0: i32) -> (i32, i32, i32) {
    %c0_i32 = arith.constant 0 : i32
    %c0_i32_0 = arith.constant 0 : i32
    %c0_i32_1 = arith.constant 0 : i32
    return %arg0, %c0_i32, %c0_i32_0 : i32, i32, i32
  }
  func.func @transform_1(%arg0: i32) -> (i32, i32, i32, i32) {
    %c0_i32 = arith.constant 0 : i32
    %c0_i32_0 = arith.constant 0 : i32
    %c0_i32_1 = arith.constant 0 : i32
    %c0_i32_2 = arith.constant 0 : i32
    return %arg0, %c0_i32, %c0_i32_0, %c0_i32_1 : i32, i32, i32, i32
  }
  func.func @transform_2(%arg0: i32) -> (i32, i32, i32) {
    %c0_i32 = arith.constant 0 : i32
    %c0_i32_0 = arith.constant 0 : i32
    %c0_i32_1 = arith.constant 0 : i32
    %c0_i32_2 = arith.constant 0 : i32
    return %c0_i32, %c0_i32_0, %c0_i32_1 : i32, i32, i32
  }
  func.func @transform_3(%arg0: i32) -> (i32, i32, i32) {
    %c0_i32 = arith.constant 0 : i32
    %c0_i32_0 = arith.constant 0 : i32
    %c0_i32_1 = arith.constant 0 : i32
    %c0_i32_2 = arith.constant 0 : i32
    return %c0_i32, %c0_i32_0, %c0_i32_1 : i32, i32, i32
  }
  func.func @transform_4(%arg0: i32) -> (i32, i32, i32) {
    %c0_i32 = arith.constant 0 : i32
    %c0_i32_0 = arith.constant 0 : i32
    %c0_i32_1 = arith.constant 0 : i32
    %c0_i32_2 = arith.constant 0 : i32
    return %c0_i32, %c0_i32_0, %c0_i32_1 : i32, i32, i32
  }
  func.func @transform_5(%arg0: i32) -> (i32, i32, i32) {
    %c0_i32 = arith.constant 0 : i32
    %c0_i32_0 = arith.constant 0 : i32
    %c0_i32_1 = arith.constant 0 : i32
    %c0_i32_2 = arith.constant 0 : i32
    return %c0_i32, %c0_i32_0, %c0_i32_1 : i32, i32, i32
  }
  func.func @transform_6(%arg0: i32) -> (i32, i32) {
    %c0_i32 = arith.constant 0 : i32
    %c0_i32_0 = arith.constant 0 : i32
    %c0_i32_1 = arith.constant 0 : i32
    return %c0_i32, %c0_i32_0 : i32, i32
  }
  func.func @transform_7(%arg0: i32) -> (i32, i32) {
    %c0_i32 = arith.constant 0 : i32
    %c0_i32_0 = arith.constant 0 : i32
    %c0_i32_1 = arith.constant 0 : i32
    return %c0_i32, %c0_i32_0 : i32, i32
  }
  func.func @transform_8(%arg0: i32) -> (i32, i32) {
    %c0_i32 = arith.constant 0 : i32
    %c0_i32_0 = arith.constant 0 : i32
    %c0_i32_1 = arith.constant 0 : i32
    return %c0_i32, %c0_i32_0 : i32, i32
  }
  func.func @transform_9(%arg0: i32) -> (i32, i32, i32) {
    %c0_i32 = arith.constant 0 : i32
    %c0_i32_0 = arith.constant 0 : i32
    %c0_i32_1 = arith.constant 0 : i32
    return %arg0, %c0_i32, %c0_i32_0 : i32, i32, i32
  }
}

</mosaic_0001>

<llo_original>
// kernel: tpu_custom_call.1
$region0: #{tpu_custom_call.1}
  #allocation0 [shape = 'u32[]', space=smem, size = 0x4, offset = 0x4, fixed_abs, tag = 'smem constant byte address 0x4 - core index']
  #allocation1 [shape = 'u32[144,128]{1,0:T(1,128)}', space=vmem, size = 0x12000, scoped, tag = 'internal scratch']
  %s0 = inlined_call_operand.vmem [shape: f32[2,64,128], index: 0, kind: input, shape index: {}]
  %s1 = inlined_call_operand.vmem [shape: f32[2,4,16,128], index: 1, kind: input, shape index: {}]
  %s2 = inlined_call_operand.vmem [shape: f32[4,128,16], index: 2, kind: input, shape index: {}]
  %s3 = inlined_call_operand.vmem [shape: f32[4,128,16], index: 3, kind: input, shape index: {}]
  %s4 = inlined_call_operand.vmem [shape: f32[4,128,16], index: 4, kind: input, shape index: {}]
  %s5 = inlined_call_operand.vmem [shape: f32[4,16,128], index: 5, kind: input, shape index: {}]
  %s6 = inlined_call_operand.vmem [shape: f32[1,128], index: 6, kind: input, shape index: {}]
  %s7 = inlined_call_operand.vmem [shape: f32[1,128], index: 7, kind: input, shape index: {}]
  %s8 = inlined_call_operand.vmem [shape: f32[1,128], index: 8, kind: input, shape index: {}]
  %s9 = inlined_call_operand.hbm [shape: f32[2,64,128], index: 9, kind: output, shape index: {}]
  %s10 = sld [smem:[#allocation0]]
  $region69: #{tpu_custom_call.1} parent=0
    _
  %s12 = ssub.s32 1, %s10
  %s13 = scalar_select 0, %s12, %s10
  $region1: #{tpu_custom_call.1} parent=0
    #allocation2 [shape = 'u8[65536]{0}', space=vmem, size = 0x10000, scoped, tag = 'output window, operand 0']
    #allocation3 [shape = 's32[2]{0}', space=sflag, size = 0x8, scoped, tag = 'scoped memory for tpu_custom_call.1']
    %14 = vsyncpa [#allocation3], 0
    %s15 = scalar_lea.sflag [#allocation3], 1
    %16 = vsyncpa %s15, 0
    loop: start=0, step=1, limit=4
    $region2: #{tpu_custom_call.1} parent=1 // loop_pre_header
      _
    $region3: #{tpu_custom_call.1} parent=1 // loop_header
      %s18 = sphi 0, %s22
      %p19 = scmp.ge.s32.totalorder %s18, 4
      %s28 = sphi 0, %s30
      %s31 = sphi 0, %s28
      %s32 = sphi 0, %s31
      %s48 = sphi 0, %s32
      %s54 = sphi 0, %s56
      %s57 = sphi 0, %s54
      %s58 = sphi 0, %s57
      %s74 = sphi 0, %s58
      %s78 = sphi 0, %s78
      %s80 = sphi 0, %s78
      %s81 = sphi 0, %s80
      %s95 = sphi 0, %s81
      %s99 = sphi 0, %s99
      %s101 = sphi 0, %s99
      %s102 = sphi 0, %s101
      %s116 = sphi 0, %s102
      %s120 = sphi 0, %s120
      %s122 = sphi 0, %s120
      %s123 = sphi 0, %s122
      %s137 = sphi 0, %s123
      %s141 = sphi 0, %s141
      %s143 = sphi 0, %s141
      %s144 = sphi 0, %s143
      %s158 = sphi 0, %s144
      %s162 = sphi 0, %s162
      %s164 = sphi 0, %s162
      %s165 = sphi 0, %s164
      %s179 = sphi 0, %s165
      %s183 = sphi 0, %s183
      %s185 = sphi 0, %s183
      %s186 = sphi 0, %s185
      %s200 = sphi 0, %s186
      %s204 = sphi 0, %s204
      %s206 = sphi 0, %s204
      %s207 = sphi 0, %s206
      %s221 = sphi 0, %s207
      %s227 = sphi 0, %s229
      %s230 = sphi 0, %s227
      %s231 = sphi 0, %s230
      %s247 = sphi 0, %s231
    $region4: #{tpu_custom_call.1} parent=1 // loop_header_branch
      %21 = sbr.rel (%p19) target = $region8
    $region5: #{tpu_custom_call.1} parent=1 // loop_body
      %s23 = ssub.s32 %s18, 1
      %s24 = ssub.s32 %s18, 2
      %s25 = sadd.s32 %s18, 1
      %s26 = ssub.s32 %s18, %s25
      %p27 = scmp.eq.s32.totalorder %s26, 0
      %s29 = sadd.s32 %s28, 1
      %s30 = scalar_select %p27, %s28, %s29
      %p33 = pneg %p27
      %p34 = scmp.eq.s32.totalorder %s18, 1
      %p35 = por %p33, %p34
      %p36 = scmp.ne.s32.totalorder %s28, %s31
      %p37 = scmp.eq.s32.totalorder %s18, 0
      %p38 = por %p36, %p37
      %p39 = scmp.ne.s32.totalorder %s28, %s31
      %p40 = scmp.eq.s32.totalorder %s23, 1
      %p41 = por %p39, %p40
      %p42 = scmp.ne.s32.totalorder %s31, %s32
      %p43 = scmp.eq.s32.totalorder %s23, 0
      %p44 = por %p42, %p43
      %p45 = scmp.ne.s32.totalorder %s31, %s32
      %p46 = scmp.eq.s32.totalorder %s24, 1
      %p47 = por %p45, %p46
      %p49 = scmp.ne.s32.totalorder %s32, %s48
      %p50 = scmp.eq.s32.totalorder %s24, 0
      %p51 = por %p49, %p50
      %s52 = ssub.s32 %s18, %s25
      %p53 = scmp.eq.s32.totalorder %s52, 0
      %s55 = sadd.s32 %s54, 1
      %s56 = scalar_select %p53, %s54, %s55
      %p59 = pneg %p53
      %p60 = scmp.eq.s32.totalorder %s18, 1
      %p61 = por %p59, %p60
      %p62 = scmp.ne.s32.totalorder %s54, %s57
      %p63 = scmp.eq.s32.totalorder %s18, 0
      %p64 = por %p62, %p63
      %p65 = scmp.ne.s32.totalorder %s54, %s57
      %p66 = scmp.eq.s32.totalorder %s23, 1
      %p67 = por %p65, %p66
      %p68 = scmp.ne.s32.totalorder %s57, %s58
      %p69 = scmp.eq.s32.totalorder %s23, 0
      %p70 = por %p68, %p69
      %p71 = scmp.ne.s32.totalorder %s57, %s58
      %p72 = scmp.eq.s32.totalorder %s24, 1
      %p73 = por %p71, %p72
      %p75 = scmp.ne.s32.totalorder %s58, %s74
      %p76 = scmp.eq.s32.totalorder %s24, 0
      %p77 = por %p75, %p76
      %s79 = sadd.s32 %s78, 1
      %p82 = scmp.eq.s32.totalorder %s18, 1
      %p83 = scmp.ne.s32.totalorder %s78, %s80
      %p84 = scmp.eq.s32.totalorder %s18, 0
      %p85 = por %p83, %p84
      %p86 = scmp.ne.s32.totalorder %s78, %s80
      %p87 = scmp.eq.s32.totalorder %s23, 1
      %p88 = por %p86, %p87
      %p89 = scmp.ne.s32.totalorder %s80, %s81
      %p90 = scmp.eq.s32.totalorder %s23, 0
      %p91 = por %p89, %p90
      %p92 = scmp.ne.s32.totalorder %s80, %s81
      %p93 = scmp.eq.s32.totalorder %s24, 1
      %p94 = por %p92, %p93
      %p96 = scmp.ne.s32.totalorder %s81, %s95
      %p97 = scmp.eq.s32.totalorder %s24, 0
      %p98 = por %p96, %p97
      %s100 = sadd.s32 %s99, 1
      %p103 = scmp.eq.s32.totalorder %s18, 1
      %p104 = scmp.ne.s32.totalorder %s99, %s101
      %p105 = scmp.eq.s32.totalorder %s18, 0
      %p106 = por %p104, %p105
      %p107 = scmp.ne.s32.totalorder %s99, %s101
      %p108 = scmp.eq.s32.totalorder %s23, 1
      %p109 = por %p107, %p108
      %p110 = scmp.ne.s32.totalorder %s101, %s102
      %p111 = scmp.eq.s32.totalorder %s23, 0
      %p112 = por %p110, %p111
      %p113 = scmp.ne.s32.totalorder %s101, %s102
      %p114 = scmp.eq.s32.totalorder %s24, 1
      %p115 = por %p113, %p114
      %p117 = scmp.ne.s32.totalorder %s102, %s116
      %p118 = scmp.eq.s32.totalorder %s24, 0
      %p119 = por %p117, %p118
      %s121 = sadd.s32 %s120, 1
      %p124 = scmp.eq.s32.totalorder %s18, 1
      %p125 = scmp.ne.s32.totalorder %s120, %s122
      %p126 = scmp.eq.s32.totalorder %s18, 0
      %p127 = por %p125, %p126
      %p128 = scmp.ne.s32.totalorder %s120, %s122
      %p129 = scmp.eq.s32.totalorder %s23, 1
      %p130 = por %p128, %p129
      %p131 = scmp.ne.s32.totalorder %s122, %s123
      %p132 = scmp.eq.s32.totalorder %s23, 0
      %p133 = por %p131, %p132
      %p134 = scmp.ne.s32.totalorder %s122, %s123
      %p135 = scmp.eq.s32.totalorder %s24, 1
      %p136 = por %p134, %p135
      %p138 = scmp.ne.s32.totalorder %s123, %s137
      %p139 = scmp.eq.s32.totalorder %s24, 0
      %p140 = por %p138, %p139
      %s142 = sadd.s32 %s141, 1
      %p145 = scmp.eq.s32.totalorder %s18, 1
      %p146 = scmp.ne.s32.totalorder %s141, %s143
      %p147 = scmp.eq.s32.totalorder %s18, 0
      %p148 = por %p146, %p147
      %p149 = scmp.ne.s32.totalorder %s141, %s143
      %p150 = scmp.eq.s32.totalorder %s23, 1
      %p151 = por %p149, %p150
      %p152 = scmp.ne.s32.totalorder %s143, %s144
      %p153 = scmp.eq.s32.totalorder %s23, 0
      %p154 = por %p152, %p153
      %p155 = scmp.ne.s32.totalorder %s143, %s144
      %p156 = scmp.eq.s32.totalorder %s24, 1
      %p157 = por %p155, %p156
      %p159 = scmp.ne.s32.totalorder %s144, %s158
      %p160 = scmp.eq.s32.totalorder %s24, 0
      %p161 = por %p159, %p160
      %s163 = sadd.s32 %s162, 1
      %p166 = scmp.eq.s32.totalorder %s18, 1
      %p167 = scmp.ne.s32.totalorder %s162, %s164
      %p168 = scmp.eq.s32.totalorder %s18, 0
      %p169 = por %p167, %p168
      %p170 = scmp.ne.s32.totalorder %s162, %s164
      %p171 = scmp.eq.s32.totalorder %s23, 1
      %p172 = por %p170, %p171
      %p173 = scmp.ne.s32.totalorder %s164, %s165
      %p174 = scmp.eq.s32.totalorder %s23, 0
      %p175 = por %p173, %p174
      %p176 = scmp.ne.s32.totalorder %s164, %s165
      %p177 = scmp.eq.s32.totalorder %s24, 1
      %p178 = por %p176, %p177
      %p180 = scmp.ne.s32.totalorder %s165, %s179
      %p181 = scmp.eq.s32.totalorder %s24, 0
      %p182 = por %p180, %p181
      %s184 = sadd.s32 %s183, 1
      %p187 = scmp.eq.s32.totalorder %s18, 1
      %p188 = scmp.ne.s32.totalorder %s183, %s185
      %p189 = scmp.eq.s32.totalorder %s18, 0
      %p190 = por %p188, %p189
      %p191 = scmp.ne.s32.totalorder %s183, %s185
      %p192 = scmp.eq.s32.totalorder %s23, 1
      %p193 = por %p191, %p192
      %p194 = scmp.ne.s32.totalorder %s185, %s186
      %p195 = scmp.eq.s32.totalorder %s23, 0
      %p196 = por %p194, %p195
      %p197 = scmp.ne.s32.totalorder %s185, %s186
      %p198 = scmp.eq.s32.totalorder %s24, 1
      %p199 = por %p197, %p198
      %p201 = scmp.ne.s32.totalorder %s186, %s200
      %p202 = scmp.eq.s32.totalorder %s24, 0
      %p203 = por %p201, %p202
      %s205 = sadd.s32 %s204, 1
      %p208 = scmp.eq.s32.totalorder %s18, 1
      %p209 = scmp.ne.s32.totalorder %s204, %s206
      %p210 = scmp.eq.s32.totalorder %s18, 0
      %p211 = por %p209, %p210
      %p212 = scmp.ne.s32.totalorder %s204, %s206
      %p213 = scmp.eq.s32.totalorder %s23, 1
      %p214 = por %p212, %p213
      %p215 = scmp.ne.s32.totalorder %s206, %s207
      %p216 = scmp.eq.s32.totalorder %s23, 0
      %p217 = por %p215, %p216
      %p218 = scmp.ne.s32.totalorder %s206, %s207
      %p219 = scmp.eq.s32.totalorder %s24, 1
      %p220 = por %p218, %p219
      %p222 = scmp.ne.s32.totalorder %s207, %s221
      %p223 = scmp.eq.s32.totalorder %s24, 0
      %p224 = por %p222, %p223
      %s225 = ssub.s32 %s18, %s25
      %p226 = scmp.eq.s32.totalorder %s225, 0
      %s228 = sadd.s32 %s227, 1
      %s229 = scalar_select %p226, %s227, %s228
      %p232 = pneg %p226
      %p233 = scmp.eq.s32.totalorder %s18, 1
      %p234 = por %p232, %p233
      %p235 = scmp.ne.s32.totalorder %s227, %s230
      %p236 = scmp.eq.s32.totalorder %s18, 0
      %p237 = por %p235, %p236
      %p238 = scmp.ne.s32.totalorder %s227, %s230
      %p239 = scmp.eq.s32.totalorder %s23, 1
      %p240 = por %p238, %p239
      %p241 = scmp.ne.s32.totalorder %s230, %s231
      %p242 = scmp.eq.s32.totalorder %s23, 0
      %p243 = por %p241, %p242
      %p244 = scmp.ne.s32.totalorder %s230, %s231
      %p245 = scmp.eq.s32.totalorder %s24, 1
      %p246 = por %p244, %p245
      %p248 = scmp.ne.s32.totalorder %s231, %s247
      %p249 = scmp.eq.s32.totalorder %s24, 0
      %p250 = por %p248, %p249
      %p251 = scmp.le.s32.totalorder 1, %s18
      %p252 = scmp.lt.s32.totalorder %s18, 3
      %p253 = pnand %p251, %p252
      %p254 = pneg %p253
      // Predicated region
      $region9: #{tpu_custom_call.1} parent=5 // pred_check
        _
      $region10: #{tpu_custom_call.1} parent=5 // pred_check_branch
        %256 = sbr.rel (%p253) target = $region12
      $region11: #{tpu_custom_call.1} parent=5 // pred_region
        %s257 = ssub.s32 %s18, 1
        // Predicated region
        $region13: #{tpu_custom_call.1} parent=11 // pred_check
          %p258 = pneg %p91
        $region14: #{tpu_custom_call.1} parent=11 // pred_check_branch
          %260 = sbr.rel (%p258) target = $region16
        $region15: #{tpu_custom_call.1} parent=11 // pred_region
          _
        $region16: #{tpu_custom_call.1} parent=11 // pred_fallthru
          _
        // Predicated region
        $region17: #{tpu_custom_call.1} parent=11 // pred_check
          %p261 = pneg %p112
        $region18: #{tpu_custom_call.1} parent=11 // pred_check_branch
          %263 = sbr.rel (%p261) target = $region20
        $region19: #{tpu_custom_call.1} parent=11 // pred_region
          _
        $region20: #{tpu_custom_call.1} parent=11 // pred_fallthru
          _
        // Predicated region
        $region21: #{tpu_custom_call.1} parent=11 // pred_check
          %p264 = pneg %p133
        $region22: #{tpu_custom_call.1} parent=11 // pred_check_branch
          %266 = sbr.rel (%p264) target = $region24
        $region23: #{tpu_custom_call.1} parent=11 // pred_region
          _
        $region24: #{tpu_custom_call.1} parent=11 // pred_fallthru
          _
        // Predicated region
        $region25: #{tpu_custom_call.1} parent=11 // pred_check
          %p267 = pneg %p154
        $region26: #{tpu_custom_call.1} parent=11 // pred_check_branch
          %269 = sbr.rel (%p267) target = $region28
        $region27: #{tpu_custom_call.1} parent=11 // pred_region
          _
        $region28: #{tpu_custom_call.1} parent=11 // pred_fallthru
          _
        // Predicated region
        $region29: #{tpu_custom_call.1} parent=11 // pred_check
          %p270 = pneg %p175
        $region30: #{tpu_custom_call.1} parent=11 // pred_check_branch
          %272 = sbr.rel (%p270) target = $region32
        $region31: #{tpu_custom_call.1} parent=11 // pred_region
          _
        $region32: #{tpu_custom_call.1} parent=11 // pred_fallthru
          _
        // Predicated region
        $region33: #{tpu_custom_call.1} parent=11 // pred_check
          %p273 = pneg %p196
        $region34: #{tpu_custom_call.1} parent=11 // pred_check_branch
          %275 = sbr.rel (%p273) target = $region36
        $region35: #{tpu_custom_call.1} parent=11 // pred_region
          _
        $region36: #{tpu_custom_call.1} parent=11 // pred_fallthru
          _
        // Predicated region
        $region37: #{tpu_custom_call.1} parent=11 // pred_check
          %p276 = pneg %p217
        $region38: #{tpu_custom_call.1} parent=11 // pred_check_branch
          %278 = sbr.rel (%p276) target = $region40
        $region39: #{tpu_custom_call.1} parent=11 // pred_region
          _
        $region40: #{tpu_custom_call.1} parent=11 // pred_fallthru
          _
      $region12: #{tpu_custom_call.1} parent=5 // pred_fallthru
        _
      %p279 = scmp.lt.s32.totalorder %s18, 2
      // Predicated region
      $region41: #{tpu_custom_call.1} parent=5 // pred_check
        %p280 = pneg %p279
      $region42: #{tpu_custom_call.1} parent=5 // pred_check_branch
        %282 = sbr.rel (%p280) target = $region44
      $region43: #{tpu_custom_call.1} parent=5 // pred_region
        // Predicated region
        $region45: #{tpu_custom_call.1} parent=43 // pred_check
          %p283 = pneg %p38
        $region46: #{tpu_custom_call.1} parent=43 // pred_check_branch
          %285 = sbr.rel (%p283) target = $region48
        $region47: #{tpu_custom_call.1} parent=43 // pred_region
          %p286 = scmp.lt.s32.totalorder %s18, 1
          %s287 = scalar_select %p286, %s18, 1
          %s288 = smul.addr %s287, 8
          %s289 = smul.addr %s288, 8
          %s290 = scalar_lea.vmem %s0, %s289
        $region48: #{tpu_custom_call.1} parent=43 // pred_fallthru
          _
        // Predicated region
        $region49: #{tpu_custom_call.1} parent=43 // pred_check
          %p291 = pneg %p64
        $region50: #{tpu_custom_call.1} parent=43 // pred_check_branch
          %293 = sbr.rel (%p291) target = $region52
        $region51: #{tpu_custom_call.1} parent=43 // pred_region
          %p294 = scmp.lt.s32.totalorder %s18, 1
          %s295 = scalar_select %p294, %s18, 1
          %s296 = smul.addr %s295, 8
          %s297 = smul.addr %s296, 8
          %s298 = scalar_lea.vmem %s1, %s297
        $region52: #{tpu_custom_call.1} parent=43 // pred_fallthru
          _
      $region44: #{tpu_custom_call.1} parent=5 // pred_fallthru
        _
      %p299 = scmp.le.s32.totalorder 1, %s18
      %p300 = scmp.lt.s32.totalorder %s18, 3
      %p301 = pnand %p299, %p300
      %p302 = pneg %p301
      // Predicated region
      $region53: #{tpu_custom_call.1} parent=5 // pred_check
        _
      $region54: #{tpu_custom_call.1} parent=5 // pred_check_branch
        %304 = sbr.rel (%p301) target = $region56
      $region55: #{tpu_custom_call.1} parent=5 // pred_region
        %s305 = ssub.s32 %s18, 1
        %p306 = scmp.lt.s32.totalorder %s23, 1
        %s307 = scalar_select %p306, %s23, 1
        %s308 = smul.addr %s307, 8
        %s309 = smul.addr %s308, 8
        %s310 = scalar_lea.vmem %s0, %s309
        %p311 = pneg %p44
        %p312 = pneg %p41
        %p313 = scmp.lt.s32.totalorder %s23, 1
        %s314 = scalar_select %p313, %s23, 1
        %s315 = smul.addr %s314, 8
        %s316 = smul.addr %s315, 8
        %s317 = scalar_lea.vmem %s1, %s316
        %p318 = pneg %p70
        %p319 = pneg %p67
        %p320 = pneg %p91
        %p321 = pneg %p88
        %p322 = pneg %p112
        %p323 = pneg %p109
        %p324 = pneg %p133
        %p325 = pneg %p130
        %p326 = pneg %p154
        %p327 = pneg %p151
        %p328 = pneg %p175
        %p329 = pneg %p172
        %p330 = pneg %p196
        %p331 = pneg %p193
        %p332 = pneg %p217
        %p333 = pneg %p214
        %p334 = pneg %p243
        %p335 = pneg %p240
        %s336 = sand.u32 %s230, 1
        %s337 = scalar_lea.sflag [#allocation3], %s336
        %s338 = sand.u32 %s230, 1
        %s339 = smul.addr %s338, 64
        %s340 = scalar_lea.vmem [#allocation2], %s339
        %p341 = scmp.lt.s32.totalorder %s23, 1
        %s342 = scalar_select %p341, %s23, 1
        %s343 = smul.addr %s342, 8
        %s344 = smul.addr %s343, 8
        %s345 = scalar_lea.vmem %s0, %s344
        %p346 = scmp.lt.s32.totalorder %s23, 1
        %s347 = scalar_select %p346, %s23, 1
        %s348 = smul.addr %s347, 8
        %s349 = smul.addr %s348, 8
        %s350 = scalar_lea.vmem %s1, %s349
        %v351 = vld [vmem:[%s345] sm:$0xff]
        %v352 = vld [vmem:[%s345 + $0x8] sm:$0xff]
        %v353 = vld [vmem:[%s345 + $0x10] sm:$0xff]
        %v354 = vld [vmem:[%s345 + $0x18] sm:$0xff]
        %v355 = vld [vmem:[%s345 + $0x20] sm:$0xff]
        %v356 = vld [vmem:[%s345 + $0x28] sm:$0xff]
        %v357 = vld [vmem:[%s345 + $0x30] sm:$0xff]
        %v358 = vld [vmem:[%s345 + $0x38] sm:$0xff]
        %v359 = vld [vmem:[%s2] sm:$0xff]
        %v360 = vld [vmem:[%s2 + $0x8] sm:$0xff]
        %v361 = vld [vmem:[%s2 + $0x10] sm:$0xff]
        %v362 = vld [vmem:[%s2 + $0x18] sm:$0xff]
        %v363 = vld [vmem:[%s2 + $0x20] sm:$0xff]
        %v364 = vld [vmem:[%s2 + $0x28] sm:$0xff]
        %v365 = vld [vmem:[%s2 + $0x30] sm:$0xff]
        %v366 = vld [vmem:[%s2 + $0x38] sm:$0xff]
        %v367 = vld [vmem:[%s2 + $0x40] sm:$0xff]
        %v368 = vld [vmem:[%s2 + $0x48] sm:$0xff]
        %v369 = vld [vmem:[%s2 + $0x50] sm:$0xff]
        %v370 = vld [vmem:[%s2 + $0x58] sm:$0xff]
        %v371 = vld [vmem:[%s2 + $0x60] sm:$0xff]
        %v372 = vld [vmem:[%s2 + $0x68] sm:$0xff]
        %v373 = vld [vmem:[%s2 + $0x70] sm:$0xff]
        %v374 = vld [vmem:[%s2 + $0x78] sm:$0xff]
        %375 = vmatprep.subr.mxu0 0.0
        %376 = vmatpush1.msra.mxu0 %v359
        %377 = vmatprep.subr.mxu0 0.0
        %378 = vmatpush1.msra.mxu0 %v360
        %379 = vmatprep.subr.mxu0 0.0
        %380 = vmatpush1.msra.mxu0 %v361
        %381 = vmatprep.subr.mxu0 0.0
        %382 = vmatpush1.msra.mxu0 %v362
        %383 = vmatprep.subr.mxu0 0.0
        %384 = vmatpush1.msra.mxu0 %v363
        %385 = vmatprep.subr.mxu0 0.0
        %386 = vmatpush1.msra.mxu0 %v364
        %387 = vmatprep.subr.mxu0 0.0
        %388 = vmatpush1.msra.mxu0 %v365
        %389 = vmatprep.subr.mxu0 0.0
        %390 = vmatpush1.msra.mxu0 %v366
        %391 = vmatprep.subr.mxu0 0.0
        %392 = vmatpush1.msra.mxu0 %v367
        %393 = vmatprep.subr.mxu0 0.0
        %394 = vmatpush1.msra.mxu0 %v368
        %395 = vmatprep.subr.mxu0 0.0
        %396 = vmatpush1.msra.mxu0 %v369
        %397 = vmatprep.subr.mxu0 0.0
        %398 = vmatpush1.msra.mxu0 %v370
        %399 = vmatprep.subr.mxu0 0.0
        %400 = vmatpush1.msra.mxu0 %v371
        %401 = vmatprep.subr.mxu0 0.0
        %402 = vmatpush1.msra.mxu0 %v372
        %403 = vmatprep.subr.mxu0 0.0
        %404 = vmatpush1.msra.mxu0 %v373
        %405 = vmatprep.subr.mxu0 0.0
        %406 = vmatpush1.msra.mxu0 %v374
        %407 = vmatprep.subr.mxu0 0.0
        %408 = vmatpush1.msra.mxu0 0.0
        %409 = vmatprep.subr.mxu0 0.0
        %410 = vmatpush1.msra.mxu0 0.0
        %411 = vmatprep.subr.mxu0 0.0
        %412 = vmatpush1.msra.mxu0 0.0
        %413 = vmatprep.subr.mxu0 0.0
        %414 = vmatpush1.msra.mxu0 0.0
        %415 = vmatprep.subr.mxu0 0.0
        %416 = vmatpush1.msra.mxu0 0.0
        %417 = vmatprep.subr.mxu0 0.0
        %418 = vmatpush1.msra.mxu0 0.0
        %419 = vmatprep.subr.mxu0 0.0
        %420 = vmatpush1.msra.mxu0 0.0
        %421 = vmatprep.subr.mxu0 0.0
        %422 = vmatpush1.msra.mxu0 0.0
        %423 = vmatprep.subr.mxu0 0.0
        %424 = vmatpush1.msra.mxu0 0.0
        %425 = vmatprep.subr.mxu0 0.0
        %426 = vmatpush1.msra.mxu0 0.0
        %427 = vmatprep.subr.mxu0 0.0
        %428 = vmatpush1.msra.mxu0 0.0
        %429 = vmatprep.subr.mxu0 0.0
        %430 = vmatpush1.msra.mxu0 0.0
        %431 = vmatprep.subr.mxu0 0.0
        %432 = vmatpush1.msra.mxu0 0.0
        %433 = vmatprep.subr.mxu0 0.0
        %434 = vmatpush1.msra.mxu0 0.0
        %435 = vmatprep.subr.mxu0 0.0
        %436 = vmatpush1.msra.mxu0 0.0
        %437 = vmatprep.subr.mxu0 0.0
        %438 = vmatpush1.msra.mxu0 0.0
        %439 = vmatprep.mubr.f32.mxu0 0.0
        %440 = vmatmul.mubr.f32.gmra.mrb[0].mxu0 %v351
        %v441 = vpop.f32.mrb[0].mxu0
        %v442 = vadd.f32 0.0, %v441
        %v443 = vpop.f32.mrb[0].mxu0
        %444 = vmatprep.mubr.f32.mxu0 0.0
        %445 = vmatmul.mubr.f32.gmra.mrb[0].mxu0 %v352
        %v446 = vpop.f32.mrb[0].mxu0
        %v447 = vadd.f32 0.0, %v446
        %v448 = vpop.f32.mrb[0].mxu0
        %449 = vmatprep.mubr.f32.mxu0 0.0
        %450 = vmatmul.mubr.f32.gmra.mrb[0].mxu0 %v353
        %v451 = vpop.f32.mrb[0].mxu0
        %v452 = vadd.f32 0.0, %v451
        %v453 = vpop.f32.mrb[0].mxu0
        %454 = vmatprep.mubr.f32.mxu0 0.0
        %455 = vmatmul.mubr.f32.gmra.mrb[0].mxu0 %v354
        %v456 = vpop.f32.mrb[0].mxu0
        %v457 = vadd.f32 0.0, %v456
        %v458 = vpop.f32.mrb[0].mxu0
        %459 = vmatprep.mubr.f32.mxu0 0.0
        %460 = vmatmul.mubr.f32.gmra.mrb[0].mxu0 %v355
        %v461 = vpop.f32.mrb[0].mxu0
        %v462 = vadd.f32 0.0, %v461
        %v463 = vpop.f32.mrb[0].mxu0
        %464 = vmatprep.mubr.f32.mxu0 0.0
        %465 = vmatmul.mubr.f32.gmra.mrb[0].mxu0 %v356
        %v466 = vpop.f32.mrb[0].mxu0
        %v467 = vadd.f32 0.0, %v466
        %v468 = vpop.f32.mrb[0].mxu0
        %469 = vmatprep.mubr.f32.mxu0 0.0
        %470 = vmatmul.mubr.f32.gmra.mrb[0].mxu0 %v357
        %v471 = vpop.f32.mrb[0].mxu0
        %v472 = vadd.f32 0.0, %v471
        %v473 = vpop.f32.mrb[0].mxu0
        %474 = vmatprep.mubr.f32.mxu0 0.0
        %475 = vmatmul.mubr.f32.gmra.mrb[0].mxu0 %v358
        %v476 = vpop.f32.mrb[0].mxu0
        %v477 = vadd.f32 0.0, %v476
        %v478 = vpop.f32.mrb[0].mxu0
        %479 = vdwg.mxu0
        %v480 = vld [vmem:[%s4] sm:$0xff]
        %v481 = vld [vmem:[%s4 + $0x8] sm:$0xff]
        %v482 = vld [vmem:[%s4 + $0x10] sm:$0xff]
        %v483 = vld [vmem:[%s4 + $0x18] sm:$0xff]
        %v484 = vld [vmem:[%s4 + $0x20] sm:$0xff]
        %v485 = vld [vmem:[%s4 + $0x28] sm:$0xff]
        %v486 = vld [vmem:[%s4 + $0x30] sm:$0xff]
        %v487 = vld [vmem:[%s4 + $0x38] sm:$0xff]
        %v488 = vld [vmem:[%s4 + $0x40] sm:$0xff]
        %v489 = vld [vmem:[%s4 + $0x48] sm:$0xff]
        %v490 = vld [vmem:[%s4 + $0x50] sm:$0xff]
        %v491 = vld [vmem:[%s4 + $0x58] sm:$0xff]
        %v492 = vld [vmem:[%s4 + $0x60] sm:$0xff]
        %v493 = vld [vmem:[%s4 + $0x68] sm:$0xff]
        %v494 = vld [vmem:[%s4 + $0x70] sm:$0xff]
        %v495 = vld [vmem:[%s4 + $0x78] sm:$0xff]
        %496 = vmatprep.subr.mxu0 0.0
        %497 = vmatpush1.msra.mxu0 %v480
        %498 = vmatprep.subr.mxu0 0.0
        %499 = vmatpush1.msra.mxu0 %v481
        %500 = vmatprep.subr.mxu0 0.0
        %501 = vmatpush1.msra.mxu0 %v482
        %502 = vmatprep.subr.mxu0 0.0
        %503 = vmatpush1.msra.mxu0 %v483
        %504 = vmatprep.subr.mxu0 0.0
        %505 = vmatpush1.msra.mxu0 %v484
        %506 = vmatprep.subr.mxu0 0.0
        %507 = vmatpush1.msra.mxu0 %v485
        %508 = vmatprep.subr.mxu0 0.0
        %509 = vmatpush1.msra.mxu0 %v486
        %510 = vmatprep.subr.mxu0 0.0
        %511 = vmatpush1.msra.mxu0 %v487
        %512 = vmatprep.subr.mxu0 0.0
        %513 = vmatpush1.msra.mxu0 %v488
        %514 = vmatprep.subr.mxu0 0.0
        %515 = vmatpush1.msra.mxu0 %v489
        %516 = vmatprep.subr.mxu0 0.0
        %517 = vmatpush1.msra.mxu0 %v490
        %518 = vmatprep.subr.mxu0 0.0
        %519 = vmatpush1.msra.mxu0 %v491
        %520 = vmatprep.subr.mxu0 0.0
        %521 = vmatpush1.msra.mxu0 %v492
        %522 = vmatprep.subr.mxu0 0.0
        %523 = vmatpush1.msra.mxu0 %v493
        %524 = vmatprep.subr.mxu0 0.0
        %525 = vmatpush1.msra.mxu0 %v494
        %526 = vmatprep.subr.mxu0 0.0
        %527 = vmatpush1.msra.mxu0 %v495
        %528 = vmatprep.subr.mxu0 0.0
        %529 = vmatpush1.msra.mxu0 0.0
        %530 = vmatprep.subr.mxu0 0.0
        %531 = vmatpush1.msra.mxu0 0.0
        %532 = vmatprep.subr.mxu0 0.0
        %533 = vmatpush1.msra.mxu0 0.0
        %534 = vmatprep.subr.mxu0 0.0
        %535 = vmatpush1.msra.mxu0 0.0
        %536 = vmatprep.subr.mxu0 0.0
        %537 = vmatpush1.msra.mxu0 0.0
        %538 = vmatprep.subr.mxu0 0.0
        %539 = vmatpush1.msra.mxu0 0.0
        %540 = vmatprep.subr.mxu0 0.0
        %541 = vmatpush1.msra.mxu0 0.0
        %542 = vmatprep.subr.mxu0 0.0
        %543 = vmatpush1.msra.mxu0 0.0
        %544 = vmatprep.subr.mxu0 0.0
        %545 = vmatpush1.msra.mxu0 0.0
        %546 = vmatprep.subr.mxu0 0.0
        %547 = vmatpush1.msra.mxu0 0.0
        %548 = vmatprep.subr.mxu0 0.0
        %549 = vmatpush1.msra.mxu0 0.0
        %550 = vmatprep.subr.mxu0 0.0
        %551 = vmatpush1.msra.mxu0 0.0
        %552 = vmatprep.subr.mxu0 0.0
        %553 = vmatpush1.msra.mxu0 0.0
        %554 = vmatprep.subr.mxu0 0.0
        %555 = vmatpush1.msra.mxu0 0.0
        %556 = vmatprep.subr.mxu0 0.0
        %557 = vmatpush1.msra.mxu0 0.0
        %558 = vmatprep.subr.mxu0 0.0
        %559 = vmatpush1.msra.mxu0 0.0
        %560 = vmatprep.mubr.f32.mxu0 0.0
        %561 = vmatmul.mubr.f32.gmra.mrb[0].mxu0 %v351
        %v562 = vpop.f32.mrb[0].mxu0
        %v563 = vadd.f32 0.0, %v562
        %v564 = vpop.f32.mrb[0].mxu0
        %565 = vmatprep.mubr.f32.mxu0 0.0
        %566 = vmatmul.mubr.f32.gmra.mrb[0].mxu0 %v352
        %v567 = vpop.f32.mrb[0].mxu0
        %v568 = vadd.f32 0.0, %v567
        %v569 = vpop.f32.mrb[0].mxu0
        %570 = vmatprep.mubr.f32.mxu0 0.0
        %571 = vmatmul.mubr.f32.gmra.mrb[0].mxu0 %v353
        %v572 = vpop.f32.mrb[0].mxu0
        %v573 = vadd.f32 0.0, %v572
        %v574 = vpop.f32.mrb[0].mxu0
        %575 = vmatprep.mubr.f32.mxu0 0.0
        %576 = vmatmul.mubr.f32.gmra.mrb[0].mxu0 %v354
        %v577 = vpop.f32.mrb[0].mxu0
        %v578 = vadd.f32 0.0, %v577
        %v579 = vpop.f32.mrb[0].mxu0
        %580 = vmatprep.mubr.f32.mxu0 0.0
        %581 = vmatmul.mubr.f32.gmra.mrb[0].mxu0 %v355
        %v582 = vpop.f32.mrb[0].mxu0
        %v583 = vadd.f32 0.0, %v582
        %v584 = vpop.f32.mrb[0].mxu0
        %585 = vmatprep.mubr.f32.mxu0 0.0
        %586 = vmatmul.mubr.f32.gmra.mrb[0].mxu0 %v356
        %v587 = vpop.f32.mrb[0].mxu0
        %v588 = vadd.f32 0.0, %v587
        %v589 = vpop.f32.mrb[0].mxu0
        %590 = vmatprep.mubr.f32.mxu0 0.0
        %591 = vmatmul.mubr.f32.gmra.mrb[0].mxu0 %v357
        %v592 = vpop.f32.mrb[0].mxu0
        %v593 = vadd.f32 0.0, %v592
        %v594 = vpop.f32.mrb[0].mxu0
        %595 = vmatprep.mubr.f32.mxu0 0.0
        %596 = vmatmul.mubr.f32.gmra.mrb[0].mxu0 %v358
        %v597 = vpop.f32.mrb[0].mxu0
        %v598 = vadd.f32 0.0, %v597
        %v599 = vpop.f32.mrb[0].mxu0
        %600 = vdwg.mxu0
        %v601 = vld [vmem:[%s350] sm:$0xff]
        %v602 = vld [vmem:[%s350 + $0x8] sm:$0xff]
        %v603 = vld [vmem:[%s3] sm:$0xff]
        %v604 = vld [vmem:[%s3 + $0x8] sm:$0xff]
        %v605 = vld [vmem:[%s3 + $0x10] sm:$0xff]
        %v606 = vld [vmem:[%s3 + $0x18] sm:$0xff]
        %v607 = vld [vmem:[%s3 + $0x20] sm:$0xff]
        %v608 = vld [vmem:[%s3 + $0x28] sm:$0xff]
        %v609 = vld [vmem:[%s3 + $0x30] sm:$0xff]
        %v610 = vld [vmem:[%s3 + $0x38] sm:$0xff]
        %v611 = vld [vmem:[%s3 + $0x40] sm:$0xff]
        %v612 = vld [vmem:[%s3 + $0x48] sm:$0xff]
        %v613 = vld [vmem:[%s3 + $0x50] sm:$0xff]
        %v614 = vld [vmem:[%s3 + $0x58] sm:$0xff]
        %v615 = vld [vmem:[%s3 + $0x60] sm:$0xff]
        %v616 = vld [vmem:[%s3 + $0x68] sm:$0xff]
        %v617 = vld [vmem:[%s3 + $0x70] sm:$0xff]
        %v618 = vld [vmem:[%s3 + $0x78] sm:$0xff]
        %619 = vmatprep.subr.mxu0 0.0
        %620 = vmatpush1.msra.mxu0 %v603
        %621 = vmatprep.subr.mxu0 0.0
        %622 = vmatpush1.msra.mxu0 %v604
        %623 = vmatprep.subr.mxu0 0.0
        %624 = vmatpush1.msra.mxu0 %v605
        %625 = vmatprep.subr.mxu0 0.0
        %626 = vmatpush1.msra.mxu0 %v606
        %627 = vmatprep.subr.mxu0 0.0
        %628 = vmatpush1.msra.mxu0 %v607
        %629 = vmatprep.subr.mxu0 0.0
        %630 = vmatpush1.msra.mxu0 %v608
        %631 = vmatprep.subr.mxu0 0.0
        %632 = vmatpush1.msra.mxu0 %v609
        %633 = vmatprep.subr.mxu0 0.0
        %634 = vmatpush1.msra.mxu0 %v610
        %635 = vmatprep.subr.mxu0 0.0
        %636 = vmatpush1.msra.mxu0 %v611
        %637 = vmatprep.subr.mxu0 0.0
        %638 = vmatpush1.msra.mxu0 %v612
        %639 = vmatprep.subr.mxu0 0.0
        %640 = vmatpush1.msra.mxu0 %v613
        %641 = vmatprep.subr.mxu0 0.0
        %642 = vmatpush1.msra.mxu0 %v614
        %643 = vmatprep.subr.mxu0 0.0
        %644 = vmatpush1.msra.mxu0 %v615
        %645 = vmatprep.subr.mxu0 0.0
        %646 = vmatpush1.msra.mxu0 %v616
        %647 = vmatprep.subr.mxu0 0.0
        %648 = vmatpush1.msra.mxu0 %v617
        %649 = vmatprep.subr.mxu0 0.0
        %650 = vmatpush1.msra.mxu0 %v618
        %651 = vmatprep.subr.mxu0 0.0
        %652 = vmatpush1.msra.mxu0 0.0
        %653 = vmatprep.subr.mxu0 0.0
        %654 = vmatpush1.msra.mxu0 0.0
        %655 = vmatprep.subr.mxu0 0.0
        %656 = vmatpush1.msra.mxu0 0.0
        %657 = vmatprep.subr.mxu0 0.0
        %658 = vmatpush1.msra.mxu0 0.0
        %659 = vmatprep.subr.mxu0 0.0
        %660 = vmatpush1.msra.mxu0 0.0
        %661 = vmatprep.subr.mxu0 0.0
        %662 = vmatpush1.msra.mxu0 0.0
        %663 = vmatprep.subr.mxu0 0.0
        %664 = vmatpush1.msra.mxu0 0.0
        %665 = vmatprep.subr.mxu0 0.0
        %666 = vmatpush1.msra.mxu0 0.0
        %667 = vmatprep.subr.mxu0 0.0
        %668 = vmatpush1.msra.mxu0 0.0
        %669 = vmatprep.subr.mxu0 0.0
        %670 = vmatpush1.msra.mxu0 0.0
        %671 = vmatprep.subr.mxu0 0.0
        %672 = vmatpush1.msra.mxu0 0.0
        %673 = vmatprep.subr.mxu0 0.0
        %674 = vmatpush1.msra.mxu0 0.0
        %675 = vmatprep.subr.mxu0 0.0
        %676 = vmatpush1.msra.mxu0 0.0
        %677 = vmatprep.subr.mxu0 0.0
        %678 = vmatpush1.msra.mxu0 0.0
        %679 = vmatprep.subr.mxu0 0.0
        %680 = vmatpush1.msra.mxu0 0.0
        %681 = vmatprep.subr.mxu0 0.0
        %682 = vmatpush1.msra.mxu0 0.0
        %683 = vmatprep.mubr.f32.mxu0 0.0
        %684 = vmatmul.mubr.f32.gmra.mrb[0].mxu0 %v601
        %v685 = vpop.f32.mrb[0].mxu0
        %v686 = vadd.f32 0.0, %v685
        %v687 = vpop.f32.mrb[0].mxu0
        %688 = vmatprep.mubr.f32.mxu0 0.0
        %689 = vmatmul.mubr.f32.gmra.mrb[0].mxu0 %v602
        %v690 = vpop.f32.mrb[0].mxu0
        %v691 = vadd.f32 0.0, %v690
        %v692 = vpop.f32.mrb[0].mxu0
        %693 = vdwg.mxu0
        %vm694 = vcmask 130048
        %v696 = vsel %vm694, %v442, 0
        %v699 = vsel %vm694, %v447, 0
        %v702 = vsel %vm694, %v452, 0
        %v705 = vsel %vm694, %v457, 0
        %v708 = vsel %vm694, %v462, 0
        %v711 = vsel %vm694, %v467, 0
        %v714 = vsel %vm694, %v472, 0
        %v717 = vsel %vm694, %v477, 0
        %719 = vmatprep.subr.mxu0 0.0
        %720 = vmatpush1.msra.mxu0 %v686
        %721 = vmatprep.subr.mxu0 0.0
        %722 = vmatpush1.msra.mxu0 %v691
        %723 = vmatprep.subr.mxu0 0.0
        %724 = vmatpush1.msra.mxu0 0.0
        %725 = vmatprep.subr.mxu0 0.0
        %726 = vmatpush1.msra.mxu0 0.0
        %727 = vmatprep.subr.mxu0 0.0
        %728 = vmatpush1.msra.mxu0 0.0
        %729 = vmatprep.subr.mxu0 0.0
        %730 = vmatpush1.msra.mxu0 0.0
        %731 = vmatprep.subr.mxu0 0.0
        %732 = vmatpush1.msra.mxu0 0.0
        %733 = vmatprep.subr.mxu0 0.0
        %734 = vmatpush1.msra.mxu0 0.0
        %735 = vmatprep.subr.mxu0 0.0
        %736 = vmatpush1.msra.mxu0 0.0
        %737 = vmatprep.subr.mxu0 0.0
        %738 = vmatpush1.msra.mxu0 0.0
        %739 = vmatprep.subr.mxu0 0.0
        %740 = vmatpush1.msra.mxu0 0.0
        %741 = vmatprep.subr.mxu0 0.0
        %742 = vmatpush1.msra.mxu0 0.0
        %743 = vmatprep.subr.mxu0 0.0
        %744 = vmatpush1.msra.mxu0 0.0
        %745 = vmatprep.subr.mxu0 0.0
        %746 = vmatpush1.msra.mxu0 0.0
        %747 = vmatprep.subr.mxu0 0.0
        %748 = vmatpush1.msra.mxu0 0.0
        %749 = vmatprep.subr.mxu0 0.0
        %750 = vmatpush1.msra.mxu0 0.0
        %751 = vmatprep.subr.mxu0 0.0
        %752 = vmatpush1.msra.mxu0 0.0
        %753 = vmatprep.subr.mxu0 0.0
        %754 = vmatpush1.msra.mxu0 0.0
        %755 = vmatprep.subr.mxu0 0.0
        %756 = vmatpush1.msra.mxu0 0.0
        %757 = vmatprep.subr.mxu0 0.0
        %758 = vmatpush1.msra.mxu0 0.0
        %759 = vmatprep.subr.mxu0 0.0
        %760 = vmatpush1.msra.mxu0 0.0
        %761 = vmatprep.subr.mxu0 0.0
        %762 = vmatpush1.msra.mxu0 0.0
        %763 = vmatprep.subr.mxu0 0.0
        %764 = vmatpush1.msra.mxu0 0.0
        %765 = vmatprep.subr.mxu0 0.0
        %766 = vmatpush1.msra.mxu0 0.0
        %767 = vmatprep.subr.mxu0 0.0
        %768 = vmatpush1.msra.mxu0 0.0
        %769 = vmatprep.subr.mxu0 0.0
        %770 = vmatpush1.msra.mxu0 0.0
        %771 = vmatprep.subr.mxu0 0.0
        %772 = vmatpush1.msra.mxu0 0.0
        %773 = vmatprep.subr.mxu0 0.0
        %774 = vmatpush1.msra.mxu0 0.0
        %775 = vmatprep.subr.mxu0 0.0
        %776 = vmatpush1.msra.mxu0 0.0
        %777 = vmatprep.subr.mxu0 0.0
        %778 = vmatpush1.msra.mxu0 0.0
        %779 = vmatprep.subr.mxu0 0.0
        %780 = vmatpush1.msra.mxu0 0.0
        %781 = vmatprep.subr.mxu0 0.0
        %782 = vmatpush1.msra.mxu0 0.0
        %783 = vmatprep.mubr.f32.mxu0 0.0
        %784 = vmatmul.mubr.f32.gmra.mrb[0].mxu0 %v696
        %v785 = vpop.f32.mrb[0].mxu0
        %v786 = vadd.f32 0.0, %v785
        %v787 = vpop.f32.mrb[0].mxu0
        %788 = vmatprep.mubr.f32.mxu0 0.0
        %789 = vmatmul.mubr.f32.gmra.mrb[0].mxu0 %v699
        %v790 = vpop.f32.mrb[0].mxu0
        %v791 = vadd.f32 0.0, %v790
        %v792 = vpop.f32.mrb[0].mxu0
        %793 = vmatprep.mubr.f32.mxu0 0.0
        %794 = vmatmul.mubr.f32.gmra.mrb[0].mxu0 %v702
        %v795 = vpop.f32.mrb[0].mxu0
        %v796 = vadd.f32 0.0, %v795
        %v797 = vpop.f32.mrb[0].mxu0
        %798 = vmatprep.mubr.f32.mxu0 0.0
        %799 = vmatmul.mubr.f32.gmra.mrb[0].mxu0 %v705
        %v800 = vpop.f32.mrb[0].mxu0
        %v801 = vadd.f32 0.0, %v800
        %v802 = vpop.f32.mrb[0].mxu0
        %803 = vmatprep.mubr.f32.mxu0 0.0
        %804 = vmatmul.mubr.f32.gmra.mrb[0].mxu0 %v708
        %v805 = vpop.f32.mrb[0].mxu0
        %v806 = vadd.f32 0.0, %v805
        %v807 = vpop.f32.mrb[0].mxu0
        %808 = vmatprep.mubr.f32.mxu0 0.0
        %809 = vmatmul.mubr.f32.gmra.mrb[0].mxu0 %v711
        %v810 = vpop.f32.mrb[0].mxu0
        %v811 = vadd.f32 0.0, %v810
        %v812 = vpop.f32.mrb[0].mxu0
        %813 = vmatprep.mubr.f32.mxu0 0.0
        %814 = vmatmul.mubr.f32.gmra.mrb[0].mxu0 %v714
        %v815 = vpop.f32.mrb[0].mxu0
        %v816 = vadd.f32 0.0, %v815
        %v817 = vpop.f32.mrb[0].mxu0
        %818 = vmatprep.mubr.f32.mxu0 0.0
        %819 = vmatmul.mubr.f32.gmra.mrb[0].mxu0 %v717
        %v820 = vpop.f32.mrb[0].mxu0
        %v821 = vadd.f32 0.0, %v820
        %v822 = vpop.f32.mrb[0].mxu0
        %823 = vdwg.mxu0
        %v824 = vsel %vm694, %v786, -inf
        %825 = vmax.xlane.f32.xlu0 %v824
        %v826 = vpop.xlane.xlu0 %825
        %v827 = vsel %vm694, %v791, -inf
        %828 = vmax.xlane.f32.xlu0 %v827
        %v829 = vpop.xlane.xlu0 %828
        %v830 = vsel %vm694, %v796, -inf
        %831 = vmax.xlane.f32.xlu0 %v830
        %v832 = vpop.xlane.xlu0 %831
        %v833 = vsel %vm694, %v801, -inf
        %834 = vmax.xlane.f32.xlu0 %v833
        %v835 = vpop.xlane.xlu0 %834
        %v836 = vsel %vm694, %v806, -inf
        %837 = vmax.xlane.f32.xlu0 %v836
        %v838 = vpop.xlane.xlu0 %837
        %v839 = vsel %vm694, %v811, -inf
        %840 = vmax.xlane.f32.xlu0 %v839
        %v841 = vpop.xlane.xlu0 %840
        %v842 = vsel %vm694, %v816, -inf
        %843 = vmax.xlane.f32.xlu0 %v842
        %v844 = vpop.xlane.xlu0 %843
        %v845 = vsel %vm694, %v821, -inf
        %846 = vmax.xlane.f32.xlu0 %v845
        %v847 = vpop.xlane.xlu0 %846
        %v848 = vsub.f32 -inf, %v826
        %v849 = vsub.f32 -inf, %v829
        %v850 = vsub.f32 -inf, %v832
        %v851 = vsub.f32 -inf, %v835
        %v852 = vsub.f32 -inf, %v838
        %v853 = vsub.f32 -inf, %v841
        %v854 = vsub.f32 -inf, %v844
        %v855 = vsub.f32 -inf, %v847
        %v856 = vmul.f32 %v848, 1.442695
        %v857 = vpow.pop %v856
        %v858 = vmul.f32 %v849, 1.442695
        %v859 = vpow.pop %v858
        %v860 = vmul.f32 %v850, 1.442695
        %v861 = vpow.pop %v860
        %v862 = vmul.f32 %v851, 1.442695
        %v863 = vpow.pop %v862
        %v864 = vmul.f32 %v852, 1.442695
        %v865 = vpow.pop %v864
        %v866 = vmul.f32 %v853, 1.442695
        %v867 = vpow.pop %v866
        %v868 = vmul.f32 %v854, 1.442695
        %v869 = vpow.pop %v868
        %v870 = vmul.f32 %v855, 1.442695
        %v871 = vpow.pop %v870
        %v872 = vsub.f32 %v786, %v826
        %v873 = vsub.f32 %v791, %v829
        %v874 = vsub.f32 %v796, %v832
        %v875 = vsub.f32 %v801, %v835
        %v876 = vsub.f32 %v806, %v838
        %v877 = vsub.f32 %v811, %v841
        %v878 = vsub.f32 %v816, %v844
        %v879 = vsub.f32 %v821, %v847
        %v880 = vmul.f32 %v872, 1.442695
        %v881 = vpow.pop %v880
        %v882 = vmul.f32 %v873, 1.442695
        %v883 = vpow.pop %v882
        %v884 = vmul.f32 %v874, 1.442695
        %v885 = vpow.pop %v884
        %v886 = vmul.f32 %v875, 1.442695
        %v887 = vpow.pop %v886
        %v888 = vmul.f32 %v876, 1.442695
        %v889 = vpow.pop %v888
        %v890 = vmul.f32 %v877, 1.442695
        %v891 = vpow.pop %v890
        %v892 = vmul.f32 %v878, 1.442695
        %v893 = vpow.pop %v892
        %v894 = vmul.f32 %v879, 1.442695
        %v895 = vpow.pop %v894
        %v896 = vmul.f32 %v857, 0.0
        %v897 = vmul.f32 %v859, 0.0
        %v898 = vmul.f32 %v861, 0.0
        %v899 = vmul.f32 %v863, 0.0
        %v900 = vmul.f32 %v865, 0.0
        %v901 = vmul.f32 %v867, 0.0
        %v902 = vmul.f32 %v869, 0.0
        %v903 = vmul.f32 %v871, 0.0
        %v904 = vsel %vm694, %v881, 0.0
        %905 = vadd.xlane.f32.xlu0 %v904
        %v906 = vpop.xlane.xlu0 %905
        %v907 = vsel %vm694, %v883, 0.0
        %908 = vadd.xlane.f32.xlu0 %v907
        %v909 = vpop.xlane.xlu0 %908
        %v910 = vsel %vm694, %v885, 0.0
        %911 = vadd.xlane.f32.xlu0 %v910
        %v912 = vpop.xlane.xlu0 %911
        %v913 = vsel %vm694, %v887, 0.0
        %914 = vadd.xlane.f32.xlu0 %v913
        %v915 = vpop.xlane.xlu0 %914
        %v916 = vsel %vm694, %v889, 0.0
        %917 = vadd.xlane.f32.xlu0 %v916
        %v918 = vpop.xlane.xlu0 %917
        %v919 = vsel %vm694, %v891, 0.0
        %920 = vadd.xlane.f32.xlu0 %v919
        %v921 = vpop.xlane.xlu0 %920
        %v922 = vsel %vm694, %v893, 0.0
        %923 = vadd.xlane.f32.xlu0 %v922
        %v924 = vpop.xlane.xlu0 %923
        %v925 = vsel %vm694, %v895, 0.0
        %926 = vadd.xlane.f32.xlu0 %v925
        %v927 = vpop.xlane.xlu0 %926
        %v928 = vadd.f32 %v896, %v906
        %v929 = vadd.f32 %v897, %v909
        %v930 = vadd.f32 %v898, %v912
        %v931 = vadd.f32 %v899, %v915
        %v932 = vadd.f32 %v900, %v918
        %v933 = vadd.f32 %v901, %v921
        %v934 = vadd.f32 %v902, %v924
        %v935 = vadd.f32 %v903, %v927
        %v937 = vsel %vm694, %v881, 0
        %v940 = vsel %vm694, %v883, 0
        %v943 = vsel %vm694, %v885, 0
        %v946 = vsel %vm694, %v887, 0
        %v949 = vsel %vm694, %v889, 0
        %v952 = vsel %vm694, %v891, 0
        %v955 = vsel %vm694, %v893, 0
        %v958 = vsel %vm694, %v895, 0
        %960 = vmatprep.subr.mxu0 0.0
        %961 = vmatpush1.msra.mxu0 %v563
        %962 = vmatprep.subr.mxu0 0.0
        %963 = vmatpush1.msra.mxu0 %v568
        %964 = vmatprep.subr.mxu0 0.0
        %965 = vmatpush1.msra.mxu0 0.0
        %966 = vmatprep.subr.mxu0 0.0
        %967 = vmatpush1.msra.mxu0 0.0
        %968 = vmatprep.subr.mxu0 0.0
        %969 = vmatpush1.msra.mxu0 0.0
        %970 = vmatprep.subr.mxu0 0.0
        %971 = vmatpush1.msra.mxu0 0.0
        %972 = vmatprep.subr.mxu0 0.0
        %973 = vmatpush1.msra.mxu0 0.0
        %974 = vmatprep.subr.mxu0 0.0
        %975 = vmatpush1.msra.mxu0 0.0
        %976 = vmatprep.subr.mxu0 0.0
        %977 = vmatpush1.msra.mxu0 0.0
        %978 = vmatprep.subr.mxu0 0.0
        %979 = vmatpush1.msra.mxu0 0.0
        %980 = vmatprep.subr.mxu0 0.0
        %981 = vmatpush1.msra.mxu0 0.0
        %982 = vmatprep.subr.mxu0 0.0
        %983 = vmatpush1.msra.mxu0 0.0
        %984 = vmatprep.subr.mxu0 0.0
        %985 = vmatpush1.msra.mxu0 0.0
        %986 = vmatprep.subr.mxu0 0.0
        %987 = vmatpush1.msra.mxu0 0.0
        %988 = vmatprep.subr.mxu0 0.0
        %989 = vmatpush1.msra.mxu0 0.0
        %990 = vmatprep.subr.mxu0 0.0
        %991 = vmatpush1.msra.mxu0 0.0
        %992 = vmatprep.subr.mxu0 0.0
        %993 = vmatpush1.msra.mxu0 0.0
        %994 = vmatprep.subr.mxu0 0.0
        %995 = vmatpush1.msra.mxu0 0.0
        %996 = vmatprep.subr.mxu0 0.0
        %997 = vmatpush1.msra.mxu0 0.0
        %998 = vmatprep.subr.mxu0 0.0
        %999 = vmatpush1.msra.mxu0 0.0
        %1000 = vmatprep.subr.mxu0 0.0
        %1001 = vmatpush1.msra.mxu0 0.0
        %1002 = vmatprep.subr.mxu0 0.0
        %1003 = vmatpush1.msra.mxu0 0.0
        %1004 = vmatprep.subr.mxu0 0.0
        %1005 = vmatpush1.msra.mxu0 0.0
        %1006 = vmatprep.subr.mxu0 0.0
        %1007 = vmatpush1.msra.mxu0 0.0
        %1008 = vmatprep.subr.mxu0 0.0
        %1009 = vmatpush1.msra.mxu0 0.0
        %1010 = vmatprep.subr.mxu0 0.0
        %1011 = vmatpush1.msra.mxu0 0.0
        %1012 = vmatprep.subr.mxu0 0.0
        %1013 = vmatpush1.msra.mxu0 0.0
        %1014 = vmatprep.subr.mxu0 0.0
        %1015 = vmatpush1.msra.mxu0 0.0
        %1016 = vmatprep.subr.mxu0 0.0
        %1017 = vmatpush1.msra.mxu0 0.0
        %1018 = vmatprep.subr.mxu0 0.0
        %1019 = vmatpush1.msra.mxu0 0.0
        %1020 = vmatprep.subr.mxu0 0.0
        %1021 = vmatpush1.msra.mxu0 0.0
        %1022 = vmatprep.subr.mxu0 0.0
        %1023 = vmatpush1.msra.mxu0 0.0
        %1024 = vmatprep.mubr.f32.mxu0 0.0
        %1025 = vmatmul.mubr.f32.gmra.mrb[0].mxu0 %v937
        %v1026 = vpop.f32.mrb[0].mxu0
        %v1027 = vadd.f32 0.0, %v1026
        %v1028 = vpop.f32.mrb[0].mxu0
        %1029 = vmatprep.mubr.f32.mxu0 0.0
        %1030 = vmatmul.mubr.f32.gmra.mrb[0].mxu0 %v940
        %v1031 = vpop.f32.mrb[0].mxu0
        %v1032 = vadd.f32 0.0, %v1031
        %v1033 = vpop.f32.mrb[0].mxu0
        %1034 = vmatprep.mubr.f32.mxu0 0.0
        %1035 = vmatmul.mubr.f32.gmra.mrb[0].mxu0 %v943
        %v1036 = vpop.f32.mrb[0].mxu0
        %v1037 = vadd.f32 0.0, %v1036
        %v1038 = vpop.f32.mrb[0].mxu0
        %1039 = vmatprep.mubr.f32.mxu0 0.0
        %1040 = vmatmul.mubr.f32.gmra.mrb[0].mxu0 %v946
        %v1041 = vpop.f32.mrb[0].mxu0
        %v1042 = vadd.f32 0.0, %v1041
        %v1043 = vpop.f32.mrb[0].mxu0
        %1044 = vmatprep.mubr.f32.mxu0 0.0
        %1045 = vmatmul.mubr.f32.gmra.mrb[0].mxu0 %v949
        %v1046 = vpop.f32.mrb[0].mxu0
        %v1047 = vadd.f32 0.0, %v1046
        %v1048 = vpop.f32.mrb[0].mxu0
        %1049 = vmatprep.mubr.f32.mxu0 0.0
        %1050 = vmatmul.mubr.f32.gmra.mrb[0].mxu0 %v952
        %v1051 = vpop.f32.mrb[0].mxu0
        %v1052 = vadd.f32 0.0, %v1051
        %v1053 = vpop.f32.mrb[0].mxu0
        %1054 = vmatprep.mubr.f32.mxu0 0.0
        %1055 = vmatmul.mubr.f32.gmra.mrb[0].mxu0 %v955
        %v1056 = vpop.f32.mrb[0].mxu0
        %v1057 = vadd.f32 0.0, %v1056
        %v1058 = vpop.f32.mrb[0].mxu0
        %1059 = vmatprep.mubr.f32.mxu0 0.0
        %1060 = vmatmul.mubr.f32.gmra.mrb[0].mxu0 %v958
        %v1061 = vpop.f32.mrb[0].mxu0
        %v1062 = vadd.f32 0.0, %v1061
        %v1063 = vpop.f32.mrb[0].mxu0
        %1064 = vdwg.mxu0
        %v1065 = vadd.f32 %v896, %v1027
        %v1066 = vadd.f32 %v897, %v1032
        %v1067 = vadd.f32 %v898, %v1037
        %v1068 = vadd.f32 %v899, %v1042
        %v1069 = vadd.f32 %v900, %v1047
        %v1070 = vadd.f32 %v901, %v1052
        %v1071 = vadd.f32 %v902, %v1057
        %v1072 = vadd.f32 %v903, %v1062
        %s1073 = scalar_lea.vmem %s350, 16
        %v1074 = vld [vmem:[%s1073] sm:$0xff]
        %v1075 = vld [vmem:[%s1073 + $0x8] sm:$0xff]
        %1076 = vmatprep.subr.mxu0 0.0
        %1077 = vmatpush1.msra.mxu0 %v603
        %1078 = vmatprep.subr.mxu0 0.0
        %1079 = vmatpush1.msra.mxu0 %v604
        %1080 = vmatprep.subr.mxu0 0.0
        %1081 = vmatpush1.msra.mxu0 %v605
        %1082 = vmatprep.subr.mxu0 0.0
        %1083 = vmatpush1.msra.mxu0 %v606
        %1084 = vmatprep.subr.mxu0 0.0
        %1085 = vmatpush1.msra.mxu0 %v607
        %1086 = vmatprep.subr.mxu0 0.0
        %1087 = vmatpush1.msra.mxu0 %v608
        %1088 = vmatprep.subr.mxu0 0.0
        %1089 = vmatpush1.msra.mxu0 %v609
        %1090 = vmatprep.subr.mxu0 0.0
        %1091 = vmatpush1.msra.mxu0 %v610
        %1092 = vmatprep.subr.mxu0 0.0
        %1093 = vmatpush1.msra.mxu0 %v611
        %1094 = vmatprep.subr.mxu0 0.0
        %1095 = vmatpush1.msra.mxu0 %v612
        %1096 = vmatprep.subr.mxu0 0.0
        %1097 = vmatpush1.msra.mxu0 %v613
        %1098 = vmatprep.subr.mxu0 0.0
        %1099 = vmatpush1.msra.mxu0 %v614
        %1100 = vmatprep.subr.mxu0 0.0
        %1101 = vmatpush1.msra.mxu0 %v615
        %1102 = vmatprep.subr.mxu0 0.0
        %1103 = vmatpush1.msra.mxu0 %v616
        %1104 = vmatprep.subr.mxu0 0.0
        %1105 = vmatpush1.msra.mxu0 %v617
        %1106 = vmatprep.subr.mxu0 0.0
        %1107 = vmatpush1.msra.mxu0 %v618
        %1108 = vmatprep.subr.mxu0 0.0
        %1109 = vmatpush1.msra.mxu0 0.0
        %1110 = vmatprep.subr.mxu0 0.0
        %1111 = vmatpush1.msra.mxu0 0.0
        %1112 = vmatprep.subr.mxu0 0.0
        %1113 = vmatpush1.msra.mxu0 0.0
        %1114 = vmatprep.subr.mxu0 0.0
        %1115 = vmatpush1.msra.mxu0 0.0
        %1116 = vmatprep.subr.mxu0 0.0
        %1117 = vmatpush1.msra.mxu0 0.0
        %1118 = vmatprep.subr.mxu0 0.0
        %1119 = vmatpush1.msra.mxu0 0.0
        %1120 = vmatprep.subr.mxu0 0.0
        %1121 = vmatpush1.msra.mxu0 0.0
        %1122 = vmatprep.subr.mxu0 0.0
        %1123 = vmatpush1.msra.mxu0 0.0
        %1124 = vmatprep.subr.mxu0 0.0
        %1125 = vmatpush1.msra.mxu0 0.0
        %1126 = vmatprep.subr.mxu0 0.0
        %1127 = vmatpush1.msra.mxu0 0.0
        %1128 = vmatprep.subr.mxu0 0.0
        %1129 = vmatpush1.msra.mxu0 0.0
        %1130 = vmatprep.subr.mxu0 0.0
        %1131 = vmatpush1.msra.mxu0 0.0
        %1132 = vmatprep.subr.mxu0 0.0
        %1133 = vmatpush1.msra.mxu0 0.0
        %1134 = vmatprep.subr.mxu0 0.0
        %1135 = vmatpush1.msra.mxu0 0.0
        %1136 = vmatprep.subr.mxu0 0.0
        %1137 = vmatpush1.msra.mxu0 0.0
        %1138 = vmatprep.subr.mxu0 0.0
        %1139 = vmatpush1.msra.mxu0 0.0
        %1140 = vmatprep.mubr.f32.mxu0 0.0
        %1141 = vmatmul.mubr.f32.gmra.mrb[0].mxu0 %v1074
        %v1142 = vpop.f32.mrb[0].mxu0
        %v1143 = vadd.f32 0.0, %v1142
        %v1144 = vpop.f32.mrb[0].mxu0
        %1145 = vmatprep.mubr.f32.mxu0 0.0
        %1146 = vmatmul.mubr.f32.gmra.mrb[0].mxu0 %v1075
        %v1147 = vpop.f32.mrb[0].mxu0
        %v1148 = vadd.f32 0.0, %v1147
        %v1149 = vpop.f32.mrb[0].mxu0
        %1150 = vdwg.mxu0
        %1151 = vmatprep.subr.mxu0 0.0
        %1152 = vmatpush1.msra.mxu0 %v1143
        %1153 = vmatprep.subr.mxu0 0.0
        %1154 = vmatpush1.msra.mxu0 %v1148
        %1155 = vmatprep.subr.mxu0 0.0
        %1156 = vmatpush1.msra.mxu0 0.0
        %1157 = vmatprep.subr.mxu0 0.0
        %1158 = vmatpush1.msra.mxu0 0.0
        %1159 = vmatprep.subr.mxu0 0.0
        %1160 = vmatpush1.msra.mxu0 0.0
        %1161 = vmatprep.subr.mxu0 0.0
        %1162 = vmatpush1.msra.mxu0 0.0
        %1163 = vmatprep.subr.mxu0 0.0
        %1164 = vmatpush1.msra.mxu0 0.0
        %1165 = vmatprep.subr.mxu0 0.0
        %1166 = vmatpush1.msra.mxu0 0.0
        %1167 = vmatprep.subr.mxu0 0.0
        %1168 = vmatpush1.msra.mxu0 0.0
        %1169 = vmatprep.subr.mxu0 0.0
        %1170 = vmatpush1.msra.mxu0 0.0
        %1171 = vmatprep.subr.mxu0 0.0
        %1172 = vmatpush1.msra.mxu0 0.0
        %1173 = vmatprep.subr.mxu0 0.0
        %1174 = vmatpush1.msra.mxu0 0.0
        %1175 = vmatprep.subr.mxu0 0.0
        %1176 = vmatpush1.msra.mxu0 0.0
        %1177 = vmatprep.subr.mxu0 0.0
        %1178 = vmatpush1.msra.mxu0 0.0
        %1179 = vmatprep.subr.mxu0 0.0
        %1180 = vmatpush1.msra.mxu0 0.0
        %1181 = vmatprep.subr.mxu0 0.0
        %1182 = vmatpush1.msra.mxu0 0.0
        %1183 = vmatprep.subr.mxu0 0.0
        %1184 = vmatpush1.msra.mxu0 0.0
        %1185 = vmatprep.subr.mxu0 0.0
        %1186 = vmatpush1.msra.mxu0 0.0
        %1187 = vmatprep.subr.mxu0 0.0
        %1188 = vmatpush1.msra.mxu0 0.0
        %1189 = vmatprep.subr.mxu0 0.0
        %1190 = vmatpush1.msra.mxu0 0.0
        %1191 = vmatprep.subr.mxu0 0.0
        %1192 = vmatpush1.msra.mxu0 0.0
        %1193 = vmatprep.subr.mxu0 0.0
        %1194 = vmatpush1.msra.mxu0 0.0
        %1195 = vmatprep.subr.mxu0 0.0
        %1196 = vmatpush1.msra.mxu0 0.0
        %1197 = vmatprep.subr.mxu0 0.0
        %1198 = vmatpush1.msra.mxu0 0.0
        %1199 = vmatprep.subr.mxu0 0.0
        %1200 = vmatpush1.msra.mxu0 0.0
        %1201 = vmatprep.subr.mxu0 0.0
        %1202 = vmatpush1.msra.mxu0 0.0
        %1203 = vmatprep.subr.mxu0 0.0
        %1204 = vmatpush1.msra.mxu0 0.0
        %1205 = vmatprep.subr.mxu0 0.0
        %1206 = vmatpush1.msra.mxu0 0.0
        %1207 = vmatprep.subr.mxu0 0.0
        %1208 = vmatpush1.msra.mxu0 0.0
        %1209 = vmatprep.subr.mxu0 0.0
        %1210 = vmatpush1.msra.mxu0 0.0
        %1211 = vmatprep.subr.mxu0 0.0
        %1212 = vmatpush1.msra.mxu0 0.0
        %1213 = vmatprep.subr.mxu0 0.0
        %1214 = vmatpush1.msra.mxu0 0.0
        %1215 = vmatprep.mubr.f32.mxu0 0.0
        %1216 = vmatmul.mubr.f32.gmra.mrb[0].mxu0 %v696
        %v1217 = vpop.f32.mrb[0].mxu0
        %v1218 = vadd.f32 0.0, %v1217
        %v1219 = vpop.f32.mrb[0].mxu0
        %1220 = vmatprep.mubr.f32.mxu0 0.0
        %1221 = vmatmul.mubr.f32.gmra.mrb[0].mxu0 %v699
        %v1222 = vpop.f32.mrb[0].mxu0
        %v1223 = vadd.f32 0.0, %v1222
        %v1224 = vpop.f32.mrb[0].mxu0
        %1225 = vmatprep.mubr.f32.mxu0 0.0
        %1226 = vmatmul.mubr.f32.gmra.mrb[0].mxu0 %v702
        %v1227 = vpop.f32.mrb[0].mxu0
        %v1228 = vadd.f32 0.0, %v1227
        %v1229 = vpop.f32.mrb[0].mxu0
        %1230 = vmatprep.mubr.f32.mxu0 0.0
        %1231 = vmatmul.mubr.f32.gmra.mrb[0].mxu0 %v705
        %v1232 = vpop.f32.mrb[0].mxu0
        %v1233 = vadd.f32 0.0, %v1232
        %v1234 = vpop.f32.mrb[0].mxu0
        %1235 = vmatprep.mubr.f32.mxu0 0.0
        %1236 = vmatmul.mubr.f32.gmra.mrb[0].mxu0 %v708
        %v1237 = vpop.f32.mrb[0].mxu0
        %v1238 = vadd.f32 0.0, %v1237
        %v1239 = vpop.f32.mrb[0].mxu0
        %1240 = vmatprep.mubr.f32.mxu0 0.0
        %1241 = vmatmul.mubr.f32.gmra.mrb[0].mxu0 %v711
        %v1242 = vpop.f32.mrb[0].mxu0
        %v1243 = vadd.f32 0.0, %v1242
        %v1244 = vpop.f32.mrb[0].mxu0
        %1245 = vmatprep.mubr.f32.mxu0 0.0
        %1246 = vmatmul.mubr.f32.gmra.mrb[0].mxu0 %v714
        %v1247 = vpop.f32.mrb[0].mxu0
        %v1248 = vadd.f32 0.0, %v1247
        %v1249 = vpop.f32.mrb[0].mxu0
        %1250 = vmatprep.mubr.f32.mxu0 0.0
        %1251 = vmatmul.mubr.f32.gmra.mrb[0].mxu0 %v717
        %v1252 = vpop.f32.mrb[0].mxu0
        %v1253 = vadd.f32 0.0, %v1252
        %v1254 = vpop.f32.mrb[0].mxu0
        %1255 = vdwg.mxu0
        %v1256 = vsel %vm694, %v1218, -inf
        %1257 = vmax.xlane.f32.xlu0 %v1256
        %v1258 = vpop.xlane.xlu0 %1257
        %v1259 = vsel %vm694, %v1223, -inf
        %1260 = vmax.xlane.f32.xlu0 %v1259
        %v1261 = vpop.xlane.xlu0 %1260
        %v1262 = vsel %vm694, %v1228, -inf
        %1263 = vmax.xlane.f32.xlu0 %v1262
        %v1264 = vpop.xlane.xlu0 %1263
        %v1265 = vsel %vm694, %v1233, -inf
        %1266 = vmax.xlane.f32.xlu0 %v1265
        %v1267 = vpop.xlane.xlu0 %1266
        %v1268 = vsel %vm694, %v1238, -inf
        %1269 = vmax.xlane.f32.xlu0 %v1268
        %v1270 = vpop.xlane.xlu0 %1269
        %v1271 = vsel %vm694, %v1243, -inf
        %1272 = vmax.xlane.f32.xlu0 %v1271
        %v1273 = vpop.xlane.xlu0 %1272
        %v1274 = vsel %vm694, %v1248, -inf
        %1275 = vmax.xlane.f32.xlu0 %v1274
        %v1276 = vpop.xlane.xlu0 %1275
        %v1277 = vsel %vm694, %v1253, -inf
        %1278 = vmax.xlane.f32.xlu0 %v1277
        %v1279 = vpop.xlane.xlu0 %1278
        %v1280 = vmax.f32 %v826, %v1258
        %v1281 = vmax.f32 %v829, %v1261
        %v1282 = vmax.f32 %v832, %v1264
        %v1283 = vmax.f32 %v835, %v1267
        %v1284 = vmax.f32 %v838, %v1270
        %v1285 = vmax.f32 %v841, %v1273
        %v1286 = vmax.f32 %v844, %v1276
        %v1287 = vmax.f32 %v847, %v1279
        %v1288 = vsub.f32 %v826, %v1280
        %v1289 = vsub.f32 %v829, %v1281
        %v1290 = vsub.f32 %v832, %v1282
        %v1291 = vsub.f32 %v835, %v1283
        %v1292 = vsub.f32 %v838, %v1284
        %v1293 = vsub.f32 %v841, %v1285
        %v1294 = vsub.f32 %v844, %v1286
        %v1295 = vsub.f32 %v847, %v1287
        %v1296 = vmul.f32 %v1288, 1.442695
        %v1297 = vpow.pop %v1296
        %v1298 = vmul.f32 %v1289, 1.442695
        %v1299 = vpow.pop %v1298
        %v1300 = vmul.f32 %v1290, 1.442695
        %v1301 = vpow.pop %v1300
        %v1302 = vmul.f32 %v1291, 1.442695
        %v1303 = vpow.pop %v1302
        %v1304 = vmul.f32 %v1292, 1.442695
        %v1305 = vpow.pop %v1304
        %v1306 = vmul.f32 %v1293, 1.442695
        %v1307 = vpow.pop %v1306
        %v1308 = vmul.f32 %v1294, 1.442695
        %v1309 = vpow.pop %v1308
        %v1310 = vmul.f32 %v1295, 1.442695
        %v1311 = vpow.pop %v1310
        %v1312 = vsub.f32 %v1218, %v1280
        %v1313 = vsub.f32 %v1223, %v1281
        %v1314 = vsub.f32 %v1228, %v1282
        %v1315 = vsub.f32 %v1233, %v1283
        %v1316 = vsub.f32 %v1238, %v1284
        %v1317 = vsub.f32 %v1243, %v1285
        %v1318 = vsub.f32 %v1248, %v1286
        %v1319 = vsub.f32 %v1253, %v1287
        %v1320 = vmul.f32 %v1312, 1.442695
        %v1321 = vpow.pop %v1320
        %v1322 = vmul.f32 %v1313, 1.442695
        %v1323 = vpow.pop %v1322
        %v1324 = vmul.f32 %v1314, 1.442695
        %v1325 = vpow.pop %v1324
        %v1326 = vmul.f32 %v1315, 1.442695
        %v1327 = vpow.pop %v1326
        %v1328 = vmul.f32 %v1316, 1.442695
        %v1329 = vpow.pop %v1328
        %v1330 = vmul.f32 %v1317, 1.442695
        %v1331 = vpow.pop %v1330
        %v1332 = vmul.f32 %v1318, 1.442695
        %v1333 = vpow.pop %v1332
        %v1334 = vmul.f32 %v1319, 1.442695
        %v1335 = vpow.pop %v1334
        %v1336 = vmul.f32 %v1297, %v928
        %v1337 = vmul.f32 %v1299, %v929
        %v1338 = vmul.f32 %v1301, %v930
        %v1339 = vmul.f32 %v1303, %v931
        %v1340 = vmul.f32 %v1305, %v932
        %v1341 = vmul.f32 %v1307, %v933
        %v1342 = vmul.f32 %v1309, %v934
        %v1343 = vmul.f32 %v1311, %v935
        %v1344 = vsel %vm694, %v1321, 0.0
        %1345 = vadd.xlane.f32.xlu0 %v1344
        %v1346 = vpop.xlane.xlu0 %1345
        %v1347 = vsel %vm694, %v1323, 0.0
        %1348 = vadd.xlane.f32.xlu0 %v1347
        %v1349 = vpop.xlane.xlu0 %1348
        %v1350 = vsel %vm694, %v1325, 0.0
        %1351 = vadd.xlane.f32.xlu0 %v1350
        %v1352 = vpop.xlane.xlu0 %1351
        %v1353 = vsel %vm694, %v1327, 0.0
        %1354 = vadd.xlane.f32.xlu0 %v1353
        %v1355 = vpop.xlane.xlu0 %1354
        %v1356 = vsel %vm694, %v1329, 0.0
        %1357 = vadd.xlane.f32.xlu0 %v1356
        %v1358 = vpop.xlane.xlu0 %1357
        %v1359 = vsel %vm694, %v1331, 0.0
        %1360 = vadd.xlane.f32.xlu0 %v1359
        %v1361 = vpop.xlane.xlu0 %1360
        %v1362 = vsel %vm694, %v1333, 0.0
        %1363 = vadd.xlane.f32.xlu0 %v1362
        %v1364 = vpop.xlane.xlu0 %1363
        %v1365 = vsel %vm694, %v1335, 0.0
        %1366 = vadd.xlane.f32.xlu0 %v1365
        %v1367 = vpop.xlane.xlu0 %1366
        %v1368 = vadd.f32 %v1336, %v1346
        %v1369 = vadd.f32 %v1337, %v1349
        %v1370 = vadd.f32 %v1338, %v1352
        %v1371 = vadd.f32 %v1339, %v1355
        %v1372 = vadd.f32 %v1340, %v1358
        %v1373 = vadd.f32 %v1341, %v1361
        %v1374 = vadd.f32 %v1342, %v1364
        %v1375 = vadd.f32 %v1343, %v1367
        %v1376 = vmul.f32 %v1297, %v1065
        %v1377 = vmul.f32 %v1299, %v1066
        %v1378 = vmul.f32 %v1301, %v1067
        %v1379 = vmul.f32 %v1303, %v1068
        %v1380 = vmul.f32 %v1305, %v1069
        %v1381 = vmul.f32 %v1307, %v1070
        %v1382 = vmul.f32 %v1309, %v1071
        %v1383 = vmul.f32 %v1311, %v1072
        %v1385 = vsel %vm694, %v1321, 0
        %v1388 = vsel %vm694, %v1323, 0
        %v1391 = vsel %vm694, %v1325, 0
        %v1394 = vsel %vm694, %v1327, 0
        %v1397 = vsel %vm694, %v1329, 0
        %v1400 = vsel %vm694, %v1331, 0
        %v1403 = vsel %vm694, %v1333, 0
        %v1406 = vsel %vm694, %v1335, 0
        %1408 = vmatprep.subr.mxu0 0.0
        %1409 = vmatpush1.msra.mxu0 %v573
        %1410 = vmatprep.subr.mxu0 0.0
        %1411 = vmatpush1.msra.mxu0 %v578
        %1412 = vmatprep.subr.mxu0 0.0
        %1413 = vmatpush1.msra.mxu0 0.0
        %1414 = vmatprep.subr.mxu0 0.0
        %1415 = vmatpush1.msra.mxu0 0.0
        %1416 = vmatprep.subr.mxu0 0.0
        %1417 = vmatpush1.msra.mxu0 0.0
        %1418 = vmatprep.subr.mxu0 0.0
        %1419 = vmatpush1.msra.mxu0 0.0
        %1420 = vmatprep.subr.mxu0 0.0
        %1421 = vmatpush1.msra.mxu0 0.0
        %1422 = vmatprep.subr.mxu0 0.0
        %1423 = vmatpush1.msra.mxu0 0.0
        %1424 = vmatprep.subr.mxu0 0.0
        %1425 = vmatpush1.msra.mxu0 0.0
        %1426 = vmatprep.subr.mxu0 0.0
        %1427 = vmatpush1.msra.mxu0 0.0
        %1428 = vmatprep.subr.mxu0 0.0
        %1429 = vmatpush1.msra.mxu0 0.0
        %1430 = vmatprep.subr.mxu0 0.0
        %1431 = vmatpush1.msra.mxu0 0.0
        %1432 = vmatprep.subr.mxu0 0.0
        %1433 = vmatpush1.msra.mxu0 0.0
        %1434 = vmatprep.subr.mxu0 0.0
        %1435 = vmatpush1.msra.mxu0 0.0
        %1436 = vmatprep.subr.mxu0 0.0
        %1437 = vmatpush1.msra.mxu0 0.0
        %1438 = vmatprep.subr.mxu0 0.0
        %1439 = vmatpush1.msra.mxu0 0.0
        %1440 = vmatprep.subr.mxu0 0.0
        %1441 = vmatpush1.msra.mxu0 0.0
        %1442 = vmatprep.subr.mxu0 0.0
        %1443 = vmatpush1.msra.mxu0 0.0
        %1444 = vmatprep.subr.mxu0 0.0
        %1445 = vmatpush1.msra.mxu0 0.0
        %1446 = vmatprep.subr.mxu0 0.0
        %1447 = vmatpush1.msra.mxu0 0.0
        %1448 = vmatprep.subr.mxu0 0.0
        %1449 = vmatpush1.msra.mxu0 0.0
        %1450 = vmatprep.subr.mxu0 0.0
        %1451 = vmatpush1.msra.mxu0 0.0
        %1452 = vmatprep.subr.mxu0 0.0
        %1453 = vmatpush1.msra.mxu0 0.0
        %1454 = vmatprep.subr.mxu0 0.0
        %1455 = vmatpush1.msra.mxu0 0.0
        %1456 = vmatprep.subr.mxu0 0.0
        %1457 = vmatpush1.msra.mxu0 0.0
        %1458 = vmatprep.subr.mxu0 0.0
        %1459 = vmatpush1.msra.mxu0 0.0
        %1460 = vmatprep.subr.mxu0 0.0
        %1461 = vmatpush1.msra.mxu0 0.0
        %1462 = vmatprep.subr.mxu0 0.0
        %1463 = vmatpush1.msra.mxu0 0.0
        %1464 = vmatprep.subr.mxu0 0.0
        %1465 = vmatpush1.msra.mxu0 0.0
        %1466 = vmatprep.subr.mxu0 0.0
        %1467 = vmatpush1.msra.mxu0 0.0
        %1468 = vmatprep.subr.mxu0 0.0
        %1469 = vmatpush1.msra.mxu0 0.0
        %1470 = vmatprep.subr.mxu0 0.0
        %1471 = vmatpush1.msra.mxu0 0.0
        %1472 = vmatprep.mubr.f32.mxu0 0.0
        %1473 = vmatmul.mubr.f32.gmra.mrb[0].mxu0 %v1385
        %v1474 = vpop.f32.mrb[0].mxu0
        %v1475 = vadd.f32 0.0, %v1474
        %v1476 = vpop.f32.mrb[0].mxu0
        %1477 = vmatprep.mubr.f32.mxu0 0.0
        %1478 = vmatmul.mubr.f32.gmra.mrb[0].mxu0 %v1388
        %v1479 = vpop.f32.mrb[0].mxu0
        %v1480 = vadd.f32 0.0, %v1479
        %v1481 = vpop.f32.mrb[0].mxu0
        %1482 = vmatprep.mubr.f32.mxu0 0.0
        %1483 = vmatmul.mubr.f32.gmra.mrb[0].mxu0 %v1391
        %v1484 = vpop.f32.mrb[0].mxu0
        %v1485 = vadd.f32 0.0, %v1484
        %v1486 = vpop.f32.mrb[0].mxu0
        %1487 = vmatprep.mubr.f32.mxu0 0.0
        %1488 = vmatmul.mubr.f32.gmra.mrb[0].mxu0 %v1394
        %v1489 = vpop.f32.mrb[0].mxu0
        %v1490 = vadd.f32 0.0, %v1489
        %v1491 = vpop.f32.mrb[0].mxu0
        %1492 = vmatprep.mubr.f32.mxu0 0.0
        %1493 = vmatmul.mubr.f32.gmra.mrb[0].mxu0 %v1397
        %v1494 = vpop.f32.mrb[0].mxu0
        %v1495 = vadd.f32 0.0, %v1494
        %v1496 = vpop.f32.mrb[0].mxu0
        %1497 = vmatprep.mubr.f32.mxu0 0.0
        %1498 = vmatmul.mubr.f32.gmra.mrb[0].mxu0 %v1400
        %v1499 = vpop.f32.mrb[0].mxu0
        %v1500 = vadd.f32 0.0, %v1499
        %v1501 = vpop.f32.mrb[0].mxu0
        %1502 = vmatprep.mubr.f32.mxu0 0.0
        %1503 = vmatmul.mubr.f32.gmra.mrb[0].mxu0 %v1403
        %v1504 = vpop.f32.mrb[0].mxu0
        %v1505 = vadd.f32 0.0, %v1504
        %v1506 = vpop.f32.mrb[0].mxu0
        %1507 = vmatprep.mubr.f32.mxu0 0.0
        %1508 = vmatmul.mubr.f32.gmra.mrb[0].mxu0 %v1406
        %v1509 = vpop.f32.mrb[0].mxu0
        %v1510 = vadd.f32 0.0, %v1509
        %v1511 = vpop.f32.mrb[0].mxu0
        %1512 = vdwg.mxu0
        %v1513 = vadd.f32 %v1376, %v1475
        %v1514 = vadd.f32 %v1377, %v1480
        %v1515 = vadd.f32 %v1378, %v1485
        %v1516 = vadd.f32 %v1379, %v1490
        %v1517 = vadd.f32 %v1380, %v1495
        %v1518 = vadd.f32 %v1381, %v1500
        %v1519 = vadd.f32 %v1382, %v1505
        %v1520 = vadd.f32 %v1383, %v1510
        %s1521 = scalar_lea.vmem %s350, 32
        %v1522 = vld [vmem:[%s1521] sm:$0xff]
        %v1523 = vld [vmem:[%s1521 + $0x8] sm:$0xff]
        %1524 = vmatprep.subr.mxu0 0.0
        %1525 = vmatpush1.msra.mxu0 %v603
        %1526 = vmatprep.subr.mxu0 0.0
        %1527 = vmatpush1.msra.mxu0 %v604
        %1528 = vmatprep.subr.mxu0 0.0
        %1529 = vmatpush1.msra.mxu0 %v605
        %1530 = vmatprep.subr.mxu0 0.0
        %1531 = vmatpush1.msra.mxu0 %v606
        %1532 = vmatprep.subr.mxu0 0.0
        %1533 = vmatpush1.msra.mxu0 %v607
        %1534 = vmatprep.subr.mxu0 0.0
        %1535 = vmatpush1.msra.mxu0 %v608
        %1536 = vmatprep.subr.mxu0 0.0
        %1537 = vmatpush1.msra.mxu0 %v609
        %1538 = vmatprep.subr.mxu0 0.0
        %1539 = vmatpush1.msra.mxu0 %v610
        %1540 = vmatprep.subr.mxu0 0.0
        %1541 = vmatpush1.msra.mxu0 %v611
        %1542 = vmatprep.subr.mxu0 0.0
        %1543 = vmatpush1.msra.mxu0 %v612
        %1544 = vmatprep.subr.mxu0 0.0
        %1545 = vmatpush1.msra.mxu0 %v613
        %1546 = vmatprep.subr.mxu0 0.0
        %1547 = vmatpush1.msra.mxu0 %v614
        %1548 = vmatprep.subr.mxu0 0.0
        %1549 = vmatpush1.msra.mxu0 %v615
        %1550 = vmatprep.subr.mxu0 0.0
        %1551 = vmatpush1.msra.mxu0 %v616
        %1552 = vmatprep.subr.mxu0 0.0
        %1553 = vmatpush1.msra.mxu0 %v617
        %1554 = vmatprep.subr.mxu0 0.0
        %1555 = vmatpush1.msra.mxu0 %v618
        %1556 = vmatprep.subr.mxu0 0.0
        %1557 = vmatpush1.msra.mxu0 0.0
        %1558 = vmatprep.subr.mxu0 0.0
        %1559 = vmatpush1.msra.mxu0 0.0
        %1560 = vmatprep.subr.mxu0 0.0
        %1561 = vmatpush1.msra.mxu0 0.0
        %1562 = vmatprep.subr.mxu0 0.0
        %1563 = vmatpush1.msra.mxu0 0.0
        %1564 = vmatprep.subr.mxu0 0.0
        %1565 = vmatpush1.msra.mxu0 0.0
        %1566 = vmatprep.subr.mxu0 0.0
        %1567 = vmatpush1.msra.mxu0 0.0
        %1568 = vmatprep.subr.mxu0 0.0
        %1569 = vmatpush1.msra.mxu0 0.0
        %1570 = vmatprep.subr.mxu0 0.0
        %1571 = vmatpush1.msra.mxu0 0.0
        %1572 = vmatprep.subr.mxu0 0.0
        %1573 = vmatpush1.msra.mxu0 0.0
        %1574 = vmatprep.subr.mxu0 0.0
        %1575 = vmatpush1.msra.mxu0 0.0
        %1576 = vmatprep.subr.mxu0 0.0
        %1577 = vmatpush1.msra.mxu0 0.0
        %1578 = vmatprep.subr.mxu0 0.0
        %1579 = vmatpush1.msra.mxu0 0.0
        %1580 = vmatprep.subr.mxu0 0.0
        %1581 = vmatpush1.msra.mxu0 0.0
        %1582 = vmatprep.subr.mxu0 0.0
        %1583 = vmatpush1.msra.mxu0 0.0
        %1584 = vmatprep.subr.mxu0 0.0
        %1585 = vmatpush1.msra.mxu0 0.0
        %1586 = vmatprep.subr.mxu0 0.0
        %1587 = vmatpush1.msra.mxu0 0.0
        %1588 = vmatprep.mubr.f32.mxu0 0.0
        %1589 = vmatmul.mubr.f32.gmra.mrb[0].mxu0 %v1522
        %v1590 = vpop.f32.mrb[0].mxu0
        %v1591 = vadd.f32 0.0, %v1590
        %v1592 = vpop.f32.mrb[0].mxu0
        %1593 = vmatprep.mubr.f32.mxu0 0.0
        %1594 = vmatmul.mubr.f32.gmra.mrb[0].mxu0 %v1523
        %v1595 = vpop.f32.mrb[0].mxu0
        %v1596 = vadd.f32 0.0, %v1595
        %v1597 = vpop.f32.mrb[0].mxu0
        %1598 = vdwg.mxu0
        %1599 = vmatprep.subr.mxu0 0.0
        %1600 = vmatpush1.msra.mxu0 %v1591
        %1601 = vmatprep.subr.mxu0 0.0
        %1602 = vmatpush1.msra.mxu0 %v1596
        %1603 = vmatprep.subr.mxu0 0.0
        %1604 = vmatpush1.msra.mxu0 0.0
        %1605 = vmatprep.subr.mxu0 0.0
        %1606 = vmatpush1.msra.mxu0 0.0
        %1607 = vmatprep.subr.mxu0 0.0
        %1608 = vmatpush1.msra.mxu0 0.0
        %1609 = vmatprep.subr.mxu0 0.0
        %1610 = vmatpush1.msra.mxu0 0.0
        %1611 = vmatprep.subr.mxu0 0.0
        %1612 = vmatpush1.msra.mxu0 0.0
        %1613 = vmatprep.subr.mxu0 0.0
        %1614 = vmatpush1.msra.mxu0 0.0
        %1615 = vmatprep.subr.mxu0 0.0
        %1616 = vmatpush1.msra.mxu0 0.0
        %1617 = vmatprep.subr.mxu0 0.0
        %1618 = vmatpush1.msra.mxu0 0.0
        %1619 = vmatprep.subr.mxu0 0.0
        %1620 = vmatpush1.msra.mxu0 0.0
        %1621 = vmatprep.subr.mxu0 0.0
        %1622 = vmatpush1.msra.mxu0 0.0
        %1623 = vmatprep.subr.mxu0 0.0
        %1624 = vmatpush1.msra.mxu0 0.0
        %1625 = vmatprep.subr.mxu0 0.0
        %1626 = vmatpush1.msra.mxu0 0.0
        %1627 = vmatprep.subr.mxu0 0.0
        %1628 = vmatpush1.msra.mxu0 0.0
        %1629 = vmatprep.subr.mxu0 0.0
        %1630 = vmatpush1.msra.mxu0 0.0
        %1631 = vmatprep.subr.mxu0 0.0
        %1632 = vmatpush1.msra.mxu0 0.0
        %1633 = vmatprep.subr.mxu0 0.0
        %1634 = vmatpush1.msra.mxu0 0.0
        %1635 = vmatprep.subr.mxu0 0.0
        %1636 = vmatpush1.msra.mxu0 0.0
        %1637 = vmatprep.subr.mxu0 0.0
        %1638 = vmatpush1.msra.mxu0 0.0
        %1639 = vmatprep.subr.mxu0 0.0
        %1640 = vmatpush1.msra.mxu0 0.0
        %1641 = vmatprep.subr.mxu0 0.0
        %1642 = vmatpush1.msra.mxu0 0.0
        %1643 = vmatprep.subr.mxu0 0.0
        %1644 = vmatpush1.msra.mxu0 0.0
        %1645 = vmatprep.subr.mxu0 0.0
        %1646 = vmatpush1.msra.mxu0 0.0
        %1647 = vmatprep.subr.mxu0 0.0
        %1648 = vmatpush1.msra.mxu0 0.0
        %1649 = vmatprep.subr.mxu0 0.0
        %1650 = vmatpush1.msra.mxu0 0.0
        %1651 = vmatprep.subr.mxu0 0.0
        %1652 = vmatpush1.msra.mxu0 0.0
        %1653 = vmatprep.subr.mxu0 0.0
        %1654 = vmatpush1.msra.mxu0 0.0
        %1655 = vmatprep.subr.mxu0 0.0
        %1656 = vmatpush1.msra.mxu0 0.0
        %1657 = vmatprep.subr.mxu0 0.0
        %1658 = vmatpush1.msra.mxu0 0.0
        %1659 = vmatprep.subr.mxu0 0.0
        %1660 = vmatpush1.msra.mxu0 0.0
        %1661 = vmatprep.subr.mxu0 0.0
        %1662 = vmatpush1.msra.mxu0 0.0
        %1663 = vmatprep.mubr.f32.mxu0 0.0
        %1664 = vmatmul.mubr.f32.gmra.mrb[0].mxu0 %v696
        %v1665 = vpop.f32.mrb[0].mxu0
        %v1666 = vadd.f32 0.0, %v1665
        %v1667 = vpop.f32.mrb[0].mxu0
        %1668 = vmatprep.mubr.f32.mxu0 0.0
        %1669 = vmatmul.mubr.f32.gmra.mrb[0].mxu0 %v699
        %v1670 = vpop.f32.mrb[0].mxu0
        %v1671 = vadd.f32 0.0, %v1670
        %v1672 = vpop.f32.mrb[0].mxu0
        %1673 = vmatprep.mubr.f32.mxu0 0.0
        %1674 = vmatmul.mubr.f32.gmra.mrb[0].mxu0 %v702
        %v1675 = vpop.f32.mrb[0].mxu0
        %v1676 = vadd.f32 0.0, %v1675
        %v1677 = vpop.f32.mrb[0].mxu0
        %1678 = vmatprep.mubr.f32.mxu0 0.0
        %1679 = vmatmul.mubr.f32.gmra.mrb[0].mxu0 %v705
        %v1680 = vpop.f32.mrb[0].mxu0
        %v1681 = vadd.f32 0.0, %v1680
        %v1682 = vpop.f32.mrb[0].mxu0
        %1683 = vmatprep.mubr.f32.mxu0 0.0
        %1684 = vmatmul.mubr.f32.gmra.mrb[0].mxu0 %v708
        %v1685 = vpop.f32.mrb[0].mxu0
        %v1686 = vadd.f32 0.0, %v1685
        %v1687 = vpop.f32.mrb[0].mxu0
        %1688 = vmatprep.mubr.f32.mxu0 0.0
        %1689 = vmatmul.mubr.f32.gmra.mrb[0].mxu0 %v711
        %v1690 = vpop.f32.mrb[0].mxu0
        %v1691 = vadd.f32 0.0, %v1690
        %v1692 = vpop.f32.mrb[0].mxu0
        %1693 = vmatprep.mubr.f32.mxu0 0.0
        %1694 = vmatmul.mubr.f32.gmra.mrb[0].mxu0 %v714
        %v1695 = vpop.f32.mrb[0].mxu0
        %v1696 = vadd.f32 0.0, %v1695
        %v1697 = vpop.f32.mrb[0].mxu0
        %1698 = vmatprep.mubr.f32.mxu0 0.0
        %1699 = vmatmul.mubr.f32.gmra.mrb[0].mxu0 %v717
        %v1700 = vpop.f32.mrb[0].mxu0
        %v1701 = vadd.f32 0.0, %v1700
        %v1702 = vpop.f32.mrb[0].mxu0
        %1703 = vdwg.mxu0
        %v1704 = vsel %vm694, %v1666, -inf
        %1705 = vmax.xlane.f32.xlu0 %v1704
        %v1706 = vpop.xlane.xlu0 %1705
        %v1707 = vsel %vm694, %v1671, -inf
        %1708 = vmax.xlane.f32.xlu0 %v1707
        %v1709 = vpop.xlane.xlu0 %1708
        %v1710 = vsel %vm694, %v1676, -inf
        %1711 = vmax.xlane.f32.xlu0 %v1710
        %v1712 = vpop.xlane.xlu0 %1711
        %v1713 = vsel %vm694, %v1681, -inf
        %1714 = vmax.xlane.f32.xlu0 %v1713
        %v1715 = vpop.xlane.xlu0 %1714
        %v1716 = vsel %vm694, %v1686, -inf
        %1717 = vmax.xlane.f32.xlu0 %v1716
        %v1718 = vpop.xlane.xlu0 %1717
        %v1719 = vsel %vm694, %v1691, -inf
        %1720 = vmax.xlane.f32.xlu0 %v1719
        %v1721 = vpop.xlane.xlu0 %1720
        %v1722 = vsel %vm694, %v1696, -inf
        %1723 = vmax.xlane.f32.xlu0 %v1722
        %v1724 = vpop.xlane.xlu0 %1723
        %v1725 = vsel %vm694, %v1701, -inf
        %1726 = vmax.xlane.f32.xlu0 %v1725
        %v1727 = vpop.xlane.xlu0 %1726
        %v1728 = vmax.f32 %v1280, %v1706
        %v1729 = vmax.f32 %v1281, %v1709
        %v1730 = vmax.f32 %v1282, %v1712
        %v1731 = vmax.f32 %v1283, %v1715
        %v1732 = vmax.f32 %v1284, %v1718
        %v1733 = vmax.f32 %v1285, %v1721
        %v1734 = vmax.f32 %v1286, %v1724
        %v1735 = vmax.f32 %v1287, %v1727
        %v1736 = vsub.f32 %v1280, %v1728
        %v1737 = vsub.f32 %v1281, %v1729
        %v1738 = vsub.f32 %v1282, %v1730
        %v1739 = vsub.f32 %v1283, %v1731
        %v1740 = vsub.f32 %v1284, %v1732
        %v1741 = vsub.f32 %v1285, %v1733
        %v1742 = vsub.f32 %v1286, %v1734
        %v1743 = vsub.f32 %v1287, %v1735
        %v1744 = vmul.f32 %v1736, 1.442695
        %v1745 = vpow.pop %v1744
        %v1746 = vmul.f32 %v1737, 1.442695
        %v1747 = vpow.pop %v1746
        %v1748 = vmul.f32 %v1738, 1.442695
        %v1749 = vpow.pop %v1748
        %v1750 = vmul.f32 %v1739, 1.442695
        %v1751 = vpow.pop %v1750
        %v1752 = vmul.f32 %v1740, 1.442695
        %v1753 = vpow.pop %v1752
        %v1754 = vmul.f32 %v1741, 1.442695
        %v1755 = vpow.pop %v1754
        %v1756 = vmul.f32 %v1742, 1.442695
        %v1757 = vpow.pop %v1756
        %v1758 = vmul.f32 %v1743, 1.442695
        %v1759 = vpow.pop %v1758
        %v1760 = vsub.f32 %v1666, %v1728
        %v1761 = vsub.f32 %v1671, %v1729
        %v1762 = vsub.f32 %v1676, %v1730
        %v1763 = vsub.f32 %v1681, %v1731
        %v1764 = vsub.f32 %v1686, %v1732
        %v1765 = vsub.f32 %v1691, %v1733
        %v1766 = vsub.f32 %v1696, %v1734
        %v1767 = vsub.f32 %v1701, %v1735
        %v1768 = vmul.f32 %v1760, 1.442695
        %v1769 = vpow.pop %v1768
        %v1770 = vmul.f32 %v1761, 1.442695
        %v1771 = vpow.pop %v1770
        %v1772 = vmul.f32 %v1762, 1.442695
        %v1773 = vpow.pop %v1772
        %v1774 = vmul.f32 %v1763, 1.442695
        %v1775 = vpow.pop %v1774
        %v1776 = vmul.f32 %v1764, 1.442695
        %v1777 = vpow.pop %v1776
        %v1778 = vmul.f32 %v1765, 1.442695
        %v1779 = vpow.pop %v1778
        %v1780 = vmul.f32 %v1766, 1.442695
        %v1781 = vpow.pop %v1780
        %v1782 = vmul.f32 %v1767, 1.442695
        %v1783 = vpow.pop %v1782
        %v1784 = vmul.f32 %v1745, %v1368
        %v1785 = vmul.f32 %v1747, %v1369
        %v1786 = vmul.f32 %v1749, %v1370
        %v1787 = vmul.f32 %v1751, %v1371
        %v1788 = vmul.f32 %v1753, %v1372
        %v1789 = vmul.f32 %v1755, %v1373
        %v1790 = vmul.f32 %v1757, %v1374
        %v1791 = vmul.f32 %v1759, %v1375
        %v1792 = vsel %vm694, %v1769, 0.0
        %1793 = vadd.xlane.f32.xlu0 %v1792
        %v1794 = vpop.xlane.xlu0 %1793
        %v1795 = vsel %vm694, %v1771, 0.0
        %1796 = vadd.xlane.f32.xlu0 %v1795
        %v1797 = vpop.xlane.xlu0 %1796
        %v1798 = vsel %vm694, %v1773, 0.0
        %1799 = vadd.xlane.f32.xlu0 %v1798
        %v1800 = vpop.xlane.xlu0 %1799
        %v1801 = vsel %vm694, %v1775, 0.0
        %1802 = vadd.xlane.f32.xlu0 %v1801
        %v1803 = vpop.xlane.xlu0 %1802
        %v1804 = vsel %vm694, %v1777, 0.0
        %1805 = vadd.xlane.f32.xlu0 %v1804
        %v1806 = vpop.xlane.xlu0 %1805
        %v1807 = vsel %vm694, %v1779, 0.0
        %1808 = vadd.xlane.f32.xlu0 %v1807
        %v1809 = vpop.xlane.xlu0 %1808
        %v1810 = vsel %vm694, %v1781, 0.0
        %1811 = vadd.xlane.f32.xlu0 %v1810
        %v1812 = vpop.xlane.xlu0 %1811
        %v1813 = vsel %vm694, %v1783, 0.0
        %1814 = vadd.xlane.f32.xlu0 %v1813
        %v1815 = vpop.xlane.xlu0 %1814
        %v1816 = vadd.f32 %v1784, %v1794
        %v1817 = vadd.f32 %v1785, %v1797
        %v1818 = vadd.f32 %v1786, %v1800
        %v1819 = vadd.f32 %v1787, %v1803
        %v1820 = vadd.f32 %v1788, %v1806
        %v1821 = vadd.f32 %v1789, %v1809
        %v1822 = vadd.f32 %v1790, %v1812
        %v1823 = vadd.f32 %v1791, %v1815
        %v1824 = vmul.f32 %v1745, %v1513
        %v1825 = vmul.f32 %v1747, %v1514
        %v1826 = vmul.f32 %v1749, %v1515
        %v1827 = vmul.f32 %v1751, %v1516
        %v1828 = vmul.f32 %v1753, %v1517
        %v1829 = vmul.f32 %v1755, %v1518
        %v1830 = vmul.f32 %v1757, %v1519
        %v1831 = vmul.f32 %v1759, %v1520
        %v1833 = vsel %vm694, %v1769, 0
        %v1836 = vsel %vm694, %v1771, 0
        %v1839 = vsel %vm694, %v1773, 0
        %v1842 = vsel %vm694, %v1775, 0
        %v1845 = vsel %vm694, %v1777, 0
        %v1848 = vsel %vm694, %v1779, 0
        %v1851 = vsel %vm694, %v1781, 0
        %v1854 = vsel %vm694, %v1783, 0
        %1856 = vmatprep.subr.mxu0 0.0
        %1857 = vmatpush1.msra.mxu0 %v583
        %1858 = vmatprep.subr.mxu0 0.0
        %1859 = vmatpush1.msra.mxu0 %v588
        %1860 = vmatprep.subr.mxu0 0.0
        %1861 = vmatpush1.msra.mxu0 0.0
        %1862 = vmatprep.subr.mxu0 0.0
        %1863 = vmatpush1.msra.mxu0 0.0
        %1864 = vmatprep.subr.mxu0 0.0
        %1865 = vmatpush1.msra.mxu0 0.0
        %1866 = vmatprep.subr.mxu0 0.0
        %1867 = vmatpush1.msra.mxu0 0.0
        %1868 = vmatprep.subr.mxu0 0.0
        %1869 = vmatpush1.msra.mxu0 0.0
        %1870 = vmatprep.subr.mxu0 0.0
        %1871 = vmatpush1.msra.mxu0 0.0
        %1872 = vmatprep.subr.mxu0 0.0
        %1873 = vmatpush1.msra.mxu0 0.0
        %1874 = vmatprep.subr.mxu0 0.0
        %1875 = vmatpush1.msra.mxu0 0.0
        %1876 = vmatprep.subr.mxu0 0.0
        %1877 = vmatpush1.msra.mxu0 0.0
        %1878 = vmatprep.subr.mxu0 0.0
        %1879 = vmatpush1.msra.mxu0 0.0
        %1880 = vmatprep.subr.mxu0 0.0
        %1881 = vmatpush1.msra.mxu0 0.0
        %1882 = vmatprep.subr.mxu0 0.0
        %1883 = vmatpush1.msra.mxu0 0.0
        %1884 = vmatprep.subr.mxu0 0.0
        %1885 = vmatpush1.msra.mxu0 0.0
        %1886 = vmatprep.subr.mxu0 0.0
        %1887 = vmatpush1.msra.mxu0 0.0
        %1888 = vmatprep.subr.mxu0 0.0
        %1889 = vmatpush1.msra.mxu0 0.0
        %1890 = vmatprep.subr.mxu0 0.0
        %1891 = vmatpush1.msra.mxu0 0.0
        %1892 = vmatprep.subr.mxu0 0.0
        %1893 = vmatpush1.msra.mxu0 0.0
        %1894 = vmatprep.subr.mxu0 0.0
        %1895 = vmatpush1.msra.mxu0 0.0
        %1896 = vmatprep.subr.mxu0 0.0
        %1897 = vmatpush1.msra.mxu0 0.0
        %1898 = vmatprep.subr.mxu0 0.0
        %1899 = vmatpush1.msra.mxu0 0.0
        %1900 = vmatprep.subr.mxu0 0.0
        %1901 = vmatpush1.msra.mxu0 0.0
        %1902 = vmatprep.subr.mxu0 0.0
        %1903 = vmatpush1.msra.mxu0 0.0
        %1904 = vmatprep.subr.mxu0 0.0
        %1905 = vmatpush1.msra.mxu0 0.0
        %1906 = vmatprep.subr.mxu0 0.0
        %1907 = vmatpush1.msra.mxu0 0.0
        %1908 = vmatprep.subr.mxu0 0.0
        %1909 = vmatpush1.msra.mxu0 0.0
        %1910 = vmatprep.subr.mxu0 0.0
        %1911 = vmatpush1.msra.mxu0 0.0
        %1912 = vmatprep.subr.mxu0 0.0
        %1913 = vmatpush1.msra.mxu0 0.0
        %1914 = vmatprep.subr.mxu0 0.0
        %1915 = vmatpush1.msra.mxu0 0.0
        %1916 = vmatprep.subr.mxu0 0.0
        %1917 = vmatpush1.msra.mxu0 0.0
        %1918 = vmatprep.subr.mxu0 0.0
        %1919 = vmatpush1.msra.mxu0 0.0
        %1920 = vmatprep.mubr.f32.mxu0 0.0
        %1921 = vmatmul.mubr.f32.gmra.mrb[0].mxu0 %v1833
        %v1922 = vpop.f32.mrb[0].mxu0
        %v1923 = vadd.f32 0.0, %v1922
        %v1924 = vpop.f32.mrb[0].mxu0
        %1925 = vmatprep.mubr.f32.mxu0 0.0
        %1926 = vmatmul.mubr.f32.gmra.mrb[0].mxu0 %v1836
        %v1927 = vpop.f32.mrb[0].mxu0
        %v1928 = vadd.f32 0.0, %v1927
        %v1929 = vpop.f32.mrb[0].mxu0
        %1930 = vmatprep.mubr.f32.mxu0 0.0
        %1931 = vmatmul.mubr.f32.gmra.mrb[0].mxu0 %v1839
        %v1932 = vpop.f32.mrb[0].mxu0
        %v1933 = vadd.f32 0.0, %v1932
        %v1934 = vpop.f32.mrb[0].mxu0
        %1935 = vmatprep.mubr.f32.mxu0 0.0
        %1936 = vmatmul.mubr.f32.gmra.mrb[0].mxu0 %v1842
        %v1937 = vpop.f32.mrb[0].mxu0
        %v1938 = vadd.f32 0.0, %v1937
        %v1939 = vpop.f32.mrb[0].mxu0
        %1940 = vmatprep.mubr.f32.mxu0 0.0
        %1941 = vmatmul.mubr.f32.gmra.mrb[0].mxu0 %v1845
        %v1942 = vpop.f32.mrb[0].mxu0
        %v1943 = vadd.f32 0.0, %v1942
        %v1944 = vpop.f32.mrb[0].mxu0
        %1945 = vmatprep.mubr.f32.mxu0 0.0
        %1946 = vmatmul.mubr.f32.gmra.mrb[0].mxu0 %v1848
        %v1947 = vpop.f32.mrb[0].mxu0
        %v1948 = vadd.f32 0.0, %v1947
        %v1949 = vpop.f32.mrb[0].mxu0
        %1950 = vmatprep.mubr.f32.mxu0 0.0
        %1951 = vmatmul.mubr.f32.gmra.mrb[0].mxu0 %v1851
        %v1952 = vpop.f32.mrb[0].mxu0
        %v1953 = vadd.f32 0.0, %v1952
        %v1954 = vpop.f32.mrb[0].mxu0
        %1955 = vmatprep.mubr.f32.mxu0 0.0
        %1956 = vmatmul.mubr.f32.gmra.mrb[0].mxu0 %v1854
        %v1957 = vpop.f32.mrb[0].mxu0
        %v1958 = vadd.f32 0.0, %v1957
        %v1959 = vpop.f32.mrb[0].mxu0
        %1960 = vdwg.mxu0
        %v1961 = vadd.f32 %v1824, %v1923
        %v1962 = vadd.f32 %v1825, %v1928
        %v1963 = vadd.f32 %v1826, %v1933
        %v1964 = vadd.f32 %v1827, %v1938
        %v1965 = vadd.f32 %v1828, %v1943
        %v1966 = vadd.f32 %v1829, %v1948
        %v1967 = vadd.f32 %v1830, %v1953
        %v1968 = vadd.f32 %v1831, %v1958
        %s1969 = scalar_lea.vmem %s350, 48
        %v1970 = vld [vmem:[%s1969] sm:$0xff]
        %v1971 = vld [vmem:[%s1969 + $0x8] sm:$0xff]
        %1972 = vmatprep.subr.mxu0 0.0
        %1973 = vmatpush1.msra.mxu0 %v603
        %1974 = vmatprep.subr.mxu0 0.0
        %1975 = vmatpush1.msra.mxu0 %v604
        %1976 = vmatprep.subr.mxu0 0.0
        %1977 = vmatpush1.msra.mxu0 %v605
        %1978 = vmatprep.subr.mxu0 0.0
        %1979 = vmatpush1.msra.mxu0 %v606
        %1980 = vmatprep.subr.mxu0 0.0
        %1981 = vmatpush1.msra.mxu0 %v607
        %1982 = vmatprep.subr.mxu0 0.0
        %1983 = vmatpush1.msra.mxu0 %v608
        %1984 = vmatprep.subr.mxu0 0.0
        %1985 = vmatpush1.msra.mxu0 %v609
        %1986 = vmatprep.subr.mxu0 0.0
        %1987 = vmatpush1.msra.mxu0 %v610
        %1988 = vmatprep.subr.mxu0 0.0
        %1989 = vmatpush1.msra.mxu0 %v611
        %1990 = vmatprep.subr.mxu0 0.0
        %1991 = vmatpush1.msra.mxu0 %v612
        %1992 = vmatprep.subr.mxu0 0.0
        %1993 = vmatpush1.msra.mxu0 %v613
        %1994 = vmatprep.subr.mxu0 0.0
        %1995 = vmatpush1.msra.mxu0 %v614
        %1996 = vmatprep.subr.mxu0 0.0
        %1997 = vmatpush1.msra.mxu0 %v615
        %1998 = vmatprep.subr.mxu0 0.0
        %1999 = vmatpush1.msra.mxu0 %v616
        %2000 = vmatprep.subr.mxu0 0.0
        %2001 = vmatpush1.msra.mxu0 %v617
        %2002 = vmatprep.subr.mxu0 0.0
        %2003 = vmatpush1.msra.mxu0 %v618
        %2004 = vmatprep.subr.mxu0 0.0
        %2005 = vmatpush1.msra.mxu0 0.0
        %2006 = vmatprep.subr.mxu0 0.0
        %2007 = vmatpush1.msra.mxu0 0.0
        %2008 = vmatprep.subr.mxu0 0.0
        %2009 = vmatpush1.msra.mxu0 0.0
        %2010 = vmatprep.subr.mxu0 0.0
        %2011 = vmatpush1.msra.mxu0 0.0
        %2012 = vmatprep.subr.mxu0 0.0
        %2013 = vmatpush1.msra.mxu0 0.0
        %2014 = vmatprep.subr.mxu0 0.0
        %2015 = vmatpush1.msra.mxu0 0.0
        %2016 = vmatprep.subr.mxu0 0.0
        %2017 = vmatpush1.msra.mxu0 0.0
        %2018 = vmatprep.subr.mxu0 0.0
        %2019 = vmatpush1.msra.mxu0 0.0
        %2020 = vmatprep.subr.mxu0 0.0
        %2021 = vmatpush1.msra.mxu0 0.0
        %2022 = vmatprep.subr.mxu0 0.0
        %2023 = vmatpush1.msra.mxu0 0.0
        %2024 = vmatprep.subr.mxu0 0.0
        %2025 = vmatpush1.msra.mxu0 0.0
        %2026 = vmatprep.subr.mxu0 0.0
        %2027 = vmatpush1.msra.mxu0 0.0
        %2028 = vmatprep.subr.mxu0 0.0
        %2029 = vmatpush1.msra.mxu0 0.0
        %2030 = vmatprep.subr.mxu0 0.0
        %2031 = vmatpush1.msra.mxu0 0.0
        %2032 = vmatprep.subr.mxu0 0.0
        %2033 = vmatpush1.msra.mxu0 0.0
        %2034 = vmatprep.subr.mxu0 0.0
        %2035 = vmatpush1.msra.mxu0 0.0
        %2036 = vmatprep.mubr.f32.mxu0 0.0
        %2037 = vmatmul.mubr.f32.gmra.mrb[0].mxu0 %v1970
        %v2038 = vpop.f32.mrb[0].mxu0
        %v2039 = vadd.f32 0.0, %v2038
        %v2040 = vpop.f32.mrb[0].mxu0
        %2041 = vmatprep.mubr.f32.mxu0 0.0
        %2042 = vmatmul.mubr.f32.gmra.mrb[0].mxu0 %v1971
        %v2043 = vpop.f32.mrb[0].mxu0
        %v2044 = vadd.f32 0.0, %v2043
        %v2045 = vpop.f32.mrb[0].mxu0
        %2046 = vdwg.mxu0
        %2047 = vmatprep.subr.mxu0 0.0
        %2048 = vmatpush1.msra.mxu0 %v2039
        %2049 = vmatprep.subr.mxu0 0.0
        %2050 = vmatpush1.msra.mxu0 %v2044
        %2051 = vmatprep.subr.mxu0 0.0
        %2052 = vmatpush1.msra.mxu0 0.0
        %2053 = vmatprep.subr.mxu0 0.0
        %2054 = vmatpush1.msra.mxu0 0.0
        %2055 = vmatprep.subr.mxu0 0.0
        %2056 = vmatpush1.msra.mxu0 0.0
        %2057 = vmatprep.subr.mxu0 0.0
        %2058 = vmatpush1.msra.mxu0 0.0
        %2059 = vmatprep.subr.mxu0 0.0
        %2060 = vmatpush1.msra.mxu0 0.0
        %2061 = vmatprep.subr.mxu0 0.0
        %2062 = vmatpush1.msra.mxu0 0.0
        %2063 = vmatprep.subr.mxu0 0.0
        %2064 = vmatpush1.msra.mxu0 0.0
        %2065 = vmatprep.subr.mxu0 0.0
        %2066 = vmatpush1.msra.mxu0 0.0
        %2067 = vmatprep.subr.mxu0 0.0
        %2068 = vmatpush1.msra.mxu0 0.0
        %2069 = vmatprep.subr.mxu0 0.0
        %2070 = vmatpush1.msra.mxu0 0.0
        %2071 = vmatprep.subr.mxu0 0.0
        %2072 = vmatpush1.msra.mxu0 0.0
        %2073 = vmatprep.subr.mxu0 0.0
        %2074 = vmatpush1.msra.mxu0 0.0
        %2075 = vmatprep.subr.mxu0 0.0
        %2076 = vmatpush1.msra.mxu0 0.0
        %2077 = vmatprep.subr.mxu0 0.0
        %2078 = vmatpush1.msra.mxu0 0.0
        %2079 = vmatprep.subr.mxu0 0.0
        %2080 = vmatpush1.msra.mxu0 0.0
        %2081 = vmatprep.subr.mxu0 0.0
        %2082 = vmatpush1.msra.mxu0 0.0
        %2083 = vmatprep.subr.mxu0 0.0
        %2084 = vmatpush1.msra.mxu0 0.0
        %2085 = vmatprep.subr.mxu0 0.0
        %2086 = vmatpush1.msra.mxu0 0.0
        %2087 = vmatprep.subr.mxu0 0.0
        %2088 = vmatpush1.msra.mxu0 0.0
        %2089 = vmatprep.subr.mxu0 0.0
        %2090 = vmatpush1.msra.mxu0 0.0
        %2091 = vmatprep.subr.mxu0 0.0
        %2092 = vmatpush1.msra.mxu0 0.0
        %2093 = vmatprep.subr.mxu0 0.0
        %2094 = vmatpush1.msra.mxu0 0.0
        %2095 = vmatprep.subr.mxu0 0.0
        %2096 = vmatpush1.msra.mxu0 0.0
        %2097 = vmatprep.subr.mxu0 0.0
        %2098 = vmatpush1.msra.mxu0 0.0
        %2099 = vmatprep.subr.mxu0 0.0
        %2100 = vmatpush1.msra.mxu0 0.0
        %2101 = vmatprep.subr.mxu0 0.0
        %2102 = vmatpush1.msra.mxu0 0.0
        %2103 = vmatprep.subr.mxu0 0.0
        %2104 = vmatpush1.msra.mxu0 0.0
        %2105 = vmatprep.subr.mxu0 0.0
        %2106 = vmatpush1.msra.mxu0 0.0
        %2107 = vmatprep.subr.mxu0 0.0
        %2108 = vmatpush1.msra.mxu0 0.0
        %2109 = vmatprep.subr.mxu0 0.0
        %2110 = vmatpush1.msra.mxu0 0.0
        %2111 = vmatprep.mubr.f32.mxu0 0.0
        %2112 = vmatmul.mubr.f32.gmra.mrb[0].mxu0 %v696
        %v2113 = vpop.f32.mrb[0].mxu0
        %v2114 = vadd.f32 0.0, %v2113
        %v2115 = vpop.f32.mrb[0].mxu0
        %2116 = vmatprep.mubr.f32.mxu0 0.0
        %2117 = vmatmul.mubr.f32.gmra.mrb[0].mxu0 %v699
        %v2118 = vpop.f32.mrb[0].mxu0
        %v2119 = vadd.f32 0.0, %v2118
        %v2120 = vpop.f32.mrb[0].mxu0
        %2121 = vmatprep.mubr.f32.mxu0 0.0
        %2122 = vmatmul.mubr.f32.gmra.mrb[0].mxu0 %v702
        %v2123 = vpop.f32.mrb[0].mxu0
        %v2124 = vadd.f32 0.0, %v2123
        %v2125 = vpop.f32.mrb[0].mxu0
        %2126 = vmatprep.mubr.f32.mxu0 0.0
        %2127 = vmatmul.mubr.f32.gmra.mrb[0].mxu0 %v705
        %v2128 = vpop.f32.mrb[0].mxu0
        %v2129 = vadd.f32 0.0, %v2128
        %v2130 = vpop.f32.mrb[0].mxu0
        %2131 = vmatprep.mubr.f32.mxu0 0.0
        %2132 = vmatmul.mubr.f32.gmra.mrb[0].mxu0 %v708
        %v2133 = vpop.f32.mrb[0].mxu0
        %v2134 = vadd.f32 0.0, %v2133
        %v2135 = vpop.f32.mrb[0].mxu0
        %2136 = vmatprep.mubr.f32.mxu0 0.0
        %2137 = vmatmul.mubr.f32.gmra.mrb[0].mxu0 %v711
        %v2138 = vpop.f32.mrb[0].mxu0
        %v2139 = vadd.f32 0.0, %v2138
        %v2140 = vpop.f32.mrb[0].mxu0
        %2141 = vmatprep.mubr.f32.mxu0 0.0
        %2142 = vmatmul.mubr.f32.gmra.mrb[0].mxu0 %v714
        %v2143 = vpop.f32.mrb[0].mxu0
        %v2144 = vadd.f32 0.0, %v2143
        %v2145 = vpop.f32.mrb[0].mxu0
        %2146 = vmatprep.mubr.f32.mxu0 0.0
        %2147 = vmatmul.mubr.f32.gmra.mrb[0].mxu0 %v717
        %v2148 = vpop.f32.mrb[0].mxu0
        %v2149 = vadd.f32 0.0, %v2148
        %v2150 = vpop.f32.mrb[0].mxu0
        %2151 = vdwg.mxu0
        %v2152 = vsel %vm694, %v2114, -inf
        %2153 = vmax.xlane.f32.xlu0 %v2152
        %v2154 = vpop.xlane.xlu0 %2153
        %v2155 = vsel %vm694, %v2119, -inf
        %2156 = vmax.xlane.f32.xlu0 %v2155
        %v2157 = vpop.xlane.xlu0 %2156
        %v2158 = vsel %vm694, %v2124, -inf
        %2159 = vmax.xlane.f32.xlu0 %v2158
        %v2160 = vpop.xlane.xlu0 %2159
        %v2161 = vsel %vm694, %v2129, -inf
        %2162 = vmax.xlane.f32.xlu0 %v2161
        %v2163 = vpop.xlane.xlu0 %2162
        %v2164 = vsel %vm694, %v2134, -inf
        %2165 = vmax.xlane.f32.xlu0 %v2164
        %v2166 = vpop.xlane.xlu0 %2165
        %v2167 = vsel %vm694, %v2139, -inf
        %2168 = vmax.xlane.f32.xlu0 %v2167
        %v2169 = vpop.xlane.xlu0 %2168
        %v2170 = vsel %vm694, %v2144, -inf
        %2171 = vmax.xlane.f32.xlu0 %v2170
        %v2172 = vpop.xlane.xlu0 %2171
        %v2173 = vsel %vm694, %v2149, -inf
        %2174 = vmax.xlane.f32.xlu0 %v2173
        %v2175 = vpop.xlane.xlu0 %2174
        %v2176 = vmax.f32 %v1728, %v2154
        %v2177 = vmax.f32 %v1729, %v2157
        %v2178 = vmax.f32 %v1730, %v2160
        %v2179 = vmax.f32 %v1731, %v2163
        %v2180 = vmax.f32 %v1732, %v2166
        %v2181 = vmax.f32 %v1733, %v2169
        %v2182 = vmax.f32 %v1734, %v2172
        %v2183 = vmax.f32 %v1735, %v2175
        %v2184 = vsub.f32 %v1728, %v2176
        %v2185 = vsub.f32 %v1729, %v2177
        %v2186 = vsub.f32 %v1730, %v2178
        %v2187 = vsub.f32 %v1731, %v2179
        %v2188 = vsub.f32 %v1732, %v2180
        %v2189 = vsub.f32 %v1733, %v2181
        %v2190 = vsub.f32 %v1734, %v2182
        %v2191 = vsub.f32 %v1735, %v2183
        %v2192 = vmul.f32 %v2184, 1.442695
        %v2193 = vpow.pop %v2192
        %v2194 = vmul.f32 %v2185, 1.442695
        %v2195 = vpow.pop %v2194
        %v2196 = vmul.f32 %v2186, 1.442695
        %v2197 = vpow.pop %v2196
        %v2198 = vmul.f32 %v2187, 1.442695
        %v2199 = vpow.pop %v2198
        %v2200 = vmul.f32 %v2188, 1.442695
        %v2201 = vpow.pop %v2200
        %v2202 = vmul.f32 %v2189, 1.442695
        %v2203 = vpow.pop %v2202
        %v2204 = vmul.f32 %v2190, 1.442695
        %v2205 = vpow.pop %v2204
        %v2206 = vmul.f32 %v2191, 1.442695
        %v2207 = vpow.pop %v2206
        %v2208 = vsub.f32 %v2114, %v2176
        %v2209 = vsub.f32 %v2119, %v2177
        %v2210 = vsub.f32 %v2124, %v2178
        %v2211 = vsub.f32 %v2129, %v2179
        %v2212 = vsub.f32 %v2134, %v2180
        %v2213 = vsub.f32 %v2139, %v2181
        %v2214 = vsub.f32 %v2144, %v2182
        %v2215 = vsub.f32 %v2149, %v2183
        %v2216 = vmul.f32 %v2208, 1.442695
        %v2217 = vpow.pop %v2216
        %v2218 = vmul.f32 %v2209, 1.442695
        %v2219 = vpow.pop %v2218
        %v2220 = vmul.f32 %v2210, 1.442695
        %v2221 = vpow.pop %v2220
        %v2222 = vmul.f32 %v2211, 1.442695
        %v2223 = vpow.pop %v2222
        %v2224 = vmul.f32 %v2212, 1.442695
        %v2225 = vpow.pop %v2224
        %v2226 = vmul.f32 %v2213, 1.442695
        %v2227 = vpow.pop %v2226
        %v2228 = vmul.f32 %v2214, 1.442695
        %v2229 = vpow.pop %v2228
        %v2230 = vmul.f32 %v2215, 1.442695
        %v2231 = vpow.pop %v2230
        %v2232 = vmul.f32 %v2193, %v1816
        %v2233 = vmul.f32 %v2195, %v1817
        %v2234 = vmul.f32 %v2197, %v1818
        %v2235 = vmul.f32 %v2199, %v1819
        %v2236 = vmul.f32 %v2201, %v1820
        %v2237 = vmul.f32 %v2203, %v1821
        %v2238 = vmul.f32 %v2205, %v1822
        %v2239 = vmul.f32 %v2207, %v1823
        %v2240 = vsel %vm694, %v2217, 0.0
        %2241 = vadd.xlane.f32.xlu0 %v2240
        %v2242 = vpop.xlane.xlu0 %2241
        %v2243 = vsel %vm694, %v2219, 0.0
        %2244 = vadd.xlane.f32.xlu0 %v2243
        %v2245 = vpop.xlane.xlu0 %2244
        %v2246 = vsel %vm694, %v2221, 0.0
        %2247 = vadd.xlane.f32.xlu0 %v2246
        %v2248 = vpop.xlane.xlu0 %2247
        %v2249 = vsel %vm694, %v2223, 0.0
        %2250 = vadd.xlane.f32.xlu0 %v2249
        %v2251 = vpop.xlane.xlu0 %2250
        %v2252 = vsel %vm694, %v2225, 0.0
        %2253 = vadd.xlane.f32.xlu0 %v2252
        %v2254 = vpop.xlane.xlu0 %2253
        %v2255 = vsel %vm694, %v2227, 0.0
        %2256 = vadd.xlane.f32.xlu0 %v2255
        %v2257 = vpop.xlane.xlu0 %2256
        %v2258 = vsel %vm694, %v2229, 0.0
        %2259 = vadd.xlane.f32.xlu0 %v2258
        %v2260 = vpop.xlane.xlu0 %2259
        %v2261 = vsel %vm694, %v2231, 0.0
        %2262 = vadd.xlane.f32.xlu0 %v2261
        %v2263 = vpop.xlane.xlu0 %2262
        %v2264 = vadd.f32 %v2232, %v2242
        %v2265 = vadd.f32 %v2233, %v2245
        %v2266 = vadd.f32 %v2234, %v2248
        %v2267 = vadd.f32 %v2235, %v2251
        %v2268 = vadd.f32 %v2236, %v2254
        %v2269 = vadd.f32 %v2237, %v2257
        %v2270 = vadd.f32 %v2238, %v2260
        %v2271 = vadd.f32 %v2239, %v2263
        %v2272 = vmul.f32 %v2193, %v1961
        %v2273 = vmul.f32 %v2195, %v1962
        %v2274 = vmul.f32 %v2197, %v1963
        %v2275 = vmul.f32 %v2199, %v1964
        %v2276 = vmul.f32 %v2201, %v1965
        %v2277 = vmul.f32 %v2203, %v1966
        %v2278 = vmul.f32 %v2205, %v1967
        %v2279 = vmul.f32 %v2207, %v1968
        %v2281 = vsel %vm694, %v2217, 0
        %v2284 = vsel %vm694, %v2219, 0
        %v2287 = vsel %vm694, %v2221, 0
        %v2290 = vsel %vm694, %v2223, 0
        %v2293 = vsel %vm694, %v2225, 0
        %v2296 = vsel %vm694, %v2227, 0
        %v2299 = vsel %vm694, %v2229, 0
        %v2302 = vsel %vm694, %v2231, 0
        %2304 = vmatprep.subr.mxu0 0.0
        %2305 = vmatpush1.msra.mxu0 %v593
        %2306 = vmatprep.subr.mxu0 0.0
        %2307 = vmatpush1.msra.mxu0 %v598
        %2308 = vmatprep.subr.mxu0 0.0
        %2309 = vmatpush1.msra.mxu0 0.0
        %2310 = vmatprep.subr.mxu0 0.0
        %2311 = vmatpush1.msra.mxu0 0.0
        %2312 = vmatprep.subr.mxu0 0.0
        %2313 = vmatpush1.msra.mxu0 0.0
        %2314 = vmatprep.subr.mxu0 0.0
        %2315 = vmatpush1.msra.mxu0 0.0
        %2316 = vmatprep.subr.mxu0 0.0
        %2317 = vmatpush1.msra.mxu0 0.0
        %2318 = vmatprep.subr.mxu0 0.0
        %2319 = vmatpush1.msra.mxu0 0.0
        %2320 = vmatprep.subr.mxu0 0.0
        %2321 = vmatpush1.msra.mxu0 0.0
        %2322 = vmatprep.subr.mxu0 0.0
        %2323 = vmatpush1.msra.mxu0 0.0
        %2324 = vmatprep.subr.mxu0 0.0
        %2325 = vmatpush1.msra.mxu0 0.0
        %2326 = vmatprep.subr.mxu0 0.0
        %2327 = vmatpush1.msra.mxu0 0.0
        %2328 = vmatprep.subr.mxu0 0.0
        %2329 = vmatpush1.msra.mxu0 0.0
        %2330 = vmatprep.subr.mxu0 0.0
        %2331 = vmatpush1.msra.mxu0 0.0
        %2332 = vmatprep.subr.mxu0 0.0
        %2333 = vmatpush1.msra.mxu0 0.0
        %2334 = vmatprep.subr.mxu0 0.0
        %2335 = vmatpush1.msra.mxu0 0.0
        %2336 = vmatprep.subr.mxu0 0.0
        %2337 = vmatpush1.msra.mxu0 0.0
        %2338 = vmatprep.subr.mxu0 0.0
        %2339 = vmatpush1.msra.mxu0 0.0
        %2340 = vmatprep.subr.mxu0 0.0
        %2341 = vmatpush1.msra.mxu0 0.0
        %2342 = vmatprep.subr.mxu0 0.0
        %2343 = vmatpush1.msra.mxu0 0.0
        %2344 = vmatprep.subr.mxu0 0.0
        %2345 = vmatpush1.msra.mxu0 0.0
        %2346 = vmatprep.subr.mxu0 0.0
        %2347 = vmatpush1.msra.mxu0 0.0
        %2348 = vmatprep.subr.mxu0 0.0
        %2349 = vmatpush1.msra.mxu0 0.0
        %2350 = vmatprep.subr.mxu0 0.0
        %2351 = vmatpush1.msra.mxu0 0.0
        %2352 = vmatprep.subr.mxu0 0.0
        %2353 = vmatpush1.msra.mxu0 0.0
        %2354 = vmatprep.subr.mxu0 0.0
        %2355 = vmatpush1.msra.mxu0 0.0
        %2356 = vmatprep.subr.mxu0 0.0
        %2357 = vmatpush1.msra.mxu0 0.0
        %2358 = vmatprep.subr.mxu0 0.0
        %2359 = vmatpush1.msra.mxu0 0.0
        %2360 = vmatprep.subr.mxu0 0.0
        %2361 = vmatpush1.msra.mxu0 0.0
        %2362 = vmatprep.subr.mxu0 0.0
        %2363 = vmatpush1.msra.mxu0 0.0
        %2364 = vmatprep.subr.mxu0 0.0
        %2365 = vmatpush1.msra.mxu0 0.0
        %2366 = vmatprep.subr.mxu0 0.0
        %2367 = vmatpush1.msra.mxu0 0.0
        %2368 = vmatprep.mubr.f32.mxu0 0.0
        %2369 = vmatmul.mubr.f32.gmra.mrb[0].mxu0 %v2281
        %v2370 = vpop.f32.mrb[0].mxu0
        %v2371 = vadd.f32 0.0, %v2370
        %v2372 = vpop.f32.mrb[0].mxu0
        %2373 = vmatprep.mubr.f32.mxu0 0.0
        %2374 = vmatmul.mubr.f32.gmra.mrb[0].mxu0 %v2284
        %v2375 = vpop.f32.mrb[0].mxu0
        %v2376 = vadd.f32 0.0, %v2375
        %v2377 = vpop.f32.mrb[0].mxu0
        %2378 = vmatprep.mubr.f32.mxu0 0.0
        %2379 = vmatmul.mubr.f32.gmra.mrb[0].mxu0 %v2287
        %v2380 = vpop.f32.mrb[0].mxu0
        %v2381 = vadd.f32 0.0, %v2380
        %v2382 = vpop.f32.mrb[0].mxu0
        %2383 = vmatprep.mubr.f32.mxu0 0.0
        %2384 = vmatmul.mubr.f32.gmra.mrb[0].mxu0 %v2290
        %v2385 = vpop.f32.mrb[0].mxu0
        %v2386 = vadd.f32 0.0, %v2385
        %v2387 = vpop.f32.mrb[0].mxu0
        %2388 = vmatprep.mubr.f32.mxu0 0.0
        %2389 = vmatmul.mubr.f32.gmra.mrb[0].mxu0 %v2293
        %v2390 = vpop.f32.mrb[0].mxu0
        %v2391 = vadd.f32 0.0, %v2390
        %v2392 = vpop.f32.mrb[0].mxu0
        %2393 = vmatprep.mubr.f32.mxu0 0.0
        %2394 = vmatmul.mubr.f32.gmra.mrb[0].mxu0 %v2296
        %v2395 = vpop.f32.mrb[0].mxu0
        %v2396 = vadd.f32 0.0, %v2395
        %v2397 = vpop.f32.mrb[0].mxu0
        %2398 = vmatprep.mubr.f32.mxu0 0.0
        %2399 = vmatmul.mubr.f32.gmra.mrb[0].mxu0 %v2299
        %v2400 = vpop.f32.mrb[0].mxu0
        %v2401 = vadd.f32 0.0, %v2400
        %v2402 = vpop.f32.mrb[0].mxu0
        %2403 = vmatprep.mubr.f32.mxu0 0.0
        %2404 = vmatmul.mubr.f32.gmra.mrb[0].mxu0 %v2302
        %v2405 = vpop.f32.mrb[0].mxu0
        %v2406 = vadd.f32 0.0, %v2405
        %v2407 = vpop.f32.mrb[0].mxu0
        %2408 = vdwg.mxu0
        %v2409 = vadd.f32 %v2272, %v2371
        %v2410 = vadd.f32 %v2273, %v2376
        %v2411 = vadd.f32 %v2274, %v2381
        %v2412 = vadd.f32 %v2275, %v2386
        %v2413 = vadd.f32 %v2276, %v2391
        %v2414 = vadd.f32 %v2277, %v2396
        %v2415 = vadd.f32 %v2278, %v2401
        %v2416 = vadd.f32 %v2279, %v2406
        %v2417 = vrcp.pop %v2264
        %v2418 = vmul.f32 %v2409, %v2417
        %v2419 = vrcp.pop %v2265
        %v2420 = vmul.f32 %v2410, %v2419
        %v2421 = vrcp.pop %v2266
        %v2422 = vmul.f32 %v2411, %v2421
        %v2423 = vrcp.pop %v2267
        %v2424 = vmul.f32 %v2412, %v2423
        %v2425 = vrcp.pop %v2268
        %v2426 = vmul.f32 %v2413, %v2425
        %v2427 = vrcp.pop %v2269
        %v2428 = vmul.f32 %v2414, %v2427
        %v2429 = vrcp.pop %v2270
        %v2430 = vmul.f32 %v2415, %v2429
        %v2431 = vrcp.pop %v2271
        %v2432 = vmul.f32 %v2416, %v2431
        %v2433 = vld [vmem:[%s5] sm:$0xff]
        %v2434 = vld [vmem:[%s5 + $0x8] sm:$0xff]
        %s2435 = scalar_lea.vmem %s2, 128
        %v2436 = vld [vmem:[%s2435] sm:$0xff]
        %v2437 = vld [vmem:[%s2435 + $0x8] sm:$0xff]
        %v2438 = vld [vmem:[%s2435 + $0x10] sm:$0xff]
        %v2439 = vld [vmem:[%s2435 + $0x18] sm:$0xff]
        %v2440 = vld [vmem:[%s2435 + $0x20] sm:$0xff]
        %v2441 = vld [vmem:[%s2435 + $0x28] sm:$0xff]
        %v2442 = vld [vmem:[%s2435 + $0x30] sm:$0xff]
        %v2443 = vld [vmem:[%s2435 + $0x38] sm:$0xff]
        %v2444 = vld [vmem:[%s2435 + $0x40] sm:$0xff]
        %v2445 = vld [vmem:[%s2435 + $0x48] sm:$0xff]
        %v2446 = vld [vmem:[%s2435 + $0x50] sm:$0xff]
        %v2447 = vld [vmem:[%s2435 + $0x58] sm:$0xff]
        %v2448 = vld [vmem:[%s2435 + $0x60] sm:$0xff]
        %v2449 = vld [vmem:[%s2435 + $0x68] sm:$0xff]
        %v2450 = vld [vmem:[%s2435 + $0x70] sm:$0xff]
        %v2451 = vld [vmem:[%s2435 + $0x78] sm:$0xff]
        %2452 = vmatprep.subr.mxu0 0.0
        %2453 = vmatpush1.msra.mxu0 %v2436
        %2454 = vmatprep.subr.mxu0 0.0
        %2455 = vmatpush1.msra.mxu0 %v2437
        %2456 = vmatprep.subr.mxu0 0.0
        %2457 = vmatpush1.msra.mxu0 %v2438
        %2458 = vmatprep.subr.mxu0 0.0
        %2459 = vmatpush1.msra.mxu0 %v2439
        %2460 = vmatprep.subr.mxu0 0.0
        %2461 = vmatpush1.msra.mxu0 %v2440
        %2462 = vmatprep.subr.mxu0 0.0
        %2463 = vmatpush1.msra.mxu0 %v2441
        %2464 = vmatprep.subr.mxu0 0.0
        %2465 = vmatpush1.msra.mxu0 %v2442
        %2466 = vmatprep.subr.mxu0 0.0
        %2467 = vmatpush1.msra.mxu0 %v2443
        %2468 = vmatprep.subr.mxu0 0.0
        %2469 = vmatpush1.msra.mxu0 %v2444
        %2470 = vmatprep.subr.mxu0 0.0
        %2471 = vmatpush1.msra.mxu0 %v2445
        %2472 = vmatprep.subr.mxu0 0.0
        %2473 = vmatpush1.msra.mxu0 %v2446
        %2474 = vmatprep.subr.mxu0 0.0
        %2475 = vmatpush1.msra.mxu0 %v2447
        %2476 = vmatprep.subr.mxu0 0.0
        %2477 = vmatpush1.msra.mxu0 %v2448
        %2478 = vmatprep.subr.mxu0 0.0
        %2479 = vmatpush1.msra.mxu0 %v2449
        %2480 = vmatprep.subr.mxu0 0.0
        %2481 = vmatpush1.msra.mxu0 %v2450
        %2482 = vmatprep.subr.mxu0 0.0
        %2483 = vmatpush1.msra.mxu0 %v2451
        %2484 = vmatprep.subr.mxu0 0.0
        %2485 = vmatpush1.msra.mxu0 0.0
        %2486 = vmatprep.subr.mxu0 0.0
        %2487 = vmatpush1.msra.mxu0 0.0
        %2488 = vmatprep.subr.mxu0 0.0
        %2489 = vmatpush1.msra.mxu0 0.0
        %2490 = vmatprep.subr.mxu0 0.0
        %2491 = vmatpush1.msra.mxu0 0.0
        %2492 = vmatprep.subr.mxu0 0.0
        %2493 = vmatpush1.msra.mxu0 0.0
        %2494 = vmatprep.subr.mxu0 0.0
        %2495 = vmatpush1.msra.mxu0 0.0
        %2496 = vmatprep.subr.mxu0 0.0
        %2497 = vmatpush1.msra.mxu0 0.0
        %2498 = vmatprep.subr.mxu0 0.0
        %2499 = vmatpush1.msra.mxu0 0.0
        %2500 = vmatprep.subr.mxu0 0.0
        %2501 = vmatpush1.msra.mxu0 0.0
        %2502 = vmatprep.subr.mxu0 0.0
        %2503 = vmatpush1.msra.mxu0 0.0
        %2504 = vmatprep.subr.mxu0 0.0
        %2505 = vmatpush1.msra.mxu0 0.0
        %2506 = vmatprep.subr.mxu0 0.0
        %2507 = vmatpush1.msra.mxu0 0.0
        %2508 = vmatprep.subr.mxu0 0.0
        %2509 = vmatpush1.msra.mxu0 0.0
        %2510 = vmatprep.subr.mxu0 0.0
        %2511 = vmatpush1.msra.mxu0 0.0
        %2512 = vmatprep.subr.mxu0 0.0
        %2513 = vmatpush1.msra.mxu0 0.0
        %2514 = vmatprep.subr.mxu0 0.0
        %2515 = vmatpush1.msra.mxu0 0.0
        %2516 = vmatprep.mubr.f32.mxu0 0.0
        %2517 = vmatmul.mubr.f32.gmra.mrb[0].mxu0 %v351
        %v2518 = vpop.f32.mrb[0].mxu0
        %v2519 = vadd.f32 0.0, %v2518
        %v2520 = vpop.f32.mrb[0].mxu0
        %2521 = vmatprep.mubr.f32.mxu0 0.0
        %2522 = vmatmul.mubr.f32.gmra.mrb[0].mxu0 %v352
        %v2523 = vpop.f32.mrb[0].mxu0
        %v2524 = vadd.f32 0.0, %v2523
        %v2525 = vpop.f32.mrb[0].mxu0
        %2526 = vmatprep.mubr.f32.mxu0 0.0
        %2527 = vmatmul.mubr.f32.gmra.mrb[0].mxu0 %v353
        %v2528 = vpop.f32.mrb[0].mxu0
        %v2529 = vadd.f32 0.0, %v2528
        %v2530 = vpop.f32.mrb[0].mxu0
        %2531 = vmatprep.mubr.f32.mxu0 0.0
        %2532 = vmatmul.mubr.f32.gmra.mrb[0].mxu0 %v354
        %v2533 = vpop.f32.mrb[0].mxu0
        %v2534 = vadd.f32 0.0, %v2533
        %v2535 = vpop.f32.mrb[0].mxu0
        %2536 = vmatprep.mubr.f32.mxu0 0.0
        %2537 = vmatmul.mubr.f32.gmra.mrb[0].mxu0 %v355
        %v2538 = vpop.f32.mrb[0].mxu0
        %v2539 = vadd.f32 0.0, %v2538
        %v2540 = vpop.f32.mrb[0].mxu0
        %2541 = vmatprep.mubr.f32.mxu0 0.0
        %2542 = vmatmul.mubr.f32.gmra.mrb[0].mxu0 %v356
        %v2543 = vpop.f32.mrb[0].mxu0
        %v2544 = vadd.f32 0.0, %v2543
        %v2545 = vpop.f32.mrb[0].mxu0
        %2546 = vmatprep.mubr.f32.mxu0 0.0
        %2547 = vmatmul.mubr.f32.gmra.mrb[0].mxu0 %v357
        %v2548 = vpop.f32.mrb[0].mxu0
        %v2549 = vadd.f32 0.0, %v2548
        %v2550 = vpop.f32.mrb[0].mxu0
        %2551 = vmatprep.mubr.f32.mxu0 0.0
        %2552 = vmatmul.mubr.f32.gmra.mrb[0].mxu0 %v358
        %v2553 = vpop.f32.mrb[0].mxu0
        %v2554 = vadd.f32 0.0, %v2553
        %v2555 = vpop.f32.mrb[0].mxu0
        %2556 = vdwg.mxu0
        %s2557 = scalar_lea.vmem %s4, 128
        %v2558 = vld [vmem:[%s2557] sm:$0xff]
        %v2559 = vld [vmem:[%s2557 + $0x8] sm:$0xff]
        %v2560 = vld [vmem:[%s2557 + $0x10] sm:$0xff]
        %v2561 = vld [vmem:[%s2557 + $0x18] sm:$0xff]
        %v2562 = vld [vmem:[%s2557 + $0x20] sm:$0xff]
        %v2563 = vld [vmem:[%s2557 + $0x28] sm:$0xff]
        %v2564 = vld [vmem:[%s2557 + $0x30] sm:$0xff]
        %v2565 = vld [vmem:[%s2557 + $0x38] sm:$0xff]
        %v2566 = vld [vmem:[%s2557 + $0x40] sm:$0xff]
        %v2567 = vld [vmem:[%s2557 + $0x48] sm:$0xff]
        %v2568 = vld [vmem:[%s2557 + $0x50] sm:$0xff]
        %v2569 = vld [vmem:[%s2557 + $0x58] sm:$0xff]
        %v2570 = vld [vmem:[%s2557 + $0x60] sm:$0xff]
        %v2571 = vld [vmem:[%s2557 + $0x68] sm:$0xff]
        %v2572 = vld [vmem:[%s2557 + $0x70] sm:$0xff]
        %v2573 = vld [vmem:[%s2557 + $0x78] sm:$0xff]
        %2574 = vmatprep.subr.mxu0 0.0
        %2575 = vmatpush1.msra.mxu0 %v2558
        %2576 = vmatprep.subr.mxu0 0.0
        %2577 = vmatpush1.msra.mxu0 %v2559
        %2578 = vmatprep.subr.mxu0 0.0
        %2579 = vmatpush1.msra.mxu0 %v2560
        %2580 = vmatprep.subr.mxu0 0.0
        %2581 = vmatpush1.msra.mxu0 %v2561
        %2582 = vmatprep.subr.mxu0 0.0
        %2583 = vmatpush1.msra.mxu0 %v2562
        %2584 = vmatprep.subr.mxu0 0.0
        %2585 = vmatpush1.msra.mxu0 %v2563
        %2586 = vmatprep.subr.mxu0 0.0
        %2587 = vmatpush1.msra.mxu0 %v2564
        %2588 = vmatprep.subr.mxu0 0.0
        %2589 = vmatpush1.msra.mxu0 %v2565
        %2590 = vmatprep.subr.mxu0 0.0
        %2591 = vmatpush1.msra.mxu0 %v2566
        %2592 = vmatprep.subr.mxu0 0.0
        %2593 = vmatpush1.msra.mxu0 %v2567
        %2594 = vmatprep.subr.mxu0 0.0
        %2595 = vmatpush1.msra.mxu0 %v2568
        %2596 = vmatprep.subr.mxu0 0.0
        %2597 = vmatpush1.msra.mxu0 %v2569
        %2598 = vmatprep.subr.mxu0 0.0
        %2599 = vmatpush1.msra.mxu0 %v2570
        %2600 = vmatprep.subr.mxu0 0.0
        %2601 = vmatpush1.msra.mxu0 %v2571
        %2602 = vmatprep.subr.mxu0 0.0
        %2603 = vmatpush1.msra.mxu0 %v2572
        %2604 = vmatprep.subr.mxu0 0.0
        %2605 = vmatpush1.msra.mxu0 %v2573
        %2606 = vmatprep.subr.mxu0 0.0
        %2607 = vmatpush1.msra.mxu0 0.0
        %2608 = vmatprep.subr.mxu0 0.0
        %2609 = vmatpush1.msra.mxu0 0.0
        %2610 = vmatprep.subr.mxu0 0.0
        %2611 = vmatpush1.msra.mxu0 0.0
        %2612 = vmatprep.subr.mxu0 0.0
        %2613 = vmatpush1.msra.mxu0 0.0
        %2614 = vmatprep.subr.mxu0 0.0
        %2615 = vmatpush1.msra.mxu0 0.0
        %2616 = vmatprep.subr.mxu0 0.0
        %2617 = vmatpush1.msra.mxu0 0.0
        %2618 = vmatprep.subr.mxu0 0.0
        %2619 = vmatpush1.msra.mxu0 0.0
        %2620 = vmatprep.subr.mxu0 0.0
        %2621 = vmatpush1.msra.mxu0 0.0
        %2622 = vmatprep.subr.mxu0 0.0
        %2623 = vmatpush1.msra.mxu0 0.0
        %2624 = vmatprep.subr.mxu0 0.0
        %2625 = vmatpush1.msra.mxu0 0.0
        %2626 = vmatprep.subr.mxu0 0.0
        %2627 = vmatpush1.msra.mxu0 0.0
        %2628 = vmatprep.subr.mxu0 0.0
        %2629 = vmatpush1.msra.mxu0 0.0
        %2630 = vmatprep.subr.mxu0 0.0
        %2631 = vmatpush1.msra.mxu0 0.0
        %2632 = vmatprep.subr.mxu0 0.0
        %2633 = vmatpush1.msra.mxu0 0.0
        %2634 = vmatprep.subr.mxu0 0.0
        %2635 = vmatpush1.msra.mxu0 0.0
        %2636 = vmatprep.subr.mxu0 0.0
        %2637 = vmatpush1.msra.mxu0 0.0
        %2638 = vmatprep.mubr.f32.mxu0 0.0
        %2639 = vmatmul.mubr.f32.gmra.mrb[0].mxu0 %v351
        %v2640 = vpop.f32.mrb[0].mxu0
        %v2641 = vadd.f32 0.0, %v2640
        %v2642 = vpop.f32.mrb[0].mxu0
        %2643 = vmatprep.mubr.f32.mxu0 0.0
        %2644 = vmatmul.mubr.f32.gmra.mrb[0].mxu0 %v352
        %v2645 = vpop.f32.mrb[0].mxu0
        %v2646 = vadd.f32 0.0, %v2645
        %v2647 = vpop.f32.mrb[0].mxu0
        %2648 = vmatprep.mubr.f32.mxu0 0.0
        %2649 = vmatmul.mubr.f32.gmra.mrb[0].mxu0 %v353
        %v2650 = vpop.f32.mrb[0].mxu0
        %v2651 = vadd.f32 0.0, %v2650
        %v2652 = vpop.f32.mrb[0].mxu0
        %2653 = vmatprep.mubr.f32.mxu0 0.0
        %2654 = vmatmul.mubr.f32.gmra.mrb[0].mxu0 %v354
        %v2655 = vpop.f32.mrb[0].mxu0
        %v2656 = vadd.f32 0.0, %v2655
        %v2657 = vpop.f32.mrb[0].mxu0
        %2658 = vmatprep.mubr.f32.mxu0 0.0
        %2659 = vmatmul.mubr.f32.gmra.mrb[0].mxu0 %v355
        %v2660 = vpop.f32.mrb[0].mxu0
        %v2661 = vadd.f32 0.0, %v2660
        %v2662 = vpop.f32.mrb[0].mxu0
        %2663 = vmatprep.mubr.f32.mxu0 0.0
        %2664 = vmatmul.mubr.f32.gmra.mrb[0].mxu0 %v356
        %v2665 = vpop.f32.mrb[0].mxu0
        %v2666 = vadd.f32 0.0, %v2665
        %v2667 = vpop.f32.mrb[0].mxu0
        %2668 = vmatprep.mubr.f32.mxu0 0.0
        %2669 = vmatmul.mubr.f32.gmra.mrb[0].mxu0 %v357
        %v2670 = vpop.f32.mrb[0].mxu0
        %v2671 = vadd.f32 0.0, %v2670
        %v2672 = vpop.f32.mrb[0].mxu0
        %2673 = vmatprep.mubr.f32.mxu0 0.0
        %2674 = vmatmul.mubr.f32.gmra.mrb[0].mxu0 %v358
        %v2675 = vpop.f32.mrb[0].mxu0
        %v2676 = vadd.f32 0.0, %v2675
        %v2677 = vpop.f32.mrb[0].mxu0
        %2678 = vdwg.mxu0
        %s2679 = scalar_lea.vmem %s3, 128
        %v2680 = vld [vmem:[%s2679] sm:$0xff]
        %v2681 = vld [vmem:[%s2679 + $0x8] sm:$0xff]
        %v2682 = vld [vmem:[%s2679 + $0x10] sm:$0xff]
        %v2683 = vld [vmem:[%s2679 + $0x18] sm:$0xff]
        %v2684 = vld [vmem:[%s2679 + $0x20] sm:$0xff]
        %v2685 = vld [vmem:[%s2679 + $0x28] sm:$0xff]
        %v2686 = vld [vmem:[%s2679 + $0x30] sm:$0xff]
        %v2687 = vld [vmem:[%s2679 + $0x38] sm:$0xff]
        %v2688 = vld [vmem:[%s2679 + $0x40] sm:$0xff]
        %v2689 = vld [vmem:[%s2679 + $0x48] sm:$0xff]
        %v2690 = vld [vmem:[%s2679 + $0x50] sm:$0xff]
        %v2691 = vld [vmem:[%s2679 + $0x58] sm:$0xff]
        %v2692 = vld [vmem:[%s2679 + $0x60] sm:$0xff]
        %v2693 = vld [vmem:[%s2679 + $0x68] sm:$0xff]
        %v2694 = vld [vmem:[%s2679 + $0x70] sm:$0xff]
        %v2695 = vld [vmem:[%s2679 + $0x78] sm:$0xff]
        %2696 = vmatprep.subr.mxu0 0.0
        %2697 = vmatpush1.msra.mxu0 %v2680
        %2698 = vmatprep.subr.mxu0 0.0
        %2699 = vmatpush1.msra.mxu0 %v2681
        %2700 = vmatprep.subr.mxu0 0.0
        %2701 = vmatpush1.msra.mxu0 %v2682
        %2702 = vmatprep.subr.mxu0 0.0
        %2703 = vmatpush1.msra.mxu0 %v2683
        %2704 = vmatprep.subr.mxu0 0.0
        %2705 = vmatpush1.msra.mxu0 %v2684
        %2706 = vmatprep.subr.mxu0 0.0
        %2707 = vmatpush1.msra.mxu0 %v2685
        %2708 = vmatprep.subr.mxu0 0.0
        %2709 = vmatpush1.msra.mxu0 %v2686
        %2710 = vmatprep.subr.mxu0 0.0
        %2711 = vmatpush1.msra.mxu0 %v2687
        %2712 = vmatprep.subr.mxu0 0.0
        %2713 = vmatpush1.msra.mxu0 %v2688
        %2714 = vmatprep.subr.mxu0 0.0
        %2715 = vmatpush1.msra.mxu0 %v2689
        %2716 = vmatprep.subr.mxu0 0.0
        %2717 = vmatpush1.msra.mxu0 %v2690
        %2718 = vmatprep.subr.mxu0 0.0
        %2719 = vmatpush1.msra.mxu0 %v2691
        %2720 = vmatprep.subr.mxu0 0.0
        %2721 = vmatpush1.msra.mxu0 %v2692
        %2722 = vmatprep.subr.mxu0 0.0
        %2723 = vmatpush1.msra.mxu0 %v2693
        %2724 = vmatprep.subr.mxu0 0.0
        %2725 = vmatpush1.msra.mxu0 %v2694
        %2726 = vmatprep.subr.mxu0 0.0
        %2727 = vmatpush1.msra.mxu0 %v2695
        %2728 = vmatprep.subr.mxu0 0.0
        %2729 = vmatpush1.msra.mxu0 0.0
        %2730 = vmatprep.subr.mxu0 0.0
        %2731 = vmatpush1.msra.mxu0 0.0
        %2732 = vmatprep.subr.mxu0 0.0
        %2733 = vmatpush1.msra.mxu0 0.0
        %2734 = vmatprep.subr.mxu0 0.0
        %2735 = vmatpush1.msra.mxu0 0.0
        %2736 = vmatprep.subr.mxu0 0.0
        %2737 = vmatpush1.msra.mxu0 0.0
        %2738 = vmatprep.subr.mxu0 0.0
        %2739 = vmatpush1.msra.mxu0 0.0
        %2740 = vmatprep.subr.mxu0 0.0
        %2741 = vmatpush1.msra.mxu0 0.0
        %2742 = vmatprep.subr.mxu0 0.0
        %2743 = vmatpush1.msra.mxu0 0.0
        %2744 = vmatprep.subr.mxu0 0.0
        %2745 = vmatpush1.msra.mxu0 0.0
        %2746 = vmatprep.subr.mxu0 0.0
        %2747 = vmatpush1.msra.mxu0 0.0
        %2748 = vmatprep.subr.mxu0 0.0
        %2749 = vmatpush1.msra.mxu0 0.0
        %2750 = vmatprep.subr.mxu0 0.0
        %2751 = vmatpush1.msra.mxu0 0.0
        %2752 = vmatprep.subr.mxu0 0.0
        %2753 = vmatpush1.msra.mxu0 0.0
        %2754 = vmatprep.subr.mxu0 0.0
        %2755 = vmatpush1.msra.mxu0 0.0
        %2756 = vmatprep.subr.mxu0 0.0
        %2757 = vmatpush1.msra.mxu0 0.0
        %2758 = vmatprep.subr.mxu0 0.0
        %2759 = vmatpush1.msra.mxu0 0.0
        %2760 = vmatprep.mubr.f32.mxu0 0.0
        %2761 = vmatmul.mubr.f32.gmra.mrb[0].mxu0 %v601
        %v2762 = vpop.f32.mrb[0].mxu0
        %v2763 = vadd.f32 0.0, %v2762
        %v2764 = vpop.f32.mrb[0].mxu0
        %2765 = vmatprep.mubr.f32.mxu0 0.0
        %2766 = vmatmul.mubr.f32.gmra.mrb[0].mxu0 %v602
        %v2767 = vpop.f32.mrb[0].mxu0
        %v2768 = vadd.f32 0.0, %v2767
        %v2769 = vpop.f32.mrb[0].mxu0
        %2770 = vdwg.mxu0
        %v2772 = vsel %vm694, %v2519, 0
        %v2775 = vsel %vm694, %v2524, 0
        %v2778 = vsel %vm694, %v2529, 0
        %v2781 = vsel %vm694, %v2534, 0
        %v2784 = vsel %vm694, %v2539, 0
        %v2787 = vsel %vm694, %v2544, 0
        %v2790 = vsel %vm694, %v2549, 0
        %v2793 = vsel %vm694, %v2554, 0
        %2795 = vmatprep.subr.mxu0 0.0
        %2796 = vmatpush1.msra.mxu0 %v2763
        %2797 = vmatprep.subr.mxu0 0.0
        %2798 = vmatpush1.msra.mxu0 %v2768
        %2799 = vmatprep.subr.mxu0 0.0
        %2800 = vmatpush1.msra.mxu0 0.0
        %2801 = vmatprep.subr.mxu0 0.0
        %2802 = vmatpush1.msra.mxu0 0.0
        %2803 = vmatprep.subr.mxu0 0.0
        %2804 = vmatpush1.msra.mxu0 0.0
        %2805 = vmatprep.subr.mxu0 0.0
        %2806 = vmatpush1.msra.mxu0 0.0
        %2807 = vmatprep.subr.mxu0 0.0
        %2808 = vmatpush1.msra.mxu0 0.0
        %2809 = vmatprep.subr.mxu0 0.0
        %2810 = vmatpush1.msra.mxu0 0.0
        %2811 = vmatprep.subr.mxu0 0.0
        %2812 = vmatpush1.msra.mxu0 0.0
        %2813 = vmatprep.subr.mxu0 0.0
        %2814 = vmatpush1.msra.mxu0 0.0
        %2815 = vmatprep.subr.mxu0 0.0
        %2816 = vmatpush1.msra.mxu0 0.0
        %2817 = vmatprep.subr.mxu0 0.0
        %2818 = vmatpush1.msra.mxu0 0.0
        %2819 = vmatprep.subr.mxu0 0.0
        %2820 = vmatpush1.msra.mxu0 0.0
        %2821 = vmatprep.subr.mxu0 0.0
        %2822 = vmatpush1.msra.mxu0 0.0
        %2823 = vmatprep.subr.mxu0 0.0
        %2824 = vmatpush1.msra.mxu0 0.0
        %2825 = vmatprep.subr.mxu0 0.0
        %2826 = vmatpush1.msra.mxu0 0.0
        %2827 = vmatprep.subr.mxu0 0.0
        %2828 = vmatpush1.msra.mxu0 0.0
        %2829 = vmatprep.subr.mxu0 0.0
        %2830 = vmatpush1.msra.mxu0 0.0
        %2831 = vmatprep.subr.mxu0 0.0
        %2832 = vmatpush1.msra.mxu0 0.0
        %2833 = vmatprep.subr.mxu0 0.0
        %2834 = vmatpush1.msra.mxu0 0.0
        %2835 = vmatprep.subr.mxu0 0.0
        %2836 = vmatpush1.msra.mxu0 0.0
        %2837 = vmatprep.subr.mxu0 0.0
        %2838 = vmatpush1.msra.mxu0 0.0
        %2839 = vmatprep.subr.mxu0 0.0
        %2840 = vmatpush1.msra.mxu0 0.0
        %2841 = vmatprep.subr.mxu0 0.0
        %2842 = vmatpush1.msra.mxu0 0.0
        %2843 = vmatprep.subr.mxu0 0.0
        %2844 = vmatpush1.msra.mxu0 0.0
        %2845 = vmatprep.subr.mxu0 0.0
        %2846 = vmatpush1.msra.mxu0 0.0
        %2847 = vmatprep.subr.mxu0 0.0
        %2848 = vmatpush1.msra.mxu0 0.0
        %2849 = vmatprep.subr.mxu0 0.0
        %2850 = vmatpush1.msra.mxu0 0.0
        %2851 = vmatprep.subr.mxu0 0.0
        %2852 = vmatpush1.msra.mxu0 0.0
        %2853 = vmatprep.subr.mxu0 0.0
        %2854 = vmatpush1.msra.mxu0 0.0
        %2855 = vmatprep.subr.mxu0 0.0
        %2856 = vmatpush1.msra.mxu0 0.0
        %2857 = vmatprep.subr.mxu0 0.0
        %2858 = vmatpush1.msra.mxu0 0.0
        %2859 = vmatprep.mubr.f32.mxu0 0.0
        %2860 = vmatmul.mubr.f32.gmra.mrb[0].mxu0 %v2772
        %v2861 = vpop.f32.mrb[0].mxu0
        %v2862 = vadd.f32 0.0, %v2861
        %v2863 = vpop.f32.mrb[0].mxu0
        %2864 = vmatprep.mubr.f32.mxu0 0.0
        %2865 = vmatmul.mubr.f32.gmra.mrb[0].mxu0 %v2775
        %v2866 = vpop.f32.mrb[0].mxu0
        %v2867 = vadd.f32 0.0, %v2866
        %v2868 = vpop.f32.mrb[0].mxu0
        %2869 = vmatprep.mubr.f32.mxu0 0.0
        %2870 = vmatmul.mubr.f32.gmra.mrb[0].mxu0 %v2778
        %v2871 = vpop.f32.mrb[0].mxu0
        %v2872 = vadd.f32 0.0, %v2871
        %v2873 = vpop.f32.mrb[0].mxu0
        %2874 = vmatprep.mubr.f32.mxu0 0.0
        %2875 = vmatmul.mubr.f32.gmra.mrb[0].mxu0 %v2781
        %v2876 = vpop.f32.mrb[0].mxu0
        %v2877 = vadd.f32 0.0, %v2876
        %v2878 = vpop.f32.mrb[0].mxu0
        %2879 = vmatprep.mubr.f32.mxu0 0.0
        %2880 = vmatmul.mubr.f32.gmra.mrb[0].mxu0 %v2784
        %v2881 = vpop.f32.mrb[0].mxu0
        %v2882 = vadd.f32 0.0, %v2881
        %v2883 = vpop.f32.mrb[0].mxu0
        %2884 = vmatprep.mubr.f32.mxu0 0.0
        %2885 = vmatmul.mubr.f32.gmra.mrb[0].mxu0 %v2787
        %v2886 = vpop.f32.mrb[0].mxu0
        %v2887 = vadd.f32 0.0, %v2886
        %v2888 = vpop.f32.mrb[0].mxu0
        %2889 = vmatprep.mubr.f32.mxu0 0.0
        %2890 = vmatmul.mubr.f32.gmra.mrb[0].mxu0 %v2790
        %v2891 = vpop.f32.mrb[0].mxu0
        %v2892 = vadd.f32 0.0, %v2891
        %v2893 = vpop.f32.mrb[0].mxu0
        %2894 = vmatprep.mubr.f32.mxu0 0.0
        %2895 = vmatmul.mubr.f32.gmra.mrb[0].mxu0 %v2793
        %v2896 = vpop.f32.mrb[0].mxu0
        %v2897 = vadd.f32 0.0, %v2896
        %v2898 = vpop.f32.mrb[0].mxu0
        %2899 = vdwg.mxu0
        %v2900 = vsel %vm694, %v2862, -inf
        %2901 = vmax.xlane.f32.xlu0 %v2900
        %v2902 = vpop.xlane.xlu0 %2901
        %v2903 = vsel %vm694, %v2867, -inf
        %2904 = vmax.xlane.f32.xlu0 %v2903
        %v2905 = vpop.xlane.xlu0 %2904
        %v2906 = vsel %vm694, %v2872, -inf
        %2907 = vmax.xlane.f32.xlu0 %v2906
        %v2908 = vpop.xlane.xlu0 %2907
        %v2909 = vsel %vm694, %v2877, -inf
        %2910 = vmax.xlane.f32.xlu0 %v2909
        %v2911 = vpop.xlane.xlu0 %2910
        %v2912 = vsel %vm694, %v2882, -inf
        %2913 = vmax.xlane.f32.xlu0 %v2912
        %v2914 = vpop.xlane.xlu0 %2913
        %v2915 = vsel %vm694, %v2887, -inf
        %2916 = vmax.xlane.f32.xlu0 %v2915
        %v2917 = vpop.xlane.xlu0 %2916
        %v2918 = vsel %vm694, %v2892, -inf
        %2919 = vmax.xlane.f32.xlu0 %v2918
        %v2920 = vpop.xlane.xlu0 %2919
        %v2921 = vsel %vm694, %v2897, -inf
        %2922 = vmax.xlane.f32.xlu0 %v2921
        %v2923 = vpop.xlane.xlu0 %2922
        %v2924 = vsub.f32 -inf, %v2902
        %v2925 = vsub.f32 -inf, %v2905
        %v2926 = vsub.f32 -inf, %v2908
        %v2927 = vsub.f32 -inf, %v2911
        %v2928 = vsub.f32 -inf, %v2914
        %v2929 = vsub.f32 -inf, %v2917
        %v2930 = vsub.f32 -inf, %v2920
        %v2931 = vsub.f32 -inf, %v2923
        %v2932 = vmul.f32 %v2924, 1.442695
        %v2933 = vpow.pop %v2932
        %v2934 = vmul.f32 %v2925, 1.442695
        %v2935 = vpow.pop %v2934
        %v2936 = vmul.f32 %v2926, 1.442695
        %v2937 = vpow.pop %v2936
        %v2938 = vmul.f32 %v2927, 1.442695
        %v2939 = vpow.pop %v2938
        %v2940 = vmul.f32 %v2928, 1.442695
        %v2941 = vpow.pop %v2940
        %v2942 = vmul.f32 %v2929, 1.442695
        %v2943 = vpow.pop %v2942
        %v2944 = vmul.f32 %v2930, 1.442695
        %v2945 = vpow.pop %v2944
        %v2946 = vmul.f32 %v2931, 1.442695
        %v2947 = vpow.pop %v2946
        %v2948 = vsub.f32 %v2862, %v2902
        %v2949 = vsub.f32 %v2867, %v2905
        %v2950 = vsub.f32 %v2872, %v2908
        %v2951 = vsub.f32 %v2877, %v2911
        %v2952 = vsub.f32 %v2882, %v2914
        %v2953 = vsub.f32 %v2887, %v2917
        %v2954 = vsub.f32 %v2892, %v2920
        %v2955 = vsub.f32 %v2897, %v2923
        %v2956 = vmul.f32 %v2948, 1.442695
        %v2957 = vpow.pop %v2956
        %v2958 = vmul.f32 %v2949, 1.442695
        %v2959 = vpow.pop %v2958
        %v2960 = vmul.f32 %v2950, 1.442695
        %v2961 = vpow.pop %v2960
        %v2962 = vmul.f32 %v2951, 1.442695
        %v2963 = vpow.pop %v2962
        %v2964 = vmul.f32 %v2952, 1.442695
        %v2965 = vpow.pop %v2964
        %v2966 = vmul.f32 %v2953, 1.442695
        %v2967 = vpow.pop %v2966
        %v2968 = vmul.f32 %v2954, 1.442695
        %v2969 = vpow.pop %v2968
        %v2970 = vmul.f32 %v2955, 1.442695
        %v2971 = vpow.pop %v2970
        %v2972 = vmul.f32 %v2933, 0.0
        %v2973 = vmul.f32 %v2935, 0.0
        %v2974 = vmul.f32 %v2937, 0.0
        %v2975 = vmul.f32 %v2939, 0.0
        %v2976 = vmul.f32 %v2941, 0.0
        %v2977 = vmul.f32 %v2943, 0.0
        %v2978 = vmul.f32 %v2945, 0.0
        %v2979 = vmul.f32 %v2947, 0.0
        %v2980 = vsel %vm694, %v2957, 0.0
        %2981 = vadd.xlane.f32.xlu0 %v2980
        %v2982 = vpop.xlane.xlu0 %2981
        %v2983 = vsel %vm694, %v2959, 0.0
        %2984 = vadd.xlane.f32.xlu0 %v2983
        %v2985 = vpop.xlane.xlu0 %2984
        %v2986 = vsel %vm694, %v2961, 0.0
        %2987 = vadd.xlane.f32.xlu0 %v2986
        %v2988 = vpop.xlane.xlu0 %2987
        %v2989 = vsel %vm694, %v2963, 0.0
        %2990 = vadd.xlane.f32.xlu0 %v2989
        %v2991 = vpop.xlane.xlu0 %2990
        %v2992 = vsel %vm694, %v2965, 0.0
        %2993 = vadd.xlane.f32.xlu0 %v2992
        %v2994 = vpop.xlane.xlu0 %2993
        %v2995 = vsel %vm694, %v2967, 0.0
        %2996 = vadd.xlane.f32.xlu0 %v2995
        %v2997 = vpop.xlane.xlu0 %2996
        %v2998 = vsel %vm694, %v2969, 0.0
        %2999 = vadd.xlane.f32.xlu0 %v2998
        %v3000 = vpop.xlane.xlu0 %2999
        %v3001 = vsel %vm694, %v2971, 0.0
        %3002 = vadd.xlane.f32.xlu0 %v3001
        %v3003 = vpop.xlane.xlu0 %3002
        %v3004 = vadd.f32 %v2972, %v2982
        %v3005 = vadd.f32 %v2973, %v2985
        %v3006 = vadd.f32 %v2974, %v2988
        %v3007 = vadd.f32 %v2975, %v2991
        %v3008 = vadd.f32 %v2976, %v2994
        %v3009 = vadd.f32 %v2977, %v2997
        %v3010 = vadd.f32 %v2978, %v3000
        %v3011 = vadd.f32 %v2979, %v3003
        %v3013 = vsel %vm694, %v2957, 0
        %v3016 = vsel %vm694, %v2959, 0
        %v3019 = vsel %vm694, %v2961, 0
        %v3022 = vsel %vm694, %v2963, 0
        %v3025 = vsel %vm694, %v2965, 0
        %v3028 = vsel %vm694, %v2967, 0
        %v3031 = vsel %vm694, %v2969, 0
        %v3034 = vsel %vm694, %v2971, 0
        %3036 = vmatprep.subr.mxu0 0.0
        %3037 = vmatpush1.msra.mxu0 %v2641
        %3038 = vmatprep.subr.mxu0 0.0
        %3039 = vmatpush1.msra.mxu0 %v2646
        %3040 = vmatprep.subr.mxu0 0.0
        %3041 = vmatpush1.msra.mxu0 0.0
        %3042 = vmatprep.subr.mxu0 0.0
        %3043 = vmatpush1.msra.mxu0 0.0
        %3044 = vmatprep.subr.mxu0 0.0
        %3045 = vmatpush1.msra.mxu0 0.0
        %3046 = vmatprep.subr.mxu0 0.0
        %3047 = vmatpush1.msra.mxu0 0.0
        %3048 = vmatprep.subr.mxu0 0.0
        %3049 = vmatpush1.msra.mxu0 0.0
        %3050 = vmatprep.subr.mxu0 0.0
        %3051 = vmatpush1.msra.mxu0 0.0
        %3052 = vmatprep.subr.mxu0 0.0
        %3053 = vmatpush1.msra.mxu0 0.0
        %3054 = vmatprep.subr.mxu0 0.0
        %3055 = vmatpush1.msra.mxu0 0.0
        %3056 = vmatprep.subr.mxu0 0.0
        %3057 = vmatpush1.msra.mxu0 0.0
        %3058 = vmatprep.subr.mxu0 0.0
        %3059 = vmatpush1.msra.mxu0 0.0
        %3060 = vmatprep.subr.mxu0 0.0
        %3061 = vmatpush1.msra.mxu0 0.0
        %3062 = vmatprep.subr.mxu0 0.0
        %3063 = vmatpush1.msra.mxu0 0.0
        %3064 = vmatprep.subr.mxu0 0.0
        %3065 = vmatpush1.msra.mxu0 0.0
        %3066 = vmatprep.subr.mxu0 0.0
        %3067 = vmatpush1.msra.mxu0 0.0
        %3068 = vmatprep.subr.mxu0 0.0
        %3069 = vmatpush1.msra.mxu0 0.0
        %3070 = vmatprep.subr.mxu0 0.0
        %3071 = vmatpush1.msra.mxu0 0.0
        %3072 = vmatprep.subr.mxu0 0.0
        %3073 = vmatpush1.msra.mxu0 0.0
        %3074 = vmatprep.subr.mxu0 0.0
        %3075 = vmatpush1.msra.mxu0 0.0
        %3076 = vmatprep.subr.mxu0 0.0
        %3077 = vmatpush1.msra.mxu0 0.0
        %3078 = vmatprep.subr.mxu0 0.0
        %3079 = vmatpush1.msra.mxu0 0.0
        %3080 = vmatprep.subr.mxu0 0.0
        %3081 = vmatpush1.msra.mxu0 0.0
        %3082 = vmatprep.subr.mxu0 0.0
        %3083 = vmatpush1.msra.mxu0 0.0
        %3084 = vmatprep.subr.mxu0 0.0
        %3085 = vmatpush1.msra.mxu0 0.0
        %3086 = vmatprep.subr.mxu0 0.0
        %3087 = vmatpush1.msra.mxu0 0.0
        %3088 = vmatprep.subr.mxu0 0.0
        %3089 = vmatpush1.msra.mxu0 0.0
        %3090 = vmatprep.subr.mxu0 0.0
        %3091 = vmatpush1.msra.mxu0 0.0
        %3092 = vmatprep.subr.mxu0 0.0
        %3093 = vmatpush1.msra.mxu0 0.0
        %3094 = vmatprep.subr.mxu0 0.0
        %3095 = vmatpush1.msra.mxu0 0.0
        %3096 = vmatprep.subr.mxu0 0.0
        %3097 = vmatpush1.msra.mxu0 0.0
        %3098 = vmatprep.subr.mxu0 0.0
        %3099 = vmatpush1.msra.mxu0 0.0
        %3100 = vmatprep.mubr.f32.mxu0 0.0
        %3101 = vmatmul.mubr.f32.gmra.mrb[0].mxu0 %v3013
        %v3102 = vpop.f32.mrb[0].mxu0
        %v3103 = vadd.f32 0.0, %v3102
        %v3104 = vpop.f32.mrb[0].mxu0
        %3105 = vmatprep.mubr.f32.mxu0 0.0
        %3106 = vmatmul.mubr.f32.gmra.mrb[0].mxu0 %v3016
        %v3107 = vpop.f32.mrb[0].mxu0
        %v3108 = vadd.f32 0.0, %v3107
        %v3109 = vpop.f32.mrb[0].mxu0
        %3110 = vmatprep.mubr.f32.mxu0 0.0
        %3111 = vmatmul.mubr.f32.gmra.mrb[0].mxu0 %v3019
        %v3112 = vpop.f32.mrb[0].mxu0
        %v3113 = vadd.f32 0.0, %v3112
        %v3114 = vpop.f32.mrb[0].mxu0
        %3115 = vmatprep.mubr.f32.mxu0 0.0
        %3116 = vmatmul.mubr.f32.gmra.mrb[0].mxu0 %v3022
        %v3117 = vpop.f32.mrb[0].mxu0
        %v3118 = vadd.f32 0.0, %v3117
        %v3119 = vpop.f32.mrb[0].mxu0
        %3120 = vmatprep.mubr.f32.mxu0 0.0
        %3121 = vmatmul.mubr.f32.gmra.mrb[0].mxu0 %v3025
        %v3122 = vpop.f32.mrb[0].mxu0
        %v3123 = vadd.f32 0.0, %v3122
        %v3124 = vpop.f32.mrb[0].mxu0
        %3125 = vmatprep.mubr.f32.mxu0 0.0
        %3126 = vmatmul.mubr.f32.gmra.mrb[0].mxu0 %v3028
        %v3127 = vpop.f32.mrb[0].mxu0
        %v3128 = vadd.f32 0.0, %v3127
        %v3129 = vpop.f32.mrb[0].mxu0
        %3130 = vmatprep.mubr.f32.mxu0 0.0
        %3131 = vmatmul.mubr.f32.gmra.mrb[0].mxu0 %v3031
        %v3132 = vpop.f32.mrb[0].mxu0
        %v3133 = vadd.f32 0.0, %v3132
        %v3134 = vpop.f32.mrb[0].mxu0
        %3135 = vmatprep.mubr.f32.mxu0 0.0
        %3136 = vmatmul.mubr.f32.gmra.mrb[0].mxu0 %v3034
        %v3137 = vpop.f32.mrb[0].mxu0
        %v3138 = vadd.f32 0.0, %v3137
        %v3139 = vpop.f32.mrb[0].mxu0
        %3140 = vdwg.mxu0
        %v3141 = vadd.f32 %v2972, %v3103
        %v3142 = vadd.f32 %v2973, %v3108
        %v3143 = vadd.f32 %v2974, %v3113
        %v3144 = vadd.f32 %v2975, %v3118
        %v3145 = vadd.f32 %v2976, %v3123
        %v3146 = vadd.f32 %v2977, %v3128
        %v3147 = vadd.f32 %v2978, %v3133
        %v3148 = vadd.f32 %v2979, %v3138
        %3149 = vmatprep.subr.mxu0 0.0
        %3150 = vmatpush1.msra.mxu0 %v2680
        %3151 = vmatprep.subr.mxu0 0.0
        %3152 = vmatpush1.msra.mxu0 %v2681
        %3153 = vmatprep.subr.mxu0 0.0
        %3154 = vmatpush1.msra.mxu0 %v2682
        %3155 = vmatprep.subr.mxu0 0.0
        %3156 = vmatpush1.msra.mxu0 %v2683
        %3157 = vmatprep.subr.mxu0 0.0
        %3158 = vmatpush1.msra.mxu0 %v2684
        %3159 = vmatprep.subr.mxu0 0.0
        %3160 = vmatpush1.msra.mxu0 %v2685
        %3161 = vmatprep.subr.mxu0 0.0
        %3162 = vmatpush1.msra.mxu0 %v2686
        %3163 = vmatprep.subr.mxu0 0.0
        %3164 = vmatpush1.msra.mxu0 %v2687
        %3165 = vmatprep.subr.mxu0 0.0
        %3166 = vmatpush1.msra.mxu0 %v2688
        %3167 = vmatprep.subr.mxu0 0.0
        %3168 = vmatpush1.msra.mxu0 %v2689
        %3169 = vmatprep.subr.mxu0 0.0
        %3170 = vmatpush1.msra.mxu0 %v2690
        %3171 = vmatprep.subr.mxu0 0.0
        %3172 = vmatpush1.msra.mxu0 %v2691
        %3173 = vmatprep.subr.mxu0 0.0
        %3174 = vmatpush1.msra.mxu0 %v2692
        %3175 = vmatprep.subr.mxu0 0.0
        %3176 = vmatpush1.msra.mxu0 %v2693
        %3177 = vmatprep.subr.mxu0 0.0
        %3178 = vmatpush1.msra.mxu0 %v2694
        %3179 = vmatprep.subr.mxu0 0.0
        %3180 = vmatpush1.msra.mxu0 %v2695
        %3181 = vmatprep.subr.mxu0 0.0
        %3182 = vmatpush1.msra.mxu0 0.0
        %3183 = vmatprep.subr.mxu0 0.0
        %3184 = vmatpush1.msra.mxu0 0.0
        %3185 = vmatprep.subr.mxu0 0.0
        %3186 = vmatpush1.msra.mxu0 0.0
        %3187 = vmatprep.subr.mxu0 0.0
        %3188 = vmatpush1.msra.mxu0 0.0
        %3189 = vmatprep.subr.mxu0 0.0
        %3190 = vmatpush1.msra.mxu0 0.0
        %3191 = vmatprep.subr.mxu0 0.0
        %3192 = vmatpush1.msra.mxu0 0.0
        %3193 = vmatprep.subr.mxu0 0.0
        %3194 = vmatpush1.msra.mxu0 0.0
        %3195 = vmatprep.subr.mxu0 0.0
        %3196 = vmatpush1.msra.mxu0 0.0
        %3197 = vmatprep.subr.mxu0 0.0
        %3198 = vmatpush1.msra.mxu0 0.0
        %3199 = vmatprep.subr.mxu0 0.0
        %3200 = vmatpush1.msra.mxu0 0.0
        %3201 = vmatprep.subr.mxu0 0.0
        %3202 = vmatpush1.msra.mxu0 0.0
        %3203 = vmatprep.subr.mxu0 0.0
        %3204 = vmatpush1.msra.mxu0 0.0
        %3205 = vmatprep.subr.mxu0 0.0
        %3206 = vmatpush1.msra.mxu0 0.0
        %3207 = vmatprep.subr.mxu0 0.0
        %3208 = vmatpush1.msra.mxu0 0.0
        %3209 = vmatprep.subr.mxu0 0.0
        %3210 = vmatpush1.msra.mxu0 0.0
        %3211 = vmatprep.subr.mxu0 0.0
        %3212 = vmatpush1.msra.mxu0 0.0
        %3213 = vmatprep.mubr.f32.mxu0 0.0
        %3214 = vmatmul.mubr.f32.gmra.mrb[0].mxu0 %v1074
        %v3215 = vpop.f32.mrb[0].mxu0
        %v3216 = vadd.f32 0.0, %v3215
        %v3217 = vpop.f32.mrb[0].mxu0
        %3218 = vmatprep.mubr.f32.mxu0 0.0
        %3219 = vmatmul.mubr.f32.gmra.mrb[0].mxu0 %v1075
        %v3220 = vpop.f32.mrb[0].mxu0
        %v3221 = vadd.f32 0.0, %v3220
        %v3222 = vpop.f32.mrb[0].mxu0
        %3223 = vdwg.mxu0
        %3224 = vmatprep.subr.mxu0 0.0
        %3225 = vmatpush1.msra.mxu0 %v3216
        %3226 = vmatprep.subr.mxu0 0.0
        %3227 = vmatpush1.msra.mxu0 %v3221
        %3228 = vmatprep.subr.mxu0 0.0
        %3229 = vmatpush1.msra.mxu0 0.0
        %3230 = vmatprep.subr.mxu0 0.0
        %3231 = vmatpush1.msra.mxu0 0.0
        %3232 = vmatprep.subr.mxu0 0.0
        %3233 = vmatpush1.msra.mxu0 0.0
        %3234 = vmatprep.subr.mxu0 0.0
        %3235 = vmatpush1.msra.mxu0 0.0
        %3236 = vmatprep.subr.mxu0 0.0
        %3237 = vmatpush1.msra.mxu0 0.0
        %3238 = vmatprep.subr.mxu0 0.0
        %3239 = vmatpush1.msra.mxu0 0.0
        %3240 = vmatprep.subr.mxu0 0.0
        %3241 = vmatpush1.msra.mxu0 0.0
        %3242 = vmatprep.subr.mxu0 0.0
        %3243 = vmatpush1.msra.mxu0 0.0
        %3244 = vmatprep.subr.mxu0 0.0
        %3245 = vmatpush1.msra.mxu0 0.0
        %3246 = vmatprep.subr.mxu0 0.0
        %3247 = vmatpush1.msra.mxu0 0.0
        %3248 = vmatprep.subr.mxu0 0.0
        %3249 = vmatpush1.msra.mxu0 0.0
        %3250 = vmatprep.subr.mxu0 0.0
        %3251 = vmatpush1.msra.mxu0 0.0
        %3252 = vmatprep.subr.mxu0 0.0
        %3253 = vmatpush1.msra.mxu0 0.0
        %3254 = vmatprep.subr.mxu0 0.0
        %3255 = vmatpush1.msra.mxu0 0.0
        %3256 = vmatprep.subr.mxu0 0.0
        %3257 = vmatpush1.msra.mxu0 0.0
        %3258 = vmatprep.subr.mxu0 0.0
        %3259 = vmatpush1.msra.mxu0 0.0
        %3260 = vmatprep.subr.mxu0 0.0
        %3261 = vmatpush1.msra.mxu0 0.0
        %3262 = vmatprep.subr.mxu0 0.0
        %3263 = vmatpush1.msra.mxu0 0.0
        %3264 = vmatprep.subr.mxu0 0.0
        %3265 = vmatpush1.msra.mxu0 0.0
        %3266 = vmatprep.subr.mxu0 0.0
        %3267 = vmatpush1.msra.mxu0 0.0
        %3268 = vmatprep.subr.mxu0 0.0
        %3269 = vmatpush1.msra.mxu0 0.0
        %3270 = vmatprep.subr.mxu0 0.0
        %3271 = vmatpush1.msra.mxu0 0.0
        %3272 = vmatprep.subr.mxu0 0.0
        %3273 = vmatpush1.msra.mxu0 0.0
        %3274 = vmatprep.subr.mxu0 0.0
        %3275 = vmatpush1.msra.mxu0 0.0
        %3276 = vmatprep.subr.mxu0 0.0
        %3277 = vmatpush1.msra.mxu0 0.0
        %3278 = vmatprep.subr.mxu0 0.0
        %3279 = vmatpush1.msra.mxu0 0.0
        %3280 = vmatprep.subr.mxu0 0.0
        %3281 = vmatpush1.msra.mxu0 0.0
        %3282 = vmatprep.subr.mxu0 0.0
        %3283 = vmatpush1.msra.mxu0 0.0
        %3284 = vmatprep.subr.mxu0 0.0
        %3285 = vmatpush1.msra.mxu0 0.0
        %3286 = vmatprep.subr.mxu0 0.0
        %3287 = vmatpush1.msra.mxu0 0.0
        %3288 = vmatprep.mubr.f32.mxu0 0.0
        %3289 = vmatmul.mubr.f32.gmra.mrb[0].mxu0 %v2772
        %v3290 = vpop.f32.mrb[0].mxu0
        %v3291 = vadd.f32 0.0, %v3290
        %v3292 = vpop.f32.mrb[0].mxu0
        %3293 = vmatprep.mubr.f32.mxu0 0.0
        %3294 = vmatmul.mubr.f32.gmra.mrb[0].mxu0 %v2775
        %v3295 = vpop.f32.mrb[0].mxu0
        %v3296 = vadd.f32 0.0, %v3295
        %v3297 = vpop.f32.mrb[0].mxu0
        %3298 = vmatprep.mubr.f32.mxu0 0.0
        %3299 = vmatmul.mubr.f32.gmra.mrb[0].mxu0 %v2778
        %v3300 = vpop.f32.mrb[0].mxu0
        %v3301 = vadd.f32 0.0, %v3300
        %v3302 = vpop.f32.mrb[0].mxu0
        %3303 = vmatprep.mubr.f32.mxu0 0.0
        %3304 = vmatmul.mubr.f32.gmra.mrb[0].mxu0 %v2781
        %v3305 = vpop.f32.mrb[0].mxu0
        %v3306 = vadd.f32 0.0, %v3305
        %v3307 = vpop.f32.mrb[0].mxu0
        %3308 = vmatprep.mubr.f32.mxu0 0.0
        %3309 = vmatmul.mubr.f32.gmra.mrb[0].mxu0 %v2784
        %v3310 = vpop.f32.mrb[0].mxu0
        %v3311 = vadd.f32 0.0, %v3310
        %v3312 = vpop.f32.mrb[0].mxu0
        %3313 = vmatprep.mubr.f32.mxu0 0.0
        %3314 = vmatmul.mubr.f32.gmra.mrb[0].mxu0 %v2787
        %v3315 = vpop.f32.mrb[0].mxu0
        %v3316 = vadd.f32 0.0, %v3315
        %v3317 = vpop.f32.mrb[0].mxu0
        %3318 = vmatprep.mubr.f32.mxu0 0.0
        %3319 = vmatmul.mubr.f32.gmra.mrb[0].mxu0 %v2790
        %v3320 = vpop.f32.mrb[0].mxu0
        %v3321 = vadd.f32 0.0, %v3320
        %v3322 = vpop.f32.mrb[0].mxu0
        %3323 = vmatprep.mubr.f32.mxu0 0.0
        %3324 = vmatmul.mubr.f32.gmra.mrb[0].mxu0 %v2793
        %v3325 = vpop.f32.mrb[0].mxu0
        %v3326 = vadd.f32 0.0, %v3325
        %v3327 = vpop.f32.mrb[0].mxu0
        %3328 = vdwg.mxu0
        %v3329 = vsel %vm694, %v3291, -inf
        %3330 = vmax.xlane.f32.xlu0 %v3329
        %v3331 = vpop.xlane.xlu0 %3330
        %v3332 = vsel %vm694, %v3296, -inf
        %3333 = vmax.xlane.f32.xlu0 %v3332
        %v3334 = vpop.xlane.xlu0 %3333
        %v3335 = vsel %vm694, %v3301, -inf
        %3336 = vmax.xlane.f32.xlu0 %v3335
        %v3337 = vpop.xlane.xlu0 %3336
        %v3338 = vsel %vm694, %v3306, -inf
        %3339 = vmax.xlane.f32.xlu0 %v3338
        %v3340 = vpop.xlane.xlu0 %3339
        %v3341 = vsel %vm694, %v3311, -inf
        %3342 = vmax.xlane.f32.xlu0 %v3341
        %v3343 = vpop.xlane.xlu0 %3342
        %v3344 = vsel %vm694, %v3316, -inf
        %3345 = vmax.xlane.f32.xlu0 %v3344
        %v3346 = vpop.xlane.xlu0 %3345
        %v3347 = vsel %vm694, %v3321, -inf
        %3348 = vmax.xlane.f32.xlu0 %v3347
        %v3349 = vpop.xlane.xlu0 %3348
        %v3350 = vsel %vm694, %v3326, -inf
        %3351 = vmax.xlane.f32.xlu0 %v3350
        %v3352 = vpop.xlane.xlu0 %3351
        %v3353 = vmax.f32 %v2902, %v3331
        %v3354 = vmax.f32 %v2905, %v3334
        %v3355 = vmax.f32 %v2908, %v3337
        %v3356 = vmax.f32 %v2911, %v3340
        %v3357 = vmax.f32 %v2914, %v3343
        %v3358 = vmax.f32 %v2917, %v3346
        %v3359 = vmax.f32 %v2920, %v3349
        %v3360 = vmax.f32 %v2923, %v3352
        %v3361 = vsub.f32 %v2902, %v3353
        %v3362 = vsub.f32 %v2905, %v3354
        %v3363 = vsub.f32 %v2908, %v3355
        %v3364 = vsub.f32 %v2911, %v3356
        %v3365 = vsub.f32 %v2914, %v3357
        %v3366 = vsub.f32 %v2917, %v3358
        %v3367 = vsub.f32 %v2920, %v3359
        %v3368 = vsub.f32 %v2923, %v3360
        %v3369 = vmul.f32 %v3361, 1.442695
        %v3370 = vpow.pop %v3369
        %v3371 = vmul.f32 %v3362, 1.442695
        %v3372 = vpow.pop %v3371
        %v3373 = vmul.f32 %v3363, 1.442695
        %v3374 = vpow.pop %v3373
        %v3375 = vmul.f32 %v3364, 1.442695
        %v3376 = vpow.pop %v3375
        %v3377 = vmul.f32 %v3365, 1.442695
        %v3378 = vpow.pop %v3377
        %v3379 = vmul.f32 %v3366, 1.442695
        %v3380 = vpow.pop %v3379
        %v3381 = vmul.f32 %v3367, 1.442695
        %v3382 = vpow.pop %v3381
        %v3383 = vmul.f32 %v3368, 1.442695
        %v3384 = vpow.pop %v3383
        %v3385 = vsub.f32 %v3291, %v3353
        %v3386 = vsub.f32 %v3296, %v3354
        %v3387 = vsub.f32 %v3301, %v3355
        %v3388 = vsub.f32 %v3306, %v3356
        %v3389 = vsub.f32 %v3311, %v3357
        %v3390 = vsub.f32 %v3316, %v3358
        %v3391 = vsub.f32 %v3321, %v3359
        %v3392 = vsub.f32 %v3326, %v3360
        %v3393 = vmul.f32 %v3385, 1.442695
        %v3394 = vpow.pop %v3393
        %v3395 = vmul.f32 %v3386, 1.442695
        %v3396 = vpow.pop %v3395
        %v3397 = vmul.f32 %v3387, 1.442695
        %v3398 = vpow.pop %v3397
        %v3399 = vmul.f32 %v3388, 1.442695
        %v3400 = vpow.pop %v3399
        %v3401 = vmul.f32 %v3389, 1.442695
        %v3402 = vpow.pop %v3401
        %v3403 = vmul.f32 %v3390, 1.442695
        %v3404 = vpow.pop %v3403
        %v3405 = vmul.f32 %v3391, 1.442695
        %v3406 = vpow.pop %v3405
        %v3407 = vmul.f32 %v3392, 1.442695
        %v3408 = vpow.pop %v3407
        %v3409 = vmul.f32 %v3370, %v3004
        %v3410 = vmul.f32 %v3372, %v3005
        %v3411 = vmul.f32 %v3374, %v3006
        %v3412 = vmul.f32 %v3376, %v3007
        %v3413 = vmul.f32 %v3378, %v3008
        %v3414 = vmul.f32 %v3380, %v3009
        %v3415 = vmul.f32 %v3382, %v3010
        %v3416 = vmul.f32 %v3384, %v3011
        %v3417 = vsel %vm694, %v3394, 0.0
        %3418 = vadd.xlane.f32.xlu0 %v3417
        %v3419 = vpop.xlane.xlu0 %3418
        %v3420 = vsel %vm694, %v3396, 0.0
        %3421 = vadd.xlane.f32.xlu0 %v3420
        %v3422 = vpop.xlane.xlu0 %3421
        %v3423 = vsel %vm694, %v3398, 0.0
        %3424 = vadd.xlane.f32.xlu0 %v3423
        %v3425 = vpop.xlane.xlu0 %3424
        %v3426 = vsel %vm694, %v3400, 0.0
        %3427 = vadd.xlane.f32.xlu0 %v3426
        %v3428 = vpop.xlane.xlu0 %3427
        %v3429 = vsel %vm694, %v3402, 0.0
        %3430 = vadd.xlane.f32.xlu0 %v3429
        %v3431 = vpop.xlane.xlu0 %3430
        %v3432 = vsel %vm694, %v3404, 0.0
        %3433 = vadd.xlane.f32.xlu0 %v3432
        %v3434 = vpop.xlane.xlu0 %3433
        %v3435 = vsel %vm694, %v3406, 0.0
        %3436 = vadd.xlane.f32.xlu0 %v3435
        %v3437 = vpop.xlane.xlu0 %3436
        %v3438 = vsel %vm694, %v3408, 0.0
        %3439 = vadd.xlane.f32.xlu0 %v3438
        %v3440 = vpop.xlane.xlu0 %3439
        %v3441 = vadd.f32 %v3409, %v3419
        %v3442 = vadd.f32 %v3410, %v3422
        %v3443 = vadd.f32 %v3411, %v3425
        %v3444 = vadd.f32 %v3412, %v3428
        %v3445 = vadd.f32 %v3413, %v3431
        %v3446 = vadd.f32 %v3414, %v3434
        %v3447 = vadd.f32 %v3415, %v3437
        %v3448 = vadd.f32 %v3416, %v3440
        %v3449 = vmul.f32 %v3370, %v3141
        %v3450 = vmul.f32 %v3372, %v3142
        %v3451 = vmul.f32 %v3374, %v3143
        %v3452 = vmul.f32 %v3376, %v3144
        %v3453 = vmul.f32 %v3378, %v3145
        %v3454 = vmul.f32 %v3380, %v3146
        %v3455 = vmul.f32 %v3382, %v3147
        %v3456 = vmul.f32 %v3384, %v3148
        %v3458 = vsel %vm694, %v3394, 0
        %v3461 = vsel %vm694, %v3396, 0
        %v3464 = vsel %vm694, %v3398, 0
        %v3467 = vsel %vm694, %v3400, 0
        %v3470 = vsel %vm694, %v3402, 0
        %v3473 = vsel %vm694, %v3404, 0
        %v3476 = vsel %vm694, %v3406, 0
        %v3479 = vsel %vm694, %v3408, 0
        %3481 = vmatprep.subr.mxu0 0.0
        %3482 = vmatpush1.msra.mxu0 %v2651
        %3483 = vmatprep.subr.mxu0 0.0
        %3484 = vmatpush1.msra.mxu0 %v2656
        %3485 = vmatprep.subr.mxu0 0.0
        %3486 = vmatpush1.msra.mxu0 0.0
        %3487 = vmatprep.subr.mxu0 0.0
        %3488 = vmatpush1.msra.mxu0 0.0
        %3489 = vmatprep.subr.mxu0 0.0
        %3490 = vmatpush1.msra.mxu0 0.0
        %3491 = vmatprep.subr.mxu0 0.0
        %3492 = vmatpush1.msra.mxu0 0.0
        %3493 = vmatprep.subr.mxu0 0.0
        %3494 = vmatpush1.msra.mxu0 0.0
        %3495 = vmatprep.subr.mxu0 0.0
        %3496 = vmatpush1.msra.mxu0 0.0
        %3497 = vmatprep.subr.mxu0 0.0
        %3498 = vmatpush1.msra.mxu0 0.0
        %3499 = vmatprep.subr.mxu0 0.0
        %3500 = vmatpush1.msra.mxu0 0.0
        %3501 = vmatprep.subr.mxu0 0.0
        %3502 = vmatpush1.msra.mxu0 0.0
        %3503 = vmatprep.subr.mxu0 0.0
        %3504 = vmatpush1.msra.mxu0 0.0
        %3505 = vmatprep.subr.mxu0 0.0
        %3506 = vmatpush1.msra.mxu0 0.0
        %3507 = vmatprep.subr.mxu0 0.0
        %3508 = vmatpush1.msra.mxu0 0.0
        %3509 = vmatprep.subr.mxu0 0.0
        %3510 = vmatpush1.msra.mxu0 0.0
        %3511 = vmatprep.subr.mxu0 0.0
        %3512 = vmatpush1.msra.mxu0 0.0
        %3513 = vmatprep.subr.mxu0 0.0
        %3514 = vmatpush1.msra.mxu0 0.0
        %3515 = vmatprep.subr.mxu0 0.0
        %3516 = vmatpush1.msra.mxu0 0.0
        %3517 = vmatprep.subr.mxu0 0.0
        %3518 = vmatpush1.msra.mxu0 0.0
        %3519 = vmatprep.subr.mxu0 0.0
        %3520 = vmatpush1.msra.mxu0 0.0
        %3521 = vmatprep.subr.mxu0 0.0
        %3522 = vmatpush1.msra.mxu0 0.0
        %3523 = vmatprep.subr.mxu0 0.0
        %3524 = vmatpush1.msra.mxu0 0.0
        %3525 = vmatprep.subr.mxu0 0.0
        %3526 = vmatpush1.msra.mxu0 0.0
        %3527 = vmatprep.subr.mxu0 0.0
        %3528 = vmatpush1.msra.mxu0 0.0
        %3529 = vmatprep.subr.mxu0 0.0
        %3530 = vmatpush1.msra.mxu0 0.0
        %3531 = vmatprep.subr.mxu0 0.0
        %3532 = vmatpush1.msra.mxu0 0.0
        %3533 = vmatprep.subr.mxu0 0.0
        %3534 = vmatpush1.msra.mxu0 0.0
        %3535 = vmatprep.subr.mxu0 0.0
        %3536 = vmatpush1.msra.mxu0 0.0
        %3537 = vmatprep.subr.mxu0 0.0
        %3538 = vmatpush1.msra.mxu0 0.0
        %3539 = vmatprep.subr.mxu0 0.0
        %3540 = vmatpush1.msra.mxu0 0.0
        %3541 = vmatprep.subr.mxu0 0.0
        %3542 = vmatpush1.msra.mxu0 0.0
        %3543 = vmatprep.subr.mxu0 0.0
        %3544 = vmatpush1.msra.mxu0 0.0
        %3545 = vmatprep.mubr.f32.mxu0 0.0
        %3546 = vmatmul.mubr.f32.gmra.mrb[0].mxu0 %v3458
        %v3547 = vpop.f32.mrb[0].mxu0
        %v3548 = vadd.f32 0.0, %v3547
        %v3549 = vpop.f32.mrb[0].mxu0
        %3550 = vmatprep.mubr.f32.mxu0 0.0
        %3551 = vmatmul.mubr.f32.gmra.mrb[0].mxu0 %v3461
        %v3552 = vpop.f32.mrb[0].mxu0
        %v3553 = vadd.f32 0.0, %v3552
        %v3554 = vpop.f32.mrb[0].mxu0
        %3555 = vmatprep.mubr.f32.mxu0 0.0
        %3556 = vmatmul.mubr.f32.gmra.mrb[0].mxu0 %v3464
        %v3557 = vpop.f32.mrb[0].mxu0
        %v3558 = vadd.f32 0.0, %v3557
        %v3559 = vpop.f32.mrb[0].mxu0
        %3560 = vmatprep.mubr.f32.mxu0 0.0
        %3561 = vmatmul.mubr.f32.gmra.mrb[0].mxu0 %v3467
        %v3562 = vpop.f32.mrb[0].mxu0
        %v3563 = vadd.f32 0.0, %v3562
        %v3564 = vpop.f32.mrb[0].mxu0
        %3565 = vmatprep.mubr.f32.mxu0 0.0
        %3566 = vmatmul.mubr.f32.gmra.mrb[0].mxu0 %v3470
        %v3567 = vpop.f32.mrb[0].mxu0
        %v3568 = vadd.f32 0.0, %v3567
        %v3569 = vpop.f32.mrb[0].mxu0
        %3570 = vmatprep.mubr.f32.mxu0 0.0
        %3571 = vmatmul.mubr.f32.gmra.mrb[0].mxu0 %v3473
        %v3572 = vpop.f32.mrb[0].mxu0
        %v3573 = vadd.f32 0.0, %v3572
        %v3574 = vpop.f32.mrb[0].mxu0
        %3575 = vmatprep.mubr.f32.mxu0 0.0
        %3576 = vmatmul.mubr.f32.gmra.mrb[0].mxu0 %v3476
        %v3577 = vpop.f32.mrb[0].mxu0
        %v3578 = vadd.f32 0.0, %v3577
        %v3579 = vpop.f32.mrb[0].mxu0
        %3580 = vmatprep.mubr.f32.mxu0 0.0
        %3581 = vmatmul.mubr.f32.gmra.mrb[0].mxu0 %v3479
        %v3582 = vpop.f32.mrb[0].mxu0
        %v3583 = vadd.f32 0.0, %v3582
        %v3584 = vpop.f32.mrb[0].mxu0
        %3585 = vdwg.mxu0
        %v3586 = vadd.f32 %v3449, %v3548
        %v3587 = vadd.f32 %v3450, %v3553
        %v3588 = vadd.f32 %v3451, %v3558
        %v3589 = vadd.f32 %v3452, %v3563
        %v3590 = vadd.f32 %v3453, %v3568
        %v3591 = vadd.f32 %v3454, %v3573
        %v3592 = vadd.f32 %v3455, %v3578
        %v3593 = vadd.f32 %v3456, %v3583
        %3594 = vmatprep.subr.mxu0 0.0
        %3595 = vmatpush1.msra.mxu0 %v2680
        %3596 = vmatprep.subr.mxu0 0.0
        %3597 = vmatpush1.msra.mxu0 %v2681
        %3598 = vmatprep.subr.mxu0 0.0
        %3599 = vmatpush1.msra.mxu0 %v2682
        %3600 = vmatprep.subr.mxu0 0.0
        %3601 = vmatpush1.msra.mxu0 %v2683
        %3602 = vmatprep.subr.mxu0 0.0
        %3603 = vmatpush1.msra.mxu0 %v2684
        %3604 = vmatprep.subr.mxu0 0.0
        %3605 = vmatpush1.msra.mxu0 %v2685
        %3606 = vmatprep.subr.mxu0 0.0
        %3607 = vmatpush1.msra.mxu0 %v2686
        %3608 = vmatprep.subr.mxu0 0.0
        %3609 = vmatpush1.msra.mxu0 %v2687
        %3610 = vmatprep.subr.mxu0 0.0
        %3611 = vmatpush1.msra.mxu0 %v2688
        %3612 = vmatprep.subr.mxu0 0.0
        %3613 = vmatpush1.msra.mxu0 %v2689
        %3614 = vmatprep.subr.mxu0 0.0
        %3615 = vmatpush1.msra.mxu0 %v2690
        %3616 = vmatprep.subr.mxu0 0.0
        %3617 = vmatpush1.msra.mxu0 %v2691
        %3618 = vmatprep.subr.mxu0 0.0
        %3619 = vmatpush1.msra.mxu0 %v2692
        %3620 = vmatprep.subr.mxu0 0.0
        %3621 = vmatpush1.msra.mxu0 %v2693
        %3622 = vmatprep.subr.mxu0 0.0
        %3623 = vmatpush1.msra.mxu0 %v2694
        %3624 = vmatprep.subr.mxu0 0.0
        %3625 = vmatpush1.msra.mxu0 %v2695
        %3626 = vmatprep.subr.mxu0 0.0
        %3627 = vmatpush1.msra.mxu0 0.0
        %3628 = vmatprep.subr.mxu0 0.0
        %3629 = vmatpush1.msra.mxu0 0.0
        %3630 = vmatprep.subr.mxu0 0.0
        %3631 = vmatpush1.msra.mxu0 0.0
        %3632 = vmatprep.subr.mxu0 0.0
        %3633 = vmatpush1.msra.mxu0 0.0
        %3634 = vmatprep.subr.mxu0 0.0
        %3635 = vmatpush1.msra.mxu0 0.0
        %3636 = vmatprep.subr.mxu0 0.0
        %3637 = vmatpush1.msra.mxu0 0.0
        %3638 = vmatprep.subr.mxu0 0.0
        %3639 = vmatpush1.msra.mxu0 0.0
        %3640 = vmatprep.subr.mxu0 0.0
        %3641 = vmatpush1.msra.mxu0 0.0
        %3642 = vmatprep.subr.mxu0 0.0
        %3643 = vmatpush1.msra.mxu0 0.0
        %3644 = vmatprep.subr.mxu0 0.0
        %3645 = vmatpush1.msra.mxu0 0.0
        %3646 = vmatprep.subr.mxu0 0.0
        %3647 = vmatpush1.msra.mxu0 0.0
        %3648 = vmatprep.subr.mxu0 0.0
        %3649 = vmatpush1.msra.mxu0 0.0
        %3650 = vmatprep.subr.mxu0 0.0
        %3651 = vmatpush1.msra.mxu0 0.0
        %3652 = vmatprep.subr.mxu0 0.0
        %3653 = vmatpush1.msra.mxu0 0.0
        %3654 = vmatprep.subr.mxu0 0.0
        %3655 = vmatpush1.msra.mxu0 0.0
        %3656 = vmatprep.subr.mxu0 0.0
        %3657 = vmatpush1.msra.mxu0 0.0
        %3658 = vmatprep.mubr.f32.mxu0 0.0
        %3659 = vmatmul.mubr.f32.gmra.mrb[0].mxu0 %v1522
        %v3660 = vpop.f32.mrb[0].mxu0
        %v3661 = vadd.f32 0.0, %v3660
        %v3662 = vpop.f32.mrb[0].mxu0
        %3663 = vmatprep.mubr.f32.mxu0 0.0
        %3664 = vmatmul.mubr.f32.gmra.mrb[0].mxu0 %v1523
        %v3665 = vpop.f32.mrb[0].mxu0
        %v3666 = vadd.f32 0.0, %v3665
        %v3667 = vpop.f32.mrb[0].mxu0
        %3668 = vdwg.mxu0
        %3669 = vmatprep.subr.mxu0 0.0
        %3670 = vmatpush1.msra.mxu0 %v3661
        %3671 = vmatprep.subr.mxu0 0.0
        %3672 = vmatpush1.msra.mxu0 %v3666
        %3673 = vmatprep.subr.mxu0 0.0
        %3674 = vmatpush1.msra.mxu0 0.0
        %3675 = vmatprep.subr.mxu0 0.0
        %3676 = vmatpush1.msra.mxu0 0.0
        %3677 = vmatprep.subr.mxu0 0.0
        %3678 = vmatpush1.msra.mxu0 0.0
        %3679 = vmatprep.subr.mxu0 0.0
        %3680 = vmatpush1.msra.mxu0 0.0
        %3681 = vmatprep.subr.mxu0 0.0
        %3682 = vmatpush1.msra.mxu0 0.0
        %3683 = vmatprep.subr.mxu0 0.0
        %3684 = vmatpush1.msra.mxu0 0.0
        %3685 = vmatprep.subr.mxu0 0.0
        %3686 = vmatpush1.msra.mxu0 0.0
        %3687 = vmatprep.subr.mxu0 0.0
        %3688 = vmatpush1.msra.mxu0 0.0
        %3689 = vmatprep.subr.mxu0 0.0
        %3690 = vmatpush1.msra.mxu0 0.0
        %3691 = vmatprep.subr.mxu0 0.0
        %3692 = vmatpush1.msra.mxu0 0.0
        %3693 = vmatprep.subr.mxu0 0.0
        %3694 = vmatpush1.msra.mxu0 0.0
        %3695 = vmatprep.subr.mxu0 0.0
        %3696 = vmatpush1.msra.mxu0 0.0
        %3697 = vmatprep.subr.mxu0 0.0
        %3698 = vmatpush1.msra.mxu0 0.0
        %3699 = vmatprep.subr.mxu0 0.0
        %3700 = vmatpush1.msra.mxu0 0.0
        %3701 = vmatprep.subr.mxu0 0.0
        %3702 = vmatpush1.msra.mxu0 0.0
        %3703 = vmatprep.subr.mxu0 0.0
        %3704 = vmatpush1.msra.mxu0 0.0
        %3705 = vmatprep.subr.mxu0 0.0
        %3706 = vmatpush1.msra.mxu0 0.0
        %3707 = vmatprep.subr.mxu0 0.0
        %3708 = vmatpush1.msra.mxu0 0.0
        %3709 = vmatprep.subr.mxu0 0.0
        %3710 = vmatpush1.msra.mxu0 0.0
        %3711 = vmatprep.subr.mxu0 0.0
        %3712 = vmatpush1.msra.mxu0 0.0
        %3713 = vmatprep.subr.mxu0 0.0
        %3714 = vmatpush1.msra.mxu0 0.0
        %3715 = vmatprep.subr.mxu0 0.0
        %3716 = vmatpush1.msra.mxu0 0.0
        %3717 = vmatprep.subr.mxu0 0.0
        %3718 = vmatpush1.msra.mxu0 0.0
        %3719 = vmatprep.subr.mxu0 0.0
        %3720 = vmatpush1.msra.mxu0 0.0
        %3721 = vmatprep.subr.mxu0 0.0
        %3722 = vmatpush1.msra.mxu0 0.0
        %3723 = vmatprep.subr.mxu0 0.0
        %3724 = vmatpush1.msra.mxu0 0.0
        %3725 = vmatprep.subr.mxu0 0.0
        %3726 = vmatpush1.msra.mxu0 0.0
        %3727 = vmatprep.subr.mxu0 0.0
        %3728 = vmatpush1.msra.mxu0 0.0
        %3729 = vmatprep.subr.mxu0 0.0
        %3730 = vmatpush1.msra.mxu0 0.0
        %3731 = vmatprep.subr.mxu0 0.0
        %3732 = vmatpush1.msra.mxu0 0.0
        %3733 = vmatprep.mubr.f32.mxu0 0.0
        %3734 = vmatmul.mubr.f32.gmra.mrb[0].mxu0 %v2772
        %v3735 = vpop.f32.mrb[0].mxu0
        %v3736 = vadd.f32 0.0, %v3735
        %v3737 = vpop.f32.mrb[0].mxu0
        %3738 = vmatprep.mubr.f32.mxu0 0.0
        %3739 = vmatmul.mubr.f32.gmra.mrb[0].mxu0 %v2775
        %v3740 = vpop.f32.mrb[0].mxu0
        %v3741 = vadd.f32 0.0, %v3740
        %v3742 = vpop.f32.mrb[0].mxu0
        %3743 = vmatprep.mubr.f32.mxu0 0.0
        %3744 = vmatmul.mubr.f32.gmra.mrb[0].mxu0 %v2778
        %v3745 = vpop.f32.mrb[0].mxu0
        %v3746 = vadd.f32 0.0, %v3745
        %v3747 = vpop.f32.mrb[0].mxu0
        %3748 = vmatprep.mubr.f32.mxu0 0.0
        %3749 = vmatmul.mubr.f32.gmra.mrb[0].mxu0 %v2781
        %v3750 = vpop.f32.mrb[0].mxu0
        %v3751 = vadd.f32 0.0, %v3750
        %v3752 = vpop.f32.mrb[0].mxu0
        %3753 = vmatprep.mubr.f32.mxu0 0.0
        %3754 = vmatmul.mubr.f32.gmra.mrb[0].mxu0 %v2784
        %v3755 = vpop.f32.mrb[0].mxu0
        %v3756 = vadd.f32 0.0, %v3755
        %v3757 = vpop.f32.mrb[0].mxu0
        %3758 = vmatprep.mubr.f32.mxu0 0.0
        %3759 = vmatmul.mubr.f32.gmra.mrb[0].mxu0 %v2787
        %v3760 = vpop.f32.mrb[0].mxu0
        %v3761 = vadd.f32 0.0, %v3760
        %v3762 = vpop.f32.mrb[0].mxu0
        %3763 = vmatprep.mubr.f32.mxu0 0.0
        %3764 = vmatmul.mubr.f32.gmra.mrb[0].mxu0 %v2790
        %v3765 = vpop.f32.mrb[0].mxu0
        %v3766 = vadd.f32 0.0, %v3765
        %v3767 = vpop.f32.mrb[0].mxu0
        %3768 = vmatprep.mubr.f32.mxu0 0.0
        %3769 = vmatmul.mubr.f32.gmra.mrb[0].mxu0 %v2793
        %v3770 = vpop.f32.mrb[0].mxu0
        %v3771 = vadd.f32 0.0, %v3770
        %v3772 = vpop.f32.mrb[0].mxu0
        %3773 = vdwg.mxu0
        %v3774 = vsel %vm694, %v3736, -inf
        %3775 = vmax.xlane.f32.xlu0 %v3774
        %v3776 = vpop.xlane.xlu0 %3775
        %v3777 = vsel %vm694, %v3741, -inf
        %3778 = vmax.xlane.f32.xlu0 %v3777
        %v3779 = vpop.xlane.xlu0 %3778
        %v3780 = vsel %vm694, %v3746, -inf
        %3781 = vmax.xlane.f32.xlu0 %v3780
        %v3782 = vpop.xlane.xlu0 %3781
        %v3783 = vsel %vm694, %v3751, -inf
        %3784 = vmax.xlane.f32.xlu0 %v3783
        %v3785 = vpop.xlane.xlu0 %3784
        %v3786 = vsel %vm694, %v3756, -inf
        %3787 = vmax.xlane.f32.xlu0 %v3786
        %v3788 = vpop.xlane.xlu0 %3787
        %v3789 = vsel %vm694, %v3761, -inf
        %3790 = vmax.xlane.f32.xlu0 %v3789
        %v3791 = vpop.xlane.xlu0 %3790
        %v3792 = vsel %vm694, %v3766, -inf
        %3793 = vmax.xlane.f32.xlu0 %v3792
        %v3794 = vpop.xlane.xlu0 %3793
        %v3795 = vsel %vm694, %v3771, -inf
        %3796 = vmax.xlane.f32.xlu0 %v3795
        %v3797 = vpop.xlane.xlu0 %3796
        %v3798 = vmax.f32 %v3353, %v3776
        %v3799 = vmax.f32 %v3354, %v3779
        %v3800 = vmax.f32 %v3355, %v3782
        %v3801 = vmax.f32 %v3356, %v3785
        %v3802 = vmax.f32 %v3357, %v3788
        %v3803 = vmax.f32 %v3358, %v3791
        %v3804 = vmax.f32 %v3359, %v3794
        %v3805 = vmax.f32 %v3360, %v3797
        %v3806 = vsub.f32 %v3353, %v3798
        %v3807 = vsub.f32 %v3354, %v3799
        %v3808 = vsub.f32 %v3355, %v3800
        %v3809 = vsub.f32 %v3356, %v3801
        %v3810 = vsub.f32 %v3357, %v3802
        %v3811 = vsub.f32 %v3358, %v3803
        %v3812 = vsub.f32 %v3359, %v3804
        %v3813 = vsub.f32 %v3360, %v3805
        %v3814 = vmul.f32 %v3806, 1.442695
        %v3815 = vpow.pop %v3814
        %v3816 = vmul.f32 %v3807, 1.442695
        %v3817 = vpow.pop %v3816
        %v3818 = vmul.f32 %v3808, 1.442695
        %v3819 = vpow.pop %v3818
        %v3820 = vmul.f32 %v3809, 1.442695
        %v3821 = vpow.pop %v3820
        %v3822 = vmul.f32 %v3810, 1.442695
        %v3823 = vpow.pop %v3822
        %v3824 = vmul.f32 %v3811, 1.442695
        %v3825 = vpow.pop %v3824
        %v3826 = vmul.f32 %v3812, 1.442695
        %v3827 = vpow.pop %v3826
        %v3828 = vmul.f32 %v3813, 1.442695
        %v3829 = vpow.pop %v3828
        %v3830 = vsub.f32 %v3736, %v3798
        %v3831 = vsub.f32 %v3741, %v3799
        %v3832 = vsub.f32 %v3746, %v3800
        %v3833 = vsub.f32 %v3751, %v3801
        %v3834 = vsub.f32 %v3756, %v3802
        %v3835 = vsub.f32 %v3761, %v3803
        %v3836 = vsub.f32 %v3766, %v3804
        %v3837 = vsub.f32 %v3771, %v3805
        %v3838 = vmul.f32 %v3830, 1.442695
        %v3839 = vpow.pop %v3838
        %v3840 = vmul.f32 %v3831, 1.442695
        %v3841 = vpow.pop %v3840
        %v3842 = vmul.f32 %v3832, 1.442695
        %v3843 = vpow.pop %v3842
        %v3844 = vmul.f32 %v3833, 1.442695
        %v3845 = vpow.pop %v3844
        %v3846 = vmul.f32 %v3834, 1.442695
        %v3847 = vpow.pop %v3846
        %v3848 = vmul.f32 %v3835, 1.442695
        %v3849 = vpow.pop %v3848
        %v3850 = vmul.f32 %v3836, 1.442695
        %v3851 = vpow.pop %v3850
        %v3852 = vmul.f32 %v3837, 1.442695
        %v3853 = vpow.pop %v3852
        %v3854 = vmul.f32 %v3815, %v3441
        %v3855 = vmul.f32 %v3817, %v3442
        %v3856 = vmul.f32 %v3819, %v3443
        %v3857 = vmul.f32 %v3821, %v3444
        %v3858 = vmul.f32 %v3823, %v3445
        %v3859 = vmul.f32 %v3825, %v3446
        %v3860 = vmul.f32 %v3827, %v3447
        %v3861 = vmul.f32 %v3829, %v3448
        %v3862 = vsel %vm694, %v3839, 0.0
        %3863 = vadd.xlane.f32.xlu0 %v3862
        %v3864 = vpop.xlane.xlu0 %3863
        %v3865 = vsel %vm694, %v3841, 0.0
        %3866 = vadd.xlane.f32.xlu0 %v3865
        %v3867 = vpop.xlane.xlu0 %3866
        %v3868 = vsel %vm694, %v3843, 0.0
        %3869 = vadd.xlane.f32.xlu0 %v3868
        %v3870 = vpop.xlane.xlu0 %3869
        %v3871 = vsel %vm694, %v3845, 0.0
        %3872 = vadd.xlane.f32.xlu0 %v3871
        %v3873 = vpop.xlane.xlu0 %3872
        %v3874 = vsel %vm694, %v3847, 0.0
        %3875 = vadd.xlane.f32.xlu0 %v3874
        %v3876 = vpop.xlane.xlu0 %3875
        %v3877 = vsel %vm694, %v3849, 0.0
        %3878 = vadd.xlane.f32.xlu0 %v3877
        %v3879 = vpop.xlane.xlu0 %3878
        %v3880 = vsel %vm694, %v3851, 0.0
        %3881 = vadd.xlane.f32.xlu0 %v3880
        %v3882 = vpop.xlane.xlu0 %3881
        %v3883 = vsel %vm694, %v3853, 0.0
        %3884 = vadd.xlane.f32.xlu0 %v3883
        %v3885 = vpop.xlane.xlu0 %3884
        %v3886 = vadd.f32 %v3854, %v3864
        %v3887 = vadd.f32 %v3855, %v3867
        %v3888 = vadd.f32 %v3856, %v3870
        %v3889 = vadd.f32 %v3857, %v3873
        %v3890 = vadd.f32 %v3858, %v3876
        %v3891 = vadd.f32 %v3859, %v3879
        %v3892 = vadd.f32 %v3860, %v3882
        %v3893 = vadd.f32 %v3861, %v3885
        %v3894 = vmul.f32 %v3815, %v3586
        %v3895 = vmul.f32 %v3817, %v3587
        %v3896 = vmul.f32 %v3819, %v3588
        %v3897 = vmul.f32 %v3821, %v3589
        %v3898 = vmul.f32 %v3823, %v3590
        %v3899 = vmul.f32 %v3825, %v3591
        %v3900 = vmul.f32 %v3827, %v3592
        %v3901 = vmul.f32 %v3829, %v3593
        %v3903 = vsel %vm694, %v3839, 0
        %v3906 = vsel %vm694, %v3841, 0
        %v3909 = vsel %vm694, %v3843, 0
        %v3912 = vsel %vm694, %v3845, 0
        %v3915 = vsel %vm694, %v3847, 0
        %v3918 = vsel %vm694, %v3849, 0
        %v3921 = vsel %vm694, %v3851, 0
        %v3924 = vsel %vm694, %v3853, 0
        %3926 = vmatprep.subr.mxu0 0.0
        %3927 = vmatpush1.msra.mxu0 %v2661
        %3928 = vmatprep.subr.mxu0 0.0
        %3929 = vmatpush1.msra.mxu0 %v2666
        %3930 = vmatprep.subr.mxu0 0.0
        %3931 = vmatpush1.msra.mxu0 0.0
        %3932 = vmatprep.subr.mxu0 0.0
        %3933 = vmatpush1.msra.mxu0 0.0
        %3934 = vmatprep.subr.mxu0 0.0
        %3935 = vmatpush1.msra.mxu0 0.0
        %3936 = vmatprep.subr.mxu0 0.0
        %3937 = vmatpush1.msra.mxu0 0.0
        %3938 = vmatprep.subr.mxu0 0.0
        %3939 = vmatpush1.msra.mxu0 0.0
        %3940 = vmatprep.subr.mxu0 0.0
        %3941 = vmatpush1.msra.mxu0 0.0
        %3942 = vmatprep.subr.mxu0 0.0
        %3943 = vmatpush1.msra.mxu0 0.0
        %3944 = vmatprep.subr.mxu0 0.0
        %3945 = vmatpush1.msra.mxu0 0.0
        %3946 = vmatprep.subr.mxu0 0.0
        %3947 = vmatpush1.msra.mxu0 0.0
        %3948 = vmatprep.subr.mxu0 0.0
        %3949 = vmatpush1.msra.mxu0 0.0
        %3950 = vmatprep.subr.mxu0 0.0
        %3951 = vmatpush1.msra.mxu0 0.0
        %3952 = vmatprep.subr.mxu0 0.0
        %3953 = vmatpush1.msra.mxu0 0.0
        %3954 = vmatprep.subr.mxu0 0.0
        %3955 = vmatpush1.msra.mxu0 0.0
        %3956 = vmatprep.subr.mxu0 0.0
        %3957 = vmatpush1.msra.mxu0 0.0
        %3958 = vmatprep.subr.mxu0 0.0
        %3959 = vmatpush1.msra.mxu0 0.0
        %3960 = vmatprep.subr.mxu0 0.0
        %3961 = vmatpush1.msra.mxu0 0.0
        %3962 = vmatprep.subr.mxu0 0.0
        %3963 = vmatpush1.msra.mxu0 0.0
        %3964 = vmatprep.subr.mxu0 0.0
        %3965 = vmatpush1.msra.mxu0 0.0
        %3966 = vmatprep.subr.mxu0 0.0
        %3967 = vmatpush1.msra.mxu0 0.0
        %3968 = vmatprep.subr.mxu0 0.0
        %3969 = vmatpush1.msra.mxu0 0.0
        %3970 = vmatprep.subr.mxu0 0.0
        %3971 = vmatpush1.msra.mxu0 0.0
        %3972 = vmatprep.subr.mxu0 0.0
        %3973 = vmatpush1.msra.mxu0 0.0
        %3974 = vmatprep.subr.mxu0 0.0
        %3975 = vmatpush1.msra.mxu0 0.0
        %3976 = vmatprep.subr.mxu0 0.0
        %3977 = vmatpush1.msra.mxu0 0.0
        %3978 = vmatprep.subr.mxu0 0.0
        %3979 = vmatpush1.msra.mxu0 0.0
        %3980 = vmatprep.subr.mxu0 0.0
        %3981 = vmatpush1.msra.mxu0 0.0
        %3982 = vmatprep.subr.mxu0 0.0
        %3983 = vmatpush1.msra.mxu0 0.0
        %3984 = vmatprep.subr.mxu0 0.0
        %3985 = vmatpush1.msra.mxu0 0.0
        %3986 = vmatprep.subr.mxu0 0.0
        %3987 = vmatpush1.msra.mxu0 0.0
        %3988 = vmatprep.subr.mxu0 0.0
        %3989 = vmatpush1.msra.mxu0 0.0
        %3990 = vmatprep.mubr.f32.mxu0 0.0
        %3991 = vmatmul.mubr.f32.gmra.mrb[0].mxu0 %v3903
        %v3992 = vpop.f32.mrb[0].mxu0
        %v3993 = vadd.f32 0.0, %v3992
        %v3994 = vpop.f32.mrb[0].mxu0
        %3995 = vmatprep.mubr.f32.mxu0 0.0
        %3996 = vmatmul.mubr.f32.gmra.mrb[0].mxu0 %v3906
        %v3997 = vpop.f32.mrb[0].mxu0
        %v3998 = vadd.f32 0.0, %v3997
        %v3999 = vpop.f32.mrb[0].mxu0
        %4000 = vmatprep.mubr.f32.mxu0 0.0
        %4001 = vmatmul.mubr.f32.gmra.mrb[0].mxu0 %v3909
        %v4002 = vpop.f32.mrb[0].mxu0
        %v4003 = vadd.f32 0.0, %v4002
        %v4004 = vpop.f32.mrb[0].mxu0
        %4005 = vmatprep.mubr.f32.mxu0 0.0
        %4006 = vmatmul.mubr.f32.gmra.mrb[0].mxu0 %v3912
        %v4007 = vpop.f32.mrb[0].mxu0
        %v4008 = vadd.f32 0.0, %v4007
        %v4009 = vpop.f32.mrb[0].mxu0
        %4010 = vmatprep.mubr.f32.mxu0 0.0
        %4011 = vmatmul.mubr.f32.gmra.mrb[0].mxu0 %v3915
        %v4012 = vpop.f32.mrb[0].mxu0
        %v4013 = vadd.f32 0.0, %v4012
        %v4014 = vpop.f32.mrb[0].mxu0
        %4015 = vmatprep.mubr.f32.mxu0 0.0
        %4016 = vmatmul.mubr.f32.gmra.mrb[0].mxu0 %v3918
        %v4017 = vpop.f32.mrb[0].mxu0
        %v4018 = vadd.f32 0.0, %v4017
        %v4019 = vpop.f32.mrb[0].mxu0
        %4020 = vmatprep.mubr.f32.mxu0 0.0
        %4021 = vmatmul.mubr.f32.gmra.mrb[0].mxu0 %v3921
        %v4022 = vpop.f32.mrb[0].mxu0
        %v4023 = vadd.f32 0.0, %v4022
        %v4024 = vpop.f32.mrb[0].mxu0
        %4025 = vmatprep.mubr.f32.mxu0 0.0
        %4026 = vmatmul.mubr.f32.gmra.mrb[0].mxu0 %v3924
        %v4027 = vpop.f32.mrb[0].mxu0
        %v4028 = vadd.f32 0.0, %v4027
        %v4029 = vpop.f32.mrb[0].mxu0
        %4030 = vdwg.mxu0
        %v4031 = vadd.f32 %v3894, %v3993
        %v4032 = vadd.f32 %v3895, %v3998
        %v4033 = vadd.f32 %v3896, %v4003
        %v4034 = vadd.f32 %v3897, %v4008
        %v4035 = vadd.f32 %v3898, %v4013
        %v4036 = vadd.f32 %v3899, %v4018
        %v4037 = vadd.f32 %v3900, %v4023
        %v4038 = vadd.f32 %v3901, %v4028
        %4039 = vmatprep.subr.mxu0 0.0
        %4040 = vmatpush1.msra.mxu0 %v2680
        %4041 = vmatprep.subr.mxu0 0.0
        %4042 = vmatpush1.msra.mxu0 %v2681
        %4043 = vmatprep.subr.mxu0 0.0
        %4044 = vmatpush1.msra.mxu0 %v2682
        %4045 = vmatprep.subr.mxu0 0.0
        %4046 = vmatpush1.msra.mxu0 %v2683
        %4047 = vmatprep.subr.mxu0 0.0
        %4048 = vmatpush1.msra.mxu0 %v2684
        %4049 = vmatprep.subr.mxu0 0.0
        %4050 = vmatpush1.msra.mxu0 %v2685
        %4051 = vmatprep.subr.mxu0 0.0
        %4052 = vmatpush1.msra.mxu0 %v2686
        %4053 = vmatprep.subr.mxu0 0.0
        %4054 = vmatpush1.msra.mxu0 %v2687
        %4055 = vmatprep.subr.mxu0 0.0
        %4056 = vmatpush1.msra.mxu0 %v2688
        %4057 = vmatprep.subr.mxu0 0.0
        %4058 = vmatpush1.msra.mxu0 %v2689
        %4059 = vmatprep.subr.mxu0 0.0
        %4060 = vmatpush1.msra.mxu0 %v2690
        %4061 = vmatprep.subr.mxu0 0.0
        %4062 = vmatpush1.msra.mxu0 %v2691
        %4063 = vmatprep.subr.mxu0 0.0
        %4064 = vmatpush1.msra.mxu0 %v2692
        %4065 = vmatprep.subr.mxu0 0.0
        %4066 = vmatpush1.msra.mxu0 %v2693
        %4067 = vmatprep.subr.mxu0 0.0
        %4068 = vmatpush1.msra.mxu0 %v2694
        %4069 = vmatprep.subr.mxu0 0.0
        %4070 = vmatpush1.msra.mxu0 %v2695
        %4071 = vmatprep.subr.mxu0 0.0
        %4072 = vmatpush1.msra.mxu0 0.0
        %4073 = vmatprep.subr.mxu0 0.0
        %4074 = vmatpush1.msra.mxu0 0.0
        %4075 = vmatprep.subr.mxu0 0.0
        %4076 = vmatpush1.msra.mxu0 0.0
        %4077 = vmatprep.subr.mxu0 0.0
        %4078 = vmatpush1.msra.mxu0 0.0
        %4079 = vmatprep.subr.mxu0 0.0
        %4080 = vmatpush1.msra.mxu0 0.0
        %4081 = vmatprep.subr.mxu0 0.0
        %4082 = vmatpush1.msra.mxu0 0.0
        %4083 = vmatprep.subr.mxu0 0.0
        %4084 = vmatpush1.msra.mxu0 0.0
        %4085 = vmatprep.subr.mxu0 0.0
        %4086 = vmatpush1.msra.mxu0 0.0
        %4087 = vmatprep.subr.mxu0 0.0
        %4088 = vmatpush1.msra.mxu0 0.0
        %4089 = vmatprep.subr.mxu0 0.0
        %4090 = vmatpush1.msra.mxu0 0.0
        %4091 = vmatprep.subr.mxu0 0.0
        %4092 = vmatpush1.msra.mxu0 0.0
        %4093 = vmatprep.subr.mxu0 0.0
        %4094 = vmatpush1.msra.mxu0 0.0
        %4095 = vmatprep.subr.mxu0 0.0
        %4096 = vmatpush1.msra.mxu0 0.0
        %4097 = vmatprep.subr.mxu0 0.0
        %4098 = vmatpush1.msra.mxu0 0.0
        %4099 = vmatprep.subr.mxu0 0.0
        %4100 = vmatpush1.msra.mxu0 0.0
        %4101 = vmatprep.subr.mxu0 0.0
        %4102 = vmatpush1.msra.mxu0 0.0
        %4103 = vmatprep.mubr.f32.mxu0 0.0
        %4104 = vmatmul.mubr.f32.gmra.mrb[0].mxu0 %v1970
        %v4105 = vpop.f32.mrb[0].mxu0
        %v4106 = vadd.f32 0.0, %v4105
        %v4107 = vpop.f32.mrb[0].mxu0
        %4108 = vmatprep.mubr.f32.mxu0 0.0
        %4109 = vmatmul.mubr.f32.gmra.mrb[0].mxu0 %v1971
        %v4110 = vpop.f32.mrb[0].mxu0
        %v4111 = vadd.f32 0.0, %v4110
        %v4112 = vpop.f32.mrb[0].mxu0
        %4113 = vdwg.mxu0
        %4114 = vmatprep.subr.mxu0 0.0
        %4115 = vmatpush1.msra.mxu0 %v4106
        %4116 = vmatprep.subr.mxu0 0.0
        %4117 = vmatpush1.msra.mxu0 %v4111
        %4118 = vmatprep.subr.mxu0 0.0
        %4119 = vmatpush1.msra.mxu0 0.0
        %4120 = vmatprep.subr.mxu0 0.0
        %4121 = vmatpush1.msra.mxu0 0.0
        %4122 = vmatprep.subr.mxu0 0.0
        %4123 = vmatpush1.msra.mxu0 0.0
        %4124 = vmatprep.subr.mxu0 0.0
        %4125 = vmatpush1.msra.mxu0 0.0
        %4126 = vmatprep.subr.mxu0 0.0
        %4127 = vmatpush1.msra.mxu0 0.0
        %4128 = vmatprep.subr.mxu0 0.0
        %4129 = vmatpush1.msra.mxu0 0.0
        %4130 = vmatprep.subr.mxu0 0.0
        %4131 = vmatpush1.msra.mxu0 0.0
        %4132 = vmatprep.subr.mxu0 0.0
        %4133 = vmatpush1.msra.mxu0 0.0
        %4134 = vmatprep.subr.mxu0 0.0
        %4135 = vmatpush1.msra.mxu0 0.0
        %4136 = vmatprep.subr.mxu0 0.0
        %4137 = vmatpush1.msra.mxu0 0.0
        %4138 = vmatprep.subr.mxu0 0.0
        %4139 = vmatpush1.msra.mxu0 0.0
        %4140 = vmatprep.subr.mxu0 0.0
        %4141 = vmatpush1.msra.mxu0 0.0
        %4142 = vmatprep.subr.mxu0 0.0
        %4143 = vmatpush1.msra.mxu0 0.0
        %4144 = vmatprep.subr.mxu0 0.0
        %4145 = vmatpush1.msra.mxu0 0.0
        %4146 = vmatprep.subr.mxu0 0.0
        %4147 = vmatpush1.msra.mxu0 0.0
        %4148 = vmatprep.subr.mxu0 0.0
        %4149 = vmatpush1.msra.mxu0 0.0
        %4150 = vmatprep.subr.mxu0 0.0
        %4151 = vmatpush1.msra.mxu0 0.0
        %4152 = vmatprep.subr.mxu0 0.0
        %4153 = vmatpush1.msra.mxu0 0.0
        %4154 = vmatprep.subr.mxu0 0.0
        %4155 = vmatpush1.msra.mxu0 0.0
        %4156 = vmatprep.subr.mxu0 0.0
        %4157 = vmatpush1.msra.mxu0 0.0
        %4158 = vmatprep.subr.mxu0 0.0
        %4159 = vmatpush1.msra.mxu0 0.0
        %4160 = vmatprep.subr.mxu0 0.0
        %4161 = vmatpush1.msra.mxu0 0.0
        %4162 = vmatprep.subr.mxu0 0.0
        %4163 = vmatpush1.msra.mxu0 0.0
        %4164 = vmatprep.subr.mxu0 0.0
        %4165 = vmatpush1.msra.mxu0 0.0
        %4166 = vmatprep.subr.mxu0 0.0
        %4167 = vmatpush1.msra.mxu0 0.0
        %4168 = vmatprep.subr.mxu0 0.0
        %4169 = vmatpush1.msra.mxu0 0.0
        %4170 = vmatprep.subr.mxu0 0.0
        %4171 = vmatpush1.msra.mxu0 0.0
        %4172 = vmatprep.subr.mxu0 0.0
        %4173 = vmatpush1.msra.mxu0 0.0
        %4174 = vmatprep.subr.mxu0 0.0
        %4175 = vmatpush1.msra.mxu0 0.0
        %4176 = vmatprep.subr.mxu0 0.0
        %4177 = vmatpush1.msra.mxu0 0.0
        %4178 = vmatprep.mubr.f32.mxu0 0.0
        %4179 = vmatmul.mubr.f32.gmra.mrb[0].mxu0 %v2772
        %v4180 = vpop.f32.mrb[0].mxu0
        %v4181 = vadd.f32 0.0, %v4180
        %v4182 = vpop.f32.mrb[0].mxu0
        %4183 = vmatprep.mubr.f32.mxu0 0.0
        %4184 = vmatmul.mubr.f32.gmra.mrb[0].mxu0 %v2775
        %v4185 = vpop.f32.mrb[0].mxu0
        %v4186 = vadd.f32 0.0, %v4185
        %v4187 = vpop.f32.mrb[0].mxu0
        %4188 = vmatprep.mubr.f32.mxu0 0.0
        %4189 = vmatmul.mubr.f32.gmra.mrb[0].mxu0 %v2778
        %v4190 = vpop.f32.mrb[0].mxu0
        %v4191 = vadd.f32 0.0, %v4190
        %v4192 = vpop.f32.mrb[0].mxu0
        %4193 = vmatprep.mubr.f32.mxu0 0.0
        %4194 = vmatmul.mubr.f32.gmra.mrb[0].mxu0 %v2781
        %v4195 = vpop.f32.mrb[0].mxu0
        %v4196 = vadd.f32 0.0, %v4195
        %v4197 = vpop.f32.mrb[0].mxu0
        %4198 = vmatprep.mubr.f32.mxu0 0.0
        %4199 = vmatmul.mubr.f32.gmra.mrb[0].mxu0 %v2784
        %v4200 = vpop.f32.mrb[0].mxu0
        %v4201 = vadd.f32 0.0, %v4200
        %v4202 = vpop.f32.mrb[0].mxu0
        %4203 = vmatprep.mubr.f32.mxu0 0.0
        %4204 = vmatmul.mubr.f32.gmra.mrb[0].mxu0 %v2787
        %v4205 = vpop.f32.mrb[0].mxu0
        %v4206 = vadd.f32 0.0, %v4205
        %v4207 = vpop.f32.mrb[0].mxu0
        %4208 = vmatprep.mubr.f32.mxu0 0.0
        %4209 = vmatmul.mubr.f32.gmra.mrb[0].mxu0 %v2790
        %v4210 = vpop.f32.mrb[0].mxu0
        %v4211 = vadd.f32 0.0, %v4210
        %v4212 = vpop.f32.mrb[0].mxu0
        %4213 = vmatprep.mubr.f32.mxu0 0.0
        %4214 = vmatmul.mubr.f32.gmra.mrb[0].mxu0 %v2793
        %v4215 = vpop.f32.mrb[0].mxu0
        %v4216 = vadd.f32 0.0, %v4215
        %v4217 = vpop.f32.mrb[0].mxu0
        %4218 = vdwg.mxu0
        %v4219 = vsel %vm694, %v4181, -inf
        %4220 = vmax.xlane.f32.xlu0 %v4219
        %v4221 = vpop.xlane.xlu0 %4220
        %v4222 = vsel %vm694, %v4186, -inf
        %4223 = vmax.xlane.f32.xlu0 %v4222
        %v4224 = vpop.xlane.xlu0 %4223
        %v4225 = vsel %vm694, %v4191, -inf
        %4226 = vmax.xlane.f32.xlu0 %v4225
        %v4227 = vpop.xlane.xlu0 %4226
        %v4228 = vsel %vm694, %v4196, -inf
        %4229 = vmax.xlane.f32.xlu0 %v4228
        %v4230 = vpop.xlane.xlu0 %4229
        %v4231 = vsel %vm694, %v4201, -inf
        %4232 = vmax.xlane.f32.xlu0 %v4231
        %v4233 = vpop.xlane.xlu0 %4232
        %v4234 = vsel %vm694, %v4206, -inf
        %4235 = vmax.xlane.f32.xlu0 %v4234
        %v4236 = vpop.xlane.xlu0 %4235
        %v4237 = vsel %vm694, %v4211, -inf
        %4238 = vmax.xlane.f32.xlu0 %v4237
        %v4239 = vpop.xlane.xlu0 %4238
        %v4240 = vsel %vm694, %v4216, -inf
        %4241 = vmax.xlane.f32.xlu0 %v4240
        %v4242 = vpop.xlane.xlu0 %4241
        %v4243 = vmax.f32 %v3798, %v4221
        %v4244 = vmax.f32 %v3799, %v4224
        %v4245 = vmax.f32 %v3800, %v4227
        %v4246 = vmax.f32 %v3801, %v4230
        %v4247 = vmax.f32 %v3802, %v4233
        %v4248 = vmax.f32 %v3803, %v4236
        %v4249 = vmax.f32 %v3804, %v4239
        %v4250 = vmax.f32 %v3805, %v4242
        %v4251 = vsub.f32 %v3798, %v4243
        %v4252 = vsub.f32 %v3799, %v4244
        %v4253 = vsub.f32 %v3800, %v4245
        %v4254 = vsub.f32 %v3801, %v4246
        %v4255 = vsub.f32 %v3802, %v4247
        %v4256 = vsub.f32 %v3803, %v4248
        %v4257 = vsub.f32 %v3804, %v4249
        %v4258 = vsub.f32 %v3805, %v4250
        %v4259 = vmul.f32 %v4251, 1.442695
        %v4260 = vpow.pop %v4259
        %v4261 = vmul.f32 %v4252, 1.442695
        %v4262 = vpow.pop %v4261
        %v4263 = vmul.f32 %v4253, 1.442695
        %v4264 = vpow.pop %v4263
        %v4265 = vmul.f32 %v4254, 1.442695
        %v4266 = vpow.pop %v4265
        %v4267 = vmul.f32 %v4255, 1.442695
        %v4268 = vpow.pop %v4267
        %v4269 = vmul.f32 %v4256, 1.442695
        %v4270 = vpow.pop %v4269
        %v4271 = vmul.f32 %v4257, 1.442695
        %v4272 = vpow.pop %v4271
        %v4273 = vmul.f32 %v4258, 1.442695
        %v4274 = vpow.pop %v4273
        %v4275 = vsub.f32 %v4181, %v4243
        %v4276 = vsub.f32 %v4186, %v4244
        %v4277 = vsub.f32 %v4191, %v4245
        %v4278 = vsub.f32 %v4196, %v4246
        %v4279 = vsub.f32 %v4201, %v4247
        %v4280 = vsub.f32 %v4206, %v4248
        %v4281 = vsub.f32 %v4211, %v4249
        %v4282 = vsub.f32 %v4216, %v4250
        %v4283 = vmul.f32 %v4275, 1.442695
        %v4284 = vpow.pop %v4283
        %v4285 = vmul.f32 %v4276, 1.442695
        %v4286 = vpow.pop %v4285
        %v4287 = vmul.f32 %v4277, 1.442695
        %v4288 = vpow.pop %v4287
        %v4289 = vmul.f32 %v4278, 1.442695
        %v4290 = vpow.pop %v4289
        %v4291 = vmul.f32 %v4279, 1.442695
        %v4292 = vpow.pop %v4291
        %v4293 = vmul.f32 %v4280, 1.442695
        %v4294 = vpow.pop %v4293
        %v4295 = vmul.f32 %v4281, 1.442695
        %v4296 = vpow.pop %v4295
        %v4297 = vmul.f32 %v4282, 1.442695
        %v4298 = vpow.pop %v4297
        %v4299 = vmul.f32 %v4260, %v3886
        %v4300 = vmul.f32 %v4262, %v3887
        %v4301 = vmul.f32 %v4264, %v3888
        %v4302 = vmul.f32 %v4266, %v3889
        %v4303 = vmul.f32 %v4268, %v3890
        %v4304 = vmul.f32 %v4270, %v3891
        %v4305 = vmul.f32 %v4272, %v3892
        %v4306 = vmul.f32 %v4274, %v3893
        %v4307 = vsel %vm694, %v4284, 0.0
        %4308 = vadd.xlane.f32.xlu0 %v4307
        %v4309 = vpop.xlane.xlu0 %4308
        %v4310 = vsel %vm694, %v4286, 0.0
        %4311 = vadd.xlane.f32.xlu0 %v4310
        %v4312 = vpop.xlane.xlu0 %4311
        %v4313 = vsel %vm694, %v4288, 0.0
        %4314 = vadd.xlane.f32.xlu0 %v4313
        %v4315 = vpop.xlane.xlu0 %4314
        %v4316 = vsel %vm694, %v4290, 0.0
        %4317 = vadd.xlane.f32.xlu0 %v4316
        %v4318 = vpop.xlane.xlu0 %4317
        %v4319 = vsel %vm694, %v4292, 0.0
        %4320 = vadd.xlane.f32.xlu0 %v4319
        %v4321 = vpop.xlane.xlu0 %4320
        %v4322 = vsel %vm694, %v4294, 0.0
        %4323 = vadd.xlane.f32.xlu0 %v4322
        %v4324 = vpop.xlane.xlu0 %4323
        %v4325 = vsel %vm694, %v4296, 0.0
        %4326 = vadd.xlane.f32.xlu0 %v4325
        %v4327 = vpop.xlane.xlu0 %4326
        %v4328 = vsel %vm694, %v4298, 0.0
        %4329 = vadd.xlane.f32.xlu0 %v4328
        %v4330 = vpop.xlane.xlu0 %4329
        %v4331 = vadd.f32 %v4299, %v4309
        %v4332 = vadd.f32 %v4300, %v4312
        %v4333 = vadd.f32 %v4301, %v4315
        %v4334 = vadd.f32 %v4302, %v4318
        %v4335 = vadd.f32 %v4303, %v4321
        %v4336 = vadd.f32 %v4304, %v4324
        %v4337 = vadd.f32 %v4305, %v4327
        %v4338 = vadd.f32 %v4306, %v4330
        %v4339 = vmul.f32 %v4260, %v4031
        %v4340 = vmul.f32 %v4262, %v4032
        %v4341 = vmul.f32 %v4264, %v4033
        %v4342 = vmul.f32 %v4266, %v4034
        %v4343 = vmul.f32 %v4268, %v4035
        %v4344 = vmul.f32 %v4270, %v4036
        %v4345 = vmul.f32 %v4272, %v4037
        %v4346 = vmul.f32 %v4274, %v4038
        %v4348 = vsel %vm694, %v4284, 0
        %v4351 = vsel %vm694, %v4286, 0
        %v4354 = vsel %vm694, %v4288, 0
        %v4357 = vsel %vm694, %v4290, 0
        %v4360 = vsel %vm694, %v4292, 0
        %v4363 = vsel %vm694, %v4294, 0
        %v4366 = vsel %vm694, %v4296, 0
        %v4369 = vsel %vm694, %v4298, 0
        %4371 = vmatprep.subr.mxu0 0.0
        %4372 = vmatpush1.msra.mxu0 %v2671
        %4373 = vmatprep.subr.mxu0 0.0
        %4374 = vmatpush1.msra.mxu0 %v2676
        %4375 = vmatprep.subr.mxu0 0.0
        %4376 = vmatpush1.msra.mxu0 0.0
        %4377 = vmatprep.subr.mxu0 0.0
        %4378 = vmatpush1.msra.mxu0 0.0
        %4379 = vmatprep.subr.mxu0 0.0
        %4380 = vmatpush1.msra.mxu0 0.0
        %4381 = vmatprep.subr.mxu0 0.0
        %4382 = vmatpush1.msra.mxu0 0.0
        %4383 = vmatprep.subr.mxu0 0.0
        %4384 = vmatpush1.msra.mxu0 0.0
        %4385 = vmatprep.subr.mxu0 0.0
        %4386 = vmatpush1.msra.mxu0 0.0
        %4387 = vmatprep.subr.mxu0 0.0
        %4388 = vmatpush1.msra.mxu0 0.0
        %4389 = vmatprep.subr.mxu0 0.0
        %4390 = vmatpush1.msra.mxu0 0.0
        %4391 = vmatprep.subr.mxu0 0.0
        %4392 = vmatpush1.msra.mxu0 0.0
        %4393 = vmatprep.subr.mxu0 0.0
        %4394 = vmatpush1.msra.mxu0 0.0
        %4395 = vmatprep.subr.mxu0 0.0
        %4396 = vmatpush1.msra.mxu0 0.0
        %4397 = vmatprep.subr.mxu0 0.0
        %4398 = vmatpush1.msra.mxu0 0.0
        %4399 = vmatprep.subr.mxu0 0.0
        %4400 = vmatpush1.msra.mxu0 0.0
        %4401 = vmatprep.subr.mxu0 0.0
        %4402 = vmatpush1.msra.mxu0 0.0
        %4403 = vmatprep.subr.mxu0 0.0
        %4404 = vmatpush1.msra.mxu0 0.0
        %4405 = vmatprep.subr.mxu0 0.0
        %4406 = vmatpush1.msra.mxu0 0.0
        %4407 = vmatprep.subr.mxu0 0.0
        %4408 = vmatpush1.msra.mxu0 0.0
        %4409 = vmatprep.subr.mxu0 0.0
        %4410 = vmatpush1.msra.mxu0 0.0
        %4411 = vmatprep.subr.mxu0 0.0
        %4412 = vmatpush1.msra.mxu0 0.0
        %4413 = vmatprep.subr.mxu0 0.0
        %4414 = vmatpush1.msra.mxu0 0.0
        %4415 = vmatprep.subr.mxu0 0.0
        %4416 = vmatpush1.msra.mxu0 0.0
        %4417 = vmatprep.subr.mxu0 0.0
        %4418 = vmatpush1.msra.mxu0 0.0
        %4419 = vmatprep.subr.mxu0 0.0
        %4420 = vmatpush1.msra.mxu0 0.0
        %4421 = vmatprep.subr.mxu0 0.0
        %4422 = vmatpush1.msra.mxu0 0.0
        %4423 = vmatprep.subr.mxu0 0.0
        %4424 = vmatpush1.msra.mxu0 0.0
        %4425 = vmatprep.subr.mxu0 0.0
        %4426 = vmatpush1.msra.mxu0 0.0
        %4427 = vmatprep.subr.mxu0 0.0
        %4428 = vmatpush1.msra.mxu0 0.0
        %4429 = vmatprep.subr.mxu0 0.0
        %4430 = vmatpush1.msra.mxu0 0.0
        %4431 = vmatprep.subr.mxu0 0.0
        %4432 = vmatpush1.msra.mxu0 0.0
        %4433 = vmatprep.subr.mxu0 0.0
        %4434 = vmatpush1.msra.mxu0 0.0
        %4435 = vmatprep.mubr.f32.mxu0 0.0
        %4436 = vmatmul.mubr.f32.gmra.mrb[0].mxu0 %v4348
        %v4437 = vpop.f32.mrb[0].mxu0
        %v4438 = vadd.f32 0.0, %v4437
        %v4439 = vpop.f32.mrb[0].mxu0
        %4440 = vmatprep.mubr.f32.mxu0 0.0
        %4441 = vmatmul.mubr.f32.gmra.mrb[0].mxu0 %v4351
        %v4442 = vpop.f32.mrb[0].mxu0
        %v4443 = vadd.f32 0.0, %v4442
        %v4444 = vpop.f32.mrb[0].mxu0
        %4445 = vmatprep.mubr.f32.mxu0 0.0
        %4446 = vmatmul.mubr.f32.gmra.mrb[0].mxu0 %v4354
        %v4447 = vpop.f32.mrb[0].mxu0
        %v4448 = vadd.f32 0.0, %v4447
        %v4449 = vpop.f32.mrb[0].mxu0
        %4450 = vmatprep.mubr.f32.mxu0 0.0
        %4451 = vmatmul.mubr.f32.gmra.mrb[0].mxu0 %v4357
        %v4452 = vpop.f32.mrb[0].mxu0
        %v4453 = vadd.f32 0.0, %v4452
        %v4454 = vpop.f32.mrb[0].mxu0
        %4455 = vmatprep.mubr.f32.mxu0 0.0
        %4456 = vmatmul.mubr.f32.gmra.mrb[0].mxu0 %v4360
        %v4457 = vpop.f32.mrb[0].mxu0
        %v4458 = vadd.f32 0.0, %v4457
        %v4459 = vpop.f32.mrb[0].mxu0
        %4460 = vmatprep.mubr.f32.mxu0 0.0
        %4461 = vmatmul.mubr.f32.gmra.mrb[0].mxu0 %v4363
        %v4462 = vpop.f32.mrb[0].mxu0
        %v4463 = vadd.f32 0.0, %v4462
        %v4464 = vpop.f32.mrb[0].mxu0
        %4465 = vmatprep.mubr.f32.mxu0 0.0
        %4466 = vmatmul.mubr.f32.gmra.mrb[0].mxu0 %v4366
        %v4467 = vpop.f32.mrb[0].mxu0
        %v4468 = vadd.f32 0.0, %v4467
        %v4469 = vpop.f32.mrb[0].mxu0
        %4470 = vmatprep.mubr.f32.mxu0 0.0
        %4471 = vmatmul.mubr.f32.gmra.mrb[0].mxu0 %v4369
        %v4472 = vpop.f32.mrb[0].mxu0
        %v4473 = vadd.f32 0.0, %v4472
        %v4474 = vpop.f32.mrb[0].mxu0
        %4475 = vdwg.mxu0
        %v4476 = vadd.f32 %v4339, %v4438
        %v4477 = vadd.f32 %v4340, %v4443
        %v4478 = vadd.f32 %v4341, %v4448
        %v4479 = vadd.f32 %v4342, %v4453
        %v4480 = vadd.f32 %v4343, %v4458
        %v4481 = vadd.f32 %v4344, %v4463
        %v4482 = vadd.f32 %v4345, %v4468
        %v4483 = vadd.f32 %v4346, %v4473
        %v4484 = vrcp.pop %v4331
        %v4485 = vmul.f32 %v4476, %v4484
        %v4486 = vrcp.pop %v4332
        %v4487 = vmul.f32 %v4477, %v4486
        %v4488 = vrcp.pop %v4333
        %v4489 = vmul.f32 %v4478, %v4488
        %v4490 = vrcp.pop %v4334
        %v4491 = vmul.f32 %v4479, %v4490
        %v4492 = vrcp.pop %v4335
        %v4493 = vmul.f32 %v4480, %v4492
        %v4494 = vrcp.pop %v4336
        %v4495 = vmul.f32 %v4481, %v4494
        %v4496 = vrcp.pop %v4337
        %v4497 = vmul.f32 %v4482, %v4496
        %v4498 = vrcp.pop %v4338
        %v4499 = vmul.f32 %v4483, %v4498
        %s4500 = scalar_lea.vmem %s5, 16
        %v4501 = vld [vmem:[%s4500] sm:$0xff]
        %v4502 = vld [vmem:[%s4500 + $0x8] sm:$0xff]
        %v4504 = vsel %vm694, %v4485, 0
        %v4507 = vsel %vm694, %v4487, 0
        %v4510 = vsel %vm694, %v4489, 0
        %v4513 = vsel %vm694, %v4491, 0
        %v4516 = vsel %vm694, %v4493, 0
        %v4519 = vsel %vm694, %v4495, 0
        %v4522 = vsel %vm694, %v4497, 0
        %v4525 = vsel %vm694, %v4499, 0
        %4527 = vmatprep.subr.mxu0 0.0
        %4528 = vmatpush1.msra.mxu0 %v4501
        %4529 = vmatprep.subr.mxu0 0.0
        %4530 = vmatpush1.msra.mxu0 %v4502
        %4531 = vmatprep.subr.mxu0 0.0
        %4532 = vmatpush1.msra.mxu0 0.0
        %4533 = vmatprep.subr.mxu0 0.0
        %4534 = vmatpush1.msra.mxu0 0.0
        %4535 = vmatprep.subr.mxu0 0.0
        %4536 = vmatpush1.msra.mxu0 0.0
        %4537 = vmatprep.subr.mxu0 0.0
        %4538 = vmatpush1.msra.mxu0 0.0
        %4539 = vmatprep.subr.mxu0 0.0
        %4540 = vmatpush1.msra.mxu0 0.0
        %4541 = vmatprep.subr.mxu0 0.0
        %4542 = vmatpush1.msra.mxu0 0.0
        %4543 = vmatprep.subr.mxu0 0.0
        %4544 = vmatpush1.msra.mxu0 0.0
        %4545 = vmatprep.subr.mxu0 0.0
        %4546 = vmatpush1.msra.mxu0 0.0
        %4547 = vmatprep.subr.mxu0 0.0
        %4548 = vmatpush1.msra.mxu0 0.0
        %4549 = vmatprep.subr.mxu0 0.0
        %4550 = vmatpush1.msra.mxu0 0.0
        %4551 = vmatprep.subr.mxu0 0.0
        %4552 = vmatpush1.msra.mxu0 0.0
        %4553 = vmatprep.subr.mxu0 0.0
        %4554 = vmatpush1.msra.mxu0 0.0
        %4555 = vmatprep.subr.mxu0 0.0
        %4556 = vmatpush1.msra.mxu0 0.0
        %4557 = vmatprep.subr.mxu0 0.0
        %4558 = vmatpush1.msra.mxu0 0.0
        %4559 = vmatprep.subr.mxu0 0.0
        %4560 = vmatpush1.msra.mxu0 0.0
        %4561 = vmatprep.subr.mxu0 0.0
        %4562 = vmatpush1.msra.mxu0 0.0
        %4563 = vmatprep.subr.mxu0 0.0
        %4564 = vmatpush1.msra.mxu0 0.0
        %4565 = vmatprep.subr.mxu0 0.0
        %4566 = vmatpush1.msra.mxu0 0.0
        %4567 = vmatprep.subr.mxu0 0.0
        %4568 = vmatpush1.msra.mxu0 0.0
        %4569 = vmatprep.subr.mxu0 0.0
        %4570 = vmatpush1.msra.mxu0 0.0
        %4571 = vmatprep.subr.mxu0 0.0
        %4572 = vmatpush1.msra.mxu0 0.0
        %4573 = vmatprep.subr.mxu0 0.0
        %4574 = vmatpush1.msra.mxu0 0.0
        %4575 = vmatprep.subr.mxu0 0.0
        %4576 = vmatpush1.msra.mxu0 0.0
        %4577 = vmatprep.subr.mxu0 0.0
        %4578 = vmatpush1.msra.mxu0 0.0
        %4579 = vmatprep.subr.mxu0 0.0
        %4580 = vmatpush1.msra.mxu0 0.0
        %4581 = vmatprep.subr.mxu0 0.0
        %4582 = vmatpush1.msra.mxu0 0.0
        %4583 = vmatprep.subr.mxu0 0.0
        %4584 = vmatpush1.msra.mxu0 0.0
        %4585 = vmatprep.subr.mxu0 0.0
        %4586 = vmatpush1.msra.mxu0 0.0
        %4587 = vmatprep.subr.mxu0 0.0
        %4588 = vmatpush1.msra.mxu0 0.0
        %4589 = vmatprep.subr.mxu0 0.0
        %4590 = vmatpush1.msra.mxu0 0.0
        %4591 = vmatprep.mubr.f32.mxu0 0.0
        %4592 = vmatmul.mubr.f32.gmra.mrb[0].mxu0 %v4504
        %v4593 = vpop.f32.mrb[0].mxu0
        %v4594 = vadd.f32 0.0, %v4593
        %v4595 = vpop.f32.mrb[0].mxu0
        %4596 = vmatprep.mubr.f32.mxu0 0.0
        %4597 = vmatmul.mubr.f32.gmra.mrb[0].mxu0 %v4507
        %v4598 = vpop.f32.mrb[0].mxu0
        %v4599 = vadd.f32 0.0, %v4598
        %v4600 = vpop.f32.mrb[0].mxu0
        %4601 = vmatprep.mubr.f32.mxu0 0.0
        %4602 = vmatmul.mubr.f32.gmra.mrb[0].mxu0 %v4510
        %v4603 = vpop.f32.mrb[0].mxu0
        %v4604 = vadd.f32 0.0, %v4603
        %v4605 = vpop.f32.mrb[0].mxu0
        %4606 = vmatprep.mubr.f32.mxu0 0.0
        %4607 = vmatmul.mubr.f32.gmra.mrb[0].mxu0 %v4513
        %v4608 = vpop.f32.mrb[0].mxu0
        %v4609 = vadd.f32 0.0, %v4608
        %v4610 = vpop.f32.mrb[0].mxu0
        %4611 = vmatprep.mubr.f32.mxu0 0.0
        %4612 = vmatmul.mubr.f32.gmra.mrb[0].mxu0 %v4516
        %v4613 = vpop.f32.mrb[0].mxu0
        %v4614 = vadd.f32 0.0, %v4613
        %v4615 = vpop.f32.mrb[0].mxu0
        %4616 = vmatprep.mubr.f32.mxu0 0.0
        %4617 = vmatmul.mubr.f32.gmra.mrb[0].mxu0 %v4519
        %v4618 = vpop.f32.mrb[0].mxu0
        %v4619 = vadd.f32 0.0, %v4618
        %v4620 = vpop.f32.mrb[0].mxu0
        %4621 = vmatprep.mubr.f32.mxu0 0.0
        %4622 = vmatmul.mubr.f32.gmra.mrb[0].mxu0 %v4522
        %v4623 = vpop.f32.mrb[0].mxu0
        %v4624 = vadd.f32 0.0, %v4623
        %v4625 = vpop.f32.mrb[0].mxu0
        %4626 = vmatprep.mubr.f32.mxu0 0.0
        %4627 = vmatmul.mubr.f32.gmra.mrb[0].mxu0 %v4525
        %v4628 = vpop.f32.mrb[0].mxu0
        %v4629 = vadd.f32 0.0, %v4628
        %v4630 = vpop.f32.mrb[0].mxu0
        %4631 = vdwg.mxu0
        %v4633 = vsel %vm694, %v2418, 0
        %v4636 = vsel %vm694, %v2420, 0
        %v4639 = vsel %vm694, %v2422, 0
        %v4642 = vsel %vm694, %v2424, 0
        %v4645 = vsel %vm694, %v2426, 0
        %v4648 = vsel %vm694, %v2428, 0
        %v4651 = vsel %vm694, %v2430, 0
        %v4654 = vsel %vm694, %v2432, 0
        %4656 = vmatprep.subr.mxu0 0.0
        %4657 = vmatpush1.msra.mxu0 %v2433
        %4658 = vmatprep.subr.mxu0 0.0
        %4659 = vmatpush1.msra.mxu0 %v2434
        %4660 = vmatprep.subr.mxu0 0.0
        %4661 = vmatpush1.msra.mxu0 0.0
        %4662 = vmatprep.subr.mxu0 0.0
        %4663 = vmatpush1.msra.mxu0 0.0
        %4664 = vmatprep.subr.mxu0 0.0
        %4665 = vmatpush1.msra.mxu0 0.0
        %4666 = vmatprep.subr.mxu0 0.0
        %4667 = vmatpush1.msra.mxu0 0.0
        %4668 = vmatprep.subr.mxu0 0.0
        %4669 = vmatpush1.msra.mxu0 0.0
        %4670 = vmatprep.subr.mxu0 0.0
        %4671 = vmatpush1.msra.mxu0 0.0
        %4672 = vmatprep.subr.mxu0 0.0
        %4673 = vmatpush1.msra.mxu0 0.0
        %4674 = vmatprep.subr.mxu0 0.0
        %4675 = vmatpush1.msra.mxu0 0.0
        %4676 = vmatprep.subr.mxu0 0.0
        %4677 = vmatpush1.msra.mxu0 0.0
        %4678 = vmatprep.subr.mxu0 0.0
        %4679 = vmatpush1.msra.mxu0 0.0
        %4680 = vmatprep.subr.mxu0 0.0
        %4681 = vmatpush1.msra.mxu0 0.0
        %4682 = vmatprep.subr.mxu0 0.0
        %4683 = vmatpush1.msra.mxu0 0.0
        %4684 = vmatprep.subr.mxu0 0.0
        %4685 = vmatpush1.msra.mxu0 0.0
        %4686 = vmatprep.subr.mxu0 0.0
        %4687 = vmatpush1.msra.mxu0 0.0
        %4688 = vmatprep.subr.mxu0 0.0
        %4689 = vmatpush1.msra.mxu0 0.0
        %4690 = vmatprep.subr.mxu0 0.0
        %4691 = vmatpush1.msra.mxu0 0.0
        %4692 = vmatprep.subr.mxu0 0.0
        %4693 = vmatpush1.msra.mxu0 0.0
        %4694 = vmatprep.subr.mxu0 0.0
        %4695 = vmatpush1.msra.mxu0 0.0
        %4696 = vmatprep.subr.mxu0 0.0
        %4697 = vmatpush1.msra.mxu0 0.0
        %4698 = vmatprep.subr.mxu0 0.0
        %4699 = vmatpush1.msra.mxu0 0.0
        %4700 = vmatprep.subr.mxu0 0.0
        %4701 = vmatpush1.msra.mxu0 0.0
        %4702 = vmatprep.subr.mxu0 0.0
        %4703 = vmatpush1.msra.mxu0 0.0
        %4704 = vmatprep.subr.mxu0 0.0
        %4705 = vmatpush1.msra.mxu0 0.0
        %4706 = vmatprep.subr.mxu0 0.0
        %4707 = vmatpush1.msra.mxu0 0.0
        %4708 = vmatprep.subr.mxu0 0.0
        %4709 = vmatpush1.msra.mxu0 0.0
        %4710 = vmatprep.subr.mxu0 0.0
        %4711 = vmatpush1.msra.mxu0 0.0
        %4712 = vmatprep.subr.mxu0 0.0
        %4713 = vmatpush1.msra.mxu0 0.0
        %4714 = vmatprep.subr.mxu0 0.0
        %4715 = vmatpush1.msra.mxu0 0.0
        %4716 = vmatprep.subr.mxu0 0.0
        %4717 = vmatpush1.msra.mxu0 0.0
        %4718 = vmatprep.subr.mxu0 0.0
        %4719 = vmatpush1.msra.mxu0 0.0
        %4720 = vmatprep.mubr.f32.mxu0 0.0
        %4721 = vmatmul.mubr.f32.gmra.mrb[0].mxu0 %v4633
        %v4722 = vpop.f32.mrb[0].mxu0
        %v4723 = vadd.f32 %v4594, %v4722
        %v4724 = vpop.f32.mrb[0].mxu0
        %4725 = vmatprep.mubr.f32.mxu0 0.0
        %4726 = vmatmul.mubr.f32.gmra.mrb[0].mxu0 %v4636
        %v4727 = vpop.f32.mrb[0].mxu0
        %v4728 = vadd.f32 %v4599, %v4727
        %v4729 = vpop.f32.mrb[0].mxu0
        %4730 = vmatprep.mubr.f32.mxu0 0.0
        %4731 = vmatmul.mubr.f32.gmra.mrb[0].mxu0 %v4639
        %v4732 = vpop.f32.mrb[0].mxu0
        %v4733 = vadd.f32 %v4604, %v4732
        %v4734 = vpop.f32.mrb[0].mxu0
        %4735 = vmatprep.mubr.f32.mxu0 0.0
        %4736 = vmatmul.mubr.f32.gmra.mrb[0].mxu0 %v4642
        %v4737 = vpop.f32.mrb[0].mxu0
        %v4738 = vadd.f32 %v4609, %v4737
        %v4739 = vpop.f32.mrb[0].mxu0
        %4740 = vmatprep.mubr.f32.mxu0 0.0
        %4741 = vmatmul.mubr.f32.gmra.mrb[0].mxu0 %v4645
        %v4742 = vpop.f32.mrb[0].mxu0
        %v4743 = vadd.f32 %v4614, %v4742
        %v4744 = vpop.f32.mrb[0].mxu0
        %4745 = vmatprep.mubr.f32.mxu0 0.0
        %4746 = vmatmul.mubr.f32.gmra.mrb[0].mxu0 %v4648
        %v4747 = vpop.f32.mrb[0].mxu0
        %v4748 = vadd.f32 %v4619, %v4747
        %v4749 = vpop.f32.mrb[0].mxu0
        %4750 = vmatprep.mubr.f32.mxu0 0.0
        %4751 = vmatmul.mubr.f32.gmra.mrb[0].mxu0 %v4651
        %v4752 = vpop.f32.mrb[0].mxu0
        %v4753 = vadd.f32 %v4624, %v4752
        %v4754 = vpop.f32.mrb[0].mxu0
        %4755 = vmatprep.mubr.f32.mxu0 0.0
        %4756 = vmatmul.mubr.f32.gmra.mrb[0].mxu0 %v4654
        %v4757 = vpop.f32.mrb[0].mxu0
        %v4758 = vadd.f32 %v4629, %v4757
        %v4759 = vpop.f32.mrb[0].mxu0
        %4760 = vdwg.mxu0
        %s4761 = scalar_lea.vmem %s2, 256
        %v4762 = vld [vmem:[%s4761] sm:$0xff]
        %v4763 = vld [vmem:[%s4761 + $0x8] sm:$0xff]
        %v4764 = vld [vmem:[%s4761 + $0x10] sm:$0xff]
        %v4765 = vld [vmem:[%s4761 + $0x18] sm:$0xff]
        %v4766 = vld [vmem:[%s4761 + $0x20] sm:$0xff]
        %v4767 = vld [vmem:[%s4761 + $0x28] sm:$0xff]
        %v4768 = vld [vmem:[%s4761 + $0x30] sm:$0xff]
        %v4769 = vld [vmem:[%s4761 + $0x38] sm:$0xff]
        %v4770 = vld [vmem:[%s4761 + $0x40] sm:$0xff]
        %v4771 = vld [vmem:[%s4761 + $0x48] sm:$0xff]
        %v4772 = vld [vmem:[%s4761 + $0x50] sm:$0xff]
        %v4773 = vld [vmem:[%s4761 + $0x58] sm:$0xff]
        %v4774 = vld [vmem:[%s4761 + $0x60] sm:$0xff]
        %v4775 = vld [vmem:[%s4761 + $0x68] sm:$0xff]
        %v4776 = vld [vmem:[%s4761 + $0x70] sm:$0xff]
        %v4777 = vld [vmem:[%s4761 + $0x78] sm:$0xff]
        %4778 = vmatprep.subr.mxu0 0.0
        %4779 = vmatpush1.msra.mxu0 %v4762
        %4780 = vmatprep.subr.mxu0 0.0
        %4781 = vmatpush1.msra.mxu0 %v4763
        %4782 = vmatprep.subr.mxu0 0.0
        %4783 = vmatpush1.msra.mxu0 %v4764
        %4784 = vmatprep.subr.mxu0 0.0
        %4785 = vmatpush1.msra.mxu0 %v4765
        %4786 = vmatprep.subr.mxu0 0.0
        %4787 = vmatpush1.msra.mxu0 %v4766
        %4788 = vmatprep.subr.mxu0 0.0
        %4789 = vmatpush1.msra.mxu0 %v4767
        %4790 = vmatprep.subr.mxu0 0.0
        %4791 = vmatpush1.msra.mxu0 %v4768
        %4792 = vmatprep.subr.mxu0 0.0
        %4793 = vmatpush1.msra.mxu0 %v4769
        %4794 = vmatprep.subr.mxu0 0.0
        %4795 = vmatpush1.msra.mxu0 %v4770
        %4796 = vmatprep.subr.mxu0 0.0
        %4797 = vmatpush1.msra.mxu0 %v4771
        %4798 = vmatprep.subr.mxu0 0.0
        %4799 = vmatpush1.msra.mxu0 %v4772
        %4800 = vmatprep.subr.mxu0 0.0
        %4801 = vmatpush1.msra.mxu0 %v4773
        %4802 = vmatprep.subr.mxu0 0.0
        %4803 = vmatpush1.msra.mxu0 %v4774
        %4804 = vmatprep.subr.mxu0 0.0
        %4805 = vmatpush1.msra.mxu0 %v4775
        %4806 = vmatprep.subr.mxu0 0.0
        %4807 = vmatpush1.msra.mxu0 %v4776
        %4808 = vmatprep.subr.mxu0 0.0
        %4809 = vmatpush1.msra.mxu0 %v4777
        %4810 = vmatprep.subr.mxu0 0.0
        %4811 = vmatpush1.msra.mxu0 0.0
        %4812 = vmatprep.subr.mxu0 0.0
        %4813 = vmatpush1.msra.mxu0 0.0
        %4814 = vmatprep.subr.mxu0 0.0
        %4815 = vmatpush1.msra.mxu0 0.0
        %4816 = vmatprep.subr.mxu0 0.0
        %4817 = vmatpush1.msra.mxu0 0.0
        %4818 = vmatprep.subr.mxu0 0.0
        %4819 = vmatpush1.msra.mxu0 0.0
        %4820 = vmatprep.subr.mxu0 0.0
        %4821 = vmatpush1.msra.mxu0 0.0
        %4822 = vmatprep.subr.mxu0 0.0
        %4823 = vmatpush1.msra.mxu0 0.0
        %4824 = vmatprep.subr.mxu0 0.0
        %4825 = vmatpush1.msra.mxu0 0.0
        %4826 = vmatprep.subr.mxu0 0.0
        %4827 = vmatpush1.msra.mxu0 0.0
        %4828 = vmatprep.subr.mxu0 0.0
        %4829 = vmatpush1.msra.mxu0 0.0
        %4830 = vmatprep.subr.mxu0 0.0
        %4831 = vmatpush1.msra.mxu0 0.0
        %4832 = vmatprep.subr.mxu0 0.0
        %4833 = vmatpush1.msra.mxu0 0.0
        %4834 = vmatprep.subr.mxu0 0.0
        %4835 = vmatpush1.msra.mxu0 0.0
        %4836 = vmatprep.subr.mxu0 0.0
        %4837 = vmatpush1.msra.mxu0 0.0
        %4838 = vmatprep.subr.mxu0 0.0
        %4839 = vmatpush1.msra.mxu0 0.0
        %4840 = vmatprep.subr.mxu0 0.0
        %4841 = vmatpush1.msra.mxu0 0.0
        %4842 = vmatprep.mubr.f32.mxu0 0.0
        %4843 = vmatmul.mubr.f32.gmra.mrb[0].mxu0 %v351
        %v4844 = vpop.f32.mrb[0].mxu0
        %v4845 = vadd.f32 0.0, %v4844
        %v4846 = vpop.f32.mrb[0].mxu0
        %4847 = vmatprep.mubr.f32.mxu0 0.0
        %4848 = vmatmul.mubr.f32.gmra.mrb[0].mxu0 %v352
        %v4849 = vpop.f32.mrb[0].mxu0
        %v4850 = vadd.f32 0.0, %v4849
        %v4851 = vpop.f32.mrb[0].mxu0
        %4852 = vmatprep.mubr.f32.mxu0 0.0
        %4853 = vmatmul.mubr.f32.gmra.mrb[0].mxu0 %v353
        %v4854 = vpop.f32.mrb[0].mxu0
        %v4855 = vadd.f32 0.0, %v4854
        %v4856 = vpop.f32.mrb[0].mxu0
        %4857 = vmatprep.mubr.f32.mxu0 0.0
        %4858 = vmatmul.mubr.f32.gmra.mrb[0].mxu0 %v354
        %v4859 = vpop.f32.mrb[0].mxu0
        %v4860 = vadd.f32 0.0, %v4859
        %v4861 = vpop.f32.mrb[0].mxu0
        %4862 = vmatprep.mubr.f32.mxu0 0.0
        %4863 = vmatmul.mubr.f32.gmra.mrb[0].mxu0 %v355
        %v4864 = vpop.f32.mrb[0].mxu0
        %v4865 = vadd.f32 0.0, %v4864
        %v4866 = vpop.f32.mrb[0].mxu0
        %4867 = vmatprep.mubr.f32.mxu0 0.0
        %4868 = vmatmul.mubr.f32.gmra.mrb[0].mxu0 %v356
        %v4869 = vpop.f32.mrb[0].mxu0
        %v4870 = vadd.f32 0.0, %v4869
        %v4871 = vpop.f32.mrb[0].mxu0
        %4872 = vmatprep.mubr.f32.mxu0 0.0
        %4873 = vmatmul.mubr.f32.gmra.mrb[0].mxu0 %v357
        %v4874 = vpop.f32.mrb[0].mxu0
        %v4875 = vadd.f32 0.0, %v4874
        %v4876 = vpop.f32.mrb[0].mxu0
        %4877 = vmatprep.mubr.f32.mxu0 0.0
        %4878 = vmatmul.mubr.f32.gmra.mrb[0].mxu0 %v358
        %v4879 = vpop.f32.mrb[0].mxu0
        %v4880 = vadd.f32 0.0, %v4879
        %v4881 = vpop.f32.mrb[0].mxu0
        %4882 = vdwg.mxu0
        %s4883 = scalar_lea.vmem %s4, 256
        %v4884 = vld [vmem:[%s4883] sm:$0xff]
        %v4885 = vld [vmem:[%s4883 + $0x8] sm:$0xff]
        %v4886 = vld [vmem:[%s4883 + $0x10] sm:$0xff]
        %v4887 = vld [vmem:[%s4883 + $0x18] sm:$0xff]
        %v4888 = vld [vmem:[%s4883 + $0x20] sm:$0xff]
        %v4889 = vld [vmem:[%s4883 + $0x28] sm:$0xff]
        %v4890 = vld [vmem:[%s4883 + $0x30] sm:$0xff]
        %v4891 = vld [vmem:[%s4883 + $0x38] sm:$0xff]
        %v4892 = vld [vmem:[%s4883 + $0x40] sm:$0xff]
        %v4893 = vld [vmem:[%s4883 + $0x48] sm:$0xff]
        %v4894 = vld [vmem:[%s4883 + $0x50] sm:$0xff]
        %v4895 = vld [vmem:[%s4883 + $0x58] sm:$0xff]
        %v4896 = vld [vmem:[%s4883 + $0x60] sm:$0xff]
        %v4897 = vld [vmem:[%s4883 + $0x68] sm:$0xff]
        %v4898 = vld [vmem:[%s4883 + $0x70] sm:$0xff]
        %v4899 = vld [vmem:[%s4883 + $0x78] sm:$0xff]
        %4900 = vmatprep.subr.mxu0 0.0
        %4901 = vmatpush1.msra.mxu0 %v4884
        %4902 = vmatprep.subr.mxu0 0.0
        %4903 = vmatpush1.msra.mxu0 %v4885
        %4904 = vmatprep.subr.mxu0 0.0
        %4905 = vmatpush1.msra.mxu0 %v4886
        %4906 = vmatprep.subr.mxu0 0.0
        %4907 = vmatpush1.msra.mxu0 %v4887
        %4908 = vmatprep.subr.mxu0 0.0
        %4909 = vmatpush1.msra.mxu0 %v4888
        %4910 = vmatprep.subr.mxu0 0.0
        %4911 = vmatpush1.msra.mxu0 %v4889
        %4912 = vmatprep.subr.mxu0 0.0
        %4913 = vmatpush1.msra.mxu0 %v4890
        %4914 = vmatprep.subr.mxu0 0.0
        %4915 = vmatpush1.msra.mxu0 %v4891
        %4916 = vmatprep.subr.mxu0 0.0
        %4917 = vmatpush1.msra.mxu0 %v4892
        %4918 = vmatprep.subr.mxu0 0.0
        %4919 = vmatpush1.msra.mxu0 %v4893
        %4920 = vmatprep.subr.mxu0 0.0
        %4921 = vmatpush1.msra.mxu0 %v4894
        %4922 = vmatprep.subr.mxu0 0.0
        %4923 = vmatpush1.msra.mxu0 %v4895
        %4924 = vmatprep.subr.mxu0 0.0
        %4925 = vmatpush1.msra.mxu0 %v4896
        %4926 = vmatprep.subr.mxu0 0.0
        %4927 = vmatpush1.msra.mxu0 %v4897
        %4928 = vmatprep.subr.mxu0 0.0
        %4929 = vmatpush1.msra.mxu0 %v4898
        %4930 = vmatprep.subr.mxu0 0.0
        %4931 = vmatpush1.msra.mxu0 %v4899
        %4932 = vmatprep.subr.mxu0 0.0
        %4933 = vmatpush1.msra.mxu0 0.0
        %4934 = vmatprep.subr.mxu0 0.0
        %4935 = vmatpush1.msra.mxu0 0.0
        %4936 = vmatprep.subr.mxu0 0.0
        %4937 = vmatpush1.msra.mxu0 0.0
        %4938 = vmatprep.subr.mxu0 0.0
        %4939 = vmatpush1.msra.mxu0 0.0
        %4940 = vmatprep.subr.mxu0 0.0
        %4941 = vmatpush1.msra.mxu0 0.0
        %4942 = vmatprep.subr.mxu0 0.0
        %4943 = vmatpush1.msra.mxu0 0.0
        %4944 = vmatprep.subr.mxu0 0.0
        %4945 = vmatpush1.msra.mxu0 0.0
        %4946 = vmatprep.subr.mxu0 0.0
        %4947 = vmatpush1.msra.mxu0 0.0
        %4948 = vmatprep.subr.mxu0 0.0
        %4949 = vmatpush1.msra.mxu0 0.0
        %4950 = vmatprep.subr.mxu0 0.0
        %4951 = vmatpush1.msra.mxu0 0.0
        %4952 = vmatprep.subr.mxu0 0.0
        %4953 = vmatpush1.msra.mxu0 0.0
        %4954 = vmatprep.subr.mxu0 0.0
        %4955 = vmatpush1.msra.mxu0 0.0
        %4956 = vmatprep.subr.mxu0 0.0
        %4957 = vmatpush1.msra.mxu0 0.0
        %4958 = vmatprep.subr.mxu0 0.0
        %4959 = vmatpush1.msra.mxu0 0.0
        %4960 = vmatprep.subr.mxu0 0.0
        %4961 = vmatpush1.msra.mxu0 0.0
        %4962 = vmatprep.subr.mxu0 0.0
        %4963 = vmatpush1.msra.mxu0 0.0
        %4964 = vmatprep.mubr.f32.mxu0 0.0
        %4965 = vmatmul.mubr.f32.gmra.mrb[0].mxu0 %v351
        %v4966 = vpop.f32.mrb[0].mxu0
        %v4967 = vadd.f32 0.0, %v4966
        %v4968 = vpop.f32.mrb[0].mxu0
        %4969 = vmatprep.mubr.f32.mxu0 0.0
        %4970 = vmatmul.mubr.f32.gmra.mrb[0].mxu0 %v352
        %v4971 = vpop.f32.mrb[0].mxu0
        %v4972 = vadd.f32 0.0, %v4971
        %v4973 = vpop.f32.mrb[0].mxu0
        %4974 = vmatprep.mubr.f32.mxu0 0.0
        %4975 = vmatmul.mubr.f32.gmra.mrb[0].mxu0 %v353
        %v4976 = vpop.f32.mrb[0].mxu0
        %v4977 = vadd.f32 0.0, %v4976
        %v4978 = vpop.f32.mrb[0].mxu0
        %4979 = vmatprep.mubr.f32.mxu0 0.0
        %4980 = vmatmul.mubr.f32.gmra.mrb[0].mxu0 %v354
        %v4981 = vpop.f32.mrb[0].mxu0
        %v4982 = vadd.f32 0.0, %v4981
        %v4983 = vpop.f32.mrb[0].mxu0
        %4984 = vmatprep.mubr.f32.mxu0 0.0
        %4985 = vmatmul.mubr.f32.gmra.mrb[0].mxu0 %v355
        %v4986 = vpop.f32.mrb[0].mxu0
        %v4987 = vadd.f32 0.0, %v4986
        %v4988 = vpop.f32.mrb[0].mxu0
        %4989 = vmatprep.mubr.f32.mxu0 0.0
        %4990 = vmatmul.mubr.f32.gmra.mrb[0].mxu0 %v356
        %v4991 = vpop.f32.mrb[0].mxu0
        %v4992 = vadd.f32 0.0, %v4991
        %v4993 = vpop.f32.mrb[0].mxu0
        %4994 = vmatprep.mubr.f32.mxu0 0.0
        %4995 = vmatmul.mubr.f32.gmra.mrb[0].mxu0 %v357
        %v4996 = vpop.f32.mrb[0].mxu0
        %v4997 = vadd.f32 0.0, %v4996
        %v4998 = vpop.f32.mrb[0].mxu0
        %4999 = vmatprep.mubr.f32.mxu0 0.0
        %5000 = vmatmul.mubr.f32.gmra.mrb[0].mxu0 %v358
        %v5001 = vpop.f32.mrb[0].mxu0
        %v5002 = vadd.f32 0.0, %v5001
        %v5003 = vpop.f32.mrb[0].mxu0
        %5004 = vdwg.mxu0
        %s5005 = scalar_lea.vmem %s3, 256
        %v5006 = vld [vmem:[%s5005] sm:$0xff]
        %v5007 = vld [vmem:[%s5005 + $0x8] sm:$0xff]
        %v5008 = vld [vmem:[%s5005 + $0x10] sm:$0xff]
        %v5009 = vld [vmem:[%s5005 + $0x18] sm:$0xff]
        %v5010 = vld [vmem:[%s5005 + $0x20] sm:$0xff]
        %v5011 = vld [vmem:[%s5005 + $0x28] sm:$0xff]
        %v5012 = vld [vmem:[%s5005 + $0x30] sm:$0xff]
        %v5013 = vld [vmem:[%s5005 + $0x38] sm:$0xff]
        %v5014 = vld [vmem:[%s5005 + $0x40] sm:$0xff]
        %v5015 = vld [vmem:[%s5005 + $0x48] sm:$0xff]
        %v5016 = vld [vmem:[%s5005 + $0x50] sm:$0xff]
        %v5017 = vld [vmem:[%s5005 + $0x58] sm:$0xff]
        %v5018 = vld [vmem:[%s5005 + $0x60] sm:$0xff]
        %v5019 = vld [vmem:[%s5005 + $0x68] sm:$0xff]
        %v5020 = vld [vmem:[%s5005 + $0x70] sm:$0xff]
        %v5021 = vld [vmem:[%s5005 + $0x78] sm:$0xff]
        %5022 = vmatprep.subr.mxu0 0.0
        %5023 = vmatpush1.msra.mxu0 %v5006
        %5024 = vmatprep.subr.mxu0 0.0
        %5025 = vmatpush1.msra.mxu0 %v5007
        %5026 = vmatprep.subr.mxu0 0.0
        %5027 = vmatpush1.msra.mxu0 %v5008
        %5028 = vmatprep.subr.mxu0 0.0
        %5029 = vmatpush1.msra.mxu0 %v5009
        %5030 = vmatprep.subr.mxu0 0.0
        %5031 = vmatpush1.msra.mxu0 %v5010
        %5032 = vmatprep.subr.mxu0 0.0
        %5033 = vmatpush1.msra.mxu0 %v5011
        %5034 = vmatprep.subr.mxu0 0.0
        %5035 = vmatpush1.msra.mxu0 %v5012
        %5036 = vmatprep.subr.mxu0 0.0
        %5037 = vmatpush1.msra.mxu0 %v5013
        %5038 = vmatprep.subr.mxu0 0.0
        %5039 = vmatpush1.msra.mxu0 %v5014
        %5040 = vmatprep.subr.mxu0 0.0
        %5041 = vmatpush1.msra.mxu0 %v5015
        %5042 = vmatprep.subr.mxu0 0.0
        %5043 = vmatpush1.msra.mxu0 %v5016
        %5044 = vmatprep.subr.mxu0 0.0
        %5045 = vmatpush1.msra.mxu0 %v5017
        %5046 = vmatprep.subr.mxu0 0.0
        %5047 = vmatpush1.msra.mxu0 %v5018
        %5048 = vmatprep.subr.mxu0 0.0
        %5049 = vmatpush1.msra.mxu0 %v5019
        %5050 = vmatprep.subr.mxu0 0.0
        %5051 = vmatpush1.msra.mxu0 %v5020
        %5052 = vmatprep.subr.mxu0 0.0
        %5053 = vmatpush1.msra.mxu0 %v5021
        %5054 = vmatprep.subr.mxu0 0.0
        %5055 = vmatpush1.msra.mxu0 0.0
        %5056 = vmatprep.subr.mxu0 0.0
        %5057 = vmatpush1.msra.mxu0 0.0
        %5058 = vmatprep.subr.mxu0 0.0
        %5059 = vmatpush1.msra.mxu0 0.0
        %5060 = vmatprep.subr.mxu0 0.0
        %5061 = vmatpush1.msra.mxu0 0.0
        %5062 = vmatprep.subr.mxu0 0.0
        %5063 = vmatpush1.msra.mxu0 0.0
        %5064 = vmatprep.subr.mxu0 0.0
        %5065 = vmatpush1.msra.mxu0 0.0
        %5066 = vmatprep.subr.mxu0 0.0
        %5067 = vmatpush1.msra.mxu0 0.0
        %5068 = vmatprep.subr.mxu0 0.0
        %5069 = vmatpush1.msra.mxu0 0.0
        %5070 = vmatprep.subr.mxu0 0.0
        %5071 = vmatpush1.msra.mxu0 0.0
        %5072 = vmatprep.subr.mxu0 0.0
        %5073 = vmatpush1.msra.mxu0 0.0
        %5074 = vmatprep.subr.mxu0 0.0
        %5075 = vmatpush1.msra.mxu0 0.0
        %5076 = vmatprep.subr.mxu0 0.0
        %5077 = vmatpush1.msra.mxu0 0.0
        %5078 = vmatprep.subr.mxu0 0.0
        %5079 = vmatpush1.msra.mxu0 0.0
        %5080 = vmatprep.subr.mxu0 0.0
        %5081 = vmatpush1.msra.mxu0 0.0
        %5082 = vmatprep.subr.mxu0 0.0
        %5083 = vmatpush1.msra.mxu0 0.0
        %5084 = vmatprep.subr.mxu0 0.0
        %5085 = vmatpush1.msra.mxu0 0.0
        %5086 = vmatprep.mubr.f32.mxu0 0.0
        %5087 = vmatmul.mubr.f32.gmra.mrb[0].mxu0 %v601
        %v5088 = vpop.f32.mrb[0].mxu0
        %v5089 = vadd.f32 0.0, %v5088
        %v5090 = vpop.f32.mrb[0].mxu0
        %5091 = vmatprep.mubr.f32.mxu0 0.0
        %5092 = vmatmul.mubr.f32.gmra.mrb[0].mxu0 %v602
        %v5093 = vpop.f32.mrb[0].mxu0
        %v5094 = vadd.f32 0.0, %v5093
        %v5095 = vpop.f32.mrb[0].mxu0
        %5096 = vdwg.mxu0
        %v5098 = vsel %vm694, %v4845, 0
        %v5101 = vsel %vm694, %v4850, 0
        %v5104 = vsel %vm694, %v4855, 0
        %v5107 = vsel %vm694, %v4860, 0
        %v5110 = vsel %vm694, %v4865, 0
        %v5113 = vsel %vm694, %v4870, 0
        %v5116 = vsel %vm694, %v4875, 0
        %v5119 = vsel %vm694, %v4880, 0
        %5121 = vmatprep.subr.mxu0 0.0
        %5122 = vmatpush1.msra.mxu0 %v5089
        %5123 = vmatprep.subr.mxu0 0.0
        %5124 = vmatpush1.msra.mxu0 %v5094
        %5125 = vmatprep.subr.mxu0 0.0
        %5126 = vmatpush1.msra.mxu0 0.0
        %5127 = vmatprep.subr.mxu0 0.0
        %5128 = vmatpush1.msra.mxu0 0.0
        %5129 = vmatprep.subr.mxu0 0.0
        %5130 = vmatpush1.msra.mxu0 0.0
        %5131 = vmatprep.subr.mxu0 0.0
        %5132 = vmatpush1.msra.mxu0 0.0
        %5133 = vmatprep.subr.mxu0 0.0
        %5134 = vmatpush1.msra.mxu0 0.0
        %5135 = vmatprep.subr.mxu0 0.0
        %5136 = vmatpush1.msra.mxu0 0.0
        %5137 = vmatprep.subr.mxu0 0.0
        %5138 = vmatpush1.msra.mxu0 0.0
        %5139 = vmatprep.subr.mxu0 0.0
        %5140 = vmatpush1.msra.mxu0 0.0
        %5141 = vmatprep.subr.mxu0 0.0
        %5142 = vmatpush1.msra.mxu0 0.0
        %5143 = vmatprep.subr.mxu0 0.0
        %5144 = vmatpush1.msra.mxu0 0.0
        %5145 = vmatprep.subr.mxu0 0.0
        %5146 = vmatpush1.msra.mxu0 0.0
        %5147 = vmatprep.subr.mxu0 0.0
        %5148 = vmatpush1.msra.mxu0 0.0
        %5149 = vmatprep.subr.mxu0 0.0
        %5150 = vmatpush1.msra.mxu0 0.0
        %5151 = vmatprep.subr.mxu0 0.0
        %5152 = vmatpush1.msra.mxu0 0.0
        %5153 = vmatprep.subr.mxu0 0.0
        %5154 = vmatpush1.msra.mxu0 0.0
        %5155 = vmatprep.subr.mxu0 0.0
        %5156 = vmatpush1.msra.mxu0 0.0
        %5157 = vmatprep.subr.mxu0 0.0
        %5158 = vmatpush1.msra.mxu0 0.0
        %5159 = vmatprep.subr.mxu0 0.0
        %5160 = vmatpush1.msra.mxu0 0.0
        %5161 = vmatprep.subr.mxu0 0.0
        %5162 = vmatpush1.msra.mxu0 0.0
        %5163 = vmatprep.subr.mxu0 0.0
        %5164 = vmatpush1.msra.mxu0 0.0
        %5165 = vmatprep.subr.mxu0 0.0
        %5166 = vmatpush1.msra.mxu0 0.0
        %5167 = vmatprep.subr.mxu0 0.0
        %5168 = vmatpush1.msra.mxu0 0.0
        %5169 = vmatprep.subr.mxu0 0.0
        %5170 = vmatpush1.msra.mxu0 0.0
        %5171 = vmatprep.subr.mxu0 0.0
        %5172 = vmatpush1.msra.mxu0 0.0
        %5173 = vmatprep.subr.mxu0 0.0
        %5174 = vmatpush1.msra.mxu0 0.0
        %5175 = vmatprep.subr.mxu0 0.0
        %5176 = vmatpush1.msra.mxu0 0.0
        %5177 = vmatprep.subr.mxu0 0.0
        %5178 = vmatpush1.msra.mxu0 0.0
        %5179 = vmatprep.subr.mxu0 0.0
        %5180 = vmatpush1.msra.mxu0 0.0
        %5181 = vmatprep.subr.mxu0 0.0
        %5182 = vmatpush1.msra.mxu0 0.0
        %5183 = vmatprep.subr.mxu0 0.0
        %5184 = vmatpush1.msra.mxu0 0.0
        %5185 = vmatprep.mubr.f32.mxu0 0.0
        %5186 = vmatmul.mubr.f32.gmra.mrb[0].mxu0 %v5098
        %v5187 = vpop.f32.mrb[0].mxu0
        %v5188 = vadd.f32 0.0, %v5187
        %v5189 = vpop.f32.mrb[0].mxu0
        %5190 = vmatprep.mubr.f32.mxu0 0.0
        %5191 = vmatmul.mubr.f32.gmra.mrb[0].mxu0 %v5101
        %v5192 = vpop.f32.mrb[0].mxu0
        %v5193 = vadd.f32 0.0, %v5192
        %v5194 = vpop.f32.mrb[0].mxu0
        %5195 = vmatprep.mubr.f32.mxu0 0.0
        %5196 = vmatmul.mubr.f32.gmra.mrb[0].mxu0 %v5104
        %v5197 = vpop.f32.mrb[0].mxu0
        %v5198 = vadd.f32 0.0, %v5197
        %v5199 = vpop.f32.mrb[0].mxu0
        %5200 = vmatprep.mubr.f32.mxu0 0.0
        %5201 = vmatmul.mubr.f32.gmra.mrb[0].mxu0 %v5107
        %v5202 = vpop.f32.mrb[0].mxu0
        %v5203 = vadd.f32 0.0, %v5202
        %v5204 = vpop.f32.mrb[0].mxu0
        %5205 = vmatprep.mubr.f32.mxu0 0.0
        %5206 = vmatmul.mubr.f32.gmra.mrb[0].mxu0 %v5110
        %v5207 = vpop.f32.mrb[0].mxu0
        %v5208 = vadd.f32 0.0, %v5207
        %v5209 = vpop.f32.mrb[0].mxu0
        %5210 = vmatprep.mubr.f32.mxu0 0.0
        %5211 = vmatmul.mubr.f32.gmra.mrb[0].mxu0 %v5113
        %v5212 = vpop.f32.mrb[0].mxu0
        %v5213 = vadd.f32 0.0, %v5212
        %v5214 = vpop.f32.mrb[0].mxu0
        %5215 = vmatprep.mubr.f32.mxu0 0.0
        %5216 = vmatmul.mubr.f32.gmra.mrb[0].mxu0 %v5116
        %v5217 = vpop.f32.mrb[0].mxu0
        %v5218 = vadd.f32 0.0, %v5217
        %v5219 = vpop.f32.mrb[0].mxu0
        %5220 = vmatprep.mubr.f32.mxu0 0.0
        %5221 = vmatmul.mubr.f32.gmra.mrb[0].mxu0 %v5119
        %v5222 = vpop.f32.mrb[0].mxu0
        %v5223 = vadd.f32 0.0, %v5222
        %v5224 = vpop.f32.mrb[0].mxu0
        %5225 = vdwg.mxu0
        %v5226 = vsel %vm694, %v5188, -inf
        %5227 = vmax.xlane.f32.xlu0 %v5226
        %v5228 = vpop.xlane.xlu0 %5227
        %v5229 = vsel %vm694, %v5193, -inf
        %5230 = vmax.xlane.f32.xlu0 %v5229
        %v5231 = vpop.xlane.xlu0 %5230
        %v5232 = vsel %vm694, %v5198, -inf
        %5233 = vmax.xlane.f32.xlu0 %v5232
        %v5234 = vpop.xlane.xlu0 %5233
        %v5235 = vsel %vm694, %v5203, -inf
        %5236 = vmax.xlane.f32.xlu0 %v5235
        %v5237 = vpop.xlane.xlu0 %5236
        %v5238 = vsel %vm694, %v5208, -inf
        %5239 = vmax.xlane.f32.xlu0 %v5238
        %v5240 = vpop.xlane.xlu0 %5239
        %v5241 = vsel %vm694, %v5213, -inf
        %5242 = vmax.xlane.f32.xlu0 %v5241
        %v5243 = vpop.xlane.xlu0 %5242
        %v5244 = vsel %vm694, %v5218, -inf
        %5245 = vmax.xlane.f32.xlu0 %v5244
        %v5246 = vpop.xlane.xlu0 %5245
        %v5247 = vsel %vm694, %v5223, -inf
        %5248 = vmax.xlane.f32.xlu0 %v5247
        %v5249 = vpop.xlane.xlu0 %5248
        %v5250 = vsub.f32 -inf, %v5228
        %v5251 = vsub.f32 -inf, %v5231
        %v5252 = vsub.f32 -inf, %v5234
        %v5253 = vsub.f32 -inf, %v5237
        %v5254 = vsub.f32 -inf, %v5240
        %v5255 = vsub.f32 -inf, %v5243
        %v5256 = vsub.f32 -inf, %v5246
        %v5257 = vsub.f32 -inf, %v5249
        %v5258 = vmul.f32 %v5250, 1.442695
        %v5259 = vpow.pop %v5258
        %v5260 = vmul.f32 %v5251, 1.442695
        %v5261 = vpow.pop %v5260
        %v5262 = vmul.f32 %v5252, 1.442695
        %v5263 = vpow.pop %v5262
        %v5264 = vmul.f32 %v5253, 1.442695
        %v5265 = vpow.pop %v5264
        %v5266 = vmul.f32 %v5254, 1.442695
        %v5267 = vpow.pop %v5266
        %v5268 = vmul.f32 %v5255, 1.442695
        %v5269 = vpow.pop %v5268
        %v5270 = vmul.f32 %v5256, 1.442695
        %v5271 = vpow.pop %v5270
        %v5272 = vmul.f32 %v5257, 1.442695
        %v5273 = vpow.pop %v5272
        %v5274 = vsub.f32 %v5188, %v5228
        %v5275 = vsub.f32 %v5193, %v5231
        %v5276 = vsub.f32 %v5198, %v5234
        %v5277 = vsub.f32 %v5203, %v5237
        %v5278 = vsub.f32 %v5208, %v5240
        %v5279 = vsub.f32 %v5213, %v5243
        %v5280 = vsub.f32 %v5218, %v5246
        %v5281 = vsub.f32 %v5223, %v5249
        %v5282 = vmul.f32 %v5274, 1.442695
        %v5283 = vpow.pop %v5282
        %v5284 = vmul.f32 %v5275, 1.442695
        %v5285 = vpow.pop %v5284
        %v5286 = vmul.f32 %v5276, 1.442695
        %v5287 = vpow.pop %v5286
        %v5288 = vmul.f32 %v5277, 1.442695
        %v5289 = vpow.pop %v5288
        %v5290 = vmul.f32 %v5278, 1.442695
        %v5291 = vpow.pop %v5290
        %v5292 = vmul.f32 %v5279, 1.442695
        %v5293 = vpow.pop %v5292
        %v5294 = vmul.f32 %v5280, 1.442695
        %v5295 = vpow.pop %v5294
        %v5296 = vmul.f32 %v5281, 1.442695
        %v5297 = vpow.pop %v5296
        %v5298 = vmul.f32 %v5259, 0.0
        %v5299 = vmul.f32 %v5261, 0.0
        %v5300 = vmul.f32 %v5263, 0.0
        %v5301 = vmul.f32 %v5265, 0.0
        %v5302 = vmul.f32 %v5267, 0.0
        %v5303 = vmul.f32 %v5269, 0.0
        %v5304 = vmul.f32 %v5271, 0.0
        %v5305 = vmul.f32 %v5273, 0.0
        %v5306 = vsel %vm694, %v5283, 0.0
        %5307 = vadd.xlane.f32.xlu0 %v5306
        %v5308 = vpop.xlane.xlu0 %5307
        %v5309 = vsel %vm694, %v5285, 0.0
        %5310 = vadd.xlane.f32.xlu0 %v5309
        %v5311 = vpop.xlane.xlu0 %5310
        %v5312 = vsel %vm694, %v5287, 0.0
        %5313 = vadd.xlane.f32.xlu0 %v5312
        %v5314 = vpop.xlane.xlu0 %5313
        %v5315 = vsel %vm694, %v5289, 0.0
        %5316 = vadd.xlane.f32.xlu0 %v5315
        %v5317 = vpop.xlane.xlu0 %5316
        %v5318 = vsel %vm694, %v5291, 0.0
        %5319 = vadd.xlane.f32.xlu0 %v5318
        %v5320 = vpop.xlane.xlu0 %5319
        %v5321 = vsel %vm694, %v5293, 0.0
        %5322 = vadd.xlane.f32.xlu0 %v5321
        %v5323 = vpop.xlane.xlu0 %5322
        %v5324 = vsel %vm694, %v5295, 0.0
        %5325 = vadd.xlane.f32.xlu0 %v5324
        %v5326 = vpop.xlane.xlu0 %5325
        %v5327 = vsel %vm694, %v5297, 0.0
        %5328 = vadd.xlane.f32.xlu0 %v5327
        %v5329 = vpop.xlane.xlu0 %5328
        %v5330 = vadd.f32 %v5298, %v5308
        %v5331 = vadd.f32 %v5299, %v5311
        %v5332 = vadd.f32 %v5300, %v5314
        %v5333 = vadd.f32 %v5301, %v5317
        %v5334 = vadd.f32 %v5302, %v5320
        %v5335 = vadd.f32 %v5303, %v5323
        %v5336 = vadd.f32 %v5304, %v5326
        %v5337 = vadd.f32 %v5305, %v5329
        %v5339 = vsel %vm694, %v5283, 0
        %v5342 = vsel %vm694, %v5285, 0
        %v5345 = vsel %vm694, %v5287, 0
        %v5348 = vsel %vm694, %v5289, 0
        %v5351 = vsel %vm694, %v5291, 0
        %v5354 = vsel %vm694, %v5293, 0
        %v5357 = vsel %vm694, %v5295, 0
        %v5360 = vsel %vm694, %v5297, 0
        %5362 = vmatprep.subr.mxu0 0.0
        %5363 = vmatpush1.msra.mxu0 %v4967
        %5364 = vmatprep.subr.mxu0 0.0
        %5365 = vmatpush1.msra.mxu0 %v4972
        %5366 = vmatprep.subr.mxu0 0.0
        %5367 = vmatpush1.msra.mxu0 0.0
        %5368 = vmatprep.subr.mxu0 0.0
        %5369 = vmatpush1.msra.mxu0 0.0
        %5370 = vmatprep.subr.mxu0 0.0
        %5371 = vmatpush1.msra.mxu0 0.0
        %5372 = vmatprep.subr.mxu0 0.0
        %5373 = vmatpush1.msra.mxu0 0.0
        %5374 = vmatprep.subr.mxu0 0.0
        %5375 = vmatpush1.msra.mxu0 0.0
        %5376 = vmatprep.subr.mxu0 0.0
        %5377 = vmatpush1.msra.mxu0 0.0
        %5378 = vmatprep.subr.mxu0 0.0
        %5379 = vmatpush1.msra.mxu0 0.0
        %5380 = vmatprep.subr.mxu0 0.0
        %5381 = vmatpush1.msra.mxu0 0.0
        %5382 = vmatprep.subr.mxu0 0.0
        %5383 = vmatpush1.msra.mxu0 0.0
        %5384 = vmatprep.subr.mxu0 0.0
        %5385 = vmatpush1.msra.mxu0 0.0
        %5386 = vmatprep.subr.mxu0 0.0
        %5387 = vmatpush1.msra.mxu0 0.0
        %5388 = vmatprep.subr.mxu0 0.0
        %5389 = vmatpush1.msra.mxu0 0.0
        %5390 = vmatprep.subr.mxu0 0.0
        %5391 = vmatpush1.msra.mxu0 0.0
        %5392 = vmatprep.subr.mxu0 0.0
        %5393 = vmatpush1.msra.mxu0 0.0
        %5394 = vmatprep.subr.mxu0 0.0
        %5395 = vmatpush1.msra.mxu0 0.0
        %5396 = vmatprep.subr.mxu0 0.0
        %5397 = vmatpush1.msra.mxu0 0.0
        %5398 = vmatprep.subr.mxu0 0.0
        %5399 = vmatpush1.msra.mxu0 0.0
        %5400 = vmatprep.subr.mxu0 0.0
        %5401 = vmatpush1.msra.mxu0 0.0
        %5402 = vmatprep.subr.mxu0 0.0
        %5403 = vmatpush1.msra.mxu0 0.0
        %5404 = vmatprep.subr.mxu0 0.0
        %5405 = vmatpush1.msra.mxu0 0.0
        %5406 = vmatprep.subr.mxu0 0.0
        %5407 = vmatpush1.msra.mxu0 0.0
        %5408 = vmatprep.subr.mxu0 0.0
        %5409 = vmatpush1.msra.mxu0 0.0
        %5410 = vmatprep.subr.mxu0 0.0
        %5411 = vmatpush1.msra.mxu0 0.0
        %5412 = vmatprep.subr.mxu0 0.0
        %5413 = vmatpush1.msra.mxu0 0.0
        %5414 = vmatprep.subr.mxu0 0.0
        %5415 = vmatpush1.msra.mxu0 0.0
        %5416 = vmatprep.subr.mxu0 0.0
        %5417 = vmatpush1.msra.mxu0 0.0
        %5418 = vmatprep.subr.mxu0 0.0
        %5419 = vmatpush1.msra.mxu0 0.0
        %5420 = vmatprep.subr.mxu0 0.0
        %5421 = vmatpush1.msra.mxu0 0.0
        %5422 = vmatprep.subr.mxu0 0.0
        %5423 = vmatpush1.msra.mxu0 0.0
        %5424 = vmatprep.subr.mxu0 0.0
        %5425 = vmatpush1.msra.mxu0 0.0
        %5426 = vmatprep.mubr.f32.mxu0 0.0
        %5427 = vmatmul.mubr.f32.gmra.mrb[0].mxu0 %v5339
        %v5428 = vpop.f32.mrb[0].mxu0
        %v5429 = vadd.f32 0.0, %v5428
        %v5430 = vpop.f32.mrb[0].mxu0
        %5431 = vmatprep.mubr.f32.mxu0 0.0
        %5432 = vmatmul.mubr.f32.gmra.mrb[0].mxu0 %v5342
        %v5433 = vpop.f32.mrb[0].mxu0
        %v5434 = vadd.f32 0.0, %v5433
        %v5435 = vpop.f32.mrb[0].mxu0
        %5436 = vmatprep.mubr.f32.mxu0 0.0
        %5437 = vmatmul.mubr.f32.gmra.mrb[0].mxu0 %v5345
        %v5438 = vpop.f32.mrb[0].mxu0
        %v5439 = vadd.f32 0.0, %v5438
        %v5440 = vpop.f32.mrb[0].mxu0
        %5441 = vmatprep.mubr.f32.mxu0 0.0
        %5442 = vmatmul.mubr.f32.gmra.mrb[0].mxu0 %v5348
        %v5443 = vpop.f32.mrb[0].mxu0
        %v5444 = vadd.f32 0.0, %v5443
        %v5445 = vpop.f32.mrb[0].mxu0
        %5446 = vmatprep.mubr.f32.mxu0 0.0
        %5447 = vmatmul.mubr.f32.gmra.mrb[0].mxu0 %v5351
        %v5448 = vpop.f32.mrb[0].mxu0
        %v5449 = vadd.f32 0.0, %v5448
        %v5450 = vpop.f32.mrb[0].mxu0
        %5451 = vmatprep.mubr.f32.mxu0 0.0
        %5452 = vmatmul.mubr.f32.gmra.mrb[0].mxu0 %v5354
        %v5453 = vpop.f32.mrb[0].mxu0
        %v5454 = vadd.f32 0.0, %v5453
        %v5455 = vpop.f32.mrb[0].mxu0
        %5456 = vmatprep.mubr.f32.mxu0 0.0
        %5457 = vmatmul.mubr.f32.gmra.mrb[0].mxu0 %v5357
        %v5458 = vpop.f32.mrb[0].mxu0
        %v5459 = vadd.f32 0.0, %v5458
        %v5460 = vpop.f32.mrb[0].mxu0
        %5461 = vmatprep.mubr.f32.mxu0 0.0
        %5462 = vmatmul.mubr.f32.gmra.mrb[0].mxu0 %v5360
        %v5463 = vpop.f32.mrb[0].mxu0
        %v5464 = vadd.f32 0.0, %v5463
        %v5465 = vpop.f32.mrb[0].mxu0
        %5466 = vdwg.mxu0
        %v5467 = vadd.f32 %v5298, %v5429
        %v5468 = vadd.f32 %v5299, %v5434
        %v5469 = vadd.f32 %v5300, %v5439
        %v5470 = vadd.f32 %v5301, %v5444
        %v5471 = vadd.f32 %v5302, %v5449
        %v5472 = vadd.f32 %v5303, %v5454
        %v5473 = vadd.f32 %v5304, %v5459
        %v5474 = vadd.f32 %v5305, %v5464
        %5475 = vmatprep.subr.mxu0 0.0
        %5476 = vmatpush1.msra.mxu0 %v5006
        %5477 = vmatprep.subr.mxu0 0.0
        %5478 = vmatpush1.msra.mxu0 %v5007
        %5479 = vmatprep.subr.mxu0 0.0
        %5480 = vmatpush1.msra.mxu0 %v5008
        %5481 = vmatprep.subr.mxu0 0.0
        %5482 = vmatpush1.msra.mxu0 %v5009
        %5483 = vmatprep.subr.mxu0 0.0
        %5484 = vmatpush1.msra.mxu0 %v5010
        %5485 = vmatprep.subr.mxu0 0.0
        %5486 = vmatpush1.msra.mxu0 %v5011
        %5487 = vmatprep.subr.mxu0 0.0
        %5488 = vmatpush1.msra.mxu0 %v5012
        %5489 = vmatprep.subr.mxu0 0.0
        %5490 = vmatpush1.msra.mxu0 %v5013
        %5491 = vmatprep.subr.mxu0 0.0
        %5492 = vmatpush1.msra.mxu0 %v5014
        %5493 = vmatprep.subr.mxu0 0.0
        %5494 = vmatpush1.msra.mxu0 %v5015
        %5495 = vmatprep.subr.mxu0 0.0
        %5496 = vmatpush1.msra.mxu0 %v5016
        %5497 = vmatprep.subr.mxu0 0.0
        %5498 = vmatpush1.msra.mxu0 %v5017
        %5499 = vmatprep.subr.mxu0 0.0
        %5500 = vmatpush1.msra.mxu0 %v5018
        %5501 = vmatprep.subr.mxu0 0.0
        %5502 = vmatpush1.msra.mxu0 %v5019
        %5503 = vmatprep.subr.mxu0 0.0
        %5504 = vmatpush1.msra.mxu0 %v5020
        %5505 = vmatprep.subr.mxu0 0.0
        %5506 = vmatpush1.msra.mxu0 %v5021
        %5507 = vmatprep.subr.mxu0 0.0
        %5508 = vmatpush1.msra.mxu0 0.0
        %5509 = vmatprep.subr.mxu0 0.0
        %5510 = vmatpush1.msra.mxu0 0.0
        %5511 = vmatprep.subr.mxu0 0.0
        %5512 = vmatpush1.msra.mxu0 0.0
        %5513 = vmatprep.subr.mxu0 0.0
        %5514 = vmatpush1.msra.mxu0 0.0
        %5515 = vmatprep.subr.mxu0 0.0
        %5516 = vmatpush1.msra.mxu0 0.0
        %5517 = vmatprep.subr.mxu0 0.0
        %5518 = vmatpush1.msra.mxu0 0.0
        %5519 = vmatprep.subr.mxu0 0.0
        %5520 = vmatpush1.msra.mxu0 0.0
        %5521 = vmatprep.subr.mxu0 0.0
        %5522 = vmatpush1.msra.mxu0 0.0
        %5523 = vmatprep.subr.mxu0 0.0
        %5524 = vmatpush1.msra.mxu0 0.0
        %5525 = vmatprep.subr.mxu0 0.0
        %5526 = vmatpush1.msra.mxu0 0.0
        %5527 = vmatprep.subr.mxu0 0.0
        %5528 = vmatpush1.msra.mxu0 0.0
        %5529 = vmatprep.subr.mxu0 0.0
        %5530 = vmatpush1.msra.mxu0 0.0
        %5531 = vmatprep.subr.mxu0 0.0
        %5532 = vmatpush1.msra.mxu0 0.0
        %5533 = vmatprep.subr.mxu0 0.0
        %5534 = vmatpush1.msra.mxu0 0.0
        %5535 = vmatprep.subr.mxu0 0.0
        %5536 = vmatpush1.msra.mxu0 0.0
        %5537 = vmatprep.subr.mxu0 0.0
        %5538 = vmatpush1.msra.mxu0 0.0
        %5539 = vmatprep.mubr.f32.mxu0 0.0
        %5540 = vmatmul.mubr.f32.gmra.mrb[0].mxu0 %v1074
        %v5541 = vpop.f32.mrb[0].mxu0
        %v5542 = vadd.f32 0.0, %v5541
        %v5543 = vpop.f32.mrb[0].mxu0
        %5544 = vmatprep.mubr.f32.mxu0 0.0
        %5545 = vmatmul.mubr.f32.gmra.mrb[0].mxu0 %v1075
        %v5546 = vpop.f32.mrb[0].mxu0
        %v5547 = vadd.f32 0.0, %v5546
        %v5548 = vpop.f32.mrb[0].mxu0
        %5549 = vdwg.mxu0
        %5550 = vmatprep.subr.mxu0 0.0
        %5551 = vmatpush1.msra.mxu0 %v5542
        %5552 = vmatprep.subr.mxu0 0.0
        %5553 = vmatpush1.msra.mxu0 %v5547
        %5554 = vmatprep.subr.mxu0 0.0
        %5555 = vmatpush1.msra.mxu0 0.0
        %5556 = vmatprep.subr.mxu0 0.0
        %5557 = vmatpush1.msra.mxu0 0.0
        %5558 = vmatprep.subr.mxu0 0.0
        %5559 = vmatpush1.msra.mxu0 0.0
        %5560 = vmatprep.subr.mxu0 0.0
        %5561 = vmatpush1.msra.mxu0 0.0
        %5562 = vmatprep.subr.mxu0 0.0
        %5563 = vmatpush1.msra.mxu0 0.0
        %5564 = vmatprep.subr.mxu0 0.0
        %5565 = vmatpush1.msra.mxu0 0.0
        %5566 = vmatprep.subr.mxu0 0.0
        %5567 = vmatpush1.msra.mxu0 0.0
        %5568 = vmatprep.subr.mxu0 0.0
        %5569 = vmatpush1.msra.mxu0 0.0
        %5570 = vmatprep.subr.mxu0 0.0
        %5571 = vmatpush1.msra.mxu0 0.0
        %5572 = vmatprep.subr.mxu0 0.0
        %5573 = vmatpush1.msra.mxu0 0.0
        %5574 = vmatprep.subr.mxu0 0.0
        %5575 = vmatpush1.msra.mxu0 0.0
        %5576 = vmatprep.subr.mxu0 0.0
        %5577 = vmatpush1.msra.mxu0 0.0
        %5578 = vmatprep.subr.mxu0 0.0
        %5579 = vmatpush1.msra.mxu0 0.0
        %5580 = vmatprep.subr.mxu0 0.0
        %5581 = vmatpush1.msra.mxu0 0.0
        %5582 = vmatprep.subr.mxu0 0.0
        %5583 = vmatpush1.msra.mxu0 0.0
        %5584 = vmatprep.subr.mxu0 0.0
        %5585 = vmatpush1.msra.mxu0 0.0
        %5586 = vmatprep.subr.mxu0 0.0
        %5587 = vmatpush1.msra.mxu0 0.0
        %5588 = vmatprep.subr.mxu0 0.0
        %5589 = vmatpush1.msra.mxu0 0.0
        %5590 = vmatprep.subr.mxu0 0.0
        %5591 = vmatpush1.msra.mxu0 0.0
        %5592 = vmatprep.subr.mxu0 0.0
        %5593 = vmatpush1.msra.mxu0 0.0
        %5594 = vmatprep.subr.mxu0 0.0
        %5595 = vmatpush1.msra.mxu0 0.0
        %5596 = vmatprep.subr.mxu0 0.0
        %5597 = vmatpush1.msra.mxu0 0.0
        %5598 = vmatprep.subr.mxu0 0.0
        %5599 = vmatpush1.msra.mxu0 0.0
        %5600 = vmatprep.subr.mxu0 0.0
        %5601 = vmatpush1.msra.mxu0 0.0
        %5602 = vmatprep.subr.mxu0 0.0
        %5603 = vmatpush1.msra.mxu0 0.0
        %5604 = vmatprep.subr.mxu0 0.0
        %5605 = vmatpush1.msra.mxu0 0.0
        %5606 = vmatprep.subr.mxu0 0.0
        %5607 = vmatpush1.msra.mxu0 0.0
        %5608 = vmatprep.subr.mxu0 0.0
        %5609 = vmatpush1.msra.mxu0 0.0
        %5610 = vmatprep.subr.mxu0 0.0
        %5611 = vmatpush1.msra.mxu0 0.0
        %5612 = vmatprep.subr.mxu0 0.0
        %5613 = vmatpush1.msra.mxu0 0.0
        %5614 = vmatprep.mubr.f32.mxu0 0.0
        %5615 = vmatmul.mubr.f32.gmra.mrb[0].mxu0 %v5098
        %v5616 = vpop.f32.mrb[0].mxu0
        %v5617 = vadd.f32 0.0, %v5616
        %v5618 = vpop.f32.mrb[0].mxu0
        %5619 = vmatprep.mubr.f32.mxu0 0.0
        %5620 = vmatmul.mubr.f32.gmra.mrb[0].mxu0 %v5101
        %v5621 = vpop.f32.mrb[0].mxu0
        %v5622 = vadd.f32 0.0, %v5621
        %v5623 = vpop.f32.mrb[0].mxu0
        %5624 = vmatprep.mubr.f32.mxu0 0.0
        %5625 = vmatmul.mubr.f32.gmra.mrb[0].mxu0 %v5104
        %v5626 = vpop.f32.mrb[0].mxu0
        %v5627 = vadd.f32 0.0, %v5626
        %v5628 = vpop.f32.mrb[0].mxu0
        %5629 = vmatprep.mubr.f32.mxu0 0.0
        %5630 = vmatmul.mubr.f32.gmra.mrb[0].mxu0 %v5107
        %v5631 = vpop.f32.mrb[0].mxu0
        %v5632 = vadd.f32 0.0, %v5631
        %v5633 = vpop.f32.mrb[0].mxu0
        %5634 = vmatprep.mubr.f32.mxu0 0.0
        %5635 = vmatmul.mubr.f32.gmra.mrb[0].mxu0 %v5110
        %v5636 = vpop.f32.mrb[0].mxu0
        %v5637 = vadd.f32 0.0, %v5636
        %v5638 = vpop.f32.mrb[0].mxu0
        %5639 = vmatprep.mubr.f32.mxu0 0.0
        %5640 = vmatmul.mubr.f32.gmra.mrb[0].mxu0 %v5113
        %v5641 = vpop.f32.mrb[0].mxu0
        %v5642 = vadd.f32 0.0, %v5641
        %v5643 = vpop.f32.mrb[0].mxu0
        %5644 = vmatprep.mubr.f32.mxu0 0.0
        %5645 = vmatmul.mubr.f32.gmra.mrb[0].mxu0 %v5116
        %v5646 = vpop.f32.mrb[0].mxu0
        %v5647 = vadd.f32 0.0, %v5646
        %v5648 = vpop.f32.mrb[0].mxu0
        %5649 = vmatprep.mubr.f32.mxu0 0.0
        %5650 = vmatmul.mubr.f32.gmra.mrb[0].mxu0 %v5119
        %v5651 = vpop.f32.mrb[0].mxu0
        %v5652 = vadd.f32 0.0, %v5651
        %v5653 = vpop.f32.mrb[0].mxu0
        %5654 = vdwg.mxu0
        %v5655 = vsel %vm694, %v5617, -inf
        %5656 = vmax.xlane.f32.xlu0 %v5655
        %v5657 = vpop.xlane.xlu0 %5656
        %v5658 = vsel %vm694, %v5622, -inf
        %5659 = vmax.xlane.f32.xlu0 %v5658
        %v5660 = vpop.xlane.xlu0 %5659
        %v5661 = vsel %vm694, %v5627, -inf
        %5662 = vmax.xlane.f32.xlu0 %v5661
        %v5663 = vpop.xlane.xlu0 %5662
        %v5664 = vsel %vm694, %v5632, -inf
        %5665 = vmax.xlane.f32.xlu0 %v5664
        %v5666 = vpop.xlane.xlu0 %5665
        %v5667 = vsel %vm694, %v5637, -inf
        %5668 = vmax.xlane.f32.xlu0 %v5667
        %v5669 = vpop.xlane.xlu0 %5668
        %v5670 = vsel %vm694, %v5642, -inf
        %5671 = vmax.xlane.f32.xlu0 %v5670
        %v5672 = vpop.xlane.xlu0 %5671
        %v5673 = vsel %vm694, %v5647, -inf
        %5674 = vmax.xlane.f32.xlu0 %v5673
        %v5675 = vpop.xlane.xlu0 %5674
        %v5676 = vsel %vm694, %v5652, -inf
        %5677 = vmax.xlane.f32.xlu0 %v5676
        %v5678 = vpop.xlane.xlu0 %5677
        %v5679 = vmax.f32 %v5228, %v5657
        %v5680 = vmax.f32 %v5231, %v5660
        %v5681 = vmax.f32 %v5234, %v5663
        %v5682 = vmax.f32 %v5237, %v5666
        %v5683 = vmax.f32 %v5240, %v5669
        %v5684 = vmax.f32 %v5243, %v5672
        %v5685 = vmax.f32 %v5246, %v5675
        %v5686 = vmax.f32 %v5249, %v5678
        %v5687 = vsub.f32 %v5228, %v5679
        %v5688 = vsub.f32 %v5231, %v5680
        %v5689 = vsub.f32 %v5234, %v5681
        %v5690 = vsub.f32 %v5237, %v5682
        %v5691 = vsub.f32 %v5240, %v5683
        %v5692 = vsub.f32 %v5243, %v5684
        %v5693 = vsub.f32 %v5246, %v5685
        %v5694 = vsub.f32 %v5249, %v5686
        %v5695 = vmul.f32 %v5687, 1.442695
        %v5696 = vpow.pop %v5695
        %v5697 = vmul.f32 %v5688, 1.442695
        %v5698 = vpow.pop %v5697
        %v5699 = vmul.f32 %v5689, 1.442695
        %v5700 = vpow.pop %v5699
        %v5701 = vmul.f32 %v5690, 1.442695
        %v5702 = vpow.pop %v5701
        %v5703 = vmul.f32 %v5691, 1.442695
        %v5704 = vpow.pop %v5703
        %v5705 = vmul.f32 %v5692, 1.442695
        %v5706 = vpow.pop %v5705
        %v5707 = vmul.f32 %v5693, 1.442695
        %v5708 = vpow.pop %v5707
        %v5709 = vmul.f32 %v5694, 1.442695
        %v5710 = vpow.pop %v5709
        %v5711 = vsub.f32 %v5617, %v5679
        %v5712 = vsub.f32 %v5622, %v5680
        %v5713 = vsub.f32 %v5627, %v5681
        %v5714 = vsub.f32 %v5632, %v5682
        %v5715 = vsub.f32 %v5637, %v5683
        %v5716 = vsub.f32 %v5642, %v5684
        %v5717 = vsub.f32 %v5647, %v5685
        %v5718 = vsub.f32 %v5652, %v5686
        %v5719 = vmul.f32 %v5711, 1.442695
        %v5720 = vpow.pop %v5719
        %v5721 = vmul.f32 %v5712, 1.442695
        %v5722 = vpow.pop %v5721
        %v5723 = vmul.f32 %v5713, 1.442695
        %v5724 = vpow.pop %v5723
        %v5725 = vmul.f32 %v5714, 1.442695
        %v5726 = vpow.pop %v5725
        %v5727 = vmul.f32 %v5715, 1.442695
        %v5728 = vpow.pop %v5727
        %v5729 = vmul.f32 %v5716, 1.442695
        %v5730 = vpow.pop %v5729
        %v5731 = vmul.f32 %v5717, 1.442695
        %v5732 = vpow.pop %v5731
        %v5733 = vmul.f32 %v5718, 1.442695
        %v5734 = vpow.pop %v5733
        %v5735 = vmul.f32 %v5696, %v5330
        %v5736 = vmul.f32 %v5698, %v5331
        %v5737 = vmul.f32 %v5700, %v5332
        %v5738 = vmul.f32 %v5702, %v5333
        %v5739 = vmul.f32 %v5704, %v5334
        %v5740 = vmul.f32 %v5706, %v5335
        %v5741 = vmul.f32 %v5708, %v5336
        %v5742 = vmul.f32 %v5710, %v5337
        %v5743 = vsel %vm694, %v5720, 0.0
        %5744 = vadd.xlane.f32.xlu0 %v5743
        %v5745 = vpop.xlane.xlu0 %5744
        %v5746 = vsel %vm694, %v5722, 0.0
        %5747 = vadd.xlane.f32.xlu0 %v5746
        %v5748 = vpop.xlane.xlu0 %5747
        %v5749 = vsel %vm694, %v5724, 0.0
        %5750 = vadd.xlane.f32.xlu0 %v5749
        %v5751 = vpop.xlane.xlu0 %5750
        %v5752 = vsel %vm694, %v5726, 0.0
        %5753 = vadd.xlane.f32.xlu0 %v5752
        %v5754 = vpop.xlane.xlu0 %5753
        %v5755 = vsel %vm694, %v5728, 0.0
        %5756 = vadd.xlane.f32.xlu0 %v5755
        %v5757 = vpop.xlane.xlu0 %5756
        %v5758 = vsel %vm694, %v5730, 0.0
        %5759 = vadd.xlane.f32.xlu0 %v5758
        %v5760 = vpop.xlane.xlu0 %5759
        %v5761 = vsel %vm694, %v5732, 0.0
        %5762 = vadd.xlane.f32.xlu0 %v5761
        %v5763 = vpop.xlane.xlu0 %5762
        %v5764 = vsel %vm694, %v5734, 0.0
        %5765 = vadd.xlane.f32.xlu0 %v5764
        %v5766 = vpop.xlane.xlu0 %5765
        %v5767 = vadd.f32 %v5735, %v5745
        %v5768 = vadd.f32 %v5736, %v5748
        %v5769 = vadd.f32 %v5737, %v5751
        %v5770 = vadd.f32 %v5738, %v5754
        %v5771 = vadd.f32 %v5739, %v5757
        %v5772 = vadd.f32 %v5740, %v5760
        %v5773 = vadd.f32 %v5741, %v5763
        %v5774 = vadd.f32 %v5742, %v5766
        %v5775 = vmul.f32 %v5696, %v5467
        %v5776 = vmul.f32 %v5698, %v5468
        %v5777 = vmul.f32 %v5700, %v5469
        %v5778 = vmul.f32 %v5702, %v5470
        %v5779 = vmul.f32 %v5704, %v5471
        %v5780 = vmul.f32 %v5706, %v5472
        %v5781 = vmul.f32 %v5708, %v5473
        %v5782 = vmul.f32 %v5710, %v5474
        %v5784 = vsel %vm694, %v5720, 0
        %v5787 = vsel %vm694, %v5722, 0
        %v5790 = vsel %vm694, %v5724, 0
        %v5793 = vsel %vm694, %v5726, 0
        %v5796 = vsel %vm694, %v5728, 0
        %v5799 = vsel %vm694, %v5730, 0
        %v5802 = vsel %vm694, %v5732, 0
        %v5805 = vsel %vm694, %v5734, 0
        %5807 = vmatprep.subr.mxu0 0.0
        %5808 = vmatpush1.msra.mxu0 %v4977
        %5809 = vmatprep.subr.mxu0 0.0
        %5810 = vmatpush1.msra.mxu0 %v4982
        %5811 = vmatprep.subr.mxu0 0.0
        %5812 = vmatpush1.msra.mxu0 0.0
        %5813 = vmatprep.subr.mxu0 0.0
        %5814 = vmatpush1.msra.mxu0 0.0
        %5815 = vmatprep.subr.mxu0 0.0
        %5816 = vmatpush1.msra.mxu0 0.0
        %5817 = vmatprep.subr.mxu0 0.0
        %5818 = vmatpush1.msra.mxu0 0.0
        %5819 = vmatprep.subr.mxu0 0.0
        %5820 = vmatpush1.msra.mxu0 0.0
        %5821 = vmatprep.subr.mxu0 0.0
        %5822 = vmatpush1.msra.mxu0 0.0
        %5823 = vmatprep.subr.mxu0 0.0
        %5824 = vmatpush1.msra.mxu0 0.0
        %5825 = vmatprep.subr.mxu0 0.0
        %5826 = vmatpush1.msra.mxu0 0.0
        %5827 = vmatprep.subr.mxu0 0.0
        %5828 = vmatpush1.msra.mxu0 0.0
        %5829 = vmatprep.subr.mxu0 0.0
        %5830 = vmatpush1.msra.mxu0 0.0
        %5831 = vmatprep.subr.mxu0 0.0
        %5832 = vmatpush1.msra.mxu0 0.0
        %5833 = vmatprep.subr.mxu0 0.0
        %5834 = vmatpush1.msra.mxu0 0.0
        %5835 = vmatprep.subr.mxu0 0.0
        %5836 = vmatpush1.msra.mxu0 0.0
        %5837 = vmatprep.subr.mxu0 0.0
        %5838 = vmatpush1.msra.mxu0 0.0
        %5839 = vmatprep.subr.mxu0 0.0
        %5840 = vmatpush1.msra.mxu0 0.0
        %5841 = vmatprep.subr.mxu0 0.0
        %5842 = vmatpush1.msra.mxu0 0.0
        %5843 = vmatprep.subr.mxu0 0.0
        %5844 = vmatpush1.msra.mxu0 0.0
        %5845 = vmatprep.subr.mxu0 0.0
        %5846 = vmatpush1.msra.mxu0 0.0
        %5847 = vmatprep.subr.mxu0 0.0
        %5848 = vmatpush1.msra.mxu0 0.0
        %5849 = vmatprep.subr.mxu0 0.0
        %5850 = vmatpush1.msra.mxu0 0.0
        %5851 = vmatprep.subr.mxu0 0.0
        %5852 = vmatpush1.msra.mxu0 0.0
        %5853 = vmatprep.subr.mxu0 0.0
        %5854 = vmatpush1.msra.mxu0 0.0
        %5855 = vmatprep.subr.mxu0 0.0
        %5856 = vmatpush1.msra.mxu0 0.0
        %5857 = vmatprep.subr.mxu0 0.0
        %5858 = vmatpush1.msra.mxu0 0.0
        %5859 = vmatprep.subr.mxu0 0.0
        %5860 = vmatpush1.msra.mxu0 0.0
        %5861 = vmatprep.subr.mxu0 0.0
        %5862 = vmatpush1.msra.mxu0 0.0
        %5863 = vmatprep.subr.mxu0 0.0
        %5864 = vmatpush1.msra.mxu0 0.0
        %5865 = vmatprep.subr.mxu0 0.0
        %5866 = vmatpush1.msra.mxu0 0.0
        %5867 = vmatprep.subr.mxu0 0.0
        %5868 = vmatpush1.msra.mxu0 0.0
        %5869 = vmatprep.subr.mxu0 0.0
        %5870 = vmatpush1.msra.mxu0 0.0
        %5871 = vmatprep.mubr.f32.mxu0 0.0
        %5872 = vmatmul.mubr.f32.gmra.mrb[0].mxu0 %v5784
        %v5873 = vpop.f32.mrb[0].mxu0
        %v5874 = vadd.f32 0.0, %v5873
        %v5875 = vpop.f32.mrb[0].mxu0
        %5876 = vmatprep.mubr.f32.mxu0 0.0
        %5877 = vmatmul.mubr.f32.gmra.mrb[0].mxu0 %v5787
        %v5878 = vpop.f32.mrb[0].mxu0
        %v5879 = vadd.f32 0.0, %v5878
        %v5880 = vpop.f32.mrb[0].mxu0
        %5881 = vmatprep.mubr.f32.mxu0 0.0
        %5882 = vmatmul.mubr.f32.gmra.mrb[0].mxu0 %v5790
        %v5883 = vpop.f32.mrb[0].mxu0
        %v5884 = vadd.f32 0.0, %v5883
        %v5885 = vpop.f32.mrb[0].mxu0
        %5886 = vmatprep.mubr.f32.mxu0 0.0
        %5887 = vmatmul.mubr.f32.gmra.mrb[0].mxu0 %v5793
        %v5888 = vpop.f32.mrb[0].mxu0
        %v5889 = vadd.f32 0.0, %v5888
        %v5890 = vpop.f32.mrb[0].mxu0
        %5891 = vmatprep.mubr.f32.mxu0 0.0
        %5892 = vmatmul.mubr.f32.gmra.mrb[0].mxu0 %v5796
        %v5893 = vpop.f32.mrb[0].mxu0
        %v5894 = vadd.f32 0.0, %v5893
        %v5895 = vpop.f32.mrb[0].mxu0
        %5896 = vmatprep.mubr.f32.mxu0 0.0
        %5897 = vmatmul.mubr.f32.gmra.mrb[0].mxu0 %v5799
        %v5898 = vpop.f32.mrb[0].mxu0
        %v5899 = vadd.f32 0.0, %v5898
        %v5900 = vpop.f32.mrb[0].mxu0
        %5901 = vmatprep.mubr.f32.mxu0 0.0
        %5902 = vmatmul.mubr.f32.gmra.mrb[0].mxu0 %v5802
        %v5903 = vpop.f32.mrb[0].mxu0
        %v5904 = vadd.f32 0.0, %v5903
        %v5905 = vpop.f32.mrb[0].mxu0
        %5906 = vmatprep.mubr.f32.mxu0 0.0
        %5907 = vmatmul.mubr.f32.gmra.mrb[0].mxu0 %v5805
        %v5908 = vpop.f32.mrb[0].mxu0
        %v5909 = vadd.f32 0.0, %v5908
        %v5910 = vpop.f32.mrb[0].mxu0
        %5911 = vdwg.mxu0
        %v5912 = vadd.f32 %v5775, %v5874
        %v5913 = vadd.f32 %v5776, %v5879
        %v5914 = vadd.f32 %v5777, %v5884
        %v5915 = vadd.f32 %v5778, %v5889
        %v5916 = vadd.f32 %v5779, %v5894
        %v5917 = vadd.f32 %v5780, %v5899
        %v5918 = vadd.f32 %v5781, %v5904
        %v5919 = vadd.f32 %v5782, %v5909
        %5920 = vmatprep.subr.mxu0 0.0
        %5921 = vmatpush1.msra.mxu0 %v5006
        %5922 = vmatprep.subr.mxu0 0.0
        %5923 = vmatpush1.msra.mxu0 %v5007
        %5924 = vmatprep.subr.mxu0 0.0
        %5925 = vmatpush1.msra.mxu0 %v5008
        %5926 = vmatprep.subr.mxu0 0.0
        %5927 = vmatpush1.msra.mxu0 %v5009
        %5928 = vmatprep.subr.mxu0 0.0
        %5929 = vmatpush1.msra.mxu0 %v5010
        %5930 = vmatprep.subr.mxu0 0.0
        %5931 = vmatpush1.msra.mxu0 %v5011
        %5932 = vmatprep.subr.mxu0 0.0
        %5933 = vmatpush1.msra.mxu0 %v5012
        %5934 = vmatprep.subr.mxu0 0.0
        %5935 = vmatpush1.msra.mxu0 %v5013
        %5936 = vmatprep.subr.mxu0 0.0
        %5937 = vmatpush1.msra.mxu0 %v5014
        %5938 = vmatprep.subr.mxu0 0.0
        %5939 = vmatpush1.msra.mxu0 %v5015
        %5940 = vmatprep.subr.mxu0 0.0
        %5941 = vmatpush1.msra.mxu0 %v5016
        %5942 = vmatprep.subr.mxu0 0.0
        %5943 = vmatpush1.msra.mxu0 %v5017
        %5944 = vmatprep.subr.mxu0 0.0
        %5945 = vmatpush1.msra.mxu0 %v5018
        %5946 = vmatprep.subr.mxu0 0.0
        %5947 = vmatpush1.msra.mxu0 %v5019
        %5948 = vmatprep.subr.mxu0 0.0
        %5949 = vmatpush1.msra.mxu0 %v5020
        %5950 = vmatprep.subr.mxu0 0.0
        %5951 = vmatpush1.msra.mxu0 %v5021
        %5952 = vmatprep.subr.mxu0 0.0
        %5953 = vmatpush1.msra.mxu0 0.0
        %5954 = vmatprep.subr.mxu0 0.0
        %5955 = vmatpush1.msra.mxu0 0.0
        %5956 = vmatprep.subr.mxu0 0.0
        %5957 = vmatpush1.msra.mxu0 0.0
        %5958 = vmatprep.subr.mxu0 0.0
        %5959 = vmatpush1.msra.mxu0 0.0
        %5960 = vmatprep.subr.mxu0 0.0
        %5961 = vmatpush1.msra.mxu0 0.0
        %5962 = vmatprep.subr.mxu0 0.0
        %5963 = vmatpush1.msra.mxu0 0.0
        %5964 = vmatprep.subr.mxu0 0.0
        %5965 = vmatpush1.msra.mxu0 0.0
        %5966 = vmatprep.subr.mxu0 0.0
        %5967 = vmatpush1.msra.mxu0 0.0
        %5968 = vmatprep.subr.mxu0 0.0
        %5969 = vmatpush1.msra.mxu0 0.0
        %5970 = vmatprep.subr.mxu0 0.0
        %5971 = vmatpush1.msra.mxu0 0.0
        %5972 = vmatprep.subr.mxu0 0.0
        %5973 = vmatpush1.msra.mxu0 0.0
        %5974 = vmatprep.subr.mxu0 0.0
        %5975 = vmatpush1.msra.mxu0 0.0
        %5976 = vmatprep.subr.mxu0 0.0
        %5977 = vmatpush1.msra.mxu0 0.0
        %5978 = vmatprep.subr.mxu0 0.0
        %5979 = vmatpush1.msra.mxu0 0.0
        %5980 = vmatprep.subr.mxu0 0.0
        %5981 = vmatpush1.msra.mxu0 0.0
        %5982 = vmatprep.subr.mxu0 0.0
        %5983 = vmatpush1.msra.mxu0 0.0
        %5984 = vmatprep.mubr.f32.mxu0 0.0
        %5985 = vmatmul.mubr.f32.gmra.mrb[0].mxu0 %v1522
        %v5986 = vpop.f32.mrb[0].mxu0
        %v5987 = vadd.f32 0.0, %v5986
        %v5988 = vpop.f32.mrb[0].mxu0
        %5989 = vmatprep.mubr.f32.mxu0 0.0
        %5990 = vmatmul.mubr.f32.gmra.mrb[0].mxu0 %v1523
        %v5991 = vpop.f32.mrb[0].mxu0
        %v5992 = vadd.f32 0.0, %v5991
        %v5993 = vpop.f32.mrb[0].mxu0
        %5994 = vdwg.mxu0
        %5995 = vmatprep.subr.mxu0 0.0
        %5996 = vmatpush1.msra.mxu0 %v5987
        %5997 = vmatprep.subr.mxu0 0.0
        %5998 = vmatpush1.msra.mxu0 %v5992
        %5999 = vmatprep.subr.mxu0 0.0
        %6000 = vmatpush1.msra.mxu0 0.0
        %6001 = vmatprep.subr.mxu0 0.0
        %6002 = vmatpush1.msra.mxu0 0.0
        %6003 = vmatprep.subr.mxu0 0.0
        %6004 = vmatpush1.msra.mxu0 0.0
        %6005 = vmatprep.subr.mxu0 0.0
        %6006 = vmatpush1.msra.mxu0 0.0
        %6007 = vmatprep.subr.mxu0 0.0
        %6008 = vmatpush1.msra.mxu0 0.0
        %6009 = vmatprep.subr.mxu0 0.0
        %6010 = vmatpush1.msra.mxu0 0.0
        %6011 = vmatprep.subr.mxu0 0.0
        %6012 = vmatpush1.msra.mxu0 0.0
        %6013 = vmatprep.subr.mxu0 0.0
        %6014 = vmatpush1.msra.mxu0 0.0
        %6015 = vmatprep.subr.mxu0 0.0
        %6016 = vmatpush1.msra.mxu0 0.0
        %6017 = vmatprep.subr.mxu0 0.0
        %6018 = vmatpush1.msra.mxu0 0.0
        %6019 = vmatprep.subr.mxu0 0.0
        %6020 = vmatpush1.msra.mxu0 0.0
        %6021 = vmatprep.subr.mxu0 0.0
        %6022 = vmatpush1.msra.mxu0 0.0
        %6023 = vmatprep.subr.mxu0 0.0
        %6024 = vmatpush1.msra.mxu0 0.0
        %6025 = vmatprep.subr.mxu0 0.0
        %6026 = vmatpush1.msra.mxu0 0.0
        %6027 = vmatprep.subr.mxu0 0.0
        %6028 = vmatpush1.msra.mxu0 0.0
        %6029 = vmatprep.subr.mxu0 0.0
        %6030 = vmatpush1.msra.mxu0 0.0
        %6031 = vmatprep.subr.mxu0 0.0
        %6032 = vmatpush1.msra.mxu0 0.0
        %6033 = vmatprep.subr.mxu0 0.0
        %6034 = vmatpush1.msra.mxu0 0.0
        %6035 = vmatprep.subr.mxu0 0.0
        %6036 = vmatpush1.msra.mxu0 0.0
        %6037 = vmatprep.subr.mxu0 0.0
        %6038 = vmatpush1.msra.mxu0 0.0
        %6039 = vmatprep.subr.mxu0 0.0
        %6040 = vmatpush1.msra.mxu0 0.0
        %6041 = vmatprep.subr.mxu0 0.0
        %6042 = vmatpush1.msra.mxu0 0.0
        %6043 = vmatprep.subr.mxu0 0.0
        %6044 = vmatpush1.msra.mxu0 0.0
        %6045 = vmatprep.subr.mxu0 0.0
        %6046 = vmatpush1.msra.mxu0 0.0
        %6047 = vmatprep.subr.mxu0 0.0
        %6048 = vmatpush1.msra.mxu0 0.0
        %6049 = vmatprep.subr.mxu0 0.0
        %6050 = vmatpush1.msra.mxu0 0.0
        %6051 = vmatprep.subr.mxu0 0.0
        %6052 = vmatpush1.msra.mxu0 0.0
        %6053 = vmatprep.subr.mxu0 0.0
        %6054 = vmatpush1.msra.mxu0 0.0
        %6055 = vmatprep.subr.mxu0 0.0
        %6056 = vmatpush1.msra.mxu0 0.0
        %6057 = vmatprep.subr.mxu0 0.0
        %6058 = vmatpush1.msra.mxu0 0.0
        %6059 = vmatprep.mubr.f32.mxu0 0.0
        %6060 = vmatmul.mubr.f32.gmra.mrb[0].mxu0 %v5098
        %v6061 = vpop.f32.mrb[0].mxu0
        %v6062 = vadd.f32 0.0, %v6061
        %v6063 = vpop.f32.mrb[0].mxu0
        %6064 = vmatprep.mubr.f32.mxu0 0.0
        %6065 = vmatmul.mubr.f32.gmra.mrb[0].mxu0 %v5101
        %v6066 = vpop.f32.mrb[0].mxu0
        %v6067 = vadd.f32 0.0, %v6066
        %v6068 = vpop.f32.mrb[0].mxu0
        %6069 = vmatprep.mubr.f32.mxu0 0.0
        %6070 = vmatmul.mubr.f32.gmra.mrb[0].mxu0 %v5104
        %v6071 = vpop.f32.mrb[0].mxu0
        %v6072 = vadd.f32 0.0, %v6071
        %v6073 = vpop.f32.mrb[0].mxu0
        %6074 = vmatprep.mubr.f32.mxu0 0.0
        %6075 = vmatmul.mubr.f32.gmra.mrb[0].mxu0 %v5107
        %v6076 = vpop.f32.mrb[0].mxu0
        %v6077 = vadd.f32 0.0, %v6076
        %v6078 = vpop.f32.mrb[0].mxu0
        %6079 = vmatprep.mubr.f32.mxu0 0.0
        %6080 = vmatmul.mubr.f32.gmra.mrb[0].mxu0 %v5110
        %v6081 = vpop.f32.mrb[0].mxu0
        %v6082 = vadd.f32 0.0, %v6081
        %v6083 = vpop.f32.mrb[0].mxu0
        %6084 = vmatprep.mubr.f32.mxu0 0.0
        %6085 = vmatmul.mubr.f32.gmra.mrb[0].mxu0 %v5113
        %v6086 = vpop.f32.mrb[0].mxu0
        %v6087 = vadd.f32 0.0, %v6086
        %v6088 = vpop.f32.mrb[0].mxu0
        %6089 = vmatprep.mubr.f32.mxu0 0.0
        %6090 = vmatmul.mubr.f32.gmra.mrb[0].mxu0 %v5116
        %v6091 = vpop.f32.mrb[0].mxu0
        %v6092 = vadd.f32 0.0, %v6091
        %v6093 = vpop.f32.mrb[0].mxu0
        %6094 = vmatprep.mubr.f32.mxu0 0.0
        %6095 = vmatmul.mubr.f32.gmra.mrb[0].mxu0 %v5119
        %v6096 = vpop.f32.mrb[0].mxu0
        %v6097 = vadd.f32 0.0, %v6096
        %v6098 = vpop.f32.mrb[0].mxu0
        %6099 = vdwg.mxu0
        %v6100 = vsel %vm694, %v6062, -inf
        %6101 = vmax.xlane.f32.xlu0 %v6100
        %v6102 = vpop.xlane.xlu0 %6101
        %v6103 = vsel %vm694, %v6067, -inf
        %6104 = vmax.xlane.f32.xlu0 %v6103
        %v6105 = vpop.xlane.xlu0 %6104
        %v6106 = vsel %vm694, %v6072, -inf
        %6107 = vmax.xlane.f32.xlu0 %v6106
        %v6108 = vpop.xlane.xlu0 %6107
        %v6109 = vsel %vm694, %v6077, -inf
        %6110 = vmax.xlane.f32.xlu0 %v6109
        %v6111 = vpop.xlane.xlu0 %6110
        %v6112 = vsel %vm694, %v6082, -inf
        %6113 = vmax.xlane.f32.xlu0 %v6112
        %v6114 = vpop.xlane.xlu0 %6113
        %v6115 = vsel %vm694, %v6087, -inf
        %6116 = vmax.xlane.f32.xlu0 %v6115
        %v6117 = vpop.xlane.xlu0 %6116
        %v6118 = vsel %vm694, %v6092, -inf
        %6119 = vmax.xlane.f32.xlu0 %v6118
        %v6120 = vpop.xlane.xlu0 %6119
        %v6121 = vsel %vm694, %v6097, -inf
        %6122 = vmax.xlane.f32.xlu0 %v6121
        %v6123 = vpop.xlane.xlu0 %6122
        %v6124 = vmax.f32 %v5679, %v6102
        %v6125 = vmax.f32 %v5680, %v6105
        %v6126 = vmax.f32 %v5681, %v6108
        %v6127 = vmax.f32 %v5682, %v6111
        %v6128 = vmax.f32 %v5683, %v6114
        %v6129 = vmax.f32 %v5684, %v6117
        %v6130 = vmax.f32 %v5685, %v6120
        %v6131 = vmax.f32 %v5686, %v6123
        %v6132 = vsub.f32 %v5679, %v6124
        %v6133 = vsub.f32 %v5680, %v6125
        %v6134 = vsub.f32 %v5681, %v6126
        %v6135 = vsub.f32 %v5682, %v6127
        %v6136 = vsub.f32 %v5683, %v6128
        %v6137 = vsub.f32 %v5684, %v6129
        %v6138 = vsub.f32 %v5685, %v6130
        %v6139 = vsub.f32 %v5686, %v6131
        %v6140 = vmul.f32 %v6132, 1.442695
        %v6141 = vpow.pop %v6140
        %v6142 = vmul.f32 %v6133, 1.442695
        %v6143 = vpow.pop %v6142
        %v6144 = vmul.f32 %v6134, 1.442695
        %v6145 = vpow.pop %v6144
        %v6146 = vmul.f32 %v6135, 1.442695
        %v6147 = vpow.pop %v6146
        %v6148 = vmul.f32 %v6136, 1.442695
        %v6149 = vpow.pop %v6148
        %v6150 = vmul.f32 %v6137, 1.442695
        %v6151 = vpow.pop %v6150
        %v6152 = vmul.f32 %v6138, 1.442695
        %v6153 = vpow.pop %v6152
        %v6154 = vmul.f32 %v6139, 1.442695
        %v6155 = vpow.pop %v6154
        %v6156 = vsub.f32 %v6062, %v6124
        %v6157 = vsub.f32 %v6067, %v6125
        %v6158 = vsub.f32 %v6072, %v6126
        %v6159 = vsub.f32 %v6077, %v6127
        %v6160 = vsub.f32 %v6082, %v6128
        %v6161 = vsub.f32 %v6087, %v6129
        %v6162 = vsub.f32 %v6092, %v6130
        %v6163 = vsub.f32 %v6097, %v6131
        %v6164 = vmul.f32 %v6156, 1.442695
        %v6165 = vpow.pop %v6164
        %v6166 = vmul.f32 %v6157, 1.442695
        %v6167 = vpow.pop %v6166
        %v6168 = vmul.f32 %v6158, 1.442695
        %v6169 = vpow.pop %v6168
        %v6170 = vmul.f32 %v6159, 1.442695
        %v6171 = vpow.pop %v6170
        %v6172 = vmul.f32 %v6160, 1.442695
        %v6173 = vpow.pop %v6172
        %v6174 = vmul.f32 %v6161, 1.442695
        %v6175 = vpow.pop %v6174
        %v6176 = vmul.f32 %v6162, 1.442695
        %v6177 = vpow.pop %v6176
        %v6178 = vmul.f32 %v6163, 1.442695
        %v6179 = vpow.pop %v6178
        %v6180 = vmul.f32 %v6141, %v5767
        %v6181 = vmul.f32 %v6143, %v5768
        %v6182 = vmul.f32 %v6145, %v5769
        %v6183 = vmul.f32 %v6147, %v5770
        %v6184 = vmul.f32 %v6149, %v5771
        %v6185 = vmul.f32 %v6151, %v5772
        %v6186 = vmul.f32 %v6153, %v5773
        %v6187 = vmul.f32 %v6155, %v5774
        %v6188 = vsel %vm694, %v6165, 0.0
        %6189 = vadd.xlane.f32.xlu0 %v6188
        %v6190 = vpop.xlane.xlu0 %6189
        %v6191 = vsel %vm694, %v6167, 0.0
        %6192 = vadd.xlane.f32.xlu0 %v6191
        %v6193 = vpop.xlane.xlu0 %6192
        %v6194 = vsel %vm694, %v6169, 0.0
        %6195 = vadd.xlane.f32.xlu0 %v6194
        %v6196 = vpop.xlane.xlu0 %6195
        %v6197 = vsel %vm694, %v6171, 0.0
        %6198 = vadd.xlane.f32.xlu0 %v6197
        %v6199 = vpop.xlane.xlu0 %6198
        %v6200 = vsel %vm694, %v6173, 0.0
        %6201 = vadd.xlane.f32.xlu0 %v6200
        %v6202 = vpop.xlane.xlu0 %6201
        %v6203 = vsel %vm694, %v6175, 0.0
        %6204 = vadd.xlane.f32.xlu0 %v6203
        %v6205 = vpop.xlane.xlu0 %6204
        %v6206 = vsel %vm694, %v6177, 0.0
        %6207 = vadd.xlane.f32.xlu0 %v6206
        %v6208 = vpop.xlane.xlu0 %6207
        %v6209 = vsel %vm694, %v6179, 0.0
        %6210 = vadd.xlane.f32.xlu0 %v6209
        %v6211 = vpop.xlane.xlu0 %6210
        %v6212 = vadd.f32 %v6180, %v6190
        %v6213 = vadd.f32 %v6181, %v6193
        %v6214 = vadd.f32 %v6182, %v6196
        %v6215 = vadd.f32 %v6183, %v6199
        %v6216 = vadd.f32 %v6184, %v6202
        %v6217 = vadd.f32 %v6185, %v6205
        %v6218 = vadd.f32 %v6186, %v6208
        %v6219 = vadd.f32 %v6187, %v6211
        %v6220 = vmul.f32 %v6141, %v5912
        %v6221 = vmul.f32 %v6143, %v5913
        %v6222 = vmul.f32 %v6145, %v5914
        %v6223 = vmul.f32 %v6147, %v5915
        %v6224 = vmul.f32 %v6149, %v5916
        %v6225 = vmul.f32 %v6151, %v5917
        %v6226 = vmul.f32 %v6153, %v5918
        %v6227 = vmul.f32 %v6155, %v5919
        %v6229 = vsel %vm694, %v6165, 0
        %v6232 = vsel %vm694, %v6167, 0
        %v6235 = vsel %vm694, %v6169, 0
        %v6238 = vsel %vm694, %v6171, 0
        %v6241 = vsel %vm694, %v6173, 0
        %v6244 = vsel %vm694, %v6175, 0
        %v6247 = vsel %vm694, %v6177, 0
        %v6250 = vsel %vm694, %v6179, 0
        %6252 = vmatprep.subr.mxu0 0.0
        %6253 = vmatpush1.msra.mxu0 %v4987
        %6254 = vmatprep.subr.mxu0 0.0
        %6255 = vmatpush1.msra.mxu0 %v4992
        %6256 = vmatprep.subr.mxu0 0.0
        %6257 = vmatpush1.msra.mxu0 0.0
        %6258 = vmatprep.subr.mxu0 0.0
        %6259 = vmatpush1.msra.mxu0 0.0
        %6260 = vmatprep.subr.mxu0 0.0
        %6261 = vmatpush1.msra.mxu0 0.0
        %6262 = vmatprep.subr.mxu0 0.0
        %6263 = vmatpush1.msra.mxu0 0.0
        %6264 = vmatprep.subr.mxu0 0.0
        %6265 = vmatpush1.msra.mxu0 0.0
        %6266 = vmatprep.subr.mxu0 0.0
        %6267 = vmatpush1.msra.mxu0 0.0
        %6268 = vmatprep.subr.mxu0 0.0
        %6269 = vmatpush1.msra.mxu0 0.0
        %6270 = vmatprep.subr.mxu0 0.0
        %6271 = vmatpush1.msra.mxu0 0.0
        %6272 = vmatprep.subr.mxu0 0.0
        %6273 = vmatpush1.msra.mxu0 0.0
        %6274 = vmatprep.subr.mxu0 0.0
        %6275 = vmatpush1.msra.mxu0 0.0
        %6276 = vmatprep.subr.mxu0 0.0
        %6277 = vmatpush1.msra.mxu0 0.0
        %6278 = vmatprep.subr.mxu0 0.0
        %6279 = vmatpush1.msra.mxu0 0.0
        %6280 = vmatprep.subr.mxu0 0.0
        %6281 = vmatpush1.msra.mxu0 0.0
        %6282 = vmatprep.subr.mxu0 0.0
        %6283 = vmatpush1.msra.mxu0 0.0
        %6284 = vmatprep.subr.mxu0 0.0
        %6285 = vmatpush1.msra.mxu0 0.0
        %6286 = vmatprep.subr.mxu0 0.0
        %6287 = vmatpush1.msra.mxu0 0.0
        %6288 = vmatprep.subr.mxu0 0.0
        %6289 = vmatpush1.msra.mxu0 0.0
        %6290 = vmatprep.subr.mxu0 0.0
        %6291 = vmatpush1.msra.mxu0 0.0
        %6292 = vmatprep.subr.mxu0 0.0
        %6293 = vmatpush1.msra.mxu0 0.0
        %6294 = vmatprep.subr.mxu0 0.0
        %6295 = vmatpush1.msra.mxu0 0.0
        %6296 = vmatprep.subr.mxu0 0.0
        %6297 = vmatpush1.msra.mxu0 0.0
        %6298 = vmatprep.subr.mxu0 0.0
        %6299 = vmatpush1.msra.mxu0 0.0
        %6300 = vmatprep.subr.mxu0 0.0
        %6301 = vmatpush1.msra.mxu0 0.0
        %6302 = vmatprep.subr.mxu0 0.0
        %6303 = vmatpush1.msra.mxu0 0.0
        %6304 = vmatprep.subr.mxu0 0.0
        %6305 = vmatpush1.msra.mxu0 0.0
        %6306 = vmatprep.subr.mxu0 0.0
        %6307 = vmatpush1.msra.mxu0 0.0
        %6308 = vmatprep.subr.mxu0 0.0
        %6309 = vmatpush1.msra.mxu0 0.0
        %6310 = vmatprep.subr.mxu0 0.0
        %6311 = vmatpush1.msra.mxu0 0.0
        %6312 = vmatprep.subr.mxu0 0.0
        %6313 = vmatpush1.msra.mxu0 0.0
        %6314 = vmatprep.subr.mxu0 0.0
        %6315 = vmatpush1.msra.mxu0 0.0
        %6316 = vmatprep.mubr.f32.mxu0 0.0
        %6317 = vmatmul.mubr.f32.gmra.mrb[0].mxu0 %v6229
        %v6318 = vpop.f32.mrb[0].mxu0
        %v6319 = vadd.f32 0.0, %v6318
        %v6320 = vpop.f32.mrb[0].mxu0
        %6321 = vmatprep.mubr.f32.mxu0 0.0
        %6322 = vmatmul.mubr.f32.gmra.mrb[0].mxu0 %v6232
        %v6323 = vpop.f32.mrb[0].mxu0
        %v6324 = vadd.f32 0.0, %v6323
        %v6325 = vpop.f32.mrb[0].mxu0
        %6326 = vmatprep.mubr.f32.mxu0 0.0
        %6327 = vmatmul.mubr.f32.gmra.mrb[0].mxu0 %v6235
        %v6328 = vpop.f32.mrb[0].mxu0
        %v6329 = vadd.f32 0.0, %v6328
        %v6330 = vpop.f32.mrb[0].mxu0
        %6331 = vmatprep.mubr.f32.mxu0 0.0
        %6332 = vmatmul.mubr.f32.gmra.mrb[0].mxu0 %v6238
        %v6333 = vpop.f32.mrb[0].mxu0
        %v6334 = vadd.f32 0.0, %v6333
        %v6335 = vpop.f32.mrb[0].mxu0
        %6336 = vmatprep.mubr.f32.mxu0 0.0
        %6337 = vmatmul.mubr.f32.gmra.mrb[0].mxu0 %v6241
        %v6338 = vpop.f32.mrb[0].mxu0
        %v6339 = vadd.f32 0.0, %v6338
        %v6340 = vpop.f32.mrb[0].mxu0
        %6341 = vmatprep.mubr.f32.mxu0 0.0
        %6342 = vmatmul.mubr.f32.gmra.mrb[0].mxu0 %v6244
        %v6343 = vpop.f32.mrb[0].mxu0
        %v6344 = vadd.f32 0.0, %v6343
        %v6345 = vpop.f32.mrb[0].mxu0
        %6346 = vmatprep.mubr.f32.mxu0 0.0
        %6347 = vmatmul.mubr.f32.gmra.mrb[0].mxu0 %v6247
        %v6348 = vpop.f32.mrb[0].mxu0
        %v6349 = vadd.f32 0.0, %v6348
        %v6350 = vpop.f32.mrb[0].mxu0
        %6351 = vmatprep.mubr.f32.mxu0 0.0
        %6352 = vmatmul.mubr.f32.gmra.mrb[0].mxu0 %v6250
        %v6353 = vpop.f32.mrb[0].mxu0
        %v6354 = vadd.f32 0.0, %v6353
        %v6355 = vpop.f32.mrb[0].mxu0
        %6356 = vdwg.mxu0
        %v6357 = vadd.f32 %v6220, %v6319
        %v6358 = vadd.f32 %v6221, %v6324
        %v6359 = vadd.f32 %v6222, %v6329
        %v6360 = vadd.f32 %v6223, %v6334
        %v6361 = vadd.f32 %v6224, %v6339
        %v6362 = vadd.f32 %v6225, %v6344
        %v6363 = vadd.f32 %v6226, %v6349
        %v6364 = vadd.f32 %v6227, %v6354
        %6365 = vmatprep.subr.mxu0 0.0
        %6366 = vmatpush1.msra.mxu0 %v5006
        %6367 = vmatprep.subr.mxu0 0.0
        %6368 = vmatpush1.msra.mxu0 %v5007
        %6369 = vmatprep.subr.mxu0 0.0
        %6370 = vmatpush1.msra.mxu0 %v5008
        %6371 = vmatprep.subr.mxu0 0.0
        %6372 = vmatpush1.msra.mxu0 %v5009
        %6373 = vmatprep.subr.mxu0 0.0
        %6374 = vmatpush1.msra.mxu0 %v5010
        %6375 = vmatprep.subr.mxu0 0.0
        %6376 = vmatpush1.msra.mxu0 %v5011
        %6377 = vmatprep.subr.mxu0 0.0
        %6378 = vmatpush1.msra.mxu0 %v5012
        %6379 = vmatprep.subr.mxu0 0.0
        %6380 = vmatpush1.msra.mxu0 %v5013
        %6381 = vmatprep.subr.mxu0 0.0
        %6382 = vmatpush1.msra.mxu0 %v5014
        %6383 = vmatprep.subr.mxu0 0.0
        %6384 = vmatpush1.msra.mxu0 %v5015
        %6385 = vmatprep.subr.mxu0 0.0
        %6386 = vmatpush1.msra.mxu0 %v5016
        %6387 = vmatprep.subr.mxu0 0.0
        %6388 = vmatpush1.msra.mxu0 %v5017
        %6389 = vmatprep.subr.mxu0 0.0
        %6390 = vmatpush1.msra.mxu0 %v5018
        %6391 = vmatprep.subr.mxu0 0.0
        %6392 = vmatpush1.msra.mxu0 %v5019
        %6393 = vmatprep.subr.mxu0 0.0
        %6394 = vmatpush1.msra.mxu0 %v5020
        %6395 = vmatprep.subr.mxu0 0.0
        %6396 = vmatpush1.msra.mxu0 %v5021
        %6397 = vmatprep.subr.mxu0 0.0
        %6398 = vmatpush1.msra.mxu0 0.0
        %6399 = vmatprep.subr.mxu0 0.0
        %6400 = vmatpush1.msra.mxu0 0.0
        %6401 = vmatprep.subr.mxu0 0.0
        %6402 = vmatpush1.msra.mxu0 0.0
        %6403 = vmatprep.subr.mxu0 0.0
        %6404 = vmatpush1.msra.mxu0 0.0
        %6405 = vmatprep.subr.mxu0 0.0
        %6406 = vmatpush1.msra.mxu0 0.0
        %6407 = vmatprep.subr.mxu0 0.0
        %6408 = vmatpush1.msra.mxu0 0.0
        %6409 = vmatprep.subr.mxu0 0.0
        %6410 = vmatpush1.msra.mxu0 0.0
        %6411 = vmatprep.subr.mxu0 0.0
        %6412 = vmatpush1.msra.mxu0 0.0
        %6413 = vmatprep.subr.mxu0 0.0
        %6414 = vmatpush1.msra.mxu0 0.0
        %6415 = vmatprep.subr.mxu0 0.0
        %6416 = vmatpush1.msra.mxu0 0.0
        %6417 = vmatprep.subr.mxu0 0.0
        %6418 = vmatpush1.msra.mxu0 0.0
        %6419 = vmatprep.subr.mxu0 0.0
        %6420 = vmatpush1.msra.mxu0 0.0
        %6421 = vmatprep.subr.mxu0 0.0
        %6422 = vmatpush1.msra.mxu0 0.0
        %6423 = vmatprep.subr.mxu0 0.0
        %6424 = vmatpush1.msra.mxu0 0.0
        %6425 = vmatprep.subr.mxu0 0.0
        %6426 = vmatpush1.msra.mxu0 0.0
        %6427 = vmatprep.subr.mxu0 0.0
        %6428 = vmatpush1.msra.mxu0 0.0
        %6429 = vmatprep.mubr.f32.mxu0 0.0
        %6430 = vmatmul.mubr.f32.gmra.mrb[0].mxu0 %v1970
        %v6431 = vpop.f32.mrb[0].mxu0
        %v6432 = vadd.f32 0.0, %v6431
        %v6433 = vpop.f32.mrb[0].mxu0
        %6434 = vmatprep.mubr.f32.mxu0 0.0
        %6435 = vmatmul.mubr.f32.gmra.mrb[0].mxu0 %v1971
        %v6436 = vpop.f32.mrb[0].mxu0
        %v6437 = vadd.f32 0.0, %v6436
        %v6438 = vpop.f32.mrb[0].mxu0
        %6439 = vdwg.mxu0
        %6440 = vmatprep.subr.mxu0 0.0
        %6441 = vmatpush1.msra.mxu0 %v6432
        %6442 = vmatprep.subr.mxu0 0.0
        %6443 = vmatpush1.msra.mxu0 %v6437
        %6444 = vmatprep.subr.mxu0 0.0
        %6445 = vmatpush1.msra.mxu0 0.0
        %6446 = vmatprep.subr.mxu0 0.0
        %6447 = vmatpush1.msra.mxu0 0.0
        %6448 = vmatprep.subr.mxu0 0.0
        %6449 = vmatpush1.msra.mxu0 0.0
        %6450 = vmatprep.subr.mxu0 0.0
        %6451 = vmatpush1.msra.mxu0 0.0
        %6452 = vmatprep.subr.mxu0 0.0
        %6453 = vmatpush1.msra.mxu0 0.0
        %6454 = vmatprep.subr.mxu0 0.0
        %6455 = vmatpush1.msra.mxu0 0.0
        %6456 = vmatprep.subr.mxu0 0.0
        %6457 = vmatpush1.msra.mxu0 0.0
        %6458 = vmatprep.subr.mxu0 0.0
        %6459 = vmatpush1.msra.mxu0 0.0
        %6460 = vmatprep.subr.mxu0 0.0
        %6461 = vmatpush1.msra.mxu0 0.0
        %6462 = vmatprep.subr.mxu0 0.0
        %6463 = vmatpush1.msra.mxu0 0.0
        %6464 = vmatprep.subr.mxu0 0.0
        %6465 = vmatpush1.msra.mxu0 0.0
        %6466 = vmatprep.subr.mxu0 0.0
        %6467 = vmatpush1.msra.mxu0 0.0
        %6468 = vmatprep.subr.mxu0 0.0
        %6469 = vmatpush1.msra.mxu0 0.0
        %6470 = vmatprep.subr.mxu0 0.0
        %6471 = vmatpush1.msra.mxu0 0.0
        %6472 = vmatprep.subr.mxu0 0.0
        %6473 = vmatpush1.msra.mxu0 0.0
        %6474 = vmatprep.subr.mxu0 0.0
        %6475 = vmatpush1.msra.mxu0 0.0
        %6476 = vmatprep.subr.mxu0 0.0
        %6477 = vmatpush1.msra.mxu0 0.0
        %6478 = vmatprep.subr.mxu0 0.0
        %6479 = vmatpush1.msra.mxu0 0.0
        %6480 = vmatprep.subr.mxu0 0.0
        %6481 = vmatpush1.msra.mxu0 0.0
        %6482 = vmatprep.subr.mxu0 0.0
        %6483 = vmatpush1.msra.mxu0 0.0
        %6484 = vmatprep.subr.mxu0 0.0
        %6485 = vmatpush1.msra.mxu0 0.0
        %6486 = vmatprep.subr.mxu0 0.0
        %6487 = vmatpush1.msra.mxu0 0.0
        %6488 = vmatprep.subr.mxu0 0.0
        %6489 = vmatpush1.msra.mxu0 0.0
        %6490 = vmatprep.subr.mxu0 0.0
        %6491 = vmatpush1.msra.mxu0 0.0
        %6492 = vmatprep.subr.mxu0 0.0
        %6493 = vmatpush1.msra.mxu0 0.0
        %6494 = vmatprep.subr.mxu0 0.0
        %6495 = vmatpush1.msra.mxu0 0.0
        %6496 = vmatprep.subr.mxu0 0.0
        %6497 = vmatpush1.msra.mxu0 0.0
        %6498 = vmatprep.subr.mxu0 0.0
        %6499 = vmatpush1.msra.mxu0 0.0
        %6500 = vmatprep.subr.mxu0 0.0
        %6501 = vmatpush1.msra.mxu0 0.0
        %6502 = vmatprep.subr.mxu0 0.0
        %6503 = vmatpush1.msra.mxu0 0.0
        %6504 = vmatprep.mubr.f32.mxu0 0.0
        %6505 = vmatmul.mubr.f32.gmra.mrb[0].mxu0 %v5098
        %v6506 = vpop.f32.mrb[0].mxu0
        %v6507 = vadd.f32 0.0, %v6506
        %v6508 = vpop.f32.mrb[0].mxu0
        %6509 = vmatprep.mubr.f32.mxu0 0.0
        %6510 = vmatmul.mubr.f32.gmra.mrb[0].mxu0 %v5101
        %v6511 = vpop.f32.mrb[0].mxu0
        %v6512 = vadd.f32 0.0, %v6511
        %v6513 = vpop.f32.mrb[0].mxu0
        %6514 = vmatprep.mubr.f32.mxu0 0.0
        %6515 = vmatmul.mubr.f32.gmra.mrb[0].mxu0 %v5104
        %v6516 = vpop.f32.mrb[0].mxu0
        %v6517 = vadd.f32 0.0, %v6516
        %v6518 = vpop.f32.mrb[0].mxu0
        %6519 = vmatprep.mubr.f32.mxu0 0.0
        %6520 = vmatmul.mubr.f32.gmra.mrb[0].mxu0 %v5107
        %v6521 = vpop.f32.mrb[0].mxu0
        %v6522 = vadd.f32 0.0, %v6521
        %v6523 = vpop.f32.mrb[0].mxu0
        %6524 = vmatprep.mubr.f32.mxu0 0.0
        %6525 = vmatmul.mubr.f32.gmra.mrb[0].mxu0 %v5110
        %v6526 = vpop.f32.mrb[0].mxu0
        %v6527 = vadd.f32 0.0, %v6526
        %v6528 = vpop.f32.mrb[0].mxu0
        %6529 = vmatprep.mubr.f32.mxu0 0.0
        %6530 = vmatmul.mubr.f32.gmra.mrb[0].mxu0 %v5113
        %v6531 = vpop.f32.mrb[0].mxu0
        %v6532 = vadd.f32 0.0, %v6531
        %v6533 = vpop.f32.mrb[0].mxu0
        %6534 = vmatprep.mubr.f32.mxu0 0.0
        %6535 = vmatmul.mubr.f32.gmra.mrb[0].mxu0 %v5116
        %v6536 = vpop.f32.mrb[0].mxu0
        %v6537 = vadd.f32 0.0, %v6536
        %v6538 = vpop.f32.mrb[0].mxu0
        %6539 = vmatprep.mubr.f32.mxu0 0.0
        %6540 = vmatmul.mubr.f32.gmra.mrb[0].mxu0 %v5119
        %v6541 = vpop.f32.mrb[0].mxu0
        %v6542 = vadd.f32 0.0, %v6541
        %v6543 = vpop.f32.mrb[0].mxu0
        %6544 = vdwg.mxu0
        %v6545 = vsel %vm694, %v6507, -inf
        %6546 = vmax.xlane.f32.xlu0 %v6545
        %v6547 = vpop.xlane.xlu0 %6546
        %v6548 = vsel %vm694, %v6512, -inf
        %6549 = vmax.xlane.f32.xlu0 %v6548
        %v6550 = vpop.xlane.xlu0 %6549
        %v6551 = vsel %vm694, %v6517, -inf
        %6552 = vmax.xlane.f32.xlu0 %v6551
        %v6553 = vpop.xlane.xlu0 %6552
        %v6554 = vsel %vm694, %v6522, -inf
        %6555 = vmax.xlane.f32.xlu0 %v6554
        %v6556 = vpop.xlane.xlu0 %6555
        %v6557 = vsel %vm694, %v6527, -inf
        %6558 = vmax.xlane.f32.xlu0 %v6557
        %v6559 = vpop.xlane.xlu0 %6558
        %v6560 = vsel %vm694, %v6532, -inf
        %6561 = vmax.xlane.f32.xlu0 %v6560
        %v6562 = vpop.xlane.xlu0 %6561
        %v6563 = vsel %vm694, %v6537, -inf
        %6564 = vmax.xlane.f32.xlu0 %v6563
        %v6565 = vpop.xlane.xlu0 %6564
        %v6566 = vsel %vm694, %v6542, -inf
        %6567 = vmax.xlane.f32.xlu0 %v6566
        %v6568 = vpop.xlane.xlu0 %6567
        %v6569 = vmax.f32 %v6124, %v6547
        %v6570 = vmax.f32 %v6125, %v6550
        %v6571 = vmax.f32 %v6126, %v6553
        %v6572 = vmax.f32 %v6127, %v6556
        %v6573 = vmax.f32 %v6128, %v6559
        %v6574 = vmax.f32 %v6129, %v6562
        %v6575 = vmax.f32 %v6130, %v6565
        %v6576 = vmax.f32 %v6131, %v6568
        %v6577 = vsub.f32 %v6124, %v6569
        %v6578 = vsub.f32 %v6125, %v6570
        %v6579 = vsub.f32 %v6126, %v6571
        %v6580 = vsub.f32 %v6127, %v6572
        %v6581 = vsub.f32 %v6128, %v6573
        %v6582 = vsub.f32 %v6129, %v6574
        %v6583 = vsub.f32 %v6130, %v6575
        %v6584 = vsub.f32 %v6131, %v6576
        %v6585 = vmul.f32 %v6577, 1.442695
        %v6586 = vpow.pop %v6585
        %v6587 = vmul.f32 %v6578, 1.442695
        %v6588 = vpow.pop %v6587
        %v6589 = vmul.f32 %v6579, 1.442695
        %v6590 = vpow.pop %v6589
        %v6591 = vmul.f32 %v6580, 1.442695
        %v6592 = vpow.pop %v6591
        %v6593 = vmul.f32 %v6581, 1.442695
        %v6594 = vpow.pop %v6593
        %v6595 = vmul.f32 %v6582, 1.442695
        %v6596 = vpow.pop %v6595
        %v6597 = vmul.f32 %v6583, 1.442695
        %v6598 = vpow.pop %v6597
        %v6599 = vmul.f32 %v6584, 1.442695
        %v6600 = vpow.pop %v6599
        %v6601 = vsub.f32 %v6507, %v6569
        %v6602 = vsub.f32 %v6512, %v6570
        %v6603 = vsub.f32 %v6517, %v6571
        %v6604 = vsub.f32 %v6522, %v6572
        %v6605 = vsub.f32 %v6527, %v6573
        %v6606 = vsub.f32 %v6532, %v6574
        %v6607 = vsub.f32 %v6537, %v6575
        %v6608 = vsub.f32 %v6542, %v6576
        %v6609 = vmul.f32 %v6601, 1.442695
        %v6610 = vpow.pop %v6609
        %v6611 = vmul.f32 %v6602, 1.442695
        %v6612 = vpow.pop %v6611
        %v6613 = vmul.f32 %v6603, 1.442695
        %v6614 = vpow.pop %v6613
        %v6615 = vmul.f32 %v6604, 1.442695
        %v6616 = vpow.pop %v6615
        %v6617 = vmul.f32 %v6605, 1.442695
        %v6618 = vpow.pop %v6617
        %v6619 = vmul.f32 %v6606, 1.442695
        %v6620 = vpow.pop %v6619
        %v6621 = vmul.f32 %v6607, 1.442695
        %v6622 = vpow.pop %v6621
        %v6623 = vmul.f32 %v6608, 1.442695
        %v6624 = vpow.pop %v6623
        %v6625 = vmul.f32 %v6586, %v6212
        %v6626 = vmul.f32 %v6588, %v6213
        %v6627 = vmul.f32 %v6590, %v6214
        %v6628 = vmul.f32 %v6592, %v6215
        %v6629 = vmul.f32 %v6594, %v6216
        %v6630 = vmul.f32 %v6596, %v6217
        %v6631 = vmul.f32 %v6598, %v6218
        %v6632 = vmul.f32 %v6600, %v6219
        %v6633 = vsel %vm694, %v6610, 0.0
        %6634 = vadd.xlane.f32.xlu0 %v6633
        %v6635 = vpop.xlane.xlu0 %6634
        %v6636 = vsel %vm694, %v6612, 0.0
        %6637 = vadd.xlane.f32.xlu0 %v6636
        %v6638 = vpop.xlane.xlu0 %6637
        %v6639 = vsel %vm694, %v6614, 0.0
        %6640 = vadd.xlane.f32.xlu0 %v6639
        %v6641 = vpop.xlane.xlu0 %6640
        %v6642 = vsel %vm694, %v6616, 0.0
        %6643 = vadd.xlane.f32.xlu0 %v6642
        %v6644 = vpop.xlane.xlu0 %6643
        %v6645 = vsel %vm694, %v6618, 0.0
        %6646 = vadd.xlane.f32.xlu0 %v6645
        %v6647 = vpop.xlane.xlu0 %6646
        %v6648 = vsel %vm694, %v6620, 0.0
        %6649 = vadd.xlane.f32.xlu0 %v6648
        %v6650 = vpop.xlane.xlu0 %6649
        %v6651 = vsel %vm694, %v6622, 0.0
        %6652 = vadd.xlane.f32.xlu0 %v6651
        %v6653 = vpop.xlane.xlu0 %6652
        %v6654 = vsel %vm694, %v6624, 0.0
        %6655 = vadd.xlane.f32.xlu0 %v6654
        %v6656 = vpop.xlane.xlu0 %6655
        %v6657 = vadd.f32 %v6625, %v6635
        %v6658 = vadd.f32 %v6626, %v6638
        %v6659 = vadd.f32 %v6627, %v6641
        %v6660 = vadd.f32 %v6628, %v6644
        %v6661 = vadd.f32 %v6629, %v6647
        %v6662 = vadd.f32 %v6630, %v6650
        %v6663 = vadd.f32 %v6631, %v6653
        %v6664 = vadd.f32 %v6632, %v6656
        %v6665 = vmul.f32 %v6586, %v6357
        %v6666 = vmul.f32 %v6588, %v6358
        %v6667 = vmul.f32 %v6590, %v6359
        %v6668 = vmul.f32 %v6592, %v6360
        %v6669 = vmul.f32 %v6594, %v6361
        %v6670 = vmul.f32 %v6596, %v6362
        %v6671 = vmul.f32 %v6598, %v6363
        %v6672 = vmul.f32 %v6600, %v6364
        %v6674 = vsel %vm694, %v6610, 0
        %v6677 = vsel %vm694, %v6612, 0
        %v6680 = vsel %vm694, %v6614, 0
        %v6683 = vsel %vm694, %v6616, 0
        %v6686 = vsel %vm694, %v6618, 0
        %v6689 = vsel %vm694, %v6620, 0
        %v6692 = vsel %vm694, %v6622, 0
        %v6695 = vsel %vm694, %v6624, 0
        %6697 = vmatprep.subr.mxu0 0.0
        %6698 = vmatpush1.msra.mxu0 %v4997
        %6699 = vmatprep.subr.mxu0 0.0
        %6700 = vmatpush1.msra.mxu0 %v5002
        %6701 = vmatprep.subr.mxu0 0.0
        %6702 = vmatpush1.msra.mxu0 0.0
        %6703 = vmatprep.subr.mxu0 0.0
        %6704 = vmatpush1.msra.mxu0 0.0
        %6705 = vmatprep.subr.mxu0 0.0
        %6706 = vmatpush1.msra.mxu0 0.0
        %6707 = vmatprep.subr.mxu0 0.0
        %6708 = vmatpush1.msra.mxu0 0.0
        %6709 = vmatprep.subr.mxu0 0.0
        %6710 = vmatpush1.msra.mxu0 0.0
        %6711 = vmatprep.subr.mxu0 0.0
        %6712 = vmatpush1.msra.mxu0 0.0
        %6713 = vmatprep.subr.mxu0 0.0
        %6714 = vmatpush1.msra.mxu0 0.0
        %6715 = vmatprep.subr.mxu0 0.0
        %6716 = vmatpush1.msra.mxu0 0.0
        %6717 = vmatprep.subr.mxu0 0.0
        %6718 = vmatpush1.msra.mxu0 0.0
        %6719 = vmatprep.subr.mxu0 0.0
        %6720 = vmatpush1.msra.mxu0 0.0
        %6721 = vmatprep.subr.mxu0 0.0
        %6722 = vmatpush1.msra.mxu0 0.0
        %6723 = vmatprep.subr.mxu0 0.0
        %6724 = vmatpush1.msra.mxu0 0.0
        %6725 = vmatprep.subr.mxu0 0.0
        %6726 = vmatpush1.msra.mxu0 0.0
        %6727 = vmatprep.subr.mxu0 0.0
        %6728 = vmatpush1.msra.mxu0 0.0
        %6729 = vmatprep.subr.mxu0 0.0
        %6730 = vmatpush1.msra.mxu0 0.0
        %6731 = vmatprep.subr.mxu0 0.0
        %6732 = vmatpush1.msra.mxu0 0.0
        %6733 = vmatprep.subr.mxu0 0.0
        %6734 = vmatpush1.msra.mxu0 0.0
        %6735 = vmatprep.subr.mxu0 0.0
        %6736 = vmatpush1.msra.mxu0 0.0
        %6737 = vmatprep.subr.mxu0 0.0
        %6738 = vmatpush1.msra.mxu0 0.0
        %6739 = vmatprep.subr.mxu0 0.0
        %6740 = vmatpush1.msra.mxu0 0.0
        %6741 = vmatprep.subr.mxu0 0.0
        %6742 = vmatpush1.msra.mxu0 0.0
        %6743 = vmatprep.subr.mxu0 0.0
        %6744 = vmatpush1.msra.mxu0 0.0
        %6745 = vmatprep.subr.mxu0 0.0
        %6746 = vmatpush1.msra.mxu0 0.0
        %6747 = vmatprep.subr.mxu0 0.0
        %6748 = vmatpush1.msra.mxu0 0.0
        %6749 = vmatprep.subr.mxu0 0.0
        %6750 = vmatpush1.msra.mxu0 0.0
        %6751 = vmatprep.subr.mxu0 0.0
        %6752 = vmatpush1.msra.mxu0 0.0
        %6753 = vmatprep.subr.mxu0 0.0
        %6754 = vmatpush1.msra.mxu0 0.0
        %6755 = vmatprep.subr.mxu0 0.0
        %6756 = vmatpush1.msra.mxu0 0.0
        %6757 = vmatprep.subr.mxu0 0.0
        %6758 = vmatpush1.msra.mxu0 0.0
        %6759 = vmatprep.subr.mxu0 0.0
        %6760 = vmatpush1.msra.mxu0 0.0
        %6761 = vmatprep.mubr.f32.mxu0 0.0
        %6762 = vmatmul.mubr.f32.gmra.mrb[0].mxu0 %v6674
        %v6763 = vpop.f32.mrb[0].mxu0
        %v6764 = vadd.f32 0.0, %v6763
        %v6765 = vpop.f32.mrb[0].mxu0
        %6766 = vmatprep.mubr.f32.mxu0 0.0
        %6767 = vmatmul.mubr.f32.gmra.mrb[0].mxu0 %v6677
        %v6768 = vpop.f32.mrb[0].mxu0
        %v6769 = vadd.f32 0.0, %v6768
        %v6770 = vpop.f32.mrb[0].mxu0
        %6771 = vmatprep.mubr.f32.mxu0 0.0
        %6772 = vmatmul.mubr.f32.gmra.mrb[0].mxu0 %v6680
        %v6773 = vpop.f32.mrb[0].mxu0
        %v6774 = vadd.f32 0.0, %v6773
        %v6775 = vpop.f32.mrb[0].mxu0
        %6776 = vmatprep.mubr.f32.mxu0 0.0
        %6777 = vmatmul.mubr.f32.gmra.mrb[0].mxu0 %v6683
        %v6778 = vpop.f32.mrb[0].mxu0
        %v6779 = vadd.f32 0.0, %v6778
        %v6780 = vpop.f32.mrb[0].mxu0
        %6781 = vmatprep.mubr.f32.mxu0 0.0
        %6782 = vmatmul.mubr.f32.gmra.mrb[0].mxu0 %v6686
        %v6783 = vpop.f32.mrb[0].mxu0
        %v6784 = vadd.f32 0.0, %v6783
        %v6785 = vpop.f32.mrb[0].mxu0
        %6786 = vmatprep.mubr.f32.mxu0 0.0
        %6787 = vmatmul.mubr.f32.gmra.mrb[0].mxu0 %v6689
        %v6788 = vpop.f32.mrb[0].mxu0
        %v6789 = vadd.f32 0.0, %v6788
        %v6790 = vpop.f32.mrb[0].mxu0
        %6791 = vmatprep.mubr.f32.mxu0 0.0
        %6792 = vmatmul.mubr.f32.gmra.mrb[0].mxu0 %v6692
        %v6793 = vpop.f32.mrb[0].mxu0
        %v6794 = vadd.f32 0.0, %v6793
        %v6795 = vpop.f32.mrb[0].mxu0
        %6796 = vmatprep.mubr.f32.mxu0 0.0
        %6797 = vmatmul.mubr.f32.gmra.mrb[0].mxu0 %v6695
        %v6798 = vpop.f32.mrb[0].mxu0
        %v6799 = vadd.f32 0.0, %v6798
        %v6800 = vpop.f32.mrb[0].mxu0
        %6801 = vdwg.mxu0
        %v6802 = vadd.f32 %v6665, %v6764
        %v6803 = vadd.f32 %v6666, %v6769
        %v6804 = vadd.f32 %v6667, %v6774
        %v6805 = vadd.f32 %v6668, %v6779
        %v6806 = vadd.f32 %v6669, %v6784
        %v6807 = vadd.f32 %v6670, %v6789
        %v6808 = vadd.f32 %v6671, %v6794
        %v6809 = vadd.f32 %v6672, %v6799
        %v6810 = vrcp.pop %v6657
        %v6811 = vmul.f32 %v6802, %v6810
        %v6812 = vrcp.pop %v6658
        %v6813 = vmul.f32 %v6803, %v6812
        %v6814 = vrcp.pop %v6659
        %v6815 = vmul.f32 %v6804, %v6814
        %v6816 = vrcp.pop %v6660
        %v6817 = vmul.f32 %v6805, %v6816
        %v6818 = vrcp.pop %v6661
        %v6819 = vmul.f32 %v6806, %v6818
        %v6820 = vrcp.pop %v6662
        %v6821 = vmul.f32 %v6807, %v6820
        %v6822 = vrcp.pop %v6663
        %v6823 = vmul.f32 %v6808, %v6822
        %v6824 = vrcp.pop %v6664
        %v6825 = vmul.f32 %v6809, %v6824
        %s6826 = scalar_lea.vmem %s5, 32
        %v6827 = vld [vmem:[%s6826] sm:$0xff]
        %v6828 = vld [vmem:[%s6826 + $0x8] sm:$0xff]
        %v6830 = vsel %vm694, %v6811, 0
        %v6833 = vsel %vm694, %v6813, 0
        %v6836 = vsel %vm694, %v6815, 0
        %v6839 = vsel %vm694, %v6817, 0
        %v6842 = vsel %vm694, %v6819, 0
        %v6845 = vsel %vm694, %v6821, 0
        %v6848 = vsel %vm694, %v6823, 0
        %v6851 = vsel %vm694, %v6825, 0
        %6853 = vmatprep.subr.mxu0 0.0
        %6854 = vmatpush1.msra.mxu0 %v6827
        %6855 = vmatprep.subr.mxu0 0.0
        %6856 = vmatpush1.msra.mxu0 %v6828
        %6857 = vmatprep.subr.mxu0 0.0
        %6858 = vmatpush1.msra.mxu0 0.0
        %6859 = vmatprep.subr.mxu0 0.0
        %6860 = vmatpush1.msra.mxu0 0.0
        %6861 = vmatprep.subr.mxu0 0.0
        %6862 = vmatpush1.msra.mxu0 0.0
        %6863 = vmatprep.subr.mxu0 0.0
        %6864 = vmatpush1.msra.mxu0 0.0
        %6865 = vmatprep.subr.mxu0 0.0
        %6866 = vmatpush1.msra.mxu0 0.0
        %6867 = vmatprep.subr.mxu0 0.0
        %6868 = vmatpush1.msra.mxu0 0.0
        %6869 = vmatprep.subr.mxu0 0.0
        %6870 = vmatpush1.msra.mxu0 0.0
        %6871 = vmatprep.subr.mxu0 0.0
        %6872 = vmatpush1.msra.mxu0 0.0
        %6873 = vmatprep.subr.mxu0 0.0
        %6874 = vmatpush1.msra.mxu0 0.0
        %6875 = vmatprep.subr.mxu0 0.0
        %6876 = vmatpush1.msra.mxu0 0.0
        %6877 = vmatprep.subr.mxu0 0.0
        %6878 = vmatpush1.msra.mxu0 0.0
        %6879 = vmatprep.subr.mxu0 0.0
        %6880 = vmatpush1.msra.mxu0 0.0
        %6881 = vmatprep.subr.mxu0 0.0
        %6882 = vmatpush1.msra.mxu0 0.0
        %6883 = vmatprep.subr.mxu0 0.0
        %6884 = vmatpush1.msra.mxu0 0.0
        %6885 = vmatprep.subr.mxu0 0.0
        %6886 = vmatpush1.msra.mxu0 0.0
        %6887 = vmatprep.subr.mxu0 0.0
        %6888 = vmatpush1.msra.mxu0 0.0
        %6889 = vmatprep.subr.mxu0 0.0
        %6890 = vmatpush1.msra.mxu0 0.0
        %6891 = vmatprep.subr.mxu0 0.0
        %6892 = vmatpush1.msra.mxu0 0.0
        %6893 = vmatprep.subr.mxu0 0.0
        %6894 = vmatpush1.msra.mxu0 0.0
        %6895 = vmatprep.subr.mxu0 0.0
        %6896 = vmatpush1.msra.mxu0 0.0
        %6897 = vmatprep.subr.mxu0 0.0
        %6898 = vmatpush1.msra.mxu0 0.0
        %6899 = vmatprep.subr.mxu0 0.0
        %6900 = vmatpush1.msra.mxu0 0.0
        %6901 = vmatprep.subr.mxu0 0.0
        %6902 = vmatpush1.msra.mxu0 0.0
        %6903 = vmatprep.subr.mxu0 0.0
        %6904 = vmatpush1.msra.mxu0 0.0
        %6905 = vmatprep.subr.mxu0 0.0
        %6906 = vmatpush1.msra.mxu0 0.0
        %6907 = vmatprep.subr.mxu0 0.0
        %6908 = vmatpush1.msra.mxu0 0.0
        %6909 = vmatprep.subr.mxu0 0.0
        %6910 = vmatpush1.msra.mxu0 0.0
        %6911 = vmatprep.subr.mxu0 0.0
        %6912 = vmatpush1.msra.mxu0 0.0
        %6913 = vmatprep.subr.mxu0 0.0
        %6914 = vmatpush1.msra.mxu0 0.0
        %6915 = vmatprep.subr.mxu0 0.0
        %6916 = vmatpush1.msra.mxu0 0.0
        %6917 = vmatprep.mubr.f32.mxu0 0.0
        %6918 = vmatmul.mubr.f32.gmra.mrb[0].mxu0 %v6830
        %v6919 = vpop.f32.mrb[0].mxu0
        %v6920 = vadd.f32 0.0, %v6919
        %v6921 = vpop.f32.mrb[0].mxu0
        %6922 = vmatprep.mubr.f32.mxu0 0.0
        %6923 = vmatmul.mubr.f32.gmra.mrb[0].mxu0 %v6833
        %v6924 = vpop.f32.mrb[0].mxu0
        %v6925 = vadd.f32 0.0, %v6924
        %v6926 = vpop.f32.mrb[0].mxu0
        %6927 = vmatprep.mubr.f32.mxu0 0.0
        %6928 = vmatmul.mubr.f32.gmra.mrb[0].mxu0 %v6836
        %v6929 = vpop.f32.mrb[0].mxu0
        %v6930 = vadd.f32 0.0, %v6929
        %v6931 = vpop.f32.mrb[0].mxu0
        %6932 = vmatprep.mubr.f32.mxu0 0.0
        %6933 = vmatmul.mubr.f32.gmra.mrb[0].mxu0 %v6839
        %v6934 = vpop.f32.mrb[0].mxu0
        %v6935 = vadd.f32 0.0, %v6934
        %v6936 = vpop.f32.mrb[0].mxu0
        %6937 = vmatprep.mubr.f32.mxu0 0.0
        %6938 = vmatmul.mubr.f32.gmra.mrb[0].mxu0 %v6842
        %v6939 = vpop.f32.mrb[0].mxu0
        %v6940 = vadd.f32 0.0, %v6939
        %v6941 = vpop.f32.mrb[0].mxu0
        %6942 = vmatprep.mubr.f32.mxu0 0.0
        %6943 = vmatmul.mubr.f32.gmra.mrb[0].mxu0 %v6845
        %v6944 = vpop.f32.mrb[0].mxu0
        %v6945 = vadd.f32 0.0, %v6944
        %v6946 = vpop.f32.mrb[0].mxu0
        %6947 = vmatprep.mubr.f32.mxu0 0.0
        %6948 = vmatmul.mubr.f32.gmra.mrb[0].mxu0 %v6848
        %v6949 = vpop.f32.mrb[0].mxu0
        %v6950 = vadd.f32 0.0, %v6949
        %v6951 = vpop.f32.mrb[0].mxu0
        %6952 = vmatprep.mubr.f32.mxu0 0.0
        %6953 = vmatmul.mubr.f32.gmra.mrb[0].mxu0 %v6851
        %v6954 = vpop.f32.mrb[0].mxu0
        %v6955 = vadd.f32 0.0, %v6954
        %v6956 = vpop.f32.mrb[0].mxu0
        %6957 = vdwg.mxu0
        %v6958 = vadd.f32 %v4723, %v6920
        %v6959 = vadd.f32 %v4728, %v6925
        %v6960 = vadd.f32 %v4733, %v6930
        %v6961 = vadd.f32 %v4738, %v6935
        %v6962 = vadd.f32 %v4743, %v6940
        %v6963 = vadd.f32 %v4748, %v6945
        %v6964 = vadd.f32 %v4753, %v6950
        %v6965 = vadd.f32 %v4758, %v6955
        %s6966 = scalar_lea.vmem %s2, 384
        %v6967 = vld [vmem:[%s6966] sm:$0xff]
        %v6968 = vld [vmem:[%s6966 + $0x8] sm:$0xff]
        %v6969 = vld [vmem:[%s6966 + $0x10] sm:$0xff]
        %v6970 = vld [vmem:[%s6966 + $0x18] sm:$0xff]
        %v6971 = vld [vmem:[%s6966 + $0x20] sm:$0xff]
        %v6972 = vld [vmem:[%s6966 + $0x28] sm:$0xff]
        %v6973 = vld [vmem:[%s6966 + $0x30] sm:$0xff]
        %v6974 = vld [vmem:[%s6966 + $0x38] sm:$0xff]
        %v6975 = vld [vmem:[%s6966 + $0x40] sm:$0xff]
        %v6976 = vld [vmem:[%s6966 + $0x48] sm:$0xff]
        %v6977 = vld [vmem:[%s6966 + $0x50] sm:$0xff]
        %v6978 = vld [vmem:[%s6966 + $0x58] sm:$0xff]
        %v6979 = vld [vmem:[%s6966 + $0x60] sm:$0xff]
        %v6980 = vld [vmem:[%s6966 + $0x68] sm:$0xff]
        %v6981 = vld [vmem:[%s6966 + $0x70] sm:$0xff]
        %v6982 = vld [vmem:[%s6966 + $0x78] sm:$0xff]
        %6983 = vmatprep.subr.mxu0 0.0
        %6984 = vmatpush1.msra.mxu0 %v6967
        %6985 = vmatprep.subr.mxu0 0.0
        %6986 = vmatpush1.msra.mxu0 %v6968
        %6987 = vmatprep.subr.mxu0 0.0
        %6988 = vmatpush1.msra.mxu0 %v6969
        %6989 = vmatprep.subr.mxu0 0.0
        %6990 = vmatpush1.msra.mxu0 %v6970
        %6991 = vmatprep.subr.mxu0 0.0
        %6992 = vmatpush1.msra.mxu0 %v6971
        %6993 = vmatprep.subr.mxu0 0.0
        %6994 = vmatpush1.msra.mxu0 %v6972
        %6995 = vmatprep.subr.mxu0 0.0
        %6996 = vmatpush1.msra.mxu0 %v6973
        %6997 = vmatprep.subr.mxu0 0.0
        %6998 = vmatpush1.msra.mxu0 %v6974
        %6999 = vmatprep.subr.mxu0 0.0
        %7000 = vmatpush1.msra.mxu0 %v6975
        %7001 = vmatprep.subr.mxu0 0.0
        %7002 = vmatpush1.msra.mxu0 %v6976
        %7003 = vmatprep.subr.mxu0 0.0
        %7004 = vmatpush1.msra.mxu0 %v6977
        %7005 = vmatprep.subr.mxu0 0.0
        %7006 = vmatpush1.msra.mxu0 %v6978
        %7007 = vmatprep.subr.mxu0 0.0
        %7008 = vmatpush1.msra.mxu0 %v6979
        %7009 = vmatprep.subr.mxu0 0.0
        %7010 = vmatpush1.msra.mxu0 %v6980
        %7011 = vmatprep.subr.mxu0 0.0
        %7012 = vmatpush1.msra.mxu0 %v6981
        %7013 = vmatprep.subr.mxu0 0.0
        %7014 = vmatpush1.msra.mxu0 %v6982
        %7015 = vmatprep.subr.mxu0 0.0
        %7016 = vmatpush1.msra.mxu0 0.0
        %7017 = vmatprep.subr.mxu0 0.0
        %7018 = vmatpush1.msra.mxu0 0.0
        %7019 = vmatprep.subr.mxu0 0.0
        %7020 = vmatpush1.msra.mxu0 0.0
        %7021 = vmatprep.subr.mxu0 0.0
        %7022 = vmatpush1.msra.mxu0 0.0
        %7023 = vmatprep.subr.mxu0 0.0
        %7024 = vmatpush1.msra.mxu0 0.0
        %7025 = vmatprep.subr.mxu0 0.0
        %7026 = vmatpush1.msra.mxu0 0.0
        %7027 = vmatprep.subr.mxu0 0.0
        %7028 = vmatpush1.msra.mxu0 0.0
        %7029 = vmatprep.subr.mxu0 0.0
        %7030 = vmatpush1.msra.mxu0 0.0
        %7031 = vmatprep.subr.mxu0 0.0
        %7032 = vmatpush1.msra.mxu0 0.0
        %7033 = vmatprep.subr.mxu0 0.0
        %7034 = vmatpush1.msra.mxu0 0.0
        %7035 = vmatprep.subr.mxu0 0.0
        %7036 = vmatpush1.msra.mxu0 0.0
        %7037 = vmatprep.subr.mxu0 0.0
        %7038 = vmatpush1.msra.mxu0 0.0
        %7039 = vmatprep.subr.mxu0 0.0
        %7040 = vmatpush1.msra.mxu0 0.0
        %7041 = vmatprep.subr.mxu0 0.0
        %7042 = vmatpush1.msra.mxu0 0.0
        %7043 = vmatprep.subr.mxu0 0.0
        %7044 = vmatpush1.msra.mxu0 0.0
        %7045 = vmatprep.subr.mxu0 0.0
        %7046 = vmatpush1.msra.mxu0 0.0
        %7047 = vmatprep.mubr.f32.mxu0 0.0
        %7048 = vmatmul.mubr.f32.gmra.mrb[0].mxu0 %v351
        %v7049 = vpop.f32.mrb[0].mxu0
        %v7050 = vadd.f32 0.0, %v7049
        %v7051 = vpop.f32.mrb[0].mxu0
        %7052 = vmatprep.mubr.f32.mxu0 0.0
        %7053 = vmatmul.mubr.f32.gmra.mrb[0].mxu0 %v352
        %v7054 = vpop.f32.mrb[0].mxu0
        %v7055 = vadd.f32 0.0, %v7054
        %v7056 = vpop.f32.mrb[0].mxu0
        %7057 = vmatprep.mubr.f32.mxu0 0.0
        %7058 = vmatmul.mubr.f32.gmra.mrb[0].mxu0 %v353
        %v7059 = vpop.f32.mrb[0].mxu0
        %v7060 = vadd.f32 0.0, %v7059
        %v7061 = vpop.f32.mrb[0].mxu0
        %7062 = vmatprep.mubr.f32.mxu0 0.0
        %7063 = vmatmul.mubr.f32.gmra.mrb[0].mxu0 %v354
        %v7064 = vpop.f32.mrb[0].mxu0
        %v7065 = vadd.f32 0.0, %v7064
        %v7066 = vpop.f32.mrb[0].mxu0
        %7067 = vmatprep.mubr.f32.mxu0 0.0
        %7068 = vmatmul.mubr.f32.gmra.mrb[0].mxu0 %v355
        %v7069 = vpop.f32.mrb[0].mxu0
        %v7070 = vadd.f32 0.0, %v7069
        %v7071 = vpop.f32.mrb[0].mxu0
        %7072 = vmatprep.mubr.f32.mxu0 0.0
        %7073 = vmatmul.mubr.f32.gmra.mrb[0].mxu0 %v356
        %v7074 = vpop.f32.mrb[0].mxu0
        %v7075 = vadd.f32 0.0, %v7074
        %v7076 = vpop.f32.mrb[0].mxu0
        %7077 = vmatprep.mubr.f32.mxu0 0.0
        %7078 = vmatmul.mubr.f32.gmra.mrb[0].mxu0 %v357
        %v7079 = vpop.f32.mrb[0].mxu0
        %v7080 = vadd.f32 0.0, %v7079
        %v7081 = vpop.f32.mrb[0].mxu0
        %7082 = vmatprep.mubr.f32.mxu0 0.0
        %7083 = vmatmul.mubr.f32.gmra.mrb[0].mxu0 %v358
        %v7084 = vpop.f32.mrb[0].mxu0
        %v7085 = vadd.f32 0.0, %v7084
        %v7086 = vpop.f32.mrb[0].mxu0
        %7087 = vdwg.mxu0
        %s7088 = scalar_lea.vmem %s4, 384
        %v7089 = vld [vmem:[%s7088] sm:$0xff]
        %v7090 = vld [vmem:[%s7088 + $0x8] sm:$0xff]
        %v7091 = vld [vmem:[%s7088 + $0x10] sm:$0xff]
        %v7092 = vld [vmem:[%s7088 + $0x18] sm:$0xff]
        %v7093 = vld [vmem:[%s7088 + $0x20] sm:$0xff]
        %v7094 = vld [vmem:[%s7088 + $0x28] sm:$0xff]
        %v7095 = vld [vmem:[%s7088 + $0x30] sm:$0xff]
        %v7096 = vld [vmem:[%s7088 + $0x38] sm:$0xff]
        %v7097 = vld [vmem:[%s7088 + $0x40] sm:$0xff]
        %v7098 = vld [vmem:[%s7088 + $0x48] sm:$0xff]
        %v7099 = vld [vmem:[%s7088 + $0x50] sm:$0xff]
        %v7100 = vld [vmem:[%s7088 + $0x58] sm:$0xff]
        %v7101 = vld [vmem:[%s7088 + $0x60] sm:$0xff]
        %v7102 = vld [vmem:[%s7088 + $0x68] sm:$0xff]
        %v7103 = vld [vmem:[%s7088 + $0x70] sm:$0xff]
        %v7104 = vld [vmem:[%s7088 + $0x78] sm:$0xff]
        %7105 = vmatprep.subr.mxu0 0.0
        %7106 = vmatpush1.msra.mxu0 %v7089
        %7107 = vmatprep.subr.mxu0 0.0
        %7108 = vmatpush1.msra.mxu0 %v7090
        %7109 = vmatprep.subr.mxu0 0.0
        %7110 = vmatpush1.msra.mxu0 %v7091
        %7111 = vmatprep.subr.mxu0 0.0
        %7112 = vmatpush1.msra.mxu0 %v7092
        %7113 = vmatprep.subr.mxu0 0.0
        %7114 = vmatpush1.msra.mxu0 %v7093
        %7115 = vmatprep.subr.mxu0 0.0
        %7116 = vmatpush1.msra.mxu0 %v7094
        %7117 = vmatprep.subr.mxu0 0.0
        %7118 = vmatpush1.msra.mxu0 %v7095
        %7119 = vmatprep.subr.mxu0 0.0
        %7120 = vmatpush1.msra.mxu0 %v7096
        %7121 = vmatprep.subr.mxu0 0.0
        %7122 = vmatpush1.msra.mxu0 %v7097
        %7123 = vmatprep.subr.mxu0 0.0
        %7124 = vmatpush1.msra.mxu0 %v7098
        %7125 = vmatprep.subr.mxu0 0.0
        %7126 = vmatpush1.msra.mxu0 %v7099
        %7127 = vmatprep.subr.mxu0 0.0
        %7128 = vmatpush1.msra.mxu0 %v7100
        %7129 = vmatprep.subr.mxu0 0.0
        %7130 = vmatpush1.msra.mxu0 %v7101
        %7131 = vmatprep.subr.mxu0 0.0
        %7132 = vmatpush1.msra.mxu0 %v7102
        %7133 = vmatprep.subr.mxu0 0.0
        %7134 = vmatpush1.msra.mxu0 %v7103
        %7135 = vmatprep.subr.mxu0 0.0
        %7136 = vmatpush1.msra.mxu0 %v7104
        %7137 = vmatprep.subr.mxu0 0.0
        %7138 = vmatpush1.msra.mxu0 0.0
        %7139 = vmatprep.subr.mxu0 0.0
        %7140 = vmatpush1.msra.mxu0 0.0
        %7141 = vmatprep.subr.mxu0 0.0
        %7142 = vmatpush1.msra.mxu0 0.0
        %7143 = vmatprep.subr.mxu0 0.0
        %7144 = vmatpush1.msra.mxu0 0.0
        %7145 = vmatprep.subr.mxu0 0.0
        %7146 = vmatpush1.msra.mxu0 0.0
        %7147 = vmatprep.subr.mxu0 0.0
        %7148 = vmatpush1.msra.mxu0 0.0
        %7149 = vmatprep.subr.mxu0 0.0
        %7150 = vmatpush1.msra.mxu0 0.0
        %7151 = vmatprep.subr.mxu0 0.0
        %7152 = vmatpush1.msra.mxu0 0.0
        %7153 = vmatprep.subr.mxu0 0.0
        %7154 = vmatpush1.msra.mxu0 0.0
        %7155 = vmatprep.subr.mxu0 0.0
        %7156 = vmatpush1.msra.mxu0 0.0
        %7157 = vmatprep.subr.mxu0 0.0
        %7158 = vmatpush1.msra.mxu0 0.0
        %7159 = vmatprep.subr.mxu0 0.0
        %7160 = vmatpush1.msra.mxu0 0.0
        %7161 = vmatprep.subr.mxu0 0.0
        %7162 = vmatpush1.msra.mxu0 0.0
        %7163 = vmatprep.subr.mxu0 0.0
        %7164 = vmatpush1.msra.mxu0 0.0
        %7165 = vmatprep.subr.mxu0 0.0
        %7166 = vmatpush1.msra.mxu0 0.0
        %7167 = vmatprep.subr.mxu0 0.0
        %7168 = vmatpush1.msra.mxu0 0.0
        %7169 = vmatprep.mubr.f32.mxu0 0.0
        %7170 = vmatmul.mubr.f32.gmra.mrb[0].mxu0 %v351
        %v7171 = vpop.f32.mrb[0].mxu0
        %v7172 = vadd.f32 0.0, %v7171
        %v7173 = vpop.f32.mrb[0].mxu0
        %7174 = vmatprep.mubr.f32.mxu0 0.0
        %7175 = vmatmul.mubr.f32.gmra.mrb[0].mxu0 %v352
        %v7176 = vpop.f32.mrb[0].mxu0
        %v7177 = vadd.f32 0.0, %v7176
        %v7178 = vpop.f32.mrb[0].mxu0
        %7179 = vmatprep.mubr.f32.mxu0 0.0
        %7180 = vmatmul.mubr.f32.gmra.mrb[0].mxu0 %v353
        %v7181 = vpop.f32.mrb[0].mxu0
        %v7182 = vadd.f32 0.0, %v7181
        %v7183 = vpop.f32.mrb[0].mxu0
        %7184 = vmatprep.mubr.f32.mxu0 0.0
        %7185 = vmatmul.mubr.f32.gmra.mrb[0].mxu0 %v354
        %v7186 = vpop.f32.mrb[0].mxu0
        %v7187 = vadd.f32 0.0, %v7186
        %v7188 = vpop.f32.mrb[0].mxu0
        %7189 = vmatprep.mubr.f32.mxu0 0.0
        %7190 = vmatmul.mubr.f32.gmra.mrb[0].mxu0 %v355
        %v7191 = vpop.f32.mrb[0].mxu0
        %v7192 = vadd.f32 0.0, %v7191
        %v7193 = vpop.f32.mrb[0].mxu0
        %7194 = vmatprep.mubr.f32.mxu0 0.0
        %7195 = vmatmul.mubr.f32.gmra.mrb[0].mxu0 %v356
        %v7196 = vpop.f32.mrb[0].mxu0
        %v7197 = vadd.f32 0.0, %v7196
        %v7198 = vpop.f32.mrb[0].mxu0
        %7199 = vmatprep.mubr.f32.mxu0 0.0
        %7200 = vmatmul.mubr.f32.gmra.mrb[0].mxu0 %v357
        %v7201 = vpop.f32.mrb[0].mxu0
        %v7202 = vadd.f32 0.0, %v7201
        %v7203 = vpop.f32.mrb[0].mxu0
        %7204 = vmatprep.mubr.f32.mxu0 0.0
        %7205 = vmatmul.mubr.f32.gmra.mrb[0].mxu0 %v358
        %v7206 = vpop.f32.mrb[0].mxu0
        %v7207 = vadd.f32 0.0, %v7206
        %v7208 = vpop.f32.mrb[0].mxu0
        %7209 = vdwg.mxu0
        %s7210 = scalar_lea.vmem %s3, 384
        %v7211 = vld [vmem:[%s7210] sm:$0xff]
        %v7212 = vld [vmem:[%s7210 + $0x8] sm:$0xff]
        %v7213 = vld [vmem:[%s7210 + $0x10] sm:$0xff]
        %v7214 = vld [vmem:[%s7210 + $0x18] sm:$0xff]
        %v7215 = vld [vmem:[%s7210 + $0x20] sm:$0xff]
        %v7216 = vld [vmem:[%s7210 + $0x28] sm:$0xff]
        %v7217 = vld [vmem:[%s7210 + $0x30] sm:$0xff]
        %v7218 = vld [vmem:[%s7210 + $0x38] sm:$0xff]
        %v7219 = vld [vmem:[%s7210 + $0x40] sm:$0xff]
        %v7220 = vld [vmem:[%s7210 + $0x48] sm:$0xff]
        %v7221 = vld [vmem:[%s7210 + $0x50] sm:$0xff]
        %v7222 = vld [vmem:[%s7210 + $0x58] sm:$0xff]
        %v7223 = vld [vmem:[%s7210 + $0x60] sm:$0xff]
        %v7224 = vld [vmem:[%s7210 + $0x68] sm:$0xff]
        %v7225 = vld [vmem:[%s7210 + $0x70] sm:$0xff]
        %v7226 = vld [vmem:[%s7210 + $0x78] sm:$0xff]
        %7227 = vmatprep.subr.mxu0 0.0
        %7228 = vmatpush1.msra.mxu0 %v7211
        %7229 = vmatprep.subr.mxu0 0.0
        %7230 = vmatpush1.msra.mxu0 %v7212
        %7231 = vmatprep.subr.mxu0 0.0
        %7232 = vmatpush1.msra.mxu0 %v7213
        %7233 = vmatprep.subr.mxu0 0.0
        %7234 = vmatpush1.msra.mxu0 %v7214
        %7235 = vmatprep.subr.mxu0 0.0
        %7236 = vmatpush1.msra.mxu0 %v7215
        %7237 = vmatprep.subr.mxu0 0.0
        %7238 = vmatpush1.msra.mxu0 %v7216
        %7239 = vmatprep.subr.mxu0 0.0
        %7240 = vmatpush1.msra.mxu0 %v7217
        %7241 = vmatprep.subr.mxu0 0.0
        %7242 = vmatpush1.msra.mxu0 %v7218
        %7243 = vmatprep.subr.mxu0 0.0
        %7244 = vmatpush1.msra.mxu0 %v7219
        %7245 = vmatprep.subr.mxu0 0.0
        %7246 = vmatpush1.msra.mxu0 %v7220
        %7247 = vmatprep.subr.mxu0 0.0
        %7248 = vmatpush1.msra.mxu0 %v7221
        %7249 = vmatprep.subr.mxu0 0.0
        %7250 = vmatpush1.msra.mxu0 %v7222
        %7251 = vmatprep.subr.mxu0 0.0
        %7252 = vmatpush1.msra.mxu0 %v7223
        %7253 = vmatprep.subr.mxu0 0.0
        %7254 = vmatpush1.msra.mxu0 %v7224
        %7255 = vmatprep.subr.mxu0 0.0
        %7256 = vmatpush1.msra.mxu0 %v7225
        %7257 = vmatprep.subr.mxu0 0.0
        %7258 = vmatpush1.msra.mxu0 %v7226
        %7259 = vmatprep.subr.mxu0 0.0
        %7260 = vmatpush1.msra.mxu0 0.0
        %7261 = vmatprep.subr.mxu0 0.0
        %7262 = vmatpush1.msra.mxu0 0.0
        %7263 = vmatprep.subr.mxu0 0.0
        %7264 = vmatpush1.msra.mxu0 0.0
        %7265 = vmatprep.subr.mxu0 0.0
        %7266 = vmatpush1.msra.mxu0 0.0
        %7267 = vmatprep.subr.mxu0 0.0
        %7268 = vmatpush1.msra.mxu0 0.0
        %7269 = vmatprep.subr.mxu0 0.0
        %7270 = vmatpush1.msra.mxu0 0.0
        %7271 = vmatprep.subr.mxu0 0.0
        %7272 = vmatpush1.msra.mxu0 0.0
        %7273 = vmatprep.subr.mxu0 0.0
        %7274 = vmatpush1.msra.mxu0 0.0
        %7275 = vmatprep.subr.mxu0 0.0
        %7276 = vmatpush1.msra.mxu0 0.0
        %7277 = vmatprep.subr.mxu0 0.0
        %7278 = vmatpush1.msra.mxu0 0.0
        %7279 = vmatprep.subr.mxu0 0.0
        %7280 = vmatpush1.msra.mxu0 0.0
        %7281 = vmatprep.subr.mxu0 0.0
        %7282 = vmatpush1.msra.mxu0 0.0
        %7283 = vmatprep.subr.mxu0 0.0
        %7284 = vmatpush1.msra.mxu0 0.0
        %7285 = vmatprep.subr.mxu0 0.0
        %7286 = vmatpush1.msra.mxu0 0.0
        %7287 = vmatprep.subr.mxu0 0.0
        %7288 = vmatpush1.msra.mxu0 0.0
        %7289 = vmatprep.subr.mxu0 0.0
        %7290 = vmatpush1.msra.mxu0 0.0
        %7291 = vmatprep.mubr.f32.mxu0 0.0
        %7292 = vmatmul.mubr.f32.gmra.mrb[0].mxu0 %v601
        %v7293 = vpop.f32.mrb[0].mxu0
        %v7294 = vadd.f32 0.0, %v7293
        %v7295 = vpop.f32.mrb[0].mxu0
        %7296 = vmatprep.mubr.f32.mxu0 0.0
        %7297 = vmatmul.mubr.f32.gmra.mrb[0].mxu0 %v602
        %v7298 = vpop.f32.mrb[0].mxu0
        %v7299 = vadd.f32 0.0, %v7298
        %v7300 = vpop.f32.mrb[0].mxu0
        %7301 = vdwg.mxu0
        %v7303 = vsel %vm694, %v7050, 0
        %v7306 = vsel %vm694, %v7055, 0
        %v7309 = vsel %vm694, %v7060, 0
        %v7312 = vsel %vm694, %v7065, 0
        %v7315 = vsel %vm694, %v7070, 0
        %v7318 = vsel %vm694, %v7075, 0
        %v7321 = vsel %vm694, %v7080, 0
        %v7324 = vsel %vm694, %v7085, 0
        %7326 = vmatprep.subr.mxu0 0.0
        %7327 = vmatpush1.msra.mxu0 %v7294
        %7328 = vmatprep.subr.mxu0 0.0
        %7329 = vmatpush1.msra.mxu0 %v7299
        %7330 = vmatprep.subr.mxu0 0.0
        %7331 = vmatpush1.msra.mxu0 0.0
        %7332 = vmatprep.subr.mxu0 0.0
        %7333 = vmatpush1.msra.mxu0 0.0
        %7334 = vmatprep.subr.mxu0 0.0
        %7335 = vmatpush1.msra.mxu0 0.0
        %7336 = vmatprep.subr.mxu0 0.0
        %7337 = vmatpush1.msra.mxu0 0.0
        %7338 = vmatprep.subr.mxu0 0.0
        %7339 = vmatpush1.msra.mxu0 0.0
        %7340 = vmatprep.subr.mxu0 0.0
        %7341 = vmatpush1.msra.mxu0 0.0
        %7342 = vmatprep.subr.mxu0 0.0
        %7343 = vmatpush1.msra.mxu0 0.0
        %7344 = vmatprep.subr.mxu0 0.0
        %7345 = vmatpush1.msra.mxu0 0.0
        %7346 = vmatprep.subr.mxu0 0.0
        %7347 = vmatpush1.msra.mxu0 0.0
        %7348 = vmatprep.subr.mxu0 0.0
        %7349 = vmatpush1.msra.mxu0 0.0
        %7350 = vmatprep.subr.mxu0 0.0
        %7351 = vmatpush1.msra.mxu0 0.0
        %7352 = vmatprep.subr.mxu0 0.0
        %7353 = vmatpush1.msra.mxu0 0.0
        %7354 = vmatprep.subr.mxu0 0.0
        %7355 = vmatpush1.msra.mxu0 0.0
        %7356 = vmatprep.subr.mxu0 0.0
        %7357 = vmatpush1.msra.mxu0 0.0
        %7358 = vmatprep.subr.mxu0 0.0
        %7359 = vmatpush1.msra.mxu0 0.0
        %7360 = vmatprep.subr.mxu0 0.0
        %7361 = vmatpush1.msra.mxu0 0.0
        %7362 = vmatprep.subr.mxu0 0.0
        %7363 = vmatpush1.msra.mxu0 0.0
        %7364 = vmatprep.subr.mxu0 0.0
        %7365 = vmatpush1.msra.mxu0 0.0
        %7366 = vmatprep.subr.mxu0 0.0
        %7367 = vmatpush1.msra.mxu0 0.0
        %7368 = vmatprep.subr.mxu0 0.0
        %7369 = vmatpush1.msra.mxu0 0.0
        %7370 = vmatprep.subr.mxu0 0.0
        %7371 = vmatpush1.msra.mxu0 0.0
        %7372 = vmatprep.subr.mxu0 0.0
        %7373 = vmatpush1.msra.mxu0 0.0
        %7374 = vmatprep.subr.mxu0 0.0
        %7375 = vmatpush1.msra.mxu0 0.0
        %7376 = vmatprep.subr.mxu0 0.0
        %7377 = vmatpush1.msra.mxu0 0.0
        %7378 = vmatprep.subr.mxu0 0.0
        %7379 = vmatpush1.msra.mxu0 0.0
        %7380 = vmatprep.subr.mxu0 0.0
        %7381 = vmatpush1.msra.mxu0 0.0
        %7382 = vmatprep.subr.mxu0 0.0
        %7383 = vmatpush1.msra.mxu0 0.0
        %7384 = vmatprep.subr.mxu0 0.0
        %7385 = vmatpush1.msra.mxu0 0.0
        %7386 = vmatprep.subr.mxu0 0.0
        %7387 = vmatpush1.msra.mxu0 0.0
        %7388 = vmatprep.subr.mxu0 0.0
        %7389 = vmatpush1.msra.mxu0 0.0
        %7390 = vmatprep.mubr.f32.mxu0 0.0
        %7391 = vmatmul.mubr.f32.gmra.mrb[0].mxu0 %v7303
        %v7392 = vpop.f32.mrb[0].mxu0
        %v7393 = vadd.f32 0.0, %v7392
        %v7394 = vpop.f32.mrb[0].mxu0
        %7395 = vmatprep.mubr.f32.mxu0 0.0
        %7396 = vmatmul.mubr.f32.gmra.mrb[0].mxu0 %v7306
        %v7397 = vpop.f32.mrb[0].mxu0
        %v7398 = vadd.f32 0.0, %v7397
        %v7399 = vpop.f32.mrb[0].mxu0
        %7400 = vmatprep.mubr.f32.mxu0 0.0
        %7401 = vmatmul.mubr.f32.gmra.mrb[0].mxu0 %v7309
        %v7402 = vpop.f32.mrb[0].mxu0
        %v7403 = vadd.f32 0.0, %v7402
        %v7404 = vpop.f32.mrb[0].mxu0
        %7405 = vmatprep.mubr.f32.mxu0 0.0
        %7406 = vmatmul.mubr.f32.gmra.mrb[0].mxu0 %v7312
        %v7407 = vpop.f32.mrb[0].mxu0
        %v7408 = vadd.f32 0.0, %v7407
        %v7409 = vpop.f32.mrb[0].mxu0
        %7410 = vmatprep.mubr.f32.mxu0 0.0
        %7411 = vmatmul.mubr.f32.gmra.mrb[0].mxu0 %v7315
        %v7412 = vpop.f32.mrb[0].mxu0
        %v7413 = vadd.f32 0.0, %v7412
        %v7414 = vpop.f32.mrb[0].mxu0
        %7415 = vmatprep.mubr.f32.mxu0 0.0
        %7416 = vmatmul.mubr.f32.gmra.mrb[0].mxu0 %v7318
        %v7417 = vpop.f32.mrb[0].mxu0
        %v7418 = vadd.f32 0.0, %v7417
        %v7419 = vpop.f32.mrb[0].mxu0
        %7420 = vmatprep.mubr.f32.mxu0 0.0
        %7421 = vmatmul.mubr.f32.gmra.mrb[0].mxu0 %v7321
        %v7422 = vpop.f32.mrb[0].mxu0
        %v7423 = vadd.f32 0.0, %v7422
        %v7424 = vpop.f32.mrb[0].mxu0
        %7425 = vmatprep.mubr.f32.mxu0 0.0
        %7426 = vmatmul.mubr.f32.gmra.mrb[0].mxu0 %v7324
        %v7427 = vpop.f32.mrb[0].mxu0
        %v7428 = vadd.f32 0.0, %v7427
        %v7429 = vpop.f32.mrb[0].mxu0
        %7430 = vdwg.mxu0
        %v7431 = vsel %vm694, %v7393, -inf
        %7432 = vmax.xlane.f32.xlu0 %v7431
        %v7433 = vpop.xlane.xlu0 %7432
        %v7434 = vsel %vm694, %v7398, -inf
        %7435 = vmax.xlane.f32.xlu0 %v7434
        %v7436 = vpop.xlane.xlu0 %7435
        %v7437 = vsel %vm694, %v7403, -inf
        %7438 = vmax.xlane.f32.xlu0 %v7437
        %v7439 = vpop.xlane.xlu0 %7438
        %v7440 = vsel %vm694, %v7408, -inf
        %7441 = vmax.xlane.f32.xlu0 %v7440
        %v7442 = vpop.xlane.xlu0 %7441
        %v7443 = vsel %vm694, %v7413, -inf
        %7444 = vmax.xlane.f32.xlu0 %v7443
        %v7445 = vpop.xlane.xlu0 %7444
        %v7446 = vsel %vm694, %v7418, -inf
        %7447 = vmax.xlane.f32.xlu0 %v7446
        %v7448 = vpop.xlane.xlu0 %7447
        %v7449 = vsel %vm694, %v7423, -inf
        %7450 = vmax.xlane.f32.xlu0 %v7449
        %v7451 = vpop.xlane.xlu0 %7450
        %v7452 = vsel %vm694, %v7428, -inf
        %7453 = vmax.xlane.f32.xlu0 %v7452
        %v7454 = vpop.xlane.xlu0 %7453
        %v7455 = vsub.f32 -inf, %v7433
        %v7456 = vsub.f32 -inf, %v7436
        %v7457 = vsub.f32 -inf, %v7439
        %v7458 = vsub.f32 -inf, %v7442
        %v7459 = vsub.f32 -inf, %v7445
        %v7460 = vsub.f32 -inf, %v7448
        %v7461 = vsub.f32 -inf, %v7451
        %v7462 = vsub.f32 -inf, %v7454
        %v7463 = vmul.f32 %v7455, 1.442695
        %v7464 = vpow.pop %v7463
        %v7465 = vmul.f32 %v7456, 1.442695
        %v7466 = vpow.pop %v7465
        %v7467 = vmul.f32 %v7457, 1.442695
        %v7468 = vpow.pop %v7467
        %v7469 = vmul.f32 %v7458, 1.442695
        %v7470 = vpow.pop %v7469
        %v7471 = vmul.f32 %v7459, 1.442695
        %v7472 = vpow.pop %v7471
        %v7473 = vmul.f32 %v7460, 1.442695
        %v7474 = vpow.pop %v7473
        %v7475 = vmul.f32 %v7461, 1.442695
        %v7476 = vpow.pop %v7475
        %v7477 = vmul.f32 %v7462, 1.442695
        %v7478 = vpow.pop %v7477
        %v7479 = vsub.f32 %v7393, %v7433
        %v7480 = vsub.f32 %v7398, %v7436
        %v7481 = vsub.f32 %v7403, %v7439
        %v7482 = vsub.f32 %v7408, %v7442
        %v7483 = vsub.f32 %v7413, %v7445
        %v7484 = vsub.f32 %v7418, %v7448
        %v7485 = vsub.f32 %v7423, %v7451
        %v7486 = vsub.f32 %v7428, %v7454
        %v7487 = vmul.f32 %v7479, 1.442695
        %v7488 = vpow.pop %v7487
        %v7489 = vmul.f32 %v7480, 1.442695
        %v7490 = vpow.pop %v7489
        %v7491 = vmul.f32 %v7481, 1.442695
        %v7492 = vpow.pop %v7491
        %v7493 = vmul.f32 %v7482, 1.442695
        %v7494 = vpow.pop %v7493
        %v7495 = vmul.f32 %v7483, 1.442695
        %v7496 = vpow.pop %v7495
        %v7497 = vmul.f32 %v7484, 1.442695
        %v7498 = vpow.pop %v7497
        %v7499 = vmul.f32 %v7485, 1.442695
        %v7500 = vpow.pop %v7499
        %v7501 = vmul.f32 %v7486, 1.442695
        %v7502 = vpow.pop %v7501
        %v7503 = vmul.f32 %v7464, 0.0
        %v7504 = vmul.f32 %v7466, 0.0
        %v7505 = vmul.f32 %v7468, 0.0
        %v7506 = vmul.f32 %v7470, 0.0
        %v7507 = vmul.f32 %v7472, 0.0
        %v7508 = vmul.f32 %v7474, 0.0
        %v7509 = vmul.f32 %v7476, 0.0
        %v7510 = vmul.f32 %v7478, 0.0
        %v7511 = vsel %vm694, %v7488, 0.0
        %7512 = vadd.xlane.f32.xlu0 %v7511
        %v7513 = vpop.xlane.xlu0 %7512
        %v7514 = vsel %vm694, %v7490, 0.0
        %7515 = vadd.xlane.f32.xlu0 %v7514
        %v7516 = vpop.xlane.xlu0 %7515
        %v7517 = vsel %vm694, %v7492, 0.0
        %7518 = vadd.xlane.f32.xlu0 %v7517
        %v7519 = vpop.xlane.xlu0 %7518
        %v7520 = vsel %vm694, %v7494, 0.0
        %7521 = vadd.xlane.f32.xlu0 %v7520
        %v7522 = vpop.xlane.xlu0 %7521
        %v7523 = vsel %vm694, %v7496, 0.0
        %7524 = vadd.xlane.f32.xlu0 %v7523
        %v7525 = vpop.xlane.xlu0 %7524
        %v7526 = vsel %vm694, %v7498, 0.0
        %7527 = vadd.xlane.f32.xlu0 %v7526
        %v7528 = vpop.xlane.xlu0 %7527
        %v7529 = vsel %vm694, %v7500, 0.0
        %7530 = vadd.xlane.f32.xlu0 %v7529
        %v7531 = vpop.xlane.xlu0 %7530
        %v7532 = vsel %vm694, %v7502, 0.0
        %7533 = vadd.xlane.f32.xlu0 %v7532
        %v7534 = vpop.xlane.xlu0 %7533
        %v7535 = vadd.f32 %v7503, %v7513
        %v7536 = vadd.f32 %v7504, %v7516
        %v7537 = vadd.f32 %v7505, %v7519
        %v7538 = vadd.f32 %v7506, %v7522
        %v7539 = vadd.f32 %v7507, %v7525
        %v7540 = vadd.f32 %v7508, %v7528
        %v7541 = vadd.f32 %v7509, %v7531
        %v7542 = vadd.f32 %v7510, %v7534
        %v7544 = vsel %vm694, %v7488, 0
        %v7547 = vsel %vm694, %v7490, 0
        %v7550 = vsel %vm694, %v7492, 0
        %v7553 = vsel %vm694, %v7494, 0
        %v7556 = vsel %vm694, %v7496, 0
        %v7559 = vsel %vm694, %v7498, 0
        %v7562 = vsel %vm694, %v7500, 0
        %v7565 = vsel %vm694, %v7502, 0
        %7567 = vmatprep.subr.mxu0 0.0
        %7568 = vmatpush1.msra.mxu0 %v7172
        %7569 = vmatprep.subr.mxu0 0.0
        %7570 = vmatpush1.msra.mxu0 %v7177
        %7571 = vmatprep.subr.mxu0 0.0
        %7572 = vmatpush1.msra.mxu0 0.0
        %7573 = vmatprep.subr.mxu0 0.0
        %7574 = vmatpush1.msra.mxu0 0.0
        %7575 = vmatprep.subr.mxu0 0.0
        %7576 = vmatpush1.msra.mxu0 0.0
        %7577 = vmatprep.subr.mxu0 0.0
        %7578 = vmatpush1.msra.mxu0 0.0
        %7579 = vmatprep.subr.mxu0 0.0
        %7580 = vmatpush1.msra.mxu0 0.0
        %7581 = vmatprep.subr.mxu0 0.0
        %7582 = vmatpush1.msra.mxu0 0.0
        %7583 = vmatprep.subr.mxu0 0.0
        %7584 = vmatpush1.msra.mxu0 0.0
        %7585 = vmatprep.subr.mxu0 0.0
        %7586 = vmatpush1.msra.mxu0 0.0
        %7587 = vmatprep.subr.mxu0 0.0
        %7588 = vmatpush1.msra.mxu0 0.0
        %7589 = vmatprep.subr.mxu0 0.0
        %7590 = vmatpush1.msra.mxu0 0.0
        %7591 = vmatprep.subr.mxu0 0.0
        %7592 = vmatpush1.msra.mxu0 0.0
        %7593 = vmatprep.subr.mxu0 0.0
        %7594 = vmatpush1.msra.mxu0 0.0
        %7595 = vmatprep.subr.mxu0 0.0
        %7596 = vmatpush1.msra.mxu0 0.0
        %7597 = vmatprep.subr.mxu0 0.0
        %7598 = vmatpush1.msra.mxu0 0.0
        %7599 = vmatprep.subr.mxu0 0.0
        %7600 = vmatpush1.msra.mxu0 0.0
        %7601 = vmatprep.subr.mxu0 0.0
        %7602 = vmatpush1.msra.mxu0 0.0
        %7603 = vmatprep.subr.mxu0 0.0
        %7604 = vmatpush1.msra.mxu0 0.0
        %7605 = vmatprep.subr.mxu0 0.0
        %7606 = vmatpush1.msra.mxu0 0.0
        %7607 = vmatprep.subr.mxu0 0.0
        %7608 = vmatpush1.msra.mxu0 0.0
        %7609 = vmatprep.subr.mxu0 0.0
        %7610 = vmatpush1.msra.mxu0 0.0
        %7611 = vmatprep.subr.mxu0 0.0
        %7612 = vmatpush1.msra.mxu0 0.0
        %7613 = vmatprep.subr.mxu0 0.0
        %7614 = vmatpush1.msra.mxu0 0.0
        %7615 = vmatprep.subr.mxu0 0.0
        %7616 = vmatpush1.msra.mxu0 0.0
        %7617 = vmatprep.subr.mxu0 0.0
        %7618 = vmatpush1.msra.mxu0 0.0
        %7619 = vmatprep.subr.mxu0 0.0
        %7620 = vmatpush1.msra.mxu0 0.0
        %7621 = vmatprep.subr.mxu0 0.0
        %7622 = vmatpush1.msra.mxu0 0.0
        %7623 = vmatprep.subr.mxu0 0.0
        %7624 = vmatpush1.msra.mxu0 0.0
        %7625 = vmatprep.subr.mxu0 0.0
        %7626 = vmatpush1.msra.mxu0 0.0
        %7627 = vmatprep.subr.mxu0 0.0
        %7628 = vmatpush1.msra.mxu0 0.0
        %7629 = vmatprep.subr.mxu0 0.0
        %7630 = vmatpush1.msra.mxu0 0.0
        %7631 = vmatprep.mubr.f32.mxu0 0.0
        %7632 = vmatmul.mubr.f32.gmra.mrb[0].mxu0 %v7544
        %v7633 = vpop.f32.mrb[0].mxu0
        %v7634 = vadd.f32 0.0, %v7633
        %v7635 = vpop.f32.mrb[0].mxu0
        %7636 = vmatprep.mubr.f32.mxu0 0.0
        %7637 = vmatmul.mubr.f32.gmra.mrb[0].mxu0 %v7547
        %v7638 = vpop.f32.mrb[0].mxu0
        %v7639 = vadd.f32 0.0, %v7638
        %v7640 = vpop.f32.mrb[0].mxu0
        %7641 = vmatprep.mubr.f32.mxu0 0.0
        %7642 = vmatmul.mubr.f32.gmra.mrb[0].mxu0 %v7550
        %v7643 = vpop.f32.mrb[0].mxu0
        %v7644 = vadd.f32 0.0, %v7643
        %v7645 = vpop.f32.mrb[0].mxu0
        %7646 = vmatprep.mubr.f32.mxu0 0.0
        %7647 = vmatmul.mubr.f32.gmra.mrb[0].mxu0 %v7553
        %v7648 = vpop.f32.mrb[0].mxu0
        %v7649 = vadd.f32 0.0, %v7648
        %v7650 = vpop.f32.mrb[0].mxu0
        %7651 = vmatprep.mubr.f32.mxu0 0.0
        %7652 = vmatmul.mubr.f32.gmra.mrb[0].mxu0 %v7556
        %v7653 = vpop.f32.mrb[0].mxu0
        %v7654 = vadd.f32 0.0, %v7653
        %v7655 = vpop.f32.mrb[0].mxu0
        %7656 = vmatprep.mubr.f32.mxu0 0.0
        %7657 = vmatmul.mubr.f32.gmra.mrb[0].mxu0 %v7559
        %v7658 = vpop.f32.mrb[0].mxu0
        %v7659 = vadd.f32 0.0, %v7658
        %v7660 = vpop.f32.mrb[0].mxu0
        %7661 = vmatprep.mubr.f32.mxu0 0.0
        %7662 = vmatmul.mubr.f32.gmra.mrb[0].mxu0 %v7562
        %v7663 = vpop.f32.mrb[0].mxu0
        %v7664 = vadd.f32 0.0, %v7663
        %v7665 = vpop.f32.mrb[0].mxu0
        %7666 = vmatprep.mubr.f32.mxu0 0.0
        %7667 = vmatmul.mubr.f32.gmra.mrb[0].mxu0 %v7565
        %v7668 = vpop.f32.mrb[0].mxu0
        %v7669 = vadd.f32 0.0, %v7668
        %v7670 = vpop.f32.mrb[0].mxu0
        %7671 = vdwg.mxu0
        %v7672 = vadd.f32 %v7503, %v7634
        %v7673 = vadd.f32 %v7504, %v7639
        %v7674 = vadd.f32 %v7505, %v7644
        %v7675 = vadd.f32 %v7506, %v7649
        %v7676 = vadd.f32 %v7507, %v7654
        %v7677 = vadd.f32 %v7508, %v7659
        %v7678 = vadd.f32 %v7509, %v7664
        %v7679 = vadd.f32 %v7510, %v7669
        %7680 = vmatprep.subr.mxu0 0.0
        %7681 = vmatpush1.msra.mxu0 %v7211
        %7682 = vmatprep.subr.mxu0 0.0
        %7683 = vmatpush1.msra.mxu0 %v7212
        %7684 = vmatprep.subr.mxu0 0.0
        %7685 = vmatpush1.msra.mxu0 %v7213
        %7686 = vmatprep.subr.mxu0 0.0
        %7687 = vmatpush1.msra.mxu0 %v7214
        %7688 = vmatprep.subr.mxu0 0.0
        %7689 = vmatpush1.msra.mxu0 %v7215
        %7690 = vmatprep.subr.mxu0 0.0
        %7691 = vmatpush1.msra.mxu0 %v7216
        %7692 = vmatprep.subr.mxu0 0.0
        %7693 = vmatpush1.msra.mxu0 %v7217
        %7694 = vmatprep.subr.mxu0 0.0
        %7695 = vmatpush1.msra.mxu0 %v7218
        %7696 = vmatprep.subr.mxu0 0.0
        %7697 = vmatpush1.msra.mxu0 %v7219
        %7698 = vmatprep.subr.mxu0 0.0
        %7699 = vmatpush1.msra.mxu0 %v7220
        %7700 = vmatprep.subr.mxu0 0.0
        %7701 = vmatpush1.msra.mxu0 %v7221
        %7702 = vmatprep.subr.mxu0 0.0
        %7703 = vmatpush1.msra.mxu0 %v7222
        %7704 = vmatprep.subr.mxu0 0.0
        %7705 = vmatpush1.msra.mxu0 %v7223
        %7706 = vmatprep.subr.mxu0 0.0
        %7707 = vmatpush1.msra.mxu0 %v7224
        %7708 = vmatprep.subr.mxu0 0.0
        %7709 = vmatpush1.msra.mxu0 %v7225
        %7710 = vmatprep.subr.mxu0 0.0
        %7711 = vmatpush1.msra.mxu0 %v7226
        %7712 = vmatprep.subr.mxu0 0.0
        %7713 = vmatpush1.msra.mxu0 0.0
        %7714 = vmatprep.subr.mxu0 0.0
        %7715 = vmatpush1.msra.mxu0 0.0
        %7716 = vmatprep.subr.mxu0 0.0
        %7717 = vmatpush1.msra.mxu0 0.0
        %7718 = vmatprep.subr.mxu0 0.0
        %7719 = vmatpush1.msra.mxu0 0.0
        %7720 = vmatprep.subr.mxu0 0.0
        %7721 = vmatpush1.msra.mxu0 0.0
        %7722 = vmatprep.subr.mxu0 0.0
        %7723 = vmatpush1.msra.mxu0 0.0
        %7724 = vmatprep.subr.mxu0 0.0
        %7725 = vmatpush1.msra.mxu0 0.0
        %7726 = vmatprep.subr.mxu0 0.0
        %7727 = vmatpush1.msra.mxu0 0.0
        %7728 = vmatprep.subr.mxu0 0.0
        %7729 = vmatpush1.msra.mxu0 0.0
        %7730 = vmatprep.subr.mxu0 0.0
        %7731 = vmatpush1.msra.mxu0 0.0
        %7732 = vmatprep.subr.mxu0 0.0
        %7733 = vmatpush1.msra.mxu0 0.0
        %7734 = vmatprep.subr.mxu0 0.0
        %7735 = vmatpush1.msra.mxu0 0.0
        %7736 = vmatprep.subr.mxu0 0.0
        %7737 = vmatpush1.msra.mxu0 0.0
        %7738 = vmatprep.subr.mxu0 0.0
        %7739 = vmatpush1.msra.mxu0 0.0
        %7740 = vmatprep.subr.mxu0 0.0
        %7741 = vmatpush1.msra.mxu0 0.0
        %7742 = vmatprep.subr.mxu0 0.0
        %7743 = vmatpush1.msra.mxu0 0.0
        %7744 = vmatprep.mubr.f32.mxu0 0.0
        %7745 = vmatmul.mubr.f32.gmra.mrb[0].mxu0 %v1074
        %v7746 = vpop.f32.mrb[0].mxu0
        %v7747 = vadd.f32 0.0, %v7746
        %v7748 = vpop.f32.mrb[0].mxu0
        %7749 = vmatprep.mubr.f32.mxu0 0.0
        %7750 = vmatmul.mubr.f32.gmra.mrb[0].mxu0 %v1075
        %v7751 = vpop.f32.mrb[0].mxu0
        %v7752 = vadd.f32 0.0, %v7751
        %v7753 = vpop.f32.mrb[0].mxu0
        %7754 = vdwg.mxu0
        %7755 = vmatprep.subr.mxu0 0.0
        %7756 = vmatpush1.msra.mxu0 %v7747
        %7757 = vmatprep.subr.mxu0 0.0
        %7758 = vmatpush1.msra.mxu0 %v7752
        %7759 = vmatprep.subr.mxu0 0.0
        %7760 = vmatpush1.msra.mxu0 0.0
        %7761 = vmatprep.subr.mxu0 0.0
        %7762 = vmatpush1.msra.mxu0 0.0
        %7763 = vmatprep.subr.mxu0 0.0
        %7764 = vmatpush1.msra.mxu0 0.0
        %7765 = vmatprep.subr.mxu0 0.0
        %7766 = vmatpush1.msra.mxu0 0.0
        %7767 = vmatprep.subr.mxu0 0.0
        %7768 = vmatpush1.msra.mxu0 0.0
        %7769 = vmatprep.subr.mxu0 0.0
        %7770 = vmatpush1.msra.mxu0 0.0
        %7771 = vmatprep.subr.mxu0 0.0
        %7772 = vmatpush1.msra.mxu0 0.0
        %7773 = vmatprep.subr.mxu0 0.0
        %7774 = vmatpush1.msra.mxu0 0.0
        %7775 = vmatprep.subr.mxu0 0.0
        %7776 = vmatpush1.msra.mxu0 0.0
        %7777 = vmatprep.subr.mxu0 0.0
        %7778 = vmatpush1.msra.mxu0 0.0
        %7779 = vmatprep.subr.mxu0 0.0
        %7780 = vmatpush1.msra.mxu0 0.0
        %7781 = vmatprep.subr.mxu0 0.0
        %7782 = vmatpush1.msra.mxu0 0.0
        %7783 = vmatprep.subr.mxu0 0.0
        %7784 = vmatpush1.msra.mxu0 0.0
        %7785 = vmatprep.subr.mxu0 0.0
        %7786 = vmatpush1.msra.mxu0 0.0
        %7787 = vmatprep.subr.mxu0 0.0
        %7788 = vmatpush1.msra.mxu0 0.0
        %7789 = vmatprep.subr.mxu0 0.0
        %7790 = vmatpush1.msra.mxu0 0.0
        %7791 = vmatprep.subr.mxu0 0.0
        %7792 = vmatpush1.msra.mxu0 0.0
        %7793 = vmatprep.subr.mxu0 0.0
        %7794 = vmatpush1.msra.mxu0 0.0
        %7795 = vmatprep.subr.mxu0 0.0
        %7796 = vmatpush1.msra.mxu0 0.0
        %7797 = vmatprep.subr.mxu0 0.0
        %7798 = vmatpush1.msra.mxu0 0.0
        %7799 = vmatprep.subr.mxu0 0.0
        %7800 = vmatpush1.msra.mxu0 0.0
        %7801 = vmatprep.subr.mxu0 0.0
        %7802 = vmatpush1.msra.mxu0 0.0
        %7803 = vmatprep.subr.mxu0 0.0
        %7804 = vmatpush1.msra.mxu0 0.0
        %7805 = vmatprep.subr.mxu0 0.0
        %7806 = vmatpush1.msra.mxu0 0.0
        %7807 = vmatprep.subr.mxu0 0.0
        %7808 = vmatpush1.msra.mxu0 0.0
        %7809 = vmatprep.subr.mxu0 0.0
        %7810 = vmatpush1.msra.mxu0 0.0
        %7811 = vmatprep.subr.mxu0 0.0
        %7812 = vmatpush1.msra.mxu0 0.0
        %7813 = vmatprep.subr.mxu0 0.0
        %7814 = vmatpush1.msra.mxu0 0.0
        %7815 = vmatprep.subr.mxu0 0.0
        %7816 = vmatpush1.msra.mxu0 0.0
        %7817 = vmatprep.subr.mxu0 0.0
        %7818 = vmatpush1.msra.mxu0 0.0
        %7819 = vmatprep.mubr.f32.mxu0 0.0
        %7820 = vmatmul.mubr.f32.gmra.mrb[0].mxu0 %v7303
        %v7821 = vpop.f32.mrb[0].mxu0
        %v7822 = vadd.f32 0.0, %v7821
        %v7823 = vpop.f32.mrb[0].mxu0
        %7824 = vmatprep.mubr.f32.mxu0 0.0
        %7825 = vmatmul.mubr.f32.gmra.mrb[0].mxu0 %v7306
        %v7826 = vpop.f32.mrb[0].mxu0
        %v7827 = vadd.f32 0.0, %v7826
        %v7828 = vpop.f32.mrb[0].mxu0
        %7829 = vmatprep.mubr.f32.mxu0 0.0
        %7830 = vmatmul.mubr.f32.gmra.mrb[0].mxu0 %v7309
        %v7831 = vpop.f32.mrb[0].mxu0
        %v7832 = vadd.f32 0.0, %v7831
        %v7833 = vpop.f32.mrb[0].mxu0
        %7834 = vmatprep.mubr.f32.mxu0 0.0
        %7835 = vmatmul.mubr.f32.gmra.mrb[0].mxu0 %v7312
        %v7836 = vpop.f32.mrb[0].mxu0
        %v7837 = vadd.f32 0.0, %v7836
        %v7838 = vpop.f32.mrb[0].mxu0
        %7839 = vmatprep.mubr.f32.mxu0 0.0
        %7840 = vmatmul.mubr.f32.gmra.mrb[0].mxu0 %v7315
        %v7841 = vpop.f32.mrb[0].mxu0
        %v7842 = vadd.f32 0.0, %v7841
        %v7843 = vpop.f32.mrb[0].mxu0
        %7844 = vmatprep.mubr.f32.mxu0 0.0
        %7845 = vmatmul.mubr.f32.gmra.mrb[0].mxu0 %v7318
        %v7846 = vpop.f32.mrb[0].mxu0
        %v7847 = vadd.f32 0.0, %v7846
        %v7848 = vpop.f32.mrb[0].mxu0
        %7849 = vmatprep.mubr.f32.mxu0 0.0
        %7850 = vmatmul.mubr.f32.gmra.mrb[0].mxu0 %v7321
        %v7851 = vpop.f32.mrb[0].mxu0
        %v7852 = vadd.f32 0.0, %v7851
        %v7853 = vpop.f32.mrb[0].mxu0
        %7854 = vmatprep.mubr.f32.mxu0 0.0
        %7855 = vmatmul.mubr.f32.gmra.mrb[0].mxu0 %v7324
        %v7856 = vpop.f32.mrb[0].mxu0
        %v7857 = vadd.f32 0.0, %v7856
        %v7858 = vpop.f32.mrb[0].mxu0
        %7859 = vdwg.mxu0
        %v7860 = vsel %vm694, %v7822, -inf
        %7861 = vmax.xlane.f32.xlu0 %v7860
        %v7862 = vpop.xlane.xlu0 %7861
        %v7863 = vsel %vm694, %v7827, -inf
        %7864 = vmax.xlane.f32.xlu0 %v7863
        %v7865 = vpop.xlane.xlu0 %7864
        %v7866 = vsel %vm694, %v7832, -inf
        %7867 = vmax.xlane.f32.xlu0 %v7866
        %v7868 = vpop.xlane.xlu0 %7867
        %v7869 = vsel %vm694, %v7837, -inf
        %7870 = vmax.xlane.f32.xlu0 %v7869
        %v7871 = vpop.xlane.xlu0 %7870
        %v7872 = vsel %vm694, %v7842, -inf
        %7873 = vmax.xlane.f32.xlu0 %v7872
        %v7874 = vpop.xlane.xlu0 %7873
        %v7875 = vsel %vm694, %v7847, -inf
        %7876 = vmax.xlane.f32.xlu0 %v7875
        %v7877 = vpop.xlane.xlu0 %7876
        %v7878 = vsel %vm694, %v7852, -inf
        %7879 = vmax.xlane.f32.xlu0 %v7878
        %v7880 = vpop.xlane.xlu0 %7879
        %v7881 = vsel %vm694, %v7857, -inf
        %7882 = vmax.xlane.f32.xlu0 %v7881
        %v7883 = vpop.xlane.xlu0 %7882
        %v7884 = vmax.f32 %v7433, %v7862
        %v7885 = vmax.f32 %v7436, %v7865
        %v7886 = vmax.f32 %v7439, %v7868
        %v7887 = vmax.f32 %v7442, %v7871
        %v7888 = vmax.f32 %v7445, %v7874
        %v7889 = vmax.f32 %v7448, %v7877
        %v7890 = vmax.f32 %v7451, %v7880
        %v7891 = vmax.f32 %v7454, %v7883
        %v7892 = vsub.f32 %v7433, %v7884
        %v7893 = vsub.f32 %v7436, %v7885
        %v7894 = vsub.f32 %v7439, %v7886
        %v7895 = vsub.f32 %v7442, %v7887
        %v7896 = vsub.f32 %v7445, %v7888
        %v7897 = vsub.f32 %v7448, %v7889
        %v7898 = vsub.f32 %v7451, %v7890
        %v7899 = vsub.f32 %v7454, %v7891
        %v7900 = vmul.f32 %v7892, 1.442695
        %v7901 = vpow.pop %v7900
        %v7902 = vmul.f32 %v7893, 1.442695
        %v7903 = vpow.pop %v7902
        %v7904 = vmul.f32 %v7894, 1.442695
        %v7905 = vpow.pop %v7904
        %v7906 = vmul.f32 %v7895, 1.442695
        %v7907 = vpow.pop %v7906
        %v7908 = vmul.f32 %v7896, 1.442695
        %v7909 = vpow.pop %v7908
        %v7910 = vmul.f32 %v7897, 1.442695
        %v7911 = vpow.pop %v7910
        %v7912 = vmul.f32 %v7898, 1.442695
        %v7913 = vpow.pop %v7912
        %v7914 = vmul.f32 %v7899, 1.442695
        %v7915 = vpow.pop %v7914
        %v7916 = vsub.f32 %v7822, %v7884
        %v7917 = vsub.f32 %v7827, %v7885
        %v7918 = vsub.f32 %v7832, %v7886
        %v7919 = vsub.f32 %v7837, %v7887
        %v7920 = vsub.f32 %v7842, %v7888
        %v7921 = vsub.f32 %v7847, %v7889
        %v7922 = vsub.f32 %v7852, %v7890
        %v7923 = vsub.f32 %v7857, %v7891
        %v7924 = vmul.f32 %v7916, 1.442695
        %v7925 = vpow.pop %v7924
        %v7926 = vmul.f32 %v7917, 1.442695
        %v7927 = vpow.pop %v7926
        %v7928 = vmul.f32 %v7918, 1.442695
        %v7929 = vpow.pop %v7928
        %v7930 = vmul.f32 %v7919, 1.442695
        %v7931 = vpow.pop %v7930
        %v7932 = vmul.f32 %v7920, 1.442695
        %v7933 = vpow.pop %v7932
        %v7934 = vmul.f32 %v7921, 1.442695
        %v7935 = vpow.pop %v7934
        %v7936 = vmul.f32 %v7922, 1.442695
        %v7937 = vpow.pop %v7936
        %v7938 = vmul.f32 %v7923, 1.442695
        %v7939 = vpow.pop %v7938
        %v7940 = vmul.f32 %v7901, %v7535
        %v7941 = vmul.f32 %v7903, %v7536
        %v7942 = vmul.f32 %v7905, %v7537
        %v7943 = vmul.f32 %v7907, %v7538
        %v7944 = vmul.f32 %v7909, %v7539
        %v7945 = vmul.f32 %v7911, %v7540
        %v7946 = vmul.f32 %v7913, %v7541
        %v7947 = vmul.f32 %v7915, %v7542
        %v7948 = vsel %vm694, %v7925, 0.0
        %7949 = vadd.xlane.f32.xlu0 %v7948
        %v7950 = vpop.xlane.xlu0 %7949
        %v7951 = vsel %vm694, %v7927, 0.0
        %7952 = vadd.xlane.f32.xlu0 %v7951
        %v7953 = vpop.xlane.xlu0 %7952
        %v7954 = vsel %vm694, %v7929, 0.0
        %7955 = vadd.xlane.f32.xlu0 %v7954
        %v7956 = vpop.xlane.xlu0 %7955
        %v7957 = vsel %vm694, %v7931, 0.0
        %7958 = vadd.xlane.f32.xlu0 %v7957
        %v7959 = vpop.xlane.xlu0 %7958
        %v7960 = vsel %vm694, %v7933, 0.0
        %7961 = vadd.xlane.f32.xlu0 %v7960
        %v7962 = vpop.xlane.xlu0 %7961
        %v7963 = vsel %vm694, %v7935, 0.0
        %7964 = vadd.xlane.f32.xlu0 %v7963
        %v7965 = vpop.xlane.xlu0 %7964
        %v7966 = vsel %vm694, %v7937, 0.0
        %7967 = vadd.xlane.f32.xlu0 %v7966
        %v7968 = vpop.xlane.xlu0 %7967
        %v7969 = vsel %vm694, %v7939, 0.0
        %7970 = vadd.xlane.f32.xlu0 %v7969
        %v7971 = vpop.xlane.xlu0 %7970
        %v7972 = vadd.f32 %v7940, %v7950
        %v7973 = vadd.f32 %v7941, %v7953
        %v7974 = vadd.f32 %v7942, %v7956
        %v7975 = vadd.f32 %v7943, %v7959
        %v7976 = vadd.f32 %v7944, %v7962
        %v7977 = vadd.f32 %v7945, %v7965
        %v7978 = vadd.f32 %v7946, %v7968
        %v7979 = vadd.f32 %v7947, %v7971
        %v7980 = vmul.f32 %v7901, %v7672
        %v7981 = vmul.f32 %v7903, %v7673
        %v7982 = vmul.f32 %v7905, %v7674
        %v7983 = vmul.f32 %v7907, %v7675
        %v7984 = vmul.f32 %v7909, %v7676
        %v7985 = vmul.f32 %v7911, %v7677
        %v7986 = vmul.f32 %v7913, %v7678
        %v7987 = vmul.f32 %v7915, %v7679
        %v7989 = vsel %vm694, %v7925, 0
        %v7992 = vsel %vm694, %v7927, 0
        %v7995 = vsel %vm694, %v7929, 0
        %v7998 = vsel %vm694, %v7931, 0
        %v8001 = vsel %vm694, %v7933, 0
        %v8004 = vsel %vm694, %v7935, 0
        %v8007 = vsel %vm694, %v7937, 0
        %v8010 = vsel %vm694, %v7939, 0
        %8012 = vmatprep.subr.mxu0 0.0
        %8013 = vmatpush1.msra.mxu0 %v7182
        %8014 = vmatprep.subr.mxu0 0.0
        %8015 = vmatpush1.msra.mxu0 %v7187
        %8016 = vmatprep.subr.mxu0 0.0
        %8017 = vmatpush1.msra.mxu0 0.0
        %8018 = vmatprep.subr.mxu0 0.0
        %8019 = vmatpush1.msra.mxu0 0.0
        %8020 = vmatprep.subr.mxu0 0.0
        %8021 = vmatpush1.msra.mxu0 0.0
        %8022 = vmatprep.subr.mxu0 0.0
        %8023 = vmatpush1.msra.mxu0 0.0
        %8024 = vmatprep.subr.mxu0 0.0
        %8025 = vmatpush1.msra.mxu0 0.0
        %8026 = vmatprep.subr.mxu0 0.0
        %8027 = vmatpush1.msra.mxu0 0.0
        %8028 = vmatprep.subr.mxu0 0.0
        %8029 = vmatpush1.msra.mxu0 0.0
        %8030 = vmatprep.subr.mxu0 0.0
        %8031 = vmatpush1.msra.mxu0 0.0
        %8032 = vmatprep.subr.mxu0 0.0
        %8033 = vmatpush1.msra.mxu0 0.0
        %8034 = vmatprep.subr.mxu0 0.0
        %8035 = vmatpush1.msra.mxu0 0.0
        %8036 = vmatprep.subr.mxu0 0.0
        %8037 = vmatpush1.msra.mxu0 0.0
        %8038 = vmatprep.subr.mxu0 0.0
        %8039 = vmatpush1.msra.mxu0 0.0
        %8040 = vmatprep.subr.mxu0 0.0
        %8041 = vmatpush1.msra.mxu0 0.0
        %8042 = vmatprep.subr.mxu0 0.0
        %8043 = vmatpush1.msra.mxu0 0.0
        %8044 = vmatprep.subr.mxu0 0.0
        %8045 = vmatpush1.msra.mxu0 0.0
        %8046 = vmatprep.subr.mxu0 0.0
        %8047 = vmatpush1.msra.mxu0 0.0
        %8048 = vmatprep.subr.mxu0 0.0
        %8049 = vmatpush1.msra.mxu0 0.0
        %8050 = vmatprep.subr.mxu0 0.0
        %8051 = vmatpush1.msra.mxu0 0.0
        %8052 = vmatprep.subr.mxu0 0.0
        %8053 = vmatpush1.msra.mxu0 0.0
        %8054 = vmatprep.subr.mxu0 0.0
        %8055 = vmatpush1.msra.mxu0 0.0
        %8056 = vmatprep.subr.mxu0 0.0
        %8057 = vmatpush1.msra.mxu0 0.0
        %8058 = vmatprep.subr.mxu0 0.0
        %8059 = vmatpush1.msra.mxu0 0.0
        %8060 = vmatprep.subr.mxu0 0.0
        %8061 = vmatpush1.msra.mxu0 0.0
        %8062 = vmatprep.subr.mxu0 0.0
        %8063 = vmatpush1.msra.mxu0 0.0
        %8064 = vmatprep.subr.mxu0 0.0
        %8065 = vmatpush1.msra.mxu0 0.0
        %8066 = vmatprep.subr.mxu0 0.0
        %8067 = vmatpush1.msra.mxu0 0.0
        %8068 = vmatprep.subr.mxu0 0.0
        %8069 = vmatpush1.msra.mxu0 0.0
        %8070 = vmatprep.subr.mxu0 0.0
        %8071 = vmatpush1.msra.mxu0 0.0
        %8072 = vmatprep.subr.mxu0 0.0
        %8073 = vmatpush1.msra.mxu0 0.0
        %8074 = vmatprep.subr.mxu0 0.0
        %8075 = vmatpush1.msra.mxu0 0.0
        %8076 = vmatprep.mubr.f32.mxu0 0.0
        %8077 = vmatmul.mubr.f32.gmra.mrb[0].mxu0 %v7989
        %v8078 = vpop.f32.mrb[0].mxu0
        %v8079 = vadd.f32 0.0, %v8078
        %v8080 = vpop.f32.mrb[0].mxu0
        %8081 = vmatprep.mubr.f32.mxu0 0.0
        %8082 = vmatmul.mubr.f32.gmra.mrb[0].mxu0 %v7992
        %v8083 = vpop.f32.mrb[0].mxu0
        %v8084 = vadd.f32 0.0, %v8083
        %v8085 = vpop.f32.mrb[0].mxu0
        %8086 = vmatprep.mubr.f32.mxu0 0.0
        %8087 = vmatmul.mubr.f32.gmra.mrb[0].mxu0 %v7995
        %v8088 = vpop.f32.mrb[0].mxu0
        %v8089 = vadd.f32 0.0, %v8088
        %v8090 = vpop.f32.mrb[0].mxu0
        %8091 = vmatprep.mubr.f32.mxu0 0.0
        %8092 = vmatmul.mubr.f32.gmra.mrb[0].mxu0 %v7998
        %v8093 = vpop.f32.mrb[0].mxu0
        %v8094 = vadd.f32 0.0, %v8093
        %v8095 = vpop.f32.mrb[0].mxu0
        %8096 = vmatprep.mubr.f32.mxu0 0.0
        %8097 = vmatmul.mubr.f32.gmra.mrb[0].mxu0 %v8001
        %v8098 = vpop.f32.mrb[0].mxu0
        %v8099 = vadd.f32 0.0, %v8098
        %v8100 = vpop.f32.mrb[0].mxu0
        %8101 = vmatprep.mubr.f32.mxu0 0.0
        %8102 = vmatmul.mubr.f32.gmra.mrb[0].mxu0 %v8004
        %v8103 = vpop.f32.mrb[0].mxu0
        %v8104 = vadd.f32 0.0, %v8103
        %v8105 = vpop.f32.mrb[0].mxu0
        %8106 = vmatprep.mubr.f32.mxu0 0.0
        %8107 = vmatmul.mubr.f32.gmra.mrb[0].mxu0 %v8007
        %v8108 = vpop.f32.mrb[0].mxu0
        %v8109 = vadd.f32 0.0, %v8108
        %v8110 = vpop.f32.mrb[0].mxu0
        %8111 = vmatprep.mubr.f32.mxu0 0.0
        %8112 = vmatmul.mubr.f32.gmra.mrb[0].mxu0 %v8010
        %v8113 = vpop.f32.mrb[0].mxu0
        %v8114 = vadd.f32 0.0, %v8113
        %v8115 = vpop.f32.mrb[0].mxu0
        %8116 = vdwg.mxu0
        %v8117 = vadd.f32 %v7980, %v8079
        %v8118 = vadd.f32 %v7981, %v8084
        %v8119 = vadd.f32 %v7982, %v8089
        %v8120 = vadd.f32 %v7983, %v8094
        %v8121 = vadd.f32 %v7984, %v8099
        %v8122 = vadd.f32 %v7985, %v8104
        %v8123 = vadd.f32 %v7986, %v8109
        %v8124 = vadd.f32 %v7987, %v8114
        %8125 = vmatprep.subr.mxu0 0.0
        %8126 = vmatpush1.msra.mxu0 %v7211
        %8127 = vmatprep.subr.mxu0 0.0
        %8128 = vmatpush1.msra.mxu0 %v7212
        %8129 = vmatprep.subr.mxu0 0.0
        %8130 = vmatpush1.msra.mxu0 %v7213
        %8131 = vmatprep.subr.mxu0 0.0
        %8132 = vmatpush1.msra.mxu0 %v7214
        %8133 = vmatprep.subr.mxu0 0.0
        %8134 = vmatpush1.msra.mxu0 %v7215
        %8135 = vmatprep.subr.mxu0 0.0
        %8136 = vmatpush1.msra.mxu0 %v7216
        %8137 = vmatprep.subr.mxu0 0.0
        %8138 = vmatpush1.msra.mxu0 %v7217
        %8139 = vmatprep.subr.mxu0 0.0
        %8140 = vmatpush1.msra.mxu0 %v7218
        %8141 = vmatprep.subr.mxu0 0.0
        %8142 = vmatpush1.msra.mxu0 %v7219
        %8143 = vmatprep.subr.mxu0 0.0
        %8144 = vmatpush1.msra.mxu0 %v7220
        %8145 = vmatprep.subr.mxu0 0.0
        %8146 = vmatpush1.msra.mxu0 %v7221
        %8147 = vmatprep.subr.mxu0 0.0
        %8148 = vmatpush1.msra.mxu0 %v7222
        %8149 = vmatprep.subr.mxu0 0.0
        %8150 = vmatpush1.msra.mxu0 %v7223
        %8151 = vmatprep.subr.mxu0 0.0
        %8152 = vmatpush1.msra.mxu0 %v7224
        %8153 = vmatprep.subr.mxu0 0.0
        %8154 = vmatpush1.msra.mxu0 %v7225
        %8155 = vmatprep.subr.mxu0 0.0
        %8156 = vmatpush1.msra.mxu0 %v7226
        %8157 = vmatprep.subr.mxu0 0.0
        %8158 = vmatpush1.msra.mxu0 0.0
        %8159 = vmatprep.subr.mxu0 0.0
        %8160 = vmatpush1.msra.mxu0 0.0
        %8161 = vmatprep.subr.mxu0 0.0
        %8162 = vmatpush1.msra.mxu0 0.0
        %8163 = vmatprep.subr.mxu0 0.0
        %8164 = vmatpush1.msra.mxu0 0.0
        %8165 = vmatprep.subr.mxu0 0.0
        %8166 = vmatpush1.msra.mxu0 0.0
        %8167 = vmatprep.subr.mxu0 0.0
        %8168 = vmatpush1.msra.mxu0 0.0
        %8169 = vmatprep.subr.mxu0 0.0
        %8170 = vmatpush1.msra.mxu0 0.0
        %8171 = vmatprep.subr.mxu0 0.0
        %8172 = vmatpush1.msra.mxu0 0.0
        %8173 = vmatprep.subr.mxu0 0.0
        %8174 = vmatpush1.msra.mxu0 0.0
        %8175 = vmatprep.subr.mxu0 0.0
        %8176 = vmatpush1.msra.mxu0 0.0
        %8177 = vmatprep.subr.mxu0 0.0
        %8178 = vmatpush1.msra.mxu0 0.0
        %8179 = vmatprep.subr.mxu0 0.0
        %8180 = vmatpush1.msra.mxu0 0.0
        %8181 = vmatprep.subr.mxu0 0.0
        %8182 = vmatpush1.msra.mxu0 0.0
        %8183 = vmatprep.subr.mxu0 0.0
        %8184 = vmatpush1.msra.mxu0 0.0
        %8185 = vmatprep.subr.mxu0 0.0
        %8186 = vmatpush1.msra.mxu0 0.0
        %8187 = vmatprep.subr.mxu0 0.0
        %8188 = vmatpush1.msra.mxu0 0.0
        %8189 = vmatprep.mubr.f32.mxu0 0.0
        %8190 = vmatmul.mubr.f32.gmra.mrb[0].mxu0 %v1522
        %v8191 = vpop.f32.mrb[0].mxu0
        %v8192 = vadd.f32 0.0, %v8191
        %v8193 = vpop.f32.mrb[0].mxu0
        %8194 = vmatprep.mubr.f32.mxu0 0.0
        %8195 = vmatmul.mubr.f32.gmra.mrb[0].mxu0 %v1523
        %v8196 = vpop.f32.mrb[0].mxu0
        %v8197 = vadd.f32 0.0, %v8196
        %v8198 = vpop.f32.mrb[0].mxu0
        %8199 = vdwg.mxu0
        %8200 = vmatprep.subr.mxu0 0.0
        %8201 = vmatpush1.msra.mxu0 %v8192
        %8202 = vmatprep.subr.mxu0 0.0
        %8203 = vmatpush1.msra.mxu0 %v8197
        %8204 = vmatprep.subr.mxu0 0.0
        %8205 = vmatpush1.msra.mxu0 0.0
        %8206 = vmatprep.subr.mxu0 0.0
        %8207 = vmatpush1.msra.mxu0 0.0
        %8208 = vmatprep.subr.mxu0 0.0
        %8209 = vmatpush1.msra.mxu0 0.0
        %8210 = vmatprep.subr.mxu0 0.0
        %8211 = vmatpush1.msra.mxu0 0.0
        %8212 = vmatprep.subr.mxu0 0.0
        %8213 = vmatpush1.msra.mxu0 0.0
        %8214 = vmatprep.subr.mxu0 0.0
        %8215 = vmatpush1.msra.mxu0 0.0
        %8216 = vmatprep.subr.mxu0 0.0
        %8217 = vmatpush1.msra.mxu0 0.0
        %8218 = vmatprep.subr.mxu0 0.0
        %8219 = vmatpush1.msra.mxu0 0.0
        %8220 = vmatprep.subr.mxu0 0.0
        %8221 = vmatpush1.msra.mxu0 0.0
        %8222 = vmatprep.subr.mxu0 0.0
        %8223 = vmatpush1.msra.mxu0 0.0
        %8224 = vmatprep.subr.mxu0 0.0
        %8225 = vmatpush1.msra.mxu0 0.0
        %8226 = vmatprep.subr.mxu0 0.0
        %8227 = vmatpush1.msra.mxu0 0.0
        %8228 = vmatprep.subr.mxu0 0.0
        %8229 = vmatpush1.msra.mxu0 0.0
        %8230 = vmatprep.subr.mxu0 0.0
        %8231 = vmatpush1.msra.mxu0 0.0
        %8232 = vmatprep.subr.mxu0 0.0
        %8233 = vmatpush1.msra.mxu0 0.0
        %8234 = vmatprep.subr.mxu0 0.0
        %8235 = vmatpush1.msra.mxu0 0.0
        %8236 = vmatprep.subr.mxu0 0.0
        %8237 = vmatpush1.msra.mxu0 0.0
        %8238 = vmatprep.subr.mxu0 0.0
        %8239 = vmatpush1.msra.mxu0 0.0
        %8240 = vmatprep.subr.mxu0 0.0
        %8241 = vmatpush1.msra.mxu0 0.0
        %8242 = vmatprep.subr.mxu0 0.0
        %8243 = vmatpush1.msra.mxu0 0.0
        %8244 = vmatprep.subr.mxu0 0.0
        %8245 = vmatpush1.msra.mxu0 0.0
        %8246 = vmatprep.subr.mxu0 0.0
        %8247 = vmatpush1.msra.mxu0 0.0
        %8248 = vmatprep.subr.mxu0 0.0
        %8249 = vmatpush1.msra.mxu0 0.0
        %8250 = vmatprep.subr.mxu0 0.0
        %8251 = vmatpush1.msra.mxu0 0.0
        %8252 = vmatprep.subr.mxu0 0.0
        %8253 = vmatpush1.msra.mxu0 0.0
        %8254 = vmatprep.subr.mxu0 0.0
        %8255 = vmatpush1.msra.mxu0 0.0
        %8256 = vmatprep.subr.mxu0 0.0
        %8257 = vmatpush1.msra.mxu0 0.0
        %8258 = vmatprep.subr.mxu0 0.0
        %8259 = vmatpush1.msra.mxu0 0.0
        %8260 = vmatprep.subr.mxu0 0.0
        %8261 = vmatpush1.msra.mxu0 0.0
        %8262 = vmatprep.subr.mxu0 0.0
        %8263 = vmatpush1.msra.mxu0 0.0
        %8264 = vmatprep.mubr.f32.mxu0 0.0
        %8265 = vmatmul.mubr.f32.gmra.mrb[0].mxu0 %v7303
        %v8266 = vpop.f32.mrb[0].mxu0
        %v8267 = vadd.f32 0.0, %v8266
        %v8268 = vpop.f32.mrb[0].mxu0
        %8269 = vmatprep.mubr.f32.mxu0 0.0
        %8270 = vmatmul.mubr.f32.gmra.mrb[0].mxu0 %v7306
        %v8271 = vpop.f32.mrb[0].mxu0
        %v8272 = vadd.f32 0.0, %v8271
        %v8273 = vpop.f32.mrb[0].mxu0
        %8274 = vmatprep.mubr.f32.mxu0 0.0
        %8275 = vmatmul.mubr.f32.gmra.mrb[0].mxu0 %v7309
        %v8276 = vpop.f32.mrb[0].mxu0
        %v8277 = vadd.f32 0.0, %v8276
        %v8278 = vpop.f32.mrb[0].mxu0
        %8279 = vmatprep.mubr.f32.mxu0 0.0
        %8280 = vmatmul.mubr.f32.gmra.mrb[0].mxu0 %v7312
        %v8281 = vpop.f32.mrb[0].mxu0
        %v8282 = vadd.f32 0.0, %v8281
        %v8283 = vpop.f32.mrb[0].mxu0
        %8284 = vmatprep.mubr.f32.mxu0 0.0
        %8285 = vmatmul.mubr.f32.gmra.mrb[0].mxu0 %v7315
        %v8286 = vpop.f32.mrb[0].mxu0
        %v8287 = vadd.f32 0.0, %v8286
        %v8288 = vpop.f32.mrb[0].mxu0
        %8289 = vmatprep.mubr.f32.mxu0 0.0
        %8290 = vmatmul.mubr.f32.gmra.mrb[0].mxu0 %v7318
        %v8291 = vpop.f32.mrb[0].mxu0
        %v8292 = vadd.f32 0.0, %v8291
        %v8293 = vpop.f32.mrb[0].mxu0
        %8294 = vmatprep.mubr.f32.mxu0 0.0
        %8295 = vmatmul.mubr.f32.gmra.mrb[0].mxu0 %v7321
        %v8296 = vpop.f32.mrb[0].mxu0
        %v8297 = vadd.f32 0.0, %v8296
        %v8298 = vpop.f32.mrb[0].mxu0
        %8299 = vmatprep.mubr.f32.mxu0 0.0
        %8300 = vmatmul.mubr.f32.gmra.mrb[0].mxu0 %v7324
        %v8301 = vpop.f32.mrb[0].mxu0
        %v8302 = vadd.f32 0.0, %v8301
        %v8303 = vpop.f32.mrb[0].mxu0
        %8304 = vdwg.mxu0
        %v8305 = vsel %vm694, %v8267, -inf
        %8306 = vmax.xlane.f32.xlu0 %v8305
        %v8307 = vpop.xlane.xlu0 %8306
        %v8308 = vsel %vm694, %v8272, -inf
        %8309 = vmax.xlane.f32.xlu0 %v8308
        %v8310 = vpop.xlane.xlu0 %8309
        %v8311 = vsel %vm694, %v8277, -inf
        %8312 = vmax.xlane.f32.xlu0 %v8311
        %v8313 = vpop.xlane.xlu0 %8312
        %v8314 = vsel %vm694, %v8282, -inf
        %8315 = vmax.xlane.f32.xlu0 %v8314
        %v8316 = vpop.xlane.xlu0 %8315
        %v8317 = vsel %vm694, %v8287, -inf
        %8318 = vmax.xlane.f32.xlu0 %v8317
        %v8319 = vpop.xlane.xlu0 %8318
        %v8320 = vsel %vm694, %v8292, -inf
        %8321 = vmax.xlane.f32.xlu0 %v8320
        %v8322 = vpop.xlane.xlu0 %8321
        %v8323 = vsel %vm694, %v8297, -inf
        %8324 = vmax.xlane.f32.xlu0 %v8323
        %v8325 = vpop.xlane.xlu0 %8324
        %v8326 = vsel %vm694, %v8302, -inf
        %8327 = vmax.xlane.f32.xlu0 %v8326
        %v8328 = vpop.xlane.xlu0 %8327
        %v8329 = vmax.f32 %v7884, %v8307
        %v8330 = vmax.f32 %v7885, %v8310
        %v8331 = vmax.f32 %v7886, %v8313
        %v8332 = vmax.f32 %v7887, %v8316
        %v8333 = vmax.f32 %v7888, %v8319
        %v8334 = vmax.f32 %v7889, %v8322
        %v8335 = vmax.f32 %v7890, %v8325
        %v8336 = vmax.f32 %v7891, %v8328
        %v8337 = vsub.f32 %v7884, %v8329
        %v8338 = vsub.f32 %v7885, %v8330
        %v8339 = vsub.f32 %v7886, %v8331
        %v8340 = vsub.f32 %v7887, %v8332
        %v8341 = vsub.f32 %v7888, %v8333
        %v8342 = vsub.f32 %v7889, %v8334
        %v8343 = vsub.f32 %v7890, %v8335
        %v8344 = vsub.f32 %v7891, %v8336
        %v8345 = vmul.f32 %v8337, 1.442695
        %v8346 = vpow.pop %v8345
        %v8347 = vmul.f32 %v8338, 1.442695
        %v8348 = vpow.pop %v8347
        %v8349 = vmul.f32 %v8339, 1.442695
        %v8350 = vpow.pop %v8349
        %v8351 = vmul.f32 %v8340, 1.442695
        %v8352 = vpow.pop %v8351
        %v8353 = vmul.f32 %v8341, 1.442695
        %v8354 = vpow.pop %v8353
        %v8355 = vmul.f32 %v8342, 1.442695
        %v8356 = vpow.pop %v8355
        %v8357 = vmul.f32 %v8343, 1.442695
        %v8358 = vpow.pop %v8357
        %v8359 = vmul.f32 %v8344, 1.442695
        %v8360 = vpow.pop %v8359
        %v8361 = vsub.f32 %v8267, %v8329
        %v8362 = vsub.f32 %v8272, %v8330
        %v8363 = vsub.f32 %v8277, %v8331
        %v8364 = vsub.f32 %v8282, %v8332
        %v8365 = vsub.f32 %v8287, %v8333
        %v8366 = vsub.f32 %v8292, %v8334
        %v8367 = vsub.f32 %v8297, %v8335
        %v8368 = vsub.f32 %v8302, %v8336
        %v8369 = vmul.f32 %v8361, 1.442695
        %v8370 = vpow.pop %v8369
        %v8371 = vmul.f32 %v8362, 1.442695
        %v8372 = vpow.pop %v8371
        %v8373 = vmul.f32 %v8363, 1.442695
        %v8374 = vpow.pop %v8373
        %v8375 = vmul.f32 %v8364, 1.442695
        %v8376 = vpow.pop %v8375
        %v8377 = vmul.f32 %v8365, 1.442695
        %v8378 = vpow.pop %v8377
        %v8379 = vmul.f32 %v8366, 1.442695
        %v8380 = vpow.pop %v8379
        %v8381 = vmul.f32 %v8367, 1.442695
        %v8382 = vpow.pop %v8381
        %v8383 = vmul.f32 %v8368, 1.442695
        %v8384 = vpow.pop %v8383
        %v8385 = vmul.f32 %v8346, %v7972
        %v8386 = vmul.f32 %v8348, %v7973
        %v8387 = vmul.f32 %v8350, %v7974
        %v8388 = vmul.f32 %v8352, %v7975
        %v8389 = vmul.f32 %v8354, %v7976
        %v8390 = vmul.f32 %v8356, %v7977
        %v8391 = vmul.f32 %v8358, %v7978
        %v8392 = vmul.f32 %v8360, %v7979
        %v8393 = vsel %vm694, %v8370, 0.0
        %8394 = vadd.xlane.f32.xlu0 %v8393
        %v8395 = vpop.xlane.xlu0 %8394
        %v8396 = vsel %vm694, %v8372, 0.0
        %8397 = vadd.xlane.f32.xlu0 %v8396
        %v8398 = vpop.xlane.xlu0 %8397
        %v8399 = vsel %vm694, %v8374, 0.0
        %8400 = vadd.xlane.f32.xlu0 %v8399
        %v8401 = vpop.xlane.xlu0 %8400
        %v8402 = vsel %vm694, %v8376, 0.0
        %8403 = vadd.xlane.f32.xlu0 %v8402
        %v8404 = vpop.xlane.xlu0 %8403
        %v8405 = vsel %vm694, %v8378, 0.0
        %8406 = vadd.xlane.f32.xlu0 %v8405
        %v8407 = vpop.xlane.xlu0 %8406
        %v8408 = vsel %vm694, %v8380, 0.0
        %8409 = vadd.xlane.f32.xlu0 %v8408
        %v8410 = vpop.xlane.xlu0 %8409
        %v8411 = vsel %vm694, %v8382, 0.0
        %8412 = vadd.xlane.f32.xlu0 %v8411
        %v8413 = vpop.xlane.xlu0 %8412
        %v8414 = vsel %vm694, %v8384, 0.0
        %8415 = vadd.xlane.f32.xlu0 %v8414
        %v8416 = vpop.xlane.xlu0 %8415
        %v8417 = vadd.f32 %v8385, %v8395
        %v8418 = vadd.f32 %v8386, %v8398
        %v8419 = vadd.f32 %v8387, %v8401
        %v8420 = vadd.f32 %v8388, %v8404
        %v8421 = vadd.f32 %v8389, %v8407
        %v8422 = vadd.f32 %v8390, %v8410
        %v8423 = vadd.f32 %v8391, %v8413
        %v8424 = vadd.f32 %v8392, %v8416
        %v8425 = vmul.f32 %v8346, %v8117
        %v8426 = vmul.f32 %v8348, %v8118
        %v8427 = vmul.f32 %v8350, %v8119
        %v8428 = vmul.f32 %v8352, %v8120
        %v8429 = vmul.f32 %v8354, %v8121
        %v8430 = vmul.f32 %v8356, %v8122
        %v8431 = vmul.f32 %v8358, %v8123
        %v8432 = vmul.f32 %v8360, %v8124
        %v8434 = vsel %vm694, %v8370, 0
        %v8437 = vsel %vm694, %v8372, 0
        %v8440 = vsel %vm694, %v8374, 0
        %v8443 = vsel %vm694, %v8376, 0
        %v8446 = vsel %vm694, %v8378, 0
        %v8449 = vsel %vm694, %v8380, 0
        %v8452 = vsel %vm694, %v8382, 0
        %v8455 = vsel %vm694, %v8384, 0
        %8457 = vmatprep.subr.mxu0 0.0
        %8458 = vmatpush1.msra.mxu0 %v7192
        %8459 = vmatprep.subr.mxu0 0.0
        %8460 = vmatpush1.msra.mxu0 %v7197
        %8461 = vmatprep.subr.mxu0 0.0
        %8462 = vmatpush1.msra.mxu0 0.0
        %8463 = vmatprep.subr.mxu0 0.0
        %8464 = vmatpush1.msra.mxu0 0.0
        %8465 = vmatprep.subr.mxu0 0.0
        %8466 = vmatpush1.msra.mxu0 0.0
        %8467 = vmatprep.subr.mxu0 0.0
        %8468 = vmatpush1.msra.mxu0 0.0
        %8469 = vmatprep.subr.mxu0 0.0
        %8470 = vmatpush1.msra.mxu0 0.0
        %8471 = vmatprep.subr.mxu0 0.0
        %8472 = vmatpush1.msra.mxu0 0.0
        %8473 = vmatprep.subr.mxu0 0.0
        %8474 = vmatpush1.msra.mxu0 0.0
        %8475 = vmatprep.subr.mxu0 0.0
        %8476 = vmatpush1.msra.mxu0 0.0
        %8477 = vmatprep.subr.mxu0 0.0
        %8478 = vmatpush1.msra.mxu0 0.0
        %8479 = vmatprep.subr.mxu0 0.0
        %8480 = vmatpush1.msra.mxu0 0.0
        %8481 = vmatprep.subr.mxu0 0.0
        %8482 = vmatpush1.msra.mxu0 0.0
        %8483 = vmatprep.subr.mxu0 0.0
        %8484 = vmatpush1.msra.mxu0 0.0
        %8485 = vmatprep.subr.mxu0 0.0
        %8486 = vmatpush1.msra.mxu0 0.0
        %8487 = vmatprep.subr.mxu0 0.0
        %8488 = vmatpush1.msra.mxu0 0.0
        %8489 = vmatprep.subr.mxu0 0.0
        %8490 = vmatpush1.msra.mxu0 0.0
        %8491 = vmatprep.subr.mxu0 0.0
        %8492 = vmatpush1.msra.mxu0 0.0
        %8493 = vmatprep.subr.mxu0 0.0
        %8494 = vmatpush1.msra.mxu0 0.0
        %8495 = vmatprep.subr.mxu0 0.0
        %8496 = vmatpush1.msra.mxu0 0.0
        %8497 = vmatprep.subr.mxu0 0.0
        %8498 = vmatpush1.msra.mxu0 0.0
        %8499 = vmatprep.subr.mxu0 0.0
        %8500 = vmatpush1.msra.mxu0 0.0
        %8501 = vmatprep.subr.mxu0 0.0
        %8502 = vmatpush1.msra.mxu0 0.0
        %8503 = vmatprep.subr.mxu0 0.0
        %8504 = vmatpush1.msra.mxu0 0.0
        %8505 = vmatprep.subr.mxu0 0.0
        %8506 = vmatpush1.msra.mxu0 0.0
        %8507 = vmatprep.subr.mxu0 0.0
        %8508 = vmatpush1.msra.mxu0 0.0
        %8509 = vmatprep.subr.mxu0 0.0
        %8510 = vmatpush1.msra.mxu0 0.0
        %8511 = vmatprep.subr.mxu0 0.0
        %8512 = vmatpush1.msra.mxu0 0.0
        %8513 = vmatprep.subr.mxu0 0.0
        %8514 = vmatpush1.msra.mxu0 0.0
        %8515 = vmatprep.subr.mxu0 0.0
        %8516 = vmatpush1.msra.mxu0 0.0
        %8517 = vmatprep.subr.mxu0 0.0
        %8518 = vmatpush1.msra.mxu0 0.0
        %8519 = vmatprep.subr.mxu0 0.0
        %8520 = vmatpush1.msra.mxu0 0.0
        %8521 = vmatprep.mubr.f32.mxu0 0.0
        %8522 = vmatmul.mubr.f32.gmra.mrb[0].mxu0 %v8434
        %v8523 = vpop.f32.mrb[0].mxu0
        %v8524 = vadd.f32 0.0, %v8523
        %v8525 = vpop.f32.mrb[0].mxu0
        %8526 = vmatprep.mubr.f32.mxu0 0.0
        %8527 = vmatmul.mubr.f32.gmra.mrb[0].mxu0 %v8437
        %v8528 = vpop.f32.mrb[0].mxu0
        %v8529 = vadd.f32 0.0, %v8528
        %v8530 = vpop.f32.mrb[0].mxu0
        %8531 = vmatprep.mubr.f32.mxu0 0.0
        %8532 = vmatmul.mubr.f32.gmra.mrb[0].mxu0 %v8440
        %v8533 = vpop.f32.mrb[0].mxu0
        %v8534 = vadd.f32 0.0, %v8533
        %v8535 = vpop.f32.mrb[0].mxu0
        %8536 = vmatprep.mubr.f32.mxu0 0.0
        %8537 = vmatmul.mubr.f32.gmra.mrb[0].mxu0 %v8443
        %v8538 = vpop.f32.mrb[0].mxu0
        %v8539 = vadd.f32 0.0, %v8538
        %v8540 = vpop.f32.mrb[0].mxu0
        %8541 = vmatprep.mubr.f32.mxu0 0.0
        %8542 = vmatmul.mubr.f32.gmra.mrb[0].mxu0 %v8446
        %v8543 = vpop.f32.mrb[0].mxu0
        %v8544 = vadd.f32 0.0, %v8543
        %v8545 = vpop.f32.mrb[0].mxu0
        %8546 = vmatprep.mubr.f32.mxu0 0.0
        %8547 = vmatmul.mubr.f32.gmra.mrb[0].mxu0 %v8449
        %v8548 = vpop.f32.mrb[0].mxu0
        %v8549 = vadd.f32 0.0, %v8548
        %v8550 = vpop.f32.mrb[0].mxu0
        %8551 = vmatprep.mubr.f32.mxu0 0.0
        %8552 = vmatmul.mubr.f32.gmra.mrb[0].mxu0 %v8452
        %v8553 = vpop.f32.mrb[0].mxu0
        %v8554 = vadd.f32 0.0, %v8553
        %v8555 = vpop.f32.mrb[0].mxu0
        %8556 = vmatprep.mubr.f32.mxu0 0.0
        %8557 = vmatmul.mubr.f32.gmra.mrb[0].mxu0 %v8455
        %v8558 = vpop.f32.mrb[0].mxu0
        %v8559 = vadd.f32 0.0, %v8558
        %v8560 = vpop.f32.mrb[0].mxu0
        %8561 = vdwg.mxu0
        %v8562 = vadd.f32 %v8425, %v8524
        %v8563 = vadd.f32 %v8426, %v8529
        %v8564 = vadd.f32 %v8427, %v8534
        %v8565 = vadd.f32 %v8428, %v8539
        %v8566 = vadd.f32 %v8429, %v8544
        %v8567 = vadd.f32 %v8430, %v8549
        %v8568 = vadd.f32 %v8431, %v8554
        %v8569 = vadd.f32 %v8432, %v8559
        %8570 = vmatprep.subr.mxu0 0.0
        %8571 = vmatpush1.msra.mxu0 %v7211
        %8572 = vmatprep.subr.mxu0 0.0
        %8573 = vmatpush1.msra.mxu0 %v7212
        %8574 = vmatprep.subr.mxu0 0.0
        %8575 = vmatpush1.msra.mxu0 %v7213
        %8576 = vmatprep.subr.mxu0 0.0
        %8577 = vmatpush1.msra.mxu0 %v7214
        %8578 = vmatprep.subr.mxu0 0.0
        %8579 = vmatpush1.msra.mxu0 %v7215
        %8580 = vmatprep.subr.mxu0 0.0
        %8581 = vmatpush1.msra.mxu0 %v7216
        %8582 = vmatprep.subr.mxu0 0.0
        %8583 = vmatpush1.msra.mxu0 %v7217
        %8584 = vmatprep.subr.mxu0 0.0
        %8585 = vmatpush1.msra.mxu0 %v7218
        %8586 = vmatprep.subr.mxu0 0.0
        %8587 = vmatpush1.msra.mxu0 %v7219
        %8588 = vmatprep.subr.mxu0 0.0
        %8589 = vmatpush1.msra.mxu0 %v7220
        %8590 = vmatprep.subr.mxu0 0.0
        %8591 = vmatpush1.msra.mxu0 %v7221
        %8592 = vmatprep.subr.mxu0 0.0
        %8593 = vmatpush1.msra.mxu0 %v7222
        %8594 = vmatprep.subr.mxu0 0.0
        %8595 = vmatpush1.msra.mxu0 %v7223
        %8596 = vmatprep.subr.mxu0 0.0
        %8597 = vmatpush1.msra.mxu0 %v7224
        %8598 = vmatprep.subr.mxu0 0.0
        %8599 = vmatpush1.msra.mxu0 %v7225
        %8600 = vmatprep.subr.mxu0 0.0
        %8601 = vmatpush1.msra.mxu0 %v7226
        %8602 = vmatprep.subr.mxu0 0.0
        %8603 = vmatpush1.msra.mxu0 0.0
        %8604 = vmatprep.subr.mxu0 0.0
        %8605 = vmatpush1.msra.mxu0 0.0
        %8606 = vmatprep.subr.mxu0 0.0
        %8607 = vmatpush1.msra.mxu0 0.0
        %8608 = vmatprep.subr.mxu0 0.0
        %8609 = vmatpush1.msra.mxu0 0.0
        %8610 = vmatprep.subr.mxu0 0.0
        %8611 = vmatpush1.msra.mxu0 0.0
        %8612 = vmatprep.subr.mxu0 0.0
        %8613 = vmatpush1.msra.mxu0 0.0
        %8614 = vmatprep.subr.mxu0 0.0
        %8615 = vmatpush1.msra.mxu0 0.0
        %8616 = vmatprep.subr.mxu0 0.0
        %8617 = vmatpush1.msra.mxu0 0.0
        %8618 = vmatprep.subr.mxu0 0.0
        %8619 = vmatpush1.msra.mxu0 0.0
        %8620 = vmatprep.subr.mxu0 0.0
        %8621 = vmatpush1.msra.mxu0 0.0
        %8622 = vmatprep.subr.mxu0 0.0
        %8623 = vmatpush1.msra.mxu0 0.0
        %8624 = vmatprep.subr.mxu0 0.0
        %8625 = vmatpush1.msra.mxu0 0.0
        %8626 = vmatprep.subr.mxu0 0.0
        %8627 = vmatpush1.msra.mxu0 0.0
        %8628 = vmatprep.subr.mxu0 0.0
        %8629 = vmatpush1.msra.mxu0 0.0
        %8630 = vmatprep.subr.mxu0 0.0
        %8631 = vmatpush1.msra.mxu0 0.0
        %8632 = vmatprep.subr.mxu0 0.0
        %8633 = vmatpush1.msra.mxu0 0.0
        %8634 = vmatprep.mubr.f32.mxu0 0.0
        %8635 = vmatmul.mubr.f32.gmra.mrb[0].mxu0 %v1970
        %v8636 = vpop.f32.mrb[0].mxu0
        %v8637 = vadd.f32 0.0, %v8636
        %v8638 = vpop.f32.mrb[0].mxu0
        %8639 = vmatprep.mubr.f32.mxu0 0.0
        %8640 = vmatmul.mubr.f32.gmra.mrb[0].mxu0 %v1971
        %v8641 = vpop.f32.mrb[0].mxu0
        %v8642 = vadd.f32 0.0, %v8641
        %v8643 = vpop.f32.mrb[0].mxu0
        %8644 = vdwg.mxu0
        %8645 = vmatprep.subr.mxu0 0.0
        %8646 = vmatpush1.msra.mxu0 %v8637
        %8647 = vmatprep.subr.mxu0 0.0
        %8648 = vmatpush1.msra.mxu0 %v8642
        %8649 = vmatprep.subr.mxu0 0.0
        %8650 = vmatpush1.msra.mxu0 0.0
        %8651 = vmatprep.subr.mxu0 0.0
        %8652 = vmatpush1.msra.mxu0 0.0
        %8653 = vmatprep.subr.mxu0 0.0
        %8654 = vmatpush1.msra.mxu0 0.0
        %8655 = vmatprep.subr.mxu0 0.0
        %8656 = vmatpush1.msra.mxu0 0.0
        %8657 = vmatprep.subr.mxu0 0.0
        %8658 = vmatpush1.msra.mxu0 0.0
        %8659 = vmatprep.subr.mxu0 0.0
        %8660 = vmatpush1.msra.mxu0 0.0
        %8661 = vmatprep.subr.mxu0 0.0
        %8662 = vmatpush1.msra.mxu0 0.0
        %8663 = vmatprep.subr.mxu0 0.0
        %8664 = vmatpush1.msra.mxu0 0.0
        %8665 = vmatprep.subr.mxu0 0.0
        %8666 = vmatpush1.msra.mxu0 0.0
        %8667 = vmatprep.subr.mxu0 0.0
        %8668 = vmatpush1.msra.mxu0 0.0
        %8669 = vmatprep.subr.mxu0 0.0
        %8670 = vmatpush1.msra.mxu0 0.0
        %8671 = vmatprep.subr.mxu0 0.0
        %8672 = vmatpush1.msra.mxu0 0.0
        %8673 = vmatprep.subr.mxu0 0.0
        %8674 = vmatpush1.msra.mxu0 0.0
        %8675 = vmatprep.subr.mxu0 0.0
        %8676 = vmatpush1.msra.mxu0 0.0
        %8677 = vmatprep.subr.mxu0 0.0
        %8678 = vmatpush1.msra.mxu0 0.0
        %8679 = vmatprep.subr.mxu0 0.0
        %8680 = vmatpush1.msra.mxu0 0.0
        %8681 = vmatprep.subr.mxu0 0.0
        %8682 = vmatpush1.msra.mxu0 0.0
        %8683 = vmatprep.subr.mxu0 0.0
        %8684 = vmatpush1.msra.mxu0 0.0
        %8685 = vmatprep.subr.mxu0 0.0
        %8686 = vmatpush1.msra.mxu0 0.0
        %8687 = vmatprep.subr.mxu0 0.0
        %8688 = vmatpush1.msra.mxu0 0.0
        %8689 = vmatprep.subr.mxu0 0.0
        %8690 = vmatpush1.msra.mxu0 0.0
        %8691 = vmatprep.subr.mxu0 0.0
        %8692 = vmatpush1.msra.mxu0 0.0
        %8693 = vmatprep.subr.mxu0 0.0
        %8694 = vmatpush1.msra.mxu0 0.0
        %8695 = vmatprep.subr.mxu0 0.0
        %8696 = vmatpush1.msra.mxu0 0.0
        %8697 = vmatprep.subr.mxu0 0.0
        %8698 = vmatpush1.msra.mxu0 0.0
        %8699 = vmatprep.subr.mxu0 0.0
        %8700 = vmatpush1.msra.mxu0 0.0
        %8701 = vmatprep.subr.mxu0 0.0
        %8702 = vmatpush1.msra.mxu0 0.0
        %8703 = vmatprep.subr.mxu0 0.0
        %8704 = vmatpush1.msra.mxu0 0.0
        %8705 = vmatprep.subr.mxu0 0.0
        %8706 = vmatpush1.msra.mxu0 0.0
        %8707 = vmatprep.subr.mxu0 0.0
        %8708 = vmatpush1.msra.mxu0 0.0
        %8709 = vmatprep.mubr.f32.mxu0 0.0
        %8710 = vmatmul.mubr.f32.gmra.mrb[0].mxu0 %v7303
        %v8711 = vpop.f32.mrb[0].mxu0
        %v8712 = vadd.f32 0.0, %v8711
        %v8713 = vpop.f32.mrb[0].mxu0
        %8714 = vmatprep.mubr.f32.mxu0 0.0
        %8715 = vmatmul.mubr.f32.gmra.mrb[0].mxu0 %v7306
        %v8716 = vpop.f32.mrb[0].mxu0
        %v8717 = vadd.f32 0.0, %v8716
        %v8718 = vpop.f32.mrb[0].mxu0
        %8719 = vmatprep.mubr.f32.mxu0 0.0
        %8720 = vmatmul.mubr.f32.gmra.mrb[0].mxu0 %v7309
        %v8721 = vpop.f32.mrb[0].mxu0
        %v8722 = vadd.f32 0.0, %v8721
        %v8723 = vpop.f32.mrb[0].mxu0
        %8724 = vmatprep.mubr.f32.mxu0 0.0
        %8725 = vmatmul.mubr.f32.gmra.mrb[0].mxu0 %v7312
        %v8726 = vpop.f32.mrb[0].mxu0
        %v8727 = vadd.f32 0.0, %v8726
        %v8728 = vpop.f32.mrb[0].mxu0
        %8729 = vmatprep.mubr.f32.mxu0 0.0
        %8730 = vmatmul.mubr.f32.gmra.mrb[0].mxu0 %v7315
        %v8731 = vpop.f32.mrb[0].mxu0
        %v8732 = vadd.f32 0.0, %v8731
        %v8733 = vpop.f32.mrb[0].mxu0
        %8734 = vmatprep.mubr.f32.mxu0 0.0
        %8735 = vmatmul.mubr.f32.gmra.mrb[0].mxu0 %v7318
        %v8736 = vpop.f32.mrb[0].mxu0
        %v8737 = vadd.f32 0.0, %v8736
        %v8738 = vpop.f32.mrb[0].mxu0
        %8739 = vmatprep.mubr.f32.mxu0 0.0
        %8740 = vmatmul.mubr.f32.gmra.mrb[0].mxu0 %v7321
        %v8741 = vpop.f32.mrb[0].mxu0
        %v8742 = vadd.f32 0.0, %v8741
        %v8743 = vpop.f32.mrb[0].mxu0
        %8744 = vmatprep.mubr.f32.mxu0 0.0
        %8745 = vmatmul.mubr.f32.gmra.mrb[0].mxu0 %v7324
        %v8746 = vpop.f32.mrb[0].mxu0
        %v8747 = vadd.f32 0.0, %v8746
        %v8748 = vpop.f32.mrb[0].mxu0
        %8749 = vdwg.mxu0
        %v8750 = vsel %vm694, %v8712, -inf
        %8751 = vmax.xlane.f32.xlu0 %v8750
        %v8752 = vpop.xlane.xlu0 %8751
        %v8753 = vsel %vm694, %v8717, -inf
        %8754 = vmax.xlane.f32.xlu0 %v8753
        %v8755 = vpop.xlane.xlu0 %8754
        %v8756 = vsel %vm694, %v8722, -inf
        %8757 = vmax.xlane.f32.xlu0 %v8756
        %v8758 = vpop.xlane.xlu0 %8757
        %v8759 = vsel %vm694, %v8727, -inf
        %8760 = vmax.xlane.f32.xlu0 %v8759
        %v8761 = vpop.xlane.xlu0 %8760
        %v8762 = vsel %vm694, %v8732, -inf
        %8763 = vmax.xlane.f32.xlu0 %v8762
        %v8764 = vpop.xlane.xlu0 %8763
        %v8765 = vsel %vm694, %v8737, -inf
        %8766 = vmax.xlane.f32.xlu0 %v8765
        %v8767 = vpop.xlane.xlu0 %8766
        %v8768 = vsel %vm694, %v8742, -inf
        %8769 = vmax.xlane.f32.xlu0 %v8768
        %v8770 = vpop.xlane.xlu0 %8769
        %v8771 = vsel %vm694, %v8747, -inf
        %8772 = vmax.xlane.f32.xlu0 %v8771
        %v8773 = vpop.xlane.xlu0 %8772
        %v8774 = vmax.f32 %v8329, %v8752
        %v8775 = vmax.f32 %v8330, %v8755
        %v8776 = vmax.f32 %v8331, %v8758
        %v8777 = vmax.f32 %v8332, %v8761
        %v8778 = vmax.f32 %v8333, %v8764
        %v8779 = vmax.f32 %v8334, %v8767
        %v8780 = vmax.f32 %v8335, %v8770
        %v8781 = vmax.f32 %v8336, %v8773
        %v8782 = vsub.f32 %v8329, %v8774
        %v8783 = vsub.f32 %v8330, %v8775
        %v8784 = vsub.f32 %v8331, %v8776
        %v8785 = vsub.f32 %v8332, %v8777
        %v8786 = vsub.f32 %v8333, %v8778
        %v8787 = vsub.f32 %v8334, %v8779
        %v8788 = vsub.f32 %v8335, %v8780
        %v8789 = vsub.f32 %v8336, %v8781
        %v8790 = vmul.f32 %v8782, 1.442695
        %v8791 = vpow.pop %v8790
        %v8792 = vmul.f32 %v8783, 1.442695
        %v8793 = vpow.pop %v8792
        %v8794 = vmul.f32 %v8784, 1.442695
        %v8795 = vpow.pop %v8794
        %v8796 = vmul.f32 %v8785, 1.442695
        %v8797 = vpow.pop %v8796
        %v8798 = vmul.f32 %v8786, 1.442695
        %v8799 = vpow.pop %v8798
        %v8800 = vmul.f32 %v8787, 1.442695
        %v8801 = vpow.pop %v8800
        %v8802 = vmul.f32 %v8788, 1.442695
        %v8803 = vpow.pop %v8802
        %v8804 = vmul.f32 %v8789, 1.442695
        %v8805 = vpow.pop %v8804
        %v8806 = vsub.f32 %v8712, %v8774
        %v8807 = vsub.f32 %v8717, %v8775
        %v8808 = vsub.f32 %v8722, %v8776
        %v8809 = vsub.f32 %v8727, %v8777
        %v8810 = vsub.f32 %v8732, %v8778
        %v8811 = vsub.f32 %v8737, %v8779
        %v8812 = vsub.f32 %v8742, %v8780
        %v8813 = vsub.f32 %v8747, %v8781
        %v8814 = vmul.f32 %v8806, 1.442695
        %v8815 = vpow.pop %v8814
        %v8816 = vmul.f32 %v8807, 1.442695
        %v8817 = vpow.pop %v8816
        %v8818 = vmul.f32 %v8808, 1.442695
        %v8819 = vpow.pop %v8818
        %v8820 = vmul.f32 %v8809, 1.442695
        %v8821 = vpow.pop %v8820
        %v8822 = vmul.f32 %v8810, 1.442695
        %v8823 = vpow.pop %v8822
        %v8824 = vmul.f32 %v8811, 1.442695
        %v8825 = vpow.pop %v8824
        %v8826 = vmul.f32 %v8812, 1.442695
        %v8827 = vpow.pop %v8826
        %v8828 = vmul.f32 %v8813, 1.442695
        %v8829 = vpow.pop %v8828
        %v8830 = vmul.f32 %v8791, %v8417
        %v8831 = vmul.f32 %v8793, %v8418
        %v8832 = vmul.f32 %v8795, %v8419
        %v8833 = vmul.f32 %v8797, %v8420
        %v8834 = vmul.f32 %v8799, %v8421
        %v8835 = vmul.f32 %v8801, %v8422
        %v8836 = vmul.f32 %v8803, %v8423
        %v8837 = vmul.f32 %v8805, %v8424
        %v8838 = vsel %vm694, %v8815, 0.0
        %8839 = vadd.xlane.f32.xlu0 %v8838
        %v8840 = vpop.xlane.xlu0 %8839
        %v8841 = vsel %vm694, %v8817, 0.0
        %8842 = vadd.xlane.f32.xlu0 %v8841
        %v8843 = vpop.xlane.xlu0 %8842
        %v8844 = vsel %vm694, %v8819, 0.0
        %8845 = vadd.xlane.f32.xlu0 %v8844
        %v8846 = vpop.xlane.xlu0 %8845
        %v8847 = vsel %vm694, %v8821, 0.0
        %8848 = vadd.xlane.f32.xlu0 %v8847
        %v8849 = vpop.xlane.xlu0 %8848
        %v8850 = vsel %vm694, %v8823, 0.0
        %8851 = vadd.xlane.f32.xlu0 %v8850
        %v8852 = vpop.xlane.xlu0 %8851
        %v8853 = vsel %vm694, %v8825, 0.0
        %8854 = vadd.xlane.f32.xlu0 %v8853
        %v8855 = vpop.xlane.xlu0 %8854
        %v8856 = vsel %vm694, %v8827, 0.0
        %8857 = vadd.xlane.f32.xlu0 %v8856
        %v8858 = vpop.xlane.xlu0 %8857
        %v8859 = vsel %vm694, %v8829, 0.0
        %8860 = vadd.xlane.f32.xlu0 %v8859
        %v8861 = vpop.xlane.xlu0 %8860
        %v8862 = vadd.f32 %v8830, %v8840
        %v8863 = vadd.f32 %v8831, %v8843
        %v8864 = vadd.f32 %v8832, %v8846
        %v8865 = vadd.f32 %v8833, %v8849
        %v8866 = vadd.f32 %v8834, %v8852
        %v8867 = vadd.f32 %v8835, %v8855
        %v8868 = vadd.f32 %v8836, %v8858
        %v8869 = vadd.f32 %v8837, %v8861
        %v8870 = vmul.f32 %v8791, %v8562
        %v8871 = vmul.f32 %v8793, %v8563
        %v8872 = vmul.f32 %v8795, %v8564
        %v8873 = vmul.f32 %v8797, %v8565
        %v8874 = vmul.f32 %v8799, %v8566
        %v8875 = vmul.f32 %v8801, %v8567
        %v8876 = vmul.f32 %v8803, %v8568
        %v8877 = vmul.f32 %v8805, %v8569
        %v8879 = vsel %vm694, %v8815, 0
        %v8882 = vsel %vm694, %v8817, 0
        %v8885 = vsel %vm694, %v8819, 0
        %v8888 = vsel %vm694, %v8821, 0
        %v8891 = vsel %vm694, %v8823, 0
        %v8894 = vsel %vm694, %v8825, 0
        %v8897 = vsel %vm694, %v8827, 0
        %v8900 = vsel %vm694, %v8829, 0
        %8902 = vmatprep.subr.mxu0 0.0
        %8903 = vmatpush1.msra.mxu0 %v7202
        %8904 = vmatprep.subr.mxu0 0.0
        %8905 = vmatpush1.msra.mxu0 %v7207
        %8906 = vmatprep.subr.mxu0 0.0
        %8907 = vmatpush1.msra.mxu0 0.0
        %8908 = vmatprep.subr.mxu0 0.0
        %8909 = vmatpush1.msra.mxu0 0.0
        %8910 = vmatprep.subr.mxu0 0.0
        %8911 = vmatpush1.msra.mxu0 0.0
        %8912 = vmatprep.subr.mxu0 0.0
        %8913 = vmatpush1.msra.mxu0 0.0
        %8914 = vmatprep.subr.mxu0 0.0
        %8915 = vmatpush1.msra.mxu0 0.0
        %8916 = vmatprep.subr.mxu0 0.0
        %8917 = vmatpush1.msra.mxu0 0.0
        %8918 = vmatprep.subr.mxu0 0.0
        %8919 = vmatpush1.msra.mxu0 0.0
        %8920 = vmatprep.subr.mxu0 0.0
        %8921 = vmatpush1.msra.mxu0 0.0
        %8922 = vmatprep.subr.mxu0 0.0
        %8923 = vmatpush1.msra.mxu0 0.0
        %8924 = vmatprep.subr.mxu0 0.0
        %8925 = vmatpush1.msra.mxu0 0.0
        %8926 = vmatprep.subr.mxu0 0.0
        %8927 = vmatpush1.msra.mxu0 0.0
        %8928 = vmatprep.subr.mxu0 0.0
        %8929 = vmatpush1.msra.mxu0 0.0
        %8930 = vmatprep.subr.mxu0 0.0
        %8931 = vmatpush1.msra.mxu0 0.0
        %8932 = vmatprep.subr.mxu0 0.0
        %8933 = vmatpush1.msra.mxu0 0.0
        %8934 = vmatprep.subr.mxu0 0.0
        %8935 = vmatpush1.msra.mxu0 0.0
        %8936 = vmatprep.subr.mxu0 0.0
        %8937 = vmatpush1.msra.mxu0 0.0
        %8938 = vmatprep.subr.mxu0 0.0
        %8939 = vmatpush1.msra.mxu0 0.0
        %8940 = vmatprep.subr.mxu0 0.0
        %8941 = vmatpush1.msra.mxu0 0.0
        %8942 = vmatprep.subr.mxu0 0.0
        %8943 = vmatpush1.msra.mxu0 0.0
        %8944 = vmatprep.subr.mxu0 0.0
        %8945 = vmatpush1.msra.mxu0 0.0
        %8946 = vmatprep.subr.mxu0 0.0
        %8947 = vmatpush1.msra.mxu0 0.0
        %8948 = vmatprep.subr.mxu0 0.0
        %8949 = vmatpush1.msra.mxu0 0.0
        %8950 = vmatprep.subr.mxu0 0.0
        %8951 = vmatpush1.msra.mxu0 0.0
        %8952 = vmatprep.subr.mxu0 0.0
        %8953 = vmatpush1.msra.mxu0 0.0
        %8954 = vmatprep.subr.mxu0 0.0
        %8955 = vmatpush1.msra.mxu0 0.0
        %8956 = vmatprep.subr.mxu0 0.0
        %8957 = vmatpush1.msra.mxu0 0.0
        %8958 = vmatprep.subr.mxu0 0.0
        %8959 = vmatpush1.msra.mxu0 0.0
        %8960 = vmatprep.subr.mxu0 0.0
        %8961 = vmatpush1.msra.mxu0 0.0
        %8962 = vmatprep.subr.mxu0 0.0
        %8963 = vmatpush1.msra.mxu0 0.0
        %8964 = vmatprep.subr.mxu0 0.0
        %8965 = vmatpush1.msra.mxu0 0.0
        %8966 = vmatprep.mubr.f32.mxu0 0.0
        %8967 = vmatmul.mubr.f32.gmra.mrb[0].mxu0 %v8879
        %v8968 = vpop.f32.mrb[0].mxu0
        %v8969 = vadd.f32 0.0, %v8968
        %v8970 = vpop.f32.mrb[0].mxu0
        %8971 = vmatprep.mubr.f32.mxu0 0.0
        %8972 = vmatmul.mubr.f32.gmra.mrb[0].mxu0 %v8882
        %v8973 = vpop.f32.mrb[0].mxu0
        %v8974 = vadd.f32 0.0, %v8973
        %v8975 = vpop.f32.mrb[0].mxu0
        %8976 = vmatprep.mubr.f32.mxu0 0.0
        %8977 = vmatmul.mubr.f32.gmra.mrb[0].mxu0 %v8885
        %v8978 = vpop.f32.mrb[0].mxu0
        %v8979 = vadd.f32 0.0, %v8978
        %v8980 = vpop.f32.mrb[0].mxu0
        %8981 = vmatprep.mubr.f32.mxu0 0.0
        %8982 = vmatmul.mubr.f32.gmra.mrb[0].mxu0 %v8888
        %v8983 = vpop.f32.mrb[0].mxu0
        %v8984 = vadd.f32 0.0, %v8983
        %v8985 = vpop.f32.mrb[0].mxu0
        %8986 = vmatprep.mubr.f32.mxu0 0.0
        %8987 = vmatmul.mubr.f32.gmra.mrb[0].mxu0 %v8891
        %v8988 = vpop.f32.mrb[0].mxu0
        %v8989 = vadd.f32 0.0, %v8988
        %v8990 = vpop.f32.mrb[0].mxu0
        %8991 = vmatprep.mubr.f32.mxu0 0.0
        %8992 = vmatmul.mubr.f32.gmra.mrb[0].mxu0 %v8894
        %v8993 = vpop.f32.mrb[0].mxu0
        %v8994 = vadd.f32 0.0, %v8993
        %v8995 = vpop.f32.mrb[0].mxu0
        %8996 = vmatprep.mubr.f32.mxu0 0.0
        %8997 = vmatmul.mubr.f32.gmra.mrb[0].mxu0 %v8897
        %v8998 = vpop.f32.mrb[0].mxu0
        %v8999 = vadd.f32 0.0, %v8998
        %v9000 = vpop.f32.mrb[0].mxu0
        %9001 = vmatprep.mubr.f32.mxu0 0.0
        %9002 = vmatmul.mubr.f32.gmra.mrb[0].mxu0 %v8900
        %v9003 = vpop.f32.mrb[0].mxu0
        %v9004 = vadd.f32 0.0, %v9003
        %v9005 = vpop.f32.mrb[0].mxu0
        %9006 = vdwg.mxu0
        %v9007 = vadd.f32 %v8870, %v8969
        %v9008 = vadd.f32 %v8871, %v8974
        %v9009 = vadd.f32 %v8872, %v8979
        %v9010 = vadd.f32 %v8873, %v8984
        %v9011 = vadd.f32 %v8874, %v8989
        %v9012 = vadd.f32 %v8875, %v8994
        %v9013 = vadd.f32 %v8876, %v8999
        %v9014 = vadd.f32 %v8877, %v9004
        %v9015 = vrcp.pop %v8862
        %v9016 = vmul.f32 %v9007, %v9015
        %v9017 = vrcp.pop %v8863
        %v9018 = vmul.f32 %v9008, %v9017
        %v9019 = vrcp.pop %v8864
        %v9020 = vmul.f32 %v9009, %v9019
        %v9021 = vrcp.pop %v8865
        %v9022 = vmul.f32 %v9010, %v9021
        %v9023 = vrcp.pop %v8866
        %v9024 = vmul.f32 %v9011, %v9023
        %v9025 = vrcp.pop %v8867
        %v9026 = vmul.f32 %v9012, %v9025
        %v9027 = vrcp.pop %v8868
        %v9028 = vmul.f32 %v9013, %v9027
        %v9029 = vrcp.pop %v8869
        %v9030 = vmul.f32 %v9014, %v9029
        %s9031 = scalar_lea.vmem %s5, 48
        %v9032 = vld [vmem:[%s9031] sm:$0xff]
        %v9033 = vld [vmem:[%s9031 + $0x8] sm:$0xff]
        %v9035 = vsel %vm694, %v9016, 0
        %v9038 = vsel %vm694, %v9018, 0
        %v9041 = vsel %vm694, %v9020, 0
        %v9044 = vsel %vm694, %v9022, 0
        %v9047 = vsel %vm694, %v9024, 0
        %v9050 = vsel %vm694, %v9026, 0
        %v9053 = vsel %vm694, %v9028, 0
        %v9056 = vsel %vm694, %v9030, 0
        %9058 = vmatprep.subr.mxu0 0.0
        %9059 = vmatpush1.msra.mxu0 %v9032
        %9060 = vmatprep.subr.mxu0 0.0
        %9061 = vmatpush1.msra.mxu0 %v9033
        %9062 = vmatprep.subr.mxu0 0.0
        %9063 = vmatpush1.msra.mxu0 0.0
        %9064 = vmatprep.subr.mxu0 0.0
        %9065 = vmatpush1.msra.mxu0 0.0
        %9066 = vmatprep.subr.mxu0 0.0
        %9067 = vmatpush1.msra.mxu0 0.0
        %9068 = vmatprep.subr.mxu0 0.0
        %9069 = vmatpush1.msra.mxu0 0.0
        %9070 = vmatprep.subr.mxu0 0.0
        %9071 = vmatpush1.msra.mxu0 0.0
        %9072 = vmatprep.subr.mxu0 0.0
        %9073 = vmatpush1.msra.mxu0 0.0
        %9074 = vmatprep.subr.mxu0 0.0
        %9075 = vmatpush1.msra.mxu0 0.0
        %9076 = vmatprep.subr.mxu0 0.0
        %9077 = vmatpush1.msra.mxu0 0.0
        %9078 = vmatprep.subr.mxu0 0.0
        %9079 = vmatpush1.msra.mxu0 0.0
        %9080 = vmatprep.subr.mxu0 0.0
        %9081 = vmatpush1.msra.mxu0 0.0
        %9082 = vmatprep.subr.mxu0 0.0
        %9083 = vmatpush1.msra.mxu0 0.0
        %9084 = vmatprep.subr.mxu0 0.0
        %9085 = vmatpush1.msra.mxu0 0.0
        %9086 = vmatprep.subr.mxu0 0.0
        %9087 = vmatpush1.msra.mxu0 0.0
        %9088 = vmatprep.subr.mxu0 0.0
        %9089 = vmatpush1.msra.mxu0 0.0
        %9090 = vmatprep.subr.mxu0 0.0
        %9091 = vmatpush1.msra.mxu0 0.0
        %9092 = vmatprep.subr.mxu0 0.0
        %9093 = vmatpush1.msra.mxu0 0.0
        %9094 = vmatprep.subr.mxu0 0.0
        %9095 = vmatpush1.msra.mxu0 0.0
        %9096 = vmatprep.subr.mxu0 0.0
        %9097 = vmatpush1.msra.mxu0 0.0
        %9098 = vmatprep.subr.mxu0 0.0
        %9099 = vmatpush1.msra.mxu0 0.0
        %9100 = vmatprep.subr.mxu0 0.0
        %9101 = vmatpush1.msra.mxu0 0.0
        %9102 = vmatprep.subr.mxu0 0.0
        %9103 = vmatpush1.msra.mxu0 0.0
        %9104 = vmatprep.subr.mxu0 0.0
        %9105 = vmatpush1.msra.mxu0 0.0
        %9106 = vmatprep.subr.mxu0 0.0
        %9107 = vmatpush1.msra.mxu0 0.0
        %9108 = vmatprep.subr.mxu0 0.0
        %9109 = vmatpush1.msra.mxu0 0.0
        %9110 = vmatprep.subr.mxu0 0.0
        %9111 = vmatpush1.msra.mxu0 0.0
        %9112 = vmatprep.subr.mxu0 0.0
        %9113 = vmatpush1.msra.mxu0 0.0
        %9114 = vmatprep.subr.mxu0 0.0
        %9115 = vmatpush1.msra.mxu0 0.0
        %9116 = vmatprep.subr.mxu0 0.0
        %9117 = vmatpush1.msra.mxu0 0.0
        %9118 = vmatprep.subr.mxu0 0.0
        %9119 = vmatpush1.msra.mxu0 0.0
        %9120 = vmatprep.subr.mxu0 0.0
        %9121 = vmatpush1.msra.mxu0 0.0
        %9122 = vmatprep.mubr.f32.mxu0 0.0
        %9123 = vmatmul.mubr.f32.gmra.mrb[0].mxu0 %v9035
        %v9124 = vpop.f32.mrb[0].mxu0
        %v9125 = vadd.f32 0.0, %v9124
        %v9126 = vpop.f32.mrb[0].mxu0
        %9127 = vmatprep.mubr.f32.mxu0 0.0
        %9128 = vmatmul.mubr.f32.gmra.mrb[0].mxu0 %v9038
        %v9129 = vpop.f32.mrb[0].mxu0
        %v9130 = vadd.f32 0.0, %v9129
        %v9131 = vpop.f32.mrb[0].mxu0
        %9132 = vmatprep.mubr.f32.mxu0 0.0
        %9133 = vmatmul.mubr.f32.gmra.mrb[0].mxu0 %v9041
        %v9134 = vpop.f32.mrb[0].mxu0
        %v9135 = vadd.f32 0.0, %v9134
        %v9136 = vpop.f32.mrb[0].mxu0
        %9137 = vmatprep.mubr.f32.mxu0 0.0
        %9138 = vmatmul.mubr.f32.gmra.mrb[0].mxu0 %v9044
        %v9139 = vpop.f32.mrb[0].mxu0
        %v9140 = vadd.f32 0.0, %v9139
        %v9141 = vpop.f32.mrb[0].mxu0
        %9142 = vmatprep.mubr.f32.mxu0 0.0
        %9143 = vmatmul.mubr.f32.gmra.mrb[0].mxu0 %v9047
        %v9144 = vpop.f32.mrb[0].mxu0
        %v9145 = vadd.f32 0.0, %v9144
        %v9146 = vpop.f32.mrb[0].mxu0
        %9147 = vmatprep.mubr.f32.mxu0 0.0
        %9148 = vmatmul.mubr.f32.gmra.mrb[0].mxu0 %v9050
        %v9149 = vpop.f32.mrb[0].mxu0
        %v9150 = vadd.f32 0.0, %v9149
        %v9151 = vpop.f32.mrb[0].mxu0
        %9152 = vmatprep.mubr.f32.mxu0 0.0
        %9153 = vmatmul.mubr.f32.gmra.mrb[0].mxu0 %v9053
        %v9154 = vpop.f32.mrb[0].mxu0
        %v9155 = vadd.f32 0.0, %v9154
        %v9156 = vpop.f32.mrb[0].mxu0
        %9157 = vmatprep.mubr.f32.mxu0 0.0
        %9158 = vmatmul.mubr.f32.gmra.mrb[0].mxu0 %v9056
        %v9159 = vpop.f32.mrb[0].mxu0
        %v9160 = vadd.f32 0.0, %v9159
        %v9161 = vpop.f32.mrb[0].mxu0
        %9162 = vdwg.mxu0
        %v9163 = vadd.f32 %v6958, %v9125
        %v9164 = vadd.f32 %v6959, %v9130
        %v9165 = vadd.f32 %v6960, %v9135
        %v9166 = vadd.f32 %v6961, %v9140
        %v9167 = vadd.f32 %v6962, %v9145
        %v9168 = vadd.f32 %v6963, %v9150
        %v9169 = vadd.f32 %v6964, %v9155
        %v9170 = vadd.f32 %v6965, %v9160
        %v9171 = vld [vmem:[%s6] sm:$0x1]
        %v9173 = vlaneseq
        %v9174 = vshrl.u32 %v9173, 7
        %v9175 = vsub.s32 0, %v9174
        %v9176 = vrot.slane %v9171, %v9175
        %v9178 = vadd.f32 %v9163, %v9176
        %v9179 = vadd.f32 %v9164, %v9176
        %v9180 = vadd.f32 %v9165, %v9176
        %v9181 = vadd.f32 %v9166, %v9176
        %v9182 = vadd.f32 %v9167, %v9176
        %v9183 = vadd.f32 %v9168, %v9176
        %v9184 = vadd.f32 %v9169, %v9176
        %v9185 = vadd.f32 %v9170, %v9176
        %9186 = vadd.xlane.f32.xlu0 %v9178
        %v9187 = vpop.xlane.xlu0 %9186
        %9188 = vadd.xlane.f32.xlu0 %v9179
        %v9189 = vpop.xlane.xlu0 %9188
        %9190 = vadd.xlane.f32.xlu0 %v9180
        %v9191 = vpop.xlane.xlu0 %9190
        %9192 = vadd.xlane.f32.xlu0 %v9181
        %v9193 = vpop.xlane.xlu0 %9192
        %9194 = vadd.xlane.f32.xlu0 %v9182
        %v9195 = vpop.xlane.xlu0 %9194
        %9196 = vadd.xlane.f32.xlu0 %v9183
        %v9197 = vpop.xlane.xlu0 %9196
        %9198 = vadd.xlane.f32.xlu0 %v9184
        %v9199 = vpop.xlane.xlu0 %9198
        %9200 = vadd.xlane.f32.xlu0 %v9185
        %v9201 = vpop.xlane.xlu0 %9200
        %v9202 = vrcp.pop 128.0
        %v9203 = vmul.f32 %v9187, %v9202
        %v9204 = vmul.f32 %v9189, %v9202
        %v9205 = vmul.f32 %v9191, %v9202
        %v9206 = vmul.f32 %v9193, %v9202
        %v9207 = vmul.f32 %v9195, %v9202
        %v9208 = vmul.f32 %v9197, %v9202
        %v9209 = vmul.f32 %v9199, %v9202
        %v9210 = vmul.f32 %v9201, %v9202
        %v9211 = vsub.f32 %v9178, %v9203
        %v9212 = vsub.f32 %v9179, %v9204
        %v9213 = vsub.f32 %v9180, %v9205
        %v9214 = vsub.f32 %v9181, %v9206
        %v9215 = vsub.f32 %v9182, %v9207
        %v9216 = vsub.f32 %v9183, %v9208
        %v9217 = vsub.f32 %v9184, %v9209
        %v9218 = vsub.f32 %v9185, %v9210
        %v9219 = vmul.f32 %v9211, %v9211
        %v9220 = vmul.f32 %v9212, %v9212
        %v9221 = vmul.f32 %v9213, %v9213
        %v9222 = vmul.f32 %v9214, %v9214
        %v9223 = vmul.f32 %v9215, %v9215
        %v9224 = vmul.f32 %v9216, %v9216
        %v9225 = vmul.f32 %v9217, %v9217
        %v9226 = vmul.f32 %v9218, %v9218
        %9227 = vadd.xlane.f32.xlu0 %v9219
        %v9228 = vpop.xlane.xlu0 %9227
        %9229 = vadd.xlane.f32.xlu0 %v9220
        %v9230 = vpop.xlane.xlu0 %9229
        %9231 = vadd.xlane.f32.xlu0 %v9221
        %v9232 = vpop.xlane.xlu0 %9231
        %9233 = vadd.xlane.f32.xlu0 %v9222
        %v9234 = vpop.xlane.xlu0 %9233
        %9235 = vadd.xlane.f32.xlu0 %v9223
        %v9236 = vpop.xlane.xlu0 %9235
        %9237 = vadd.xlane.f32.xlu0 %v9224
        %v9238 = vpop.xlane.xlu0 %9237
        %9239 = vadd.xlane.f32.xlu0 %v9225
        %v9240 = vpop.xlane.xlu0 %9239
        %9241 = vadd.xlane.f32.xlu0 %v9226
        %v9242 = vpop.xlane.xlu0 %9241
        %v9243 = vmul.f32 %v9228, %v9202
        %v9244 = vmul.f32 %v9230, %v9202
        %v9245 = vmul.f32 %v9232, %v9202
        %v9246 = vmul.f32 %v9234, %v9202
        %v9247 = vmul.f32 %v9236, %v9202
        %v9248 = vmul.f32 %v9238, %v9202
        %v9249 = vmul.f32 %v9240, %v9202
        %v9250 = vmul.f32 %v9242, %v9202
        %v9251 = vadd.f32 %v9243, 1e-05
        %v9252 = vadd.f32 %v9244, 1e-05
        %v9253 = vadd.f32 %v9245, 1e-05
        %v9254 = vadd.f32 %v9246, 1e-05
        %v9255 = vadd.f32 %v9247, 1e-05
        %v9256 = vadd.f32 %v9248, 1e-05
        %v9257 = vadd.f32 %v9249, 1e-05
        %v9258 = vadd.f32 %v9250, 1e-05
        %v9259 = vrsqrt.pop %v9251
        %v9260 = vrsqrt.pop %v9252
        %v9261 = vrsqrt.pop %v9253
        %v9262 = vrsqrt.pop %v9254
        %v9263 = vrsqrt.pop %v9255
        %v9264 = vrsqrt.pop %v9256
        %v9265 = vrsqrt.pop %v9257
        %v9266 = vrsqrt.pop %v9258
        %v9267 = vmul.f32 %v9211, %v9259
        %v9268 = vmul.f32 %v9212, %v9260
        %v9269 = vmul.f32 %v9213, %v9261
        %v9270 = vmul.f32 %v9214, %v9262
        %v9271 = vmul.f32 %v9215, %v9263
        %v9272 = vmul.f32 %v9216, %v9264
        %v9273 = vmul.f32 %v9217, %v9265
        %v9274 = vmul.f32 %v9218, %v9266
        %v9275 = vld [vmem:[%s7] sm:$0x1]
        %v9277 = vlaneseq
        %v9278 = vshrl.u32 %v9277, 7
        %v9279 = vsub.s32 0, %v9278
        %v9280 = vrot.slane %v9275, %v9279
        %v9282 = vmul.f32 %v9267, %v9280
        %v9283 = vmul.f32 %v9268, %v9280
        %v9284 = vmul.f32 %v9269, %v9280
        %v9285 = vmul.f32 %v9270, %v9280
        %v9286 = vmul.f32 %v9271, %v9280
        %v9287 = vmul.f32 %v9272, %v9280
        %v9288 = vmul.f32 %v9273, %v9280
        %v9289 = vmul.f32 %v9274, %v9280
        %v9290 = vld [vmem:[%s8] sm:$0x1]
        %v9292 = vlaneseq
        %v9293 = vshrl.u32 %v9292, 7
        %v9294 = vsub.s32 0, %v9293
        %v9295 = vrot.slane %v9290, %v9294
        %v9297 = vadd.f32 %v9282, %v9295
        %v9298 = vadd.f32 %v9283, %v9295
        %v9299 = vadd.f32 %v9284, %v9295
        %v9300 = vadd.f32 %v9285, %v9295
        %v9301 = vadd.f32 %v9286, %v9295
        %v9302 = vadd.f32 %v9287, %v9295
        %v9303 = vadd.f32 %v9288, %v9295
        %v9304 = vadd.f32 %v9289, %v9295
        %v9305 = vadd.f32 %v9297, %v351
        %v9306 = vadd.f32 %v9298, %v352
        %v9307 = vadd.f32 %v9299, %v353
        %v9308 = vadd.f32 %v9300, %v354
        %v9309 = vadd.f32 %v9301, %v355
        %v9310 = vadd.f32 %v9302, %v356
        %v9311 = vadd.f32 %v9303, %v357
        %v9312 = vadd.f32 %v9304, %v358
        %9313 = vst [vmem:[%s340] sm:$0xff] %v9305
        %9314 = vst [vmem:[%s340 + $0x8] sm:$0xff] %v9306
        %9315 = vst [vmem:[%s340 + $0x10] sm:$0xff] %v9307
        %9316 = vst [vmem:[%s340 + $0x18] sm:$0xff] %v9308
        %9317 = vst [vmem:[%s340 + $0x20] sm:$0xff] %v9309
        %9318 = vst [vmem:[%s340 + $0x28] sm:$0xff] %v9310
        %9319 = vst [vmem:[%s340 + $0x30] sm:$0xff] %v9311
        %9320 = vst [vmem:[%s340 + $0x38] sm:$0xff] %v9312
        %s9321 = sand.u32 %s230, 1
        %s9322 = scalar_lea.sflag [#allocation3], %s9321
        %s9323 = sand.u32 %s230, 1
        %s9324 = smul.addr %s9323, 64
        %s9325 = scalar_lea.vmem [#allocation2], %s9324
        // Predicated region
        $region57: #{tpu_custom_call.1} parent=55 // pred_check
          %p9326 = pneg %p240
        $region58: #{tpu_custom_call.1} parent=55 // pred_check_branch
          %9328 = sbr.rel (%p9326) target = $region60
        $region59: #{tpu_custom_call.1} parent=55 // pred_region
          %s9330 = ssub.s32 1024, 1024
          %9331 = vsyncadd %s9322, %s9330
          %s9332 = smul.addr %s23, 8
          %s9333 = smul.addr %s9332, 128
          %s9334 = scalar_lea.hbm %s9, %s9333
          %s9335 = sshll.u32 %s9325, 4
          %s9336 = int_to_ptr.vmem [resolvable:$true] %s9335
          %9341 = dma.vmem_to_hbm [thread:$0]  %s9336, 1024, %s9334, %s9322, 128, 128, 8
        $region60: #{tpu_custom_call.1} parent=55 // pred_fallthru
          _
      $region56: #{tpu_custom_call.1} parent=5 // pred_fallthru
        _
      %p9342 = scmp.le.s32.totalorder 2, %s18
      // Predicated region
      $region61: #{tpu_custom_call.1} parent=5 // pred_check
        %p9343 = pneg %p9342
      $region62: #{tpu_custom_call.1} parent=5 // pred_check_branch
        %9345 = sbr.rel (%p9343) target = $region64
      $region63: #{tpu_custom_call.1} parent=5 // pred_region
        %s9346 = ssub.s32 %s18, 2
        // Predicated region
        $region65: #{tpu_custom_call.1} parent=63 // pred_check
          %p9347 = pneg %p246
        $region66: #{tpu_custom_call.1} parent=63 // pred_check_branch
          %9349 = sbr.rel (%p9347) target = $region68
        $region67: #{tpu_custom_call.1} parent=63 // pred_region
          %s9350 = sand.u32 %s231, 1
          %s9351 = scalar_lea.sflag [#allocation3], %s9350
          %s9352 = sand.u32 %s231, 1
          %s9353 = smul.addr %s9352, 64
          %s9354 = scalar_lea.vmem [#allocation2], %s9353
          %9355 = dma.done %s9351, 1024
        $region68: #{tpu_custom_call.1} parent=63 // pred_fallthru
          _
      $region64: #{tpu_custom_call.1} parent=5 // pred_fallthru
        _
    $region6: #{tpu_custom_call.1} parent=1 // loop_footer
      %s22 = sadd.s32 1, %s18
    $region7: #{tpu_custom_call.1} parent=1 // loop_footer_branch
      %17 = sbr.rel target = $region3
    $region8: #{tpu_custom_call.1} parent=1 // loop_exit
      _
    %9356 = vsyncpa [#allocation3], 1
    %s9357 = scalar_lea.sflag [#allocation3], 1
    %9358 = vsyncpa %s9357, 1

</llo_original>
